<compile_context>
chip_gen: v7x
topology: tpu7x:2x2x1
jax: 0.10.0
libtpu: 0.0.40
codegen_flags: <defaults>
</compile_context>

<pallas_src>
import math
import functools
import numpy as np

import jax
import jax.numpy as jnp
from jax import lax
from jax.experimental import pallas as pl
from jax.experimental.pallas import tpu as pltpu


# ----------------------------- Pallas kernel ------------------------------ #

def _fakd_flow_kernel(temb_ref, w1_ref, gamma_ref, beta_ref, w2_ref,
                      x_ref, out_ref, *, C, H, W, HPAD, WPAD, S, eps):
    """Fused S-step flow-matching update for one batch element.

    Layout: each channel plane is (HPAD, WPAD) with pad rows/lanes forced to
    zero wherever the plane feeds a convolution.
    """
    b = pl.program_id(0)

    # ---- hoisted constants (reused across all S steps) --------------------
    row = lax.broadcasted_iota(jnp.int32, (HPAD, WPAD), 0)
    lane = lax.broadcasted_iota(jnp.int32, (HPAD, WPAD), 1)
    mask = ((row < H) & (lane < W)).astype(jnp.float32)   # 1 on valid, 0 on pad
    inv_count = 1.0 / float(C * H * W)

    gam = [gamma_ref[c] for c in range(C)]
    bet = [beta_ref[c] for c in range(C)]

    def conv3x3_accum(acc, get_plane, w_ref, subtract):
        """acc[o] (+/-)= sum_{i,kh,kw} shift(get_plane(i), kh, kw) * w[o,i,kh,kw].

        i is outermost so only one input channel's shifted variants are live at
        a time.  Shifts are XLU rolls; the wrap lands in zeroed pad rows/lanes
        of the masked input, so zero-padding semantics are preserved.
        """
        for i in range(C):
            p = get_plane(i)                               # masked (HPAD, WPAD)
            for kh in range(3):
                if kh == 0:
                    v = pltpu.roll(p, shift=1, axis=0)         # out[h] <- in[h-1]
                elif kh == 1:
                    v = p
                else:
                    v = pltpu.roll(p, shift=HPAD - 1, axis=0)  # out[h] <- in[h+1]
                left = pltpu.roll(v, shift=1, axis=1)          # out[w] <- in[w-1]
                right = pltpu.roll(v, shift=WPAD - 1, axis=1)  # out[w] <- in[w+1]
                taps = (left, v, right)
                for kw in range(3):
                    src = taps[kw]
                    for o in range(C):
                        # SMEM scalar read at use site: no live broadcast vregs.
                        wv = w_ref[((o * C + i) * 3 + kh) * 3 + kw]
                        if subtract:
                            acc[o] = acc[o] - src * wv
                        else:
                            acc[o] = acc[o] + src * wv
        return acc

    def step(s, x):
        x = list(x)
        base = (b * S + s) * C

        # --- conv1 input: SiLU(x + t_embed), masked (pad rows/lanes -> 0) ---
        def a_plane(i):
            e = x[i] + temb_ref[base + i]
            return e * jax.nn.sigmoid(e) * mask

        zero = jnp.zeros((HPAD, WPAD), jnp.float32)
        y1 = conv3x3_accum([zero] * C, a_plane, w1_ref, subtract=False)

        # --- GroupNorm(1, C): single masked pass (sum & sum-of-squares) -----
        s1p = y1[0] * mask
        s2p = s1p * y1[0]
        for c in range(1, C):
            ym = y1[c] * mask
            s1p = s1p + ym
            s2p = s2p + ym * y1[c]
        mean = jnp.sum(s1p) * inv_count
        var = jnp.sum(s2p) * inv_count - mean * mean
        inv_std = lax.rsqrt(var + eps)

        # --- conv2 input: SiLU(affine(y1)), mean folded into the bias -------
        def b_plane(i):
            sc = inv_std * gam[i]
            z = y1[i] * sc + (bet[i] - mean * sc)
            return z * jax.nn.sigmoid(z) * mask

        # --- x <- x - conv(b2, w2/S): conv2 accumulates directly into x -----
        # (the 1/S factor is folded into w2 by the wrapper)
        x = conv3x3_accum(x, b_plane, w2_ref, subtract=True)
        return tuple(x)

    x0 = tuple(x_ref[0, c] for c in range(C))
    xf = lax.fori_loop(0, S, step, x0)
    for c in range(C):
        out_ref[0, c] = xf[c]          # aligned (HPAD, WPAD) unmasked stores


@functools.partial(jax.jit, static_argnums=(6,))
def fakd_flow(x, temb_all, w1, gamma, beta, w2, sampling):
    """Run all S flow steps over the whole batch in one pallas_call."""
    N, C, H, W = x.shape
    HPAD = ((H + 7) // 8) * 8
    WPAD = ((W + 127) // 128) * 128
    S = int(sampling)

    # Sublane/lane-aligned layout (zeros in pad rows/lanes).
    x_pad = jnp.pad(x.astype(jnp.float32),
                    ((0, 0), (0, 0), (0, HPAD - H), (0, WPAD - W)))

    kernel = functools.partial(_fakd_flow_kernel, C=C, H=H, W=W,
                               HPAD=HPAD, WPAD=WPAD, S=S, eps=1e-5)
    smem = pl.BlockSpec(memory_space=pltpu.MemorySpace.SMEM)

    out = pl.pallas_call(
        kernel,
        out_shape=jax.ShapeDtypeStruct((N, C, HPAD, WPAD), jnp.float32),
        grid=(N,),
        in_specs=[
            smem,                                                    # temb (N*S*C,)
            smem,                                                    # w1   (C*C*9,)
            smem,                                                    # gamma (C,)
            smem,                                                    # beta  (C,)
            smem,                                                    # w2/S (C*C*9,)
            pl.BlockSpec((1, C, HPAD, WPAD), lambda b: (b, 0, 0, 0)),  # x
        ],
        out_specs=pl.BlockSpec((1, C, HPAD, WPAD), lambda b: (b, 0, 0, 0)),
        input_output_aliases={5: 0},          # reuse x_pad's HBM buffer for out
        compiler_params=pltpu.CompilerParams(
            dimension_semantics=("parallel",)),   # v7x: one batch elem per TC
    )(temb_all.reshape(-1).astype(jnp.float32),
      w1.reshape(-1).astype(jnp.float32),
      gamma.astype(jnp.float32),
      beta.astype(jnp.float32),
      (w2 / float(S)).reshape(-1).astype(jnp.float32),   # fold 1/S into w2
      x_pad)
    return out[:, :, :H, :W]


# ------------------------------ JAX glue ----------------------------------- #

def _adaptive_pool_matrix(in_size, out_size):
    """Row-stochastic matrix reproducing nn.AdaptiveAvgPool2d bin semantics."""
    P = np.zeros((out_size, in_size), np.float32)
    for o in range(out_size):
        s = (o * in_size) // out_size
        e = ((o + 1) * in_size + out_size - 1) // out_size   # ceil
        P[o, s:e] = 1.0 / float(e - s)
    return jnp.asarray(P)


def adaptive_avg_pool2d(x, out_hw):
    Hin, Win = x.shape[2], x.shape[3]
    Ph = _adaptive_pool_matrix(Hin, out_hw[0])
    Pw = _adaptive_pool_matrix(Win, out_hw[1])
    return jnp.einsum('oh,nchw,pw->ncop', Ph, x, Pw)


def timestep_embedding(timesteps, dim, max_period=10000):
    half = dim // 2
    freqs = jnp.exp(-math.log(max_period) *
                    jnp.arange(half, dtype=jnp.float32) / half)
    args = timesteps[:, None].astype(jnp.float32) * freqs[None]
    emb = jnp.concatenate([jnp.cos(args), jnp.sin(args)], axis=-1)
    if dim % 2:
        emb = jnp.concatenate([emb, jnp.zeros_like(emb[:, :1])], axis=-1)
    return emb


class FAKDLossPallas:
    """FAKDLoss(ftype='feature_based', encoder_type='conv') — eval forward."""

    def __init__(self, teacher_channel, student_channel, teacher_size,
                 student_size, sampling=8, stage=3, weight=1.0, key=None):
        assert teacher_size is not None and student_size is not None
        self.teacher_channel = teacher_channel
        self.student_channel = student_channel
        self.sampling = sampling
        self.weight = weight
        required_size = [(300, 300), (150, 150), (80, 80), (45, 45)]
        self.pool_size = required_size[stage]

        C = student_channel
        if key is None:
            key = jax.random.PRNGKey(0)
        k1, k2, k3, k4 = jax.random.split(key, 4)
        fan_in = C * 3 * 3
        # flowembedding: SiLU -> Conv3x3 -> GroupNorm(1,C) -> SiLU -> Conv3x3
        self.w_conv1 = (jax.random.normal(k1, (C, C, 3, 3), jnp.float32)
                        / math.sqrt(fan_in))
        self.w_conv2 = (jax.random.normal(k2, (C, C, 3, 3), jnp.float32)
                        / math.sqrt(fan_in))
        self.gn_gamma = jnp.ones((C,), jnp.float32)
        self.gn_beta = jnp.zeros((C,), jnp.float32)
        # time_embed: nn.Linear(C, C)
        self.w_time = jax.random.normal(k3, (C, C), jnp.float32) / math.sqrt(C)
        self.b_time = 0.01 * jax.random.normal(k4, (C,), jnp.float32)

    def __call__(self, student_feature, teacher_feature, inference_sampling=4):
        C = self.student_channel
        student_feature = adaptive_avg_pool2d(student_feature, self.pool_size)
        teacher_feature = adaptive_avg_pool2d(teacher_feature, self.pool_size)

        if self.weight == 0:
            return jnp.zeros((1,), jnp.float32), student_feature

        # studentmodule = Identity; dirac_ratio=1.0 -> dirac shuffle is a no-op.
        N = student_feature.shape[0]
        S = int(inference_sampling)

        # Precompute the per-step time embeddings (step s uses i = S - s).
        tembs = []
        for s in range(S):
            i = S - s
            t = jnp.full((N,), float(i) / float(S), jnp.float32)
            emb = timestep_embedding(t, C)
            tembs.append(emb @ self.w_time.T + self.b_time)      # (N, C)
        temb_all = jnp.stack(tembs, axis=1)                      # (N, S, C)

        x = fakd_flow(student_feature, temb_all, self.w_conv1, self.gn_gamma,
                      self.gn_beta, self.w_conv2, S)
        return jnp.zeros((1,), jnp.float32), x


# --------------------------- pure-JAX reference ----------------------------- #

def _flow_step_reference(x, temb, w1, gamma, beta, w2, s):
    e = x + temb[:, :, None, None]
    a = jax.nn.silu(e)
    dn = ('NCHW', 'OIHW', 'NCHW')
    y1 = lax.conv_general_dilated(a, w1, (1, 1), ((1, 1), (1, 1)),
                                  dimension_numbers=dn)
    mean = y1.mean(axis=(1, 2, 3), keepdims=True)
    var = y1.var(axis=(1, 2, 3), keepdims=True)
    z = (y1 - mean) / jnp.sqrt(var + 1e-5)
    z = z * gamma[None, :, None, None] + beta[None, :, None, None]
    b2 = jax.nn.silu(z)
    v = lax.conv_general_dilated(b2, w2, (1, 1), ((1, 1), (1, 1)),
                                 dimension_numbers=dn)
    return x - v / float(s)


def _forward_reference(mod, student_feature, teacher_feature, S):
    C = mod.student_channel
    x = adaptive_avg_pool2d(student_feature, mod.pool_size)
    N = x.shape[0]
    for i in range(S, 0, -1):
        t = jnp.full((N,), float(i) / float(S), jnp.float32)
        temb = timestep_embedding(t, C) @ mod.w_time.T + mod.b_time
        x = _flow_step_reference(x, temb, mod.w_conv1, mod.gn_gamma,
                                 mod.gn_beta, mod.w_conv2, S)
    return x


# --------------------------------- main ------------------------------------- #

if __name__ == "__main__":
    key = jax.random.PRNGKey(0)
    kx, kt, kp = jax.random.split(key, 3)

    N, C, Hin, Win = 2, 4, 16, 16
    teacher_channel = 8
    student = jax.random.normal(kx, (N, C, Hin, Win), jnp.float32)
    teacher = jax.random.normal(kt, (N, teacher_channel, Hin, Win), jnp.float32)

    mod = FAKDLossPallas(teacher_channel=teacher_channel, student_channel=C,
                         teacher_size=Hin, student_size=Hin,
                         sampling=8, stage=3, weight=1.0, key=kp)

    loss, x_out = mod(student, teacher, inference_sampling=4)
    x_out = jax.block_until_ready(x_out)
    loss = jax.block_until_ready(loss)

    # sanity check against a pure-JAX reference of the same eval forward
    x_ref = jax.block_until_ready(_forward_reference(mod, student, teacher, 4))
    assert x_out.shape == (N, C, 45, 45)
    np.testing.assert_allclose(np.asarray(x_out), np.asarray(x_ref),
                               rtol=1e-3, atol=1e-3)
    assert float(loss[0]) == 0.0

    print("KERNEL_OK")
</pallas_src>

<mosaic_0001>
module attributes {stable_mosaic.version = 11 : i64} {
  func.func @_fakd_flow_kernel(%arg0: i32, %arg1: memref<32xf32, #tpu.memory_space<smem>>, %arg2: memref<144xf32, #tpu.memory_space<smem>>, %arg3: memref<4xf32, #tpu.memory_space<smem>>, %arg4: memref<4xf32, #tpu.memory_space<smem>>, %arg5: memref<144xf32, #tpu.memory_space<smem>>, %arg6: memref<1x4x48x128xf32, #tpu.memory_space<vmem>>, %arg7: memref<1x4x48x128xf32, #tpu.memory_space<vmem>>) attributes {dimension_semantics = [#tpu.dimension_semantics<parallel>], iteration_bounds = array<i64: 2>, scalar_prefetch = 0 : i64, scratch_operands = 0 : i64, tpu.core_type = #tpu.core_type<tc>, window_params = [{transform_indices = @transform_0, window_bounds = array<i64: 32>}, {transform_indices = @transform_1, window_bounds = array<i64: 144>}, {transform_indices = @transform_2, window_bounds = array<i64: 4>}, {transform_indices = @transform_3, window_bounds = array<i64: 4>}, {transform_indices = @transform_4, window_bounds = array<i64: 144>}, {transform_indices = @transform_5, window_bounds = array<i64: 1, 4, 48, 128>}, {transform_indices = @transform_6, window_bounds = array<i64: 1, 4, 48, 128>}]} {
    %0 = tpu.iota {dimensions = array<i32: 0>} : vector<48x128xi32>
    %1 = tpu.iota {dimensions = array<i32: 1>} : vector<48x128xi32>
    %c45_i32 = arith.constant 45 : i32
    %2 = vector.broadcast %c45_i32 : i32 to vector<48x128xi32>
    %3 = arith.cmpi slt, %0, %2 : vector<48x128xi32>
    %c45_i32_0 = arith.constant 45 : i32
    %4 = vector.broadcast %c45_i32_0 : i32 to vector<48x128xi32>
    %5 = arith.cmpi slt, %1, %4 : vector<48x128xi32>
    %6 = arith.andi %3, %5 : vector<48x128xi1>
    %7 = arith.extui %6 : vector<48x128xi1> to vector<48x128xi32>
    %8 = arith.sitofp %7 : vector<48x128xi32> to vector<48x128xf32>
    %c0 = arith.constant 0 : index
    %9 = memref.load %arg3[%c0] : memref<4xf32, #tpu.memory_space<smem>>
    %c1 = arith.constant 1 : index
    %10 = memref.load %arg3[%c1] : memref<4xf32, #tpu.memory_space<smem>>
    %c2 = arith.constant 2 : index
    %11 = memref.load %arg3[%c2] : memref<4xf32, #tpu.memory_space<smem>>
    %c3 = arith.constant 3 : index
    %12 = memref.load %arg3[%c3] : memref<4xf32, #tpu.memory_space<smem>>
    %c0_1 = arith.constant 0 : index
    %13 = memref.load %arg4[%c0_1] : memref<4xf32, #tpu.memory_space<smem>>
    %c1_2 = arith.constant 1 : index
    %14 = memref.load %arg4[%c1_2] : memref<4xf32, #tpu.memory_space<smem>>
    %c2_3 = arith.constant 2 : index
    %15 = memref.load %arg4[%c2_3] : memref<4xf32, #tpu.memory_space<smem>>
    %c3_4 = arith.constant 3 : index
    %16 = memref.load %arg4[%c3_4] : memref<4xf32, #tpu.memory_space<smem>>
    %c0_5 = arith.constant 0 : index
    %c0_6 = arith.constant 0 : index
    %c0_7 = arith.constant 0 : index
    %c0_8 = arith.constant 0 : index
    %17 = vector.load %arg6[%c0_5, %c0_6, %c0_7, %c0_8] : memref<1x4x48x128xf32, #tpu.memory_space<vmem>>, vector<1x1x48x128xf32>
    %18 = vector.shape_cast %17 : vector<1x1x48x128xf32> to vector<48x128xf32>
    %c0_9 = arith.constant 0 : index
    %c1_10 = arith.constant 1 : index
    %c0_11 = arith.constant 0 : index
    %c0_12 = arith.constant 0 : index
    %19 = vector.load %arg6[%c0_9, %c1_10, %c0_11, %c0_12] : memref<1x4x48x128xf32, #tpu.memory_space<vmem>>, vector<1x1x48x128xf32>
    %20 = vector.shape_cast %19 : vector<1x1x48x128xf32> to vector<48x128xf32>
    %c0_13 = arith.constant 0 : index
    %c2_14 = arith.constant 2 : index
    %c0_15 = arith.constant 0 : index
    %c0_16 = arith.constant 0 : index
    %21 = vector.load %arg6[%c0_13, %c2_14, %c0_15, %c0_16] : memref<1x4x48x128xf32, #tpu.memory_space<vmem>>, vector<1x1x48x128xf32>
    %22 = vector.shape_cast %21 : vector<1x1x48x128xf32> to vector<48x128xf32>
    %c0_17 = arith.constant 0 : index
    %c3_18 = arith.constant 3 : index
    %c0_19 = arith.constant 0 : index
    %c0_20 = arith.constant 0 : index
    %23 = vector.load %arg6[%c0_17, %c3_18, %c0_19, %c0_20] : memref<1x4x48x128xf32, #tpu.memory_space<vmem>>, vector<1x1x48x128xf32>
    %24 = vector.shape_cast %23 : vector<1x1x48x128xf32> to vector<48x128xf32>
    %c0_i32 = arith.constant 0 : i32
    %c4_i32 = arith.constant 4 : i32
    %25 = arith.addi %c0_i32, %c4_i32 : i32
    %c1_i32 = arith.constant 1 : i32
    %26:4 = scf.for %arg8 = %c0_i32 to %25 step %c1_i32 iter_args(%arg9 = %18, %arg10 = %20, %arg11 = %22, %arg12 = %24) -> (vector<48x128xf32>, vector<48x128xf32>, vector<48x128xf32>, vector<48x128xf32>)  : i32 {
      %c4_i32_38 = arith.constant 4 : i32
      %39 = arith.muli %arg0, %c4_i32_38 : i32
      %40 = arith.addi %39, %arg8 : i32
      %c4_i32_39 = arith.constant 4 : i32
      %41 = arith.muli %40, %c4_i32_39 : i32
      %cst = arith.constant 0.000000e+00 : f32
      %42 = vector.broadcast %cst : f32 to vector<48x128xf32>
      %c0_i32_40 = arith.constant 0 : i32
      %43 = arith.addi %41, %c0_i32_40 : i32
      %44 = arith.index_cast %43 : i32 to index
      %45 = memref.load %arg1[%44] : memref<32xf32, #tpu.memory_space<smem>>
      %46 = vector.broadcast %45 : f32 to vector<48x128xf32>
      %47 = arith.addf %arg9, %46 : vector<48x128xf32>
      %48 = arith.negf %47 : vector<48x128xf32>
      %49 = math.exp %48 : vector<48x128xf32>
      %cst_41 = arith.constant 1.000000e+00 : f32
      %50 = vector.broadcast %cst_41 : f32 to vector<48x128xf32>
      %51 = arith.addf %50, %49 : vector<48x128xf32>
      %52 = arith.divf %50, %51 : vector<48x128xf32>
      %53 = arith.mulf %47, %52 : vector<48x128xf32>
      %54 = arith.mulf %53, %8 : vector<48x128xf32>
      %c1_i32_42 = arith.constant 1 : i32
      %55 = tpu.dynamic_rotate %54 by %c1_i32_42 dim 0 : vector<48x128xf32>, i32 -> vector<48x128xf32>
      %c1_i32_43 = arith.constant 1 : i32
      %56 = tpu.dynamic_rotate %55 by %c1_i32_43 dim 1 : vector<48x128xf32>, i32 -> vector<48x128xf32>
      %c127_i32 = arith.constant 127 : i32
      %57 = tpu.dynamic_rotate %55 by %c127_i32 dim 1 : vector<48x128xf32>, i32 -> vector<48x128xf32>
      %c0_44 = arith.constant 0 : index
      %58 = memref.load %arg2[%c0_44] : memref<144xf32, #tpu.memory_space<smem>>
      %59 = vector.broadcast %58 : f32 to vector<48x128xf32>
      %60 = arith.mulf %56, %59 : vector<48x128xf32>
      %61 = arith.addf %42, %60 : vector<48x128xf32>
      %c36 = arith.constant 36 : index
      %62 = memref.load %arg2[%c36] : memref<144xf32, #tpu.memory_space<smem>>
      %63 = vector.broadcast %62 : f32 to vector<48x128xf32>
      %64 = arith.mulf %56, %63 : vector<48x128xf32>
      %65 = arith.addf %42, %64 : vector<48x128xf32>
      %c72 = arith.constant 72 : index
      %66 = memref.load %arg2[%c72] : memref<144xf32, #tpu.memory_space<smem>>
      %67 = vector.broadcast %66 : f32 to vector<48x128xf32>
      %68 = arith.mulf %56, %67 : vector<48x128xf32>
      %69 = arith.addf %42, %68 : vector<48x128xf32>
      %c108 = arith.constant 108 : index
      %70 = memref.load %arg2[%c108] : memref<144xf32, #tpu.memory_space<smem>>
      %71 = vector.broadcast %70 : f32 to vector<48x128xf32>
      %72 = arith.mulf %56, %71 : vector<48x128xf32>
      %73 = arith.addf %42, %72 : vector<48x128xf32>
      %c1_45 = arith.constant 1 : index
      %74 = memref.load %arg2[%c1_45] : memref<144xf32, #tpu.memory_space<smem>>
      %75 = vector.broadcast %74 : f32 to vector<48x128xf32>
      %76 = arith.mulf %55, %75 : vector<48x128xf32>
      %77 = arith.addf %61, %76 : vector<48x128xf32>
      %c37 = arith.constant 37 : index
      %78 = memref.load %arg2[%c37] : memref<144xf32, #tpu.memory_space<smem>>
      %79 = vector.broadcast %78 : f32 to vector<48x128xf32>
      %80 = arith.mulf %55, %79 : vector<48x128xf32>
      %81 = arith.addf %65, %80 : vector<48x128xf32>
      %c73 = arith.constant 73 : index
      %82 = memref.load %arg2[%c73] : memref<144xf32, #tpu.memory_space<smem>>
      %83 = vector.broadcast %82 : f32 to vector<48x128xf32>
      %84 = arith.mulf %55, %83 : vector<48x128xf32>
      %85 = arith.addf %69, %84 : vector<48x128xf32>
      %c109 = arith.constant 109 : index
      %86 = memref.load %arg2[%c109] : memref<144xf32, #tpu.memory_space<smem>>
      %87 = vector.broadcast %86 : f32 to vector<48x128xf32>
      %88 = arith.mulf %55, %87 : vector<48x128xf32>
      %89 = arith.addf %73, %88 : vector<48x128xf32>
      %c2_46 = arith.constant 2 : index
      %90 = memref.load %arg2[%c2_46] : memref<144xf32, #tpu.memory_space<smem>>
      %91 = vector.broadcast %90 : f32 to vector<48x128xf32>
      %92 = arith.mulf %57, %91 : vector<48x128xf32>
      %93 = arith.addf %77, %92 : vector<48x128xf32>
      %c38 = arith.constant 38 : index
      %94 = memref.load %arg2[%c38] : memref<144xf32, #tpu.memory_space<smem>>
      %95 = vector.broadcast %94 : f32 to vector<48x128xf32>
      %96 = arith.mulf %57, %95 : vector<48x128xf32>
      %97 = arith.addf %81, %96 : vector<48x128xf32>
      %c74 = arith.constant 74 : index
      %98 = memref.load %arg2[%c74] : memref<144xf32, #tpu.memory_space<smem>>
      %99 = vector.broadcast %98 : f32 to vector<48x128xf32>
      %100 = arith.mulf %57, %99 : vector<48x128xf32>
      %101 = arith.addf %85, %100 : vector<48x128xf32>
      %c110 = arith.constant 110 : index
      %102 = memref.load %arg2[%c110] : memref<144xf32, #tpu.memory_space<smem>>
      %103 = vector.broadcast %102 : f32 to vector<48x128xf32>
      %104 = arith.mulf %57, %103 : vector<48x128xf32>
      %105 = arith.addf %89, %104 : vector<48x128xf32>
      %c1_i32_47 = arith.constant 1 : i32
      %106 = tpu.dynamic_rotate %54 by %c1_i32_47 dim 1 : vector<48x128xf32>, i32 -> vector<48x128xf32>
      %c127_i32_48 = arith.constant 127 : i32
      %107 = tpu.dynamic_rotate %54 by %c127_i32_48 dim 1 : vector<48x128xf32>, i32 -> vector<48x128xf32>
      %c3_49 = arith.constant 3 : index
      %108 = memref.load %arg2[%c3_49] : memref<144xf32, #tpu.memory_space<smem>>
      %109 = vector.broadcast %108 : f32 to vector<48x128xf32>
      %110 = arith.mulf %106, %109 : vector<48x128xf32>
      %111 = arith.addf %93, %110 : vector<48x128xf32>
      %c39 = arith.constant 39 : index
      %112 = memref.load %arg2[%c39] : memref<144xf32, #tpu.memory_space<smem>>
      %113 = vector.broadcast %112 : f32 to vector<48x128xf32>
      %114 = arith.mulf %106, %113 : vector<48x128xf32>
      %115 = arith.addf %97, %114 : vector<48x128xf32>
      %c75 = arith.constant 75 : index
      %116 = memref.load %arg2[%c75] : memref<144xf32, #tpu.memory_space<smem>>
      %117 = vector.broadcast %116 : f32 to vector<48x128xf32>
      %118 = arith.mulf %106, %117 : vector<48x128xf32>
      %119 = arith.addf %101, %118 : vector<48x128xf32>
      %c111 = arith.constant 111 : index
      %120 = memref.load %arg2[%c111] : memref<144xf32, #tpu.memory_space<smem>>
      %121 = vector.broadcast %120 : f32 to vector<48x128xf32>
      %122 = arith.mulf %106, %121 : vector<48x128xf32>
      %123 = arith.addf %105, %122 : vector<48x128xf32>
      %c4 = arith.constant 4 : index
      %124 = memref.load %arg2[%c4] : memref<144xf32, #tpu.memory_space<smem>>
      %125 = vector.broadcast %124 : f32 to vector<48x128xf32>
      %126 = arith.mulf %54, %125 : vector<48x128xf32>
      %127 = arith.addf %111, %126 : vector<48x128xf32>
      %c40 = arith.constant 40 : index
      %128 = memref.load %arg2[%c40] : memref<144xf32, #tpu.memory_space<smem>>
      %129 = vector.broadcast %128 : f32 to vector<48x128xf32>
      %130 = arith.mulf %54, %129 : vector<48x128xf32>
      %131 = arith.addf %115, %130 : vector<48x128xf32>
      %c76 = arith.constant 76 : index
      %132 = memref.load %arg2[%c76] : memref<144xf32, #tpu.memory_space<smem>>
      %133 = vector.broadcast %132 : f32 to vector<48x128xf32>
      %134 = arith.mulf %54, %133 : vector<48x128xf32>
      %135 = arith.addf %119, %134 : vector<48x128xf32>
      %c112 = arith.constant 112 : index
      %136 = memref.load %arg2[%c112] : memref<144xf32, #tpu.memory_space<smem>>
      %137 = vector.broadcast %136 : f32 to vector<48x128xf32>
      %138 = arith.mulf %54, %137 : vector<48x128xf32>
      %139 = arith.addf %123, %138 : vector<48x128xf32>
      %c5 = arith.constant 5 : index
      %140 = memref.load %arg2[%c5] : memref<144xf32, #tpu.memory_space<smem>>
      %141 = vector.broadcast %140 : f32 to vector<48x128xf32>
      %142 = arith.mulf %107, %141 : vector<48x128xf32>
      %143 = arith.addf %127, %142 : vector<48x128xf32>
      %c41 = arith.constant 41 : index
      %144 = memref.load %arg2[%c41] : memref<144xf32, #tpu.memory_space<smem>>
      %145 = vector.broadcast %144 : f32 to vector<48x128xf32>
      %146 = arith.mulf %107, %145 : vector<48x128xf32>
      %147 = arith.addf %131, %146 : vector<48x128xf32>
      %c77 = arith.constant 77 : index
      %148 = memref.load %arg2[%c77] : memref<144xf32, #tpu.memory_space<smem>>
      %149 = vector.broadcast %148 : f32 to vector<48x128xf32>
      %150 = arith.mulf %107, %149 : vector<48x128xf32>
      %151 = arith.addf %135, %150 : vector<48x128xf32>
      %c113 = arith.constant 113 : index
      %152 = memref.load %arg2[%c113] : memref<144xf32, #tpu.memory_space<smem>>
      %153 = vector.broadcast %152 : f32 to vector<48x128xf32>
      %154 = arith.mulf %107, %153 : vector<48x128xf32>
      %155 = arith.addf %139, %154 : vector<48x128xf32>
      %c47_i32 = arith.constant 47 : i32
      %156 = tpu.dynamic_rotate %54 by %c47_i32 dim 0 : vector<48x128xf32>, i32 -> vector<48x128xf32>
      %c1_i32_50 = arith.constant 1 : i32
      %157 = tpu.dynamic_rotate %156 by %c1_i32_50 dim 1 : vector<48x128xf32>, i32 -> vector<48x128xf32>
      %c127_i32_51 = arith.constant 127 : i32
      %158 = tpu.dynamic_rotate %156 by %c127_i32_51 dim 1 : vector<48x128xf32>, i32 -> vector<48x128xf32>
      %c6 = arith.constant 6 : index
      %159 = memref.load %arg2[%c6] : memref<144xf32, #tpu.memory_space<smem>>
      %160 = vector.broadcast %159 : f32 to vector<48x128xf32>
      %161 = arith.mulf %157, %160 : vector<48x128xf32>
      %162 = arith.addf %143, %161 : vector<48x128xf32>
      %c42 = arith.constant 42 : index
      %163 = memref.load %arg2[%c42] : memref<144xf32, #tpu.memory_space<smem>>
      %164 = vector.broadcast %163 : f32 to vector<48x128xf32>
      %165 = arith.mulf %157, %164 : vector<48x128xf32>
      %166 = arith.addf %147, %165 : vector<48x128xf32>
      %c78 = arith.constant 78 : index
      %167 = memref.load %arg2[%c78] : memref<144xf32, #tpu.memory_space<smem>>
      %168 = vector.broadcast %167 : f32 to vector<48x128xf32>
      %169 = arith.mulf %157, %168 : vector<48x128xf32>
      %170 = arith.addf %151, %169 : vector<48x128xf32>
      %c114 = arith.constant 114 : index
      %171 = memref.load %arg2[%c114] : memref<144xf32, #tpu.memory_space<smem>>
      %172 = vector.broadcast %171 : f32 to vector<48x128xf32>
      %173 = arith.mulf %157, %172 : vector<48x128xf32>
      %174 = arith.addf %155, %173 : vector<48x128xf32>
      %c7 = arith.constant 7 : index
      %175 = memref.load %arg2[%c7] : memref<144xf32, #tpu.memory_space<smem>>
      %176 = vector.broadcast %175 : f32 to vector<48x128xf32>
      %177 = arith.mulf %156, %176 : vector<48x128xf32>
      %178 = arith.addf %162, %177 : vector<48x128xf32>
      %c43 = arith.constant 43 : index
      %179 = memref.load %arg2[%c43] : memref<144xf32, #tpu.memory_space<smem>>
      %180 = vector.broadcast %179 : f32 to vector<48x128xf32>
      %181 = arith.mulf %156, %180 : vector<48x128xf32>
      %182 = arith.addf %166, %181 : vector<48x128xf32>
      %c79 = arith.constant 79 : index
      %183 = memref.load %arg2[%c79] : memref<144xf32, #tpu.memory_space<smem>>
      %184 = vector.broadcast %183 : f32 to vector<48x128xf32>
      %185 = arith.mulf %156, %184 : vector<48x128xf32>
      %186 = arith.addf %170, %185 : vector<48x128xf32>
      %c115 = arith.constant 115 : index
      %187 = memref.load %arg2[%c115] : memref<144xf32, #tpu.memory_space<smem>>
      %188 = vector.broadcast %187 : f32 to vector<48x128xf32>
      %189 = arith.mulf %156, %188 : vector<48x128xf32>
      %190 = arith.addf %174, %189 : vector<48x128xf32>
      %c8 = arith.constant 8 : index
      %191 = memref.load %arg2[%c8] : memref<144xf32, #tpu.memory_space<smem>>
      %192 = vector.broadcast %191 : f32 to vector<48x128xf32>
      %193 = arith.mulf %158, %192 : vector<48x128xf32>
      %194 = arith.addf %178, %193 : vector<48x128xf32>
      %c44 = arith.constant 44 : index
      %195 = memref.load %arg2[%c44] : memref<144xf32, #tpu.memory_space<smem>>
      %196 = vector.broadcast %195 : f32 to vector<48x128xf32>
      %197 = arith.mulf %158, %196 : vector<48x128xf32>
      %198 = arith.addf %182, %197 : vector<48x128xf32>
      %c80 = arith.constant 80 : index
      %199 = memref.load %arg2[%c80] : memref<144xf32, #tpu.memory_space<smem>>
      %200 = vector.broadcast %199 : f32 to vector<48x128xf32>
      %201 = arith.mulf %158, %200 : vector<48x128xf32>
      %202 = arith.addf %186, %201 : vector<48x128xf32>
      %c116 = arith.constant 116 : index
      %203 = memref.load %arg2[%c116] : memref<144xf32, #tpu.memory_space<smem>>
      %204 = vector.broadcast %203 : f32 to vector<48x128xf32>
      %205 = arith.mulf %158, %204 : vector<48x128xf32>
      %206 = arith.addf %190, %205 : vector<48x128xf32>
      %c1_i32_52 = arith.constant 1 : i32
      %207 = arith.addi %41, %c1_i32_52 : i32
      %208 = arith.index_cast %207 : i32 to index
      %209 = memref.load %arg1[%208] : memref<32xf32, #tpu.memory_space<smem>>
      %210 = vector.broadcast %209 : f32 to vector<48x128xf32>
      %211 = arith.addf %arg10, %210 : vector<48x128xf32>
      %212 = arith.negf %211 : vector<48x128xf32>
      %213 = math.exp %212 : vector<48x128xf32>
      %cst_53 = arith.constant 1.000000e+00 : f32
      %214 = vector.broadcast %cst_53 : f32 to vector<48x128xf32>
      %215 = arith.addf %214, %213 : vector<48x128xf32>
      %216 = arith.divf %214, %215 : vector<48x128xf32>
      %217 = arith.mulf %211, %216 : vector<48x128xf32>
      %218 = arith.mulf %217, %8 : vector<48x128xf32>
      %c1_i32_54 = arith.constant 1 : i32
      %219 = tpu.dynamic_rotate %218 by %c1_i32_54 dim 0 : vector<48x128xf32>, i32 -> vector<48x128xf32>
      %c1_i32_55 = arith.constant 1 : i32
      %220 = tpu.dynamic_rotate %219 by %c1_i32_55 dim 1 : vector<48x128xf32>, i32 -> vector<48x128xf32>
      %c127_i32_56 = arith.constant 127 : i32
      %221 = tpu.dynamic_rotate %219 by %c127_i32_56 dim 1 : vector<48x128xf32>, i32 -> vector<48x128xf32>
      %c9 = arith.constant 9 : index
      %222 = memref.load %arg2[%c9] : memref<144xf32, #tpu.memory_space<smem>>
      %223 = vector.broadcast %222 : f32 to vector<48x128xf32>
      %224 = arith.mulf %220, %223 : vector<48x128xf32>
      %225 = arith.addf %194, %224 : vector<48x128xf32>
      %c45 = arith.constant 45 : index
      %226 = memref.load %arg2[%c45] : memref<144xf32, #tpu.memory_space<smem>>
      %227 = vector.broadcast %226 : f32 to vector<48x128xf32>
      %228 = arith.mulf %220, %227 : vector<48x128xf32>
      %229 = arith.addf %198, %228 : vector<48x128xf32>
      %c81 = arith.constant 81 : index
      %230 = memref.load %arg2[%c81] : memref<144xf32, #tpu.memory_space<smem>>
      %231 = vector.broadcast %230 : f32 to vector<48x128xf32>
      %232 = arith.mulf %220, %231 : vector<48x128xf32>
      %233 = arith.addf %202, %232 : vector<48x128xf32>
      %c117 = arith.constant 117 : index
      %234 = memref.load %arg2[%c117] : memref<144xf32, #tpu.memory_space<smem>>
      %235 = vector.broadcast %234 : f32 to vector<48x128xf32>
      %236 = arith.mulf %220, %235 : vector<48x128xf32>
      %237 = arith.addf %206, %236 : vector<48x128xf32>
      %c10 = arith.constant 10 : index
      %238 = memref.load %arg2[%c10] : memref<144xf32, #tpu.memory_space<smem>>
      %239 = vector.broadcast %238 : f32 to vector<48x128xf32>
      %240 = arith.mulf %219, %239 : vector<48x128xf32>
      %241 = arith.addf %225, %240 : vector<48x128xf32>
      %c46 = arith.constant 46 : index
      %242 = memref.load %arg2[%c46] : memref<144xf32, #tpu.memory_space<smem>>
      %243 = vector.broadcast %242 : f32 to vector<48x128xf32>
      %244 = arith.mulf %219, %243 : vector<48x128xf32>
      %245 = arith.addf %229, %244 : vector<48x128xf32>
      %c82 = arith.constant 82 : index
      %246 = memref.load %arg2[%c82] : memref<144xf32, #tpu.memory_space<smem>>
      %247 = vector.broadcast %246 : f32 to vector<48x128xf32>
      %248 = arith.mulf %219, %247 : vector<48x128xf32>
      %249 = arith.addf %233, %248 : vector<48x128xf32>
      %c118 = arith.constant 118 : index
      %250 = memref.load %arg2[%c118] : memref<144xf32, #tpu.memory_space<smem>>
      %251 = vector.broadcast %250 : f32 to vector<48x128xf32>
      %252 = arith.mulf %219, %251 : vector<48x128xf32>
      %253 = arith.addf %237, %252 : vector<48x128xf32>
      %c11 = arith.constant 11 : index
      %254 = memref.load %arg2[%c11] : memref<144xf32, #tpu.memory_space<smem>>
      %255 = vector.broadcast %254 : f32 to vector<48x128xf32>
      %256 = arith.mulf %221, %255 : vector<48x128xf32>
      %257 = arith.addf %241, %256 : vector<48x128xf32>
      %c47 = arith.constant 47 : index
      %258 = memref.load %arg2[%c47] : memref<144xf32, #tpu.memory_space<smem>>
      %259 = vector.broadcast %258 : f32 to vector<48x128xf32>
      %260 = arith.mulf %221, %259 : vector<48x128xf32>
      %261 = arith.addf %245, %260 : vector<48x128xf32>
      %c83 = arith.constant 83 : index
      %262 = memref.load %arg2[%c83] : memref<144xf32, #tpu.memory_space<smem>>
      %263 = vector.broadcast %262 : f32 to vector<48x128xf32>
      %264 = arith.mulf %221, %263 : vector<48x128xf32>
      %265 = arith.addf %249, %264 : vector<48x128xf32>
      %c119 = arith.constant 119 : index
      %266 = memref.load %arg2[%c119] : memref<144xf32, #tpu.memory_space<smem>>
      %267 = vector.broadcast %266 : f32 to vector<48x128xf32>
      %268 = arith.mulf %221, %267 : vector<48x128xf32>
      %269 = arith.addf %253, %268 : vector<48x128xf32>
      %c1_i32_57 = arith.constant 1 : i32
      %270 = tpu.dynamic_rotate %218 by %c1_i32_57 dim 1 : vector<48x128xf32>, i32 -> vector<48x128xf32>
      %c127_i32_58 = arith.constant 127 : i32
      %271 = tpu.dynamic_rotate %218 by %c127_i32_58 dim 1 : vector<48x128xf32>, i32 -> vector<48x128xf32>
      %c12 = arith.constant 12 : index
      %272 = memref.load %arg2[%c12] : memref<144xf32, #tpu.memory_space<smem>>
      %273 = vector.broadcast %272 : f32 to vector<48x128xf32>
      %274 = arith.mulf %270, %273 : vector<48x128xf32>
      %275 = arith.addf %257, %274 : vector<48x128xf32>
      %c48 = arith.constant 48 : index
      %276 = memref.load %arg2[%c48] : memref<144xf32, #tpu.memory_space<smem>>
      %277 = vector.broadcast %276 : f32 to vector<48x128xf32>
      %278 = arith.mulf %270, %277 : vector<48x128xf32>
      %279 = arith.addf %261, %278 : vector<48x128xf32>
      %c84 = arith.constant 84 : index
      %280 = memref.load %arg2[%c84] : memref<144xf32, #tpu.memory_space<smem>>
      %281 = vector.broadcast %280 : f32 to vector<48x128xf32>
      %282 = arith.mulf %270, %281 : vector<48x128xf32>
      %283 = arith.addf %265, %282 : vector<48x128xf32>
      %c120 = arith.constant 120 : index
      %284 = memref.load %arg2[%c120] : memref<144xf32, #tpu.memory_space<smem>>
      %285 = vector.broadcast %284 : f32 to vector<48x128xf32>
      %286 = arith.mulf %270, %285 : vector<48x128xf32>
      %287 = arith.addf %269, %286 : vector<48x128xf32>
      %c13 = arith.constant 13 : index
      %288 = memref.load %arg2[%c13] : memref<144xf32, #tpu.memory_space<smem>>
      %289 = vector.broadcast %288 : f32 to vector<48x128xf32>
      %290 = arith.mulf %218, %289 : vector<48x128xf32>
      %291 = arith.addf %275, %290 : vector<48x128xf32>
      %c49 = arith.constant 49 : index
      %292 = memref.load %arg2[%c49] : memref<144xf32, #tpu.memory_space<smem>>
      %293 = vector.broadcast %292 : f32 to vector<48x128xf32>
      %294 = arith.mulf %218, %293 : vector<48x128xf32>
      %295 = arith.addf %279, %294 : vector<48x128xf32>
      %c85 = arith.constant 85 : index
      %296 = memref.load %arg2[%c85] : memref<144xf32, #tpu.memory_space<smem>>
      %297 = vector.broadcast %296 : f32 to vector<48x128xf32>
      %298 = arith.mulf %218, %297 : vector<48x128xf32>
      %299 = arith.addf %283, %298 : vector<48x128xf32>
      %c121 = arith.constant 121 : index
      %300 = memref.load %arg2[%c121] : memref<144xf32, #tpu.memory_space<smem>>
      %301 = vector.broadcast %300 : f32 to vector<48x128xf32>
      %302 = arith.mulf %218, %301 : vector<48x128xf32>
      %303 = arith.addf %287, %302 : vector<48x128xf32>
      %c14 = arith.constant 14 : index
      %304 = memref.load %arg2[%c14] : memref<144xf32, #tpu.memory_space<smem>>
      %305 = vector.broadcast %304 : f32 to vector<48x128xf32>
      %306 = arith.mulf %271, %305 : vector<48x128xf32>
      %307 = arith.addf %291, %306 : vector<48x128xf32>
      %c50 = arith.constant 50 : index
      %308 = memref.load %arg2[%c50] : memref<144xf32, #tpu.memory_space<smem>>
      %309 = vector.broadcast %308 : f32 to vector<48x128xf32>
      %310 = arith.mulf %271, %309 : vector<48x128xf32>
      %311 = arith.addf %295, %310 : vector<48x128xf32>
      %c86 = arith.constant 86 : index
      %312 = memref.load %arg2[%c86] : memref<144xf32, #tpu.memory_space<smem>>
      %313 = vector.broadcast %312 : f32 to vector<48x128xf32>
      %314 = arith.mulf %271, %313 : vector<48x128xf32>
      %315 = arith.addf %299, %314 : vector<48x128xf32>
      %c122 = arith.constant 122 : index
      %316 = memref.load %arg2[%c122] : memref<144xf32, #tpu.memory_space<smem>>
      %317 = vector.broadcast %316 : f32 to vector<48x128xf32>
      %318 = arith.mulf %271, %317 : vector<48x128xf32>
      %319 = arith.addf %303, %318 : vector<48x128xf32>
      %c47_i32_59 = arith.constant 47 : i32
      %320 = tpu.dynamic_rotate %218 by %c47_i32_59 dim 0 : vector<48x128xf32>, i32 -> vector<48x128xf32>
      %c1_i32_60 = arith.constant 1 : i32
      %321 = tpu.dynamic_rotate %320 by %c1_i32_60 dim 1 : vector<48x128xf32>, i32 -> vector<48x128xf32>
      %c127_i32_61 = arith.constant 127 : i32
      %322 = tpu.dynamic_rotate %320 by %c127_i32_61 dim 1 : vector<48x128xf32>, i32 -> vector<48x128xf32>
      %c15 = arith.constant 15 : index
      %323 = memref.load %arg2[%c15] : memref<144xf32, #tpu.memory_space<smem>>
      %324 = vector.broadcast %323 : f32 to vector<48x128xf32>
      %325 = arith.mulf %321, %324 : vector<48x128xf32>
      %326 = arith.addf %307, %325 : vector<48x128xf32>
      %c51 = arith.constant 51 : index
      %327 = memref.load %arg2[%c51] : memref<144xf32, #tpu.memory_space<smem>>
      %328 = vector.broadcast %327 : f32 to vector<48x128xf32>
      %329 = arith.mulf %321, %328 : vector<48x128xf32>
      %330 = arith.addf %311, %329 : vector<48x128xf32>
      %c87 = arith.constant 87 : index
      %331 = memref.load %arg2[%c87] : memref<144xf32, #tpu.memory_space<smem>>
      %332 = vector.broadcast %331 : f32 to vector<48x128xf32>
      %333 = arith.mulf %321, %332 : vector<48x128xf32>
      %334 = arith.addf %315, %333 : vector<48x128xf32>
      %c123 = arith.constant 123 : index
      %335 = memref.load %arg2[%c123] : memref<144xf32, #tpu.memory_space<smem>>
      %336 = vector.broadcast %335 : f32 to vector<48x128xf32>
      %337 = arith.mulf %321, %336 : vector<48x128xf32>
      %338 = arith.addf %319, %337 : vector<48x128xf32>
      %c16 = arith.constant 16 : index
      %339 = memref.load %arg2[%c16] : memref<144xf32, #tpu.memory_space<smem>>
      %340 = vector.broadcast %339 : f32 to vector<48x128xf32>
      %341 = arith.mulf %320, %340 : vector<48x128xf32>
      %342 = arith.addf %326, %341 : vector<48x128xf32>
      %c52 = arith.constant 52 : index
      %343 = memref.load %arg2[%c52] : memref<144xf32, #tpu.memory_space<smem>>
      %344 = vector.broadcast %343 : f32 to vector<48x128xf32>
      %345 = arith.mulf %320, %344 : vector<48x128xf32>
      %346 = arith.addf %330, %345 : vector<48x128xf32>
      %c88 = arith.constant 88 : index
      %347 = memref.load %arg2[%c88] : memref<144xf32, #tpu.memory_space<smem>>
      %348 = vector.broadcast %347 : f32 to vector<48x128xf32>
      %349 = arith.mulf %320, %348 : vector<48x128xf32>
      %350 = arith.addf %334, %349 : vector<48x128xf32>
      %c124 = arith.constant 124 : index
      %351 = memref.load %arg2[%c124] : memref<144xf32, #tpu.memory_space<smem>>
      %352 = vector.broadcast %351 : f32 to vector<48x128xf32>
      %353 = arith.mulf %320, %352 : vector<48x128xf32>
      %354 = arith.addf %338, %353 : vector<48x128xf32>
      %c17 = arith.constant 17 : index
      %355 = memref.load %arg2[%c17] : memref<144xf32, #tpu.memory_space<smem>>
      %356 = vector.broadcast %355 : f32 to vector<48x128xf32>
      %357 = arith.mulf %322, %356 : vector<48x128xf32>
      %358 = arith.addf %342, %357 : vector<48x128xf32>
      %c53 = arith.constant 53 : index
      %359 = memref.load %arg2[%c53] : memref<144xf32, #tpu.memory_space<smem>>
      %360 = vector.broadcast %359 : f32 to vector<48x128xf32>
      %361 = arith.mulf %322, %360 : vector<48x128xf32>
      %362 = arith.addf %346, %361 : vector<48x128xf32>
      %c89 = arith.constant 89 : index
      %363 = memref.load %arg2[%c89] : memref<144xf32, #tpu.memory_space<smem>>
      %364 = vector.broadcast %363 : f32 to vector<48x128xf32>
      %365 = arith.mulf %322, %364 : vector<48x128xf32>
      %366 = arith.addf %350, %365 : vector<48x128xf32>
      %c125 = arith.constant 125 : index
      %367 = memref.load %arg2[%c125] : memref<144xf32, #tpu.memory_space<smem>>
      %368 = vector.broadcast %367 : f32 to vector<48x128xf32>
      %369 = arith.mulf %322, %368 : vector<48x128xf32>
      %370 = arith.addf %354, %369 : vector<48x128xf32>
      %c2_i32 = arith.constant 2 : i32
      %371 = arith.addi %41, %c2_i32 : i32
      %372 = arith.index_cast %371 : i32 to index
      %373 = memref.load %arg1[%372] : memref<32xf32, #tpu.memory_space<smem>>
      %374 = vector.broadcast %373 : f32 to vector<48x128xf32>
      %375 = arith.addf %arg11, %374 : vector<48x128xf32>
      %376 = arith.negf %375 : vector<48x128xf32>
      %377 = math.exp %376 : vector<48x128xf32>
      %cst_62 = arith.constant 1.000000e+00 : f32
      %378 = vector.broadcast %cst_62 : f32 to vector<48x128xf32>
      %379 = arith.addf %378, %377 : vector<48x128xf32>
      %380 = arith.divf %378, %379 : vector<48x128xf32>
      %381 = arith.mulf %375, %380 : vector<48x128xf32>
      %382 = arith.mulf %381, %8 : vector<48x128xf32>
      %c1_i32_63 = arith.constant 1 : i32
      %383 = tpu.dynamic_rotate %382 by %c1_i32_63 dim 0 : vector<48x128xf32>, i32 -> vector<48x128xf32>
      %c1_i32_64 = arith.constant 1 : i32
      %384 = tpu.dynamic_rotate %383 by %c1_i32_64 dim 1 : vector<48x128xf32>, i32 -> vector<48x128xf32>
      %c127_i32_65 = arith.constant 127 : i32
      %385 = tpu.dynamic_rotate %383 by %c127_i32_65 dim 1 : vector<48x128xf32>, i32 -> vector<48x128xf32>
      %c18 = arith.constant 18 : index
      %386 = memref.load %arg2[%c18] : memref<144xf32, #tpu.memory_space<smem>>
      %387 = vector.broadcast %386 : f32 to vector<48x128xf32>
      %388 = arith.mulf %384, %387 : vector<48x128xf32>
      %389 = arith.addf %358, %388 : vector<48x128xf32>
      %c54 = arith.constant 54 : index
      %390 = memref.load %arg2[%c54] : memref<144xf32, #tpu.memory_space<smem>>
      %391 = vector.broadcast %390 : f32 to vector<48x128xf32>
      %392 = arith.mulf %384, %391 : vector<48x128xf32>
      %393 = arith.addf %362, %392 : vector<48x128xf32>
      %c90 = arith.constant 90 : index
      %394 = memref.load %arg2[%c90] : memref<144xf32, #tpu.memory_space<smem>>
      %395 = vector.broadcast %394 : f32 to vector<48x128xf32>
      %396 = arith.mulf %384, %395 : vector<48x128xf32>
      %397 = arith.addf %366, %396 : vector<48x128xf32>
      %c126 = arith.constant 126 : index
      %398 = memref.load %arg2[%c126] : memref<144xf32, #tpu.memory_space<smem>>
      %399 = vector.broadcast %398 : f32 to vector<48x128xf32>
      %400 = arith.mulf %384, %399 : vector<48x128xf32>
      %401 = arith.addf %370, %400 : vector<48x128xf32>
      %c19 = arith.constant 19 : index
      %402 = memref.load %arg2[%c19] : memref<144xf32, #tpu.memory_space<smem>>
      %403 = vector.broadcast %402 : f32 to vector<48x128xf32>
      %404 = arith.mulf %383, %403 : vector<48x128xf32>
      %405 = arith.addf %389, %404 : vector<48x128xf32>
      %c55 = arith.constant 55 : index
      %406 = memref.load %arg2[%c55] : memref<144xf32, #tpu.memory_space<smem>>
      %407 = vector.broadcast %406 : f32 to vector<48x128xf32>
      %408 = arith.mulf %383, %407 : vector<48x128xf32>
      %409 = arith.addf %393, %408 : vector<48x128xf32>
      %c91 = arith.constant 91 : index
      %410 = memref.load %arg2[%c91] : memref<144xf32, #tpu.memory_space<smem>>
      %411 = vector.broadcast %410 : f32 to vector<48x128xf32>
      %412 = arith.mulf %383, %411 : vector<48x128xf32>
      %413 = arith.addf %397, %412 : vector<48x128xf32>
      %c127 = arith.constant 127 : index
      %414 = memref.load %arg2[%c127] : memref<144xf32, #tpu.memory_space<smem>>
      %415 = vector.broadcast %414 : f32 to vector<48x128xf32>
      %416 = arith.mulf %383, %415 : vector<48x128xf32>
      %417 = arith.addf %401, %416 : vector<48x128xf32>
      %c20 = arith.constant 20 : index
      %418 = memref.load %arg2[%c20] : memref<144xf32, #tpu.memory_space<smem>>
      %419 = vector.broadcast %418 : f32 to vector<48x128xf32>
      %420 = arith.mulf %385, %419 : vector<48x128xf32>
      %421 = arith.addf %405, %420 : vector<48x128xf32>
      %c56 = arith.constant 56 : index
      %422 = memref.load %arg2[%c56] : memref<144xf32, #tpu.memory_space<smem>>
      %423 = vector.broadcast %422 : f32 to vector<48x128xf32>
      %424 = arith.mulf %385, %423 : vector<48x128xf32>
      %425 = arith.addf %409, %424 : vector<48x128xf32>
      %c92 = arith.constant 92 : index
      %426 = memref.load %arg2[%c92] : memref<144xf32, #tpu.memory_space<smem>>
      %427 = vector.broadcast %426 : f32 to vector<48x128xf32>
      %428 = arith.mulf %385, %427 : vector<48x128xf32>
      %429 = arith.addf %413, %428 : vector<48x128xf32>
      %c128 = arith.constant 128 : index
      %430 = memref.load %arg2[%c128] : memref<144xf32, #tpu.memory_space<smem>>
      %431 = vector.broadcast %430 : f32 to vector<48x128xf32>
      %432 = arith.mulf %385, %431 : vector<48x128xf32>
      %433 = arith.addf %417, %432 : vector<48x128xf32>
      %c1_i32_66 = arith.constant 1 : i32
      %434 = tpu.dynamic_rotate %382 by %c1_i32_66 dim 1 : vector<48x128xf32>, i32 -> vector<48x128xf32>
      %c127_i32_67 = arith.constant 127 : i32
      %435 = tpu.dynamic_rotate %382 by %c127_i32_67 dim 1 : vector<48x128xf32>, i32 -> vector<48x128xf32>
      %c21 = arith.constant 21 : index
      %436 = memref.load %arg2[%c21] : memref<144xf32, #tpu.memory_space<smem>>
      %437 = vector.broadcast %436 : f32 to vector<48x128xf32>
      %438 = arith.mulf %434, %437 : vector<48x128xf32>
      %439 = arith.addf %421, %438 : vector<48x128xf32>
      %c57 = arith.constant 57 : index
      %440 = memref.load %arg2[%c57] : memref<144xf32, #tpu.memory_space<smem>>
      %441 = vector.broadcast %440 : f32 to vector<48x128xf32>
      %442 = arith.mulf %434, %441 : vector<48x128xf32>
      %443 = arith.addf %425, %442 : vector<48x128xf32>
      %c93 = arith.constant 93 : index
      %444 = memref.load %arg2[%c93] : memref<144xf32, #tpu.memory_space<smem>>
      %445 = vector.broadcast %444 : f32 to vector<48x128xf32>
      %446 = arith.mulf %434, %445 : vector<48x128xf32>
      %447 = arith.addf %429, %446 : vector<48x128xf32>
      %c129 = arith.constant 129 : index
      %448 = memref.load %arg2[%c129] : memref<144xf32, #tpu.memory_space<smem>>
      %449 = vector.broadcast %448 : f32 to vector<48x128xf32>
      %450 = arith.mulf %434, %449 : vector<48x128xf32>
      %451 = arith.addf %433, %450 : vector<48x128xf32>
      %c22 = arith.constant 22 : index
      %452 = memref.load %arg2[%c22] : memref<144xf32, #tpu.memory_space<smem>>
      %453 = vector.broadcast %452 : f32 to vector<48x128xf32>
      %454 = arith.mulf %382, %453 : vector<48x128xf32>
      %455 = arith.addf %439, %454 : vector<48x128xf32>
      %c58 = arith.constant 58 : index
      %456 = memref.load %arg2[%c58] : memref<144xf32, #tpu.memory_space<smem>>
      %457 = vector.broadcast %456 : f32 to vector<48x128xf32>
      %458 = arith.mulf %382, %457 : vector<48x128xf32>
      %459 = arith.addf %443, %458 : vector<48x128xf32>
      %c94 = arith.constant 94 : index
      %460 = memref.load %arg2[%c94] : memref<144xf32, #tpu.memory_space<smem>>
      %461 = vector.broadcast %460 : f32 to vector<48x128xf32>
      %462 = arith.mulf %382, %461 : vector<48x128xf32>
      %463 = arith.addf %447, %462 : vector<48x128xf32>
      %c130 = arith.constant 130 : index
      %464 = memref.load %arg2[%c130] : memref<144xf32, #tpu.memory_space<smem>>
      %465 = vector.broadcast %464 : f32 to vector<48x128xf32>
      %466 = arith.mulf %382, %465 : vector<48x128xf32>
      %467 = arith.addf %451, %466 : vector<48x128xf32>
      %c23 = arith.constant 23 : index
      %468 = memref.load %arg2[%c23] : memref<144xf32, #tpu.memory_space<smem>>
      %469 = vector.broadcast %468 : f32 to vector<48x128xf32>
      %470 = arith.mulf %435, %469 : vector<48x128xf32>
      %471 = arith.addf %455, %470 : vector<48x128xf32>
      %c59 = arith.constant 59 : index
      %472 = memref.load %arg2[%c59] : memref<144xf32, #tpu.memory_space<smem>>
      %473 = vector.broadcast %472 : f32 to vector<48x128xf32>
      %474 = arith.mulf %435, %473 : vector<48x128xf32>
      %475 = arith.addf %459, %474 : vector<48x128xf32>
      %c95 = arith.constant 95 : index
      %476 = memref.load %arg2[%c95] : memref<144xf32, #tpu.memory_space<smem>>
      %477 = vector.broadcast %476 : f32 to vector<48x128xf32>
      %478 = arith.mulf %435, %477 : vector<48x128xf32>
      %479 = arith.addf %463, %478 : vector<48x128xf32>
      %c131 = arith.constant 131 : index
      %480 = memref.load %arg2[%c131] : memref<144xf32, #tpu.memory_space<smem>>
      %481 = vector.broadcast %480 : f32 to vector<48x128xf32>
      %482 = arith.mulf %435, %481 : vector<48x128xf32>
      %483 = arith.addf %467, %482 : vector<48x128xf32>
      %c47_i32_68 = arith.constant 47 : i32
      %484 = tpu.dynamic_rotate %382 by %c47_i32_68 dim 0 : vector<48x128xf32>, i32 -> vector<48x128xf32>
      %c1_i32_69 = arith.constant 1 : i32
      %485 = tpu.dynamic_rotate %484 by %c1_i32_69 dim 1 : vector<48x128xf32>, i32 -> vector<48x128xf32>
      %c127_i32_70 = arith.constant 127 : i32
      %486 = tpu.dynamic_rotate %484 by %c127_i32_70 dim 1 : vector<48x128xf32>, i32 -> vector<48x128xf32>
      %c24 = arith.constant 24 : index
      %487 = memref.load %arg2[%c24] : memref<144xf32, #tpu.memory_space<smem>>
      %488 = vector.broadcast %487 : f32 to vector<48x128xf32>
      %489 = arith.mulf %485, %488 : vector<48x128xf32>
      %490 = arith.addf %471, %489 : vector<48x128xf32>
      %c60 = arith.constant 60 : index
      %491 = memref.load %arg2[%c60] : memref<144xf32, #tpu.memory_space<smem>>
      %492 = vector.broadcast %491 : f32 to vector<48x128xf32>
      %493 = arith.mulf %485, %492 : vector<48x128xf32>
      %494 = arith.addf %475, %493 : vector<48x128xf32>
      %c96 = arith.constant 96 : index
      %495 = memref.load %arg2[%c96] : memref<144xf32, #tpu.memory_space<smem>>
      %496 = vector.broadcast %495 : f32 to vector<48x128xf32>
      %497 = arith.mulf %485, %496 : vector<48x128xf32>
      %498 = arith.addf %479, %497 : vector<48x128xf32>
      %c132 = arith.constant 132 : index
      %499 = memref.load %arg2[%c132] : memref<144xf32, #tpu.memory_space<smem>>
      %500 = vector.broadcast %499 : f32 to vector<48x128xf32>
      %501 = arith.mulf %485, %500 : vector<48x128xf32>
      %502 = arith.addf %483, %501 : vector<48x128xf32>
      %c25 = arith.constant 25 : index
      %503 = memref.load %arg2[%c25] : memref<144xf32, #tpu.memory_space<smem>>
      %504 = vector.broadcast %503 : f32 to vector<48x128xf32>
      %505 = arith.mulf %484, %504 : vector<48x128xf32>
      %506 = arith.addf %490, %505 : vector<48x128xf32>
      %c61 = arith.constant 61 : index
      %507 = memref.load %arg2[%c61] : memref<144xf32, #tpu.memory_space<smem>>
      %508 = vector.broadcast %507 : f32 to vector<48x128xf32>
      %509 = arith.mulf %484, %508 : vector<48x128xf32>
      %510 = arith.addf %494, %509 : vector<48x128xf32>
      %c97 = arith.constant 97 : index
      %511 = memref.load %arg2[%c97] : memref<144xf32, #tpu.memory_space<smem>>
      %512 = vector.broadcast %511 : f32 to vector<48x128xf32>
      %513 = arith.mulf %484, %512 : vector<48x128xf32>
      %514 = arith.addf %498, %513 : vector<48x128xf32>
      %c133 = arith.constant 133 : index
      %515 = memref.load %arg2[%c133] : memref<144xf32, #tpu.memory_space<smem>>
      %516 = vector.broadcast %515 : f32 to vector<48x128xf32>
      %517 = arith.mulf %484, %516 : vector<48x128xf32>
      %518 = arith.addf %502, %517 : vector<48x128xf32>
      %c26 = arith.constant 26 : index
      %519 = memref.load %arg2[%c26] : memref<144xf32, #tpu.memory_space<smem>>
      %520 = vector.broadcast %519 : f32 to vector<48x128xf32>
      %521 = arith.mulf %486, %520 : vector<48x128xf32>
      %522 = arith.addf %506, %521 : vector<48x128xf32>
      %c62 = arith.constant 62 : index
      %523 = memref.load %arg2[%c62] : memref<144xf32, #tpu.memory_space<smem>>
      %524 = vector.broadcast %523 : f32 to vector<48x128xf32>
      %525 = arith.mulf %486, %524 : vector<48x128xf32>
      %526 = arith.addf %510, %525 : vector<48x128xf32>
      %c98 = arith.constant 98 : index
      %527 = memref.load %arg2[%c98] : memref<144xf32, #tpu.memory_space<smem>>
      %528 = vector.broadcast %527 : f32 to vector<48x128xf32>
      %529 = arith.mulf %486, %528 : vector<48x128xf32>
      %530 = arith.addf %514, %529 : vector<48x128xf32>
      %c134 = arith.constant 134 : index
      %531 = memref.load %arg2[%c134] : memref<144xf32, #tpu.memory_space<smem>>
      %532 = vector.broadcast %531 : f32 to vector<48x128xf32>
      %533 = arith.mulf %486, %532 : vector<48x128xf32>
      %534 = arith.addf %518, %533 : vector<48x128xf32>
      %c3_i32 = arith.constant 3 : i32
      %535 = arith.addi %41, %c3_i32 : i32
      %536 = arith.index_cast %535 : i32 to index
      %537 = memref.load %arg1[%536] : memref<32xf32, #tpu.memory_space<smem>>
      %538 = vector.broadcast %537 : f32 to vector<48x128xf32>
      %539 = arith.addf %arg12, %538 : vector<48x128xf32>
      %540 = arith.negf %539 : vector<48x128xf32>
      %541 = math.exp %540 : vector<48x128xf32>
      %cst_71 = arith.constant 1.000000e+00 : f32
      %542 = vector.broadcast %cst_71 : f32 to vector<48x128xf32>
      %543 = arith.addf %542, %541 : vector<48x128xf32>
      %544 = arith.divf %542, %543 : vector<48x128xf32>
      %545 = arith.mulf %539, %544 : vector<48x128xf32>
      %546 = arith.mulf %545, %8 : vector<48x128xf32>
      %c1_i32_72 = arith.constant 1 : i32
      %547 = tpu.dynamic_rotate %546 by %c1_i32_72 dim 0 : vector<48x128xf32>, i32 -> vector<48x128xf32>
      %c1_i32_73 = arith.constant 1 : i32
      %548 = tpu.dynamic_rotate %547 by %c1_i32_73 dim 1 : vector<48x128xf32>, i32 -> vector<48x128xf32>
      %c127_i32_74 = arith.constant 127 : i32
      %549 = tpu.dynamic_rotate %547 by %c127_i32_74 dim 1 : vector<48x128xf32>, i32 -> vector<48x128xf32>
      %c27 = arith.constant 27 : index
      %550 = memref.load %arg2[%c27] : memref<144xf32, #tpu.memory_space<smem>>
      %551 = vector.broadcast %550 : f32 to vector<48x128xf32>
      %552 = arith.mulf %548, %551 : vector<48x128xf32>
      %553 = arith.addf %522, %552 : vector<48x128xf32>
      %c63 = arith.constant 63 : index
      %554 = memref.load %arg2[%c63] : memref<144xf32, #tpu.memory_space<smem>>
      %555 = vector.broadcast %554 : f32 to vector<48x128xf32>
      %556 = arith.mulf %548, %555 : vector<48x128xf32>
      %557 = arith.addf %526, %556 : vector<48x128xf32>
      %c99 = arith.constant 99 : index
      %558 = memref.load %arg2[%c99] : memref<144xf32, #tpu.memory_space<smem>>
      %559 = vector.broadcast %558 : f32 to vector<48x128xf32>
      %560 = arith.mulf %548, %559 : vector<48x128xf32>
      %561 = arith.addf %530, %560 : vector<48x128xf32>
      %c135 = arith.constant 135 : index
      %562 = memref.load %arg2[%c135] : memref<144xf32, #tpu.memory_space<smem>>
      %563 = vector.broadcast %562 : f32 to vector<48x128xf32>
      %564 = arith.mulf %548, %563 : vector<48x128xf32>
      %565 = arith.addf %534, %564 : vector<48x128xf32>
      %c28 = arith.constant 28 : index
      %566 = memref.load %arg2[%c28] : memref<144xf32, #tpu.memory_space<smem>>
      %567 = vector.broadcast %566 : f32 to vector<48x128xf32>
      %568 = arith.mulf %547, %567 : vector<48x128xf32>
      %569 = arith.addf %553, %568 : vector<48x128xf32>
      %c64 = arith.constant 64 : index
      %570 = memref.load %arg2[%c64] : memref<144xf32, #tpu.memory_space<smem>>
      %571 = vector.broadcast %570 : f32 to vector<48x128xf32>
      %572 = arith.mulf %547, %571 : vector<48x128xf32>
      %573 = arith.addf %557, %572 : vector<48x128xf32>
      %c100 = arith.constant 100 : index
      %574 = memref.load %arg2[%c100] : memref<144xf32, #tpu.memory_space<smem>>
      %575 = vector.broadcast %574 : f32 to vector<48x128xf32>
      %576 = arith.mulf %547, %575 : vector<48x128xf32>
      %577 = arith.addf %561, %576 : vector<48x128xf32>
      %c136 = arith.constant 136 : index
      %578 = memref.load %arg2[%c136] : memref<144xf32, #tpu.memory_space<smem>>
      %579 = vector.broadcast %578 : f32 to vector<48x128xf32>
      %580 = arith.mulf %547, %579 : vector<48x128xf32>
      %581 = arith.addf %565, %580 : vector<48x128xf32>
      %c29 = arith.constant 29 : index
      %582 = memref.load %arg2[%c29] : memref<144xf32, #tpu.memory_space<smem>>
      %583 = vector.broadcast %582 : f32 to vector<48x128xf32>
      %584 = arith.mulf %549, %583 : vector<48x128xf32>
      %585 = arith.addf %569, %584 : vector<48x128xf32>
      %c65 = arith.constant 65 : index
      %586 = memref.load %arg2[%c65] : memref<144xf32, #tpu.memory_space<smem>>
      %587 = vector.broadcast %586 : f32 to vector<48x128xf32>
      %588 = arith.mulf %549, %587 : vector<48x128xf32>
      %589 = arith.addf %573, %588 : vector<48x128xf32>
      %c101 = arith.constant 101 : index
      %590 = memref.load %arg2[%c101] : memref<144xf32, #tpu.memory_space<smem>>
      %591 = vector.broadcast %590 : f32 to vector<48x128xf32>
      %592 = arith.mulf %549, %591 : vector<48x128xf32>
      %593 = arith.addf %577, %592 : vector<48x128xf32>
      %c137 = arith.constant 137 : index
      %594 = memref.load %arg2[%c137] : memref<144xf32, #tpu.memory_space<smem>>
      %595 = vector.broadcast %594 : f32 to vector<48x128xf32>
      %596 = arith.mulf %549, %595 : vector<48x128xf32>
      %597 = arith.addf %581, %596 : vector<48x128xf32>
      %c1_i32_75 = arith.constant 1 : i32
      %598 = tpu.dynamic_rotate %546 by %c1_i32_75 dim 1 : vector<48x128xf32>, i32 -> vector<48x128xf32>
      %c127_i32_76 = arith.constant 127 : i32
      %599 = tpu.dynamic_rotate %546 by %c127_i32_76 dim 1 : vector<48x128xf32>, i32 -> vector<48x128xf32>
      %c30 = arith.constant 30 : index
      %600 = memref.load %arg2[%c30] : memref<144xf32, #tpu.memory_space<smem>>
      %601 = vector.broadcast %600 : f32 to vector<48x128xf32>
      %602 = arith.mulf %598, %601 : vector<48x128xf32>
      %603 = arith.addf %585, %602 : vector<48x128xf32>
      %c66 = arith.constant 66 : index
      %604 = memref.load %arg2[%c66] : memref<144xf32, #tpu.memory_space<smem>>
      %605 = vector.broadcast %604 : f32 to vector<48x128xf32>
      %606 = arith.mulf %598, %605 : vector<48x128xf32>
      %607 = arith.addf %589, %606 : vector<48x128xf32>
      %c102 = arith.constant 102 : index
      %608 = memref.load %arg2[%c102] : memref<144xf32, #tpu.memory_space<smem>>
      %609 = vector.broadcast %608 : f32 to vector<48x128xf32>
      %610 = arith.mulf %598, %609 : vector<48x128xf32>
      %611 = arith.addf %593, %610 : vector<48x128xf32>
      %c138 = arith.constant 138 : index
      %612 = memref.load %arg2[%c138] : memref<144xf32, #tpu.memory_space<smem>>
      %613 = vector.broadcast %612 : f32 to vector<48x128xf32>
      %614 = arith.mulf %598, %613 : vector<48x128xf32>
      %615 = arith.addf %597, %614 : vector<48x128xf32>
      %c31 = arith.constant 31 : index
      %616 = memref.load %arg2[%c31] : memref<144xf32, #tpu.memory_space<smem>>
      %617 = vector.broadcast %616 : f32 to vector<48x128xf32>
      %618 = arith.mulf %546, %617 : vector<48x128xf32>
      %619 = arith.addf %603, %618 : vector<48x128xf32>
      %c67 = arith.constant 67 : index
      %620 = memref.load %arg2[%c67] : memref<144xf32, #tpu.memory_space<smem>>
      %621 = vector.broadcast %620 : f32 to vector<48x128xf32>
      %622 = arith.mulf %546, %621 : vector<48x128xf32>
      %623 = arith.addf %607, %622 : vector<48x128xf32>
      %c103 = arith.constant 103 : index
      %624 = memref.load %arg2[%c103] : memref<144xf32, #tpu.memory_space<smem>>
      %625 = vector.broadcast %624 : f32 to vector<48x128xf32>
      %626 = arith.mulf %546, %625 : vector<48x128xf32>
      %627 = arith.addf %611, %626 : vector<48x128xf32>
      %c139 = arith.constant 139 : index
      %628 = memref.load %arg2[%c139] : memref<144xf32, #tpu.memory_space<smem>>
      %629 = vector.broadcast %628 : f32 to vector<48x128xf32>
      %630 = arith.mulf %546, %629 : vector<48x128xf32>
      %631 = arith.addf %615, %630 : vector<48x128xf32>
      %c32 = arith.constant 32 : index
      %632 = memref.load %arg2[%c32] : memref<144xf32, #tpu.memory_space<smem>>
      %633 = vector.broadcast %632 : f32 to vector<48x128xf32>
      %634 = arith.mulf %599, %633 : vector<48x128xf32>
      %635 = arith.addf %619, %634 : vector<48x128xf32>
      %c68 = arith.constant 68 : index
      %636 = memref.load %arg2[%c68] : memref<144xf32, #tpu.memory_space<smem>>
      %637 = vector.broadcast %636 : f32 to vector<48x128xf32>
      %638 = arith.mulf %599, %637 : vector<48x128xf32>
      %639 = arith.addf %623, %638 : vector<48x128xf32>
      %c104 = arith.constant 104 : index
      %640 = memref.load %arg2[%c104] : memref<144xf32, #tpu.memory_space<smem>>
      %641 = vector.broadcast %640 : f32 to vector<48x128xf32>
      %642 = arith.mulf %599, %641 : vector<48x128xf32>
      %643 = arith.addf %627, %642 : vector<48x128xf32>
      %c140 = arith.constant 140 : index
      %644 = memref.load %arg2[%c140] : memref<144xf32, #tpu.memory_space<smem>>
      %645 = vector.broadcast %644 : f32 to vector<48x128xf32>
      %646 = arith.mulf %599, %645 : vector<48x128xf32>
      %647 = arith.addf %631, %646 : vector<48x128xf32>
      %c47_i32_77 = arith.constant 47 : i32
      %648 = tpu.dynamic_rotate %546 by %c47_i32_77 dim 0 : vector<48x128xf32>, i32 -> vector<48x128xf32>
      %c1_i32_78 = arith.constant 1 : i32
      %649 = tpu.dynamic_rotate %648 by %c1_i32_78 dim 1 : vector<48x128xf32>, i32 -> vector<48x128xf32>
      %c127_i32_79 = arith.constant 127 : i32
      %650 = tpu.dynamic_rotate %648 by %c127_i32_79 dim 1 : vector<48x128xf32>, i32 -> vector<48x128xf32>
      %c33 = arith.constant 33 : index
      %651 = memref.load %arg2[%c33] : memref<144xf32, #tpu.memory_space<smem>>
      %652 = vector.broadcast %651 : f32 to vector<48x128xf32>
      %653 = arith.mulf %649, %652 : vector<48x128xf32>
      %654 = arith.addf %635, %653 : vector<48x128xf32>
      %c69 = arith.constant 69 : index
      %655 = memref.load %arg2[%c69] : memref<144xf32, #tpu.memory_space<smem>>
      %656 = vector.broadcast %655 : f32 to vector<48x128xf32>
      %657 = arith.mulf %649, %656 : vector<48x128xf32>
      %658 = arith.addf %639, %657 : vector<48x128xf32>
      %c105 = arith.constant 105 : index
      %659 = memref.load %arg2[%c105] : memref<144xf32, #tpu.memory_space<smem>>
      %660 = vector.broadcast %659 : f32 to vector<48x128xf32>
      %661 = arith.mulf %649, %660 : vector<48x128xf32>
      %662 = arith.addf %643, %661 : vector<48x128xf32>
      %c141 = arith.constant 141 : index
      %663 = memref.load %arg2[%c141] : memref<144xf32, #tpu.memory_space<smem>>
      %664 = vector.broadcast %663 : f32 to vector<48x128xf32>
      %665 = arith.mulf %649, %664 : vector<48x128xf32>
      %666 = arith.addf %647, %665 : vector<48x128xf32>
      %c34 = arith.constant 34 : index
      %667 = memref.load %arg2[%c34] : memref<144xf32, #tpu.memory_space<smem>>
      %668 = vector.broadcast %667 : f32 to vector<48x128xf32>
      %669 = arith.mulf %648, %668 : vector<48x128xf32>
      %670 = arith.addf %654, %669 : vector<48x128xf32>
      %c70 = arith.constant 70 : index
      %671 = memref.load %arg2[%c70] : memref<144xf32, #tpu.memory_space<smem>>
      %672 = vector.broadcast %671 : f32 to vector<48x128xf32>
      %673 = arith.mulf %648, %672 : vector<48x128xf32>
      %674 = arith.addf %658, %673 : vector<48x128xf32>
      %c106 = arith.constant 106 : index
      %675 = memref.load %arg2[%c106] : memref<144xf32, #tpu.memory_space<smem>>
      %676 = vector.broadcast %675 : f32 to vector<48x128xf32>
      %677 = arith.mulf %648, %676 : vector<48x128xf32>
      %678 = arith.addf %662, %677 : vector<48x128xf32>
      %c142 = arith.constant 142 : index
      %679 = memref.load %arg2[%c142] : memref<144xf32, #tpu.memory_space<smem>>
      %680 = vector.broadcast %679 : f32 to vector<48x128xf32>
      %681 = arith.mulf %648, %680 : vector<48x128xf32>
      %682 = arith.addf %666, %681 : vector<48x128xf32>
      %c35 = arith.constant 35 : index
      %683 = memref.load %arg2[%c35] : memref<144xf32, #tpu.memory_space<smem>>
      %684 = vector.broadcast %683 : f32 to vector<48x128xf32>
      %685 = arith.mulf %650, %684 : vector<48x128xf32>
      %686 = arith.addf %670, %685 : vector<48x128xf32>
      %c71 = arith.constant 71 : index
      %687 = memref.load %arg2[%c71] : memref<144xf32, #tpu.memory_space<smem>>
      %688 = vector.broadcast %687 : f32 to vector<48x128xf32>
      %689 = arith.mulf %650, %688 : vector<48x128xf32>
      %690 = arith.addf %674, %689 : vector<48x128xf32>
      %c107 = arith.constant 107 : index
      %691 = memref.load %arg2[%c107] : memref<144xf32, #tpu.memory_space<smem>>
      %692 = vector.broadcast %691 : f32 to vector<48x128xf32>
      %693 = arith.mulf %650, %692 : vector<48x128xf32>
      %694 = arith.addf %678, %693 : vector<48x128xf32>
      %c143 = arith.constant 143 : index
      %695 = memref.load %arg2[%c143] : memref<144xf32, #tpu.memory_space<smem>>
      %696 = vector.broadcast %695 : f32 to vector<48x128xf32>
      %697 = arith.mulf %650, %696 : vector<48x128xf32>
      %698 = arith.addf %682, %697 : vector<48x128xf32>
      %699 = arith.mulf %686, %8 : vector<48x128xf32>
      %700 = arith.mulf %699, %686 : vector<48x128xf32>
      %701 = arith.mulf %690, %8 : vector<48x128xf32>
      %702 = arith.addf %699, %701 : vector<48x128xf32>
      %703 = arith.mulf %701, %690 : vector<48x128xf32>
      %704 = arith.addf %700, %703 : vector<48x128xf32>
      %705 = arith.mulf %694, %8 : vector<48x128xf32>
      %706 = arith.addf %702, %705 : vector<48x128xf32>
      %707 = arith.mulf %705, %694 : vector<48x128xf32>
      %708 = arith.addf %704, %707 : vector<48x128xf32>
      %709 = arith.mulf %698, %8 : vector<48x128xf32>
      %710 = arith.addf %706, %709 : vector<48x128xf32>
      %711 = arith.mulf %709, %698 : vector<48x128xf32>
      %712 = arith.addf %708, %711 : vector<48x128xf32>
      %713 = vector.shape_cast %710 : vector<48x128xf32> to vector<1x48x128xf32>
      %cst_80 = arith.constant dense<0.000000e+00> : vector<1xf32>
      %714 = vector.multi_reduction <add>, %713, %cst_80 [1, 2] : vector<1x48x128xf32> to vector<1xf32>
      %715 = vector.shape_cast %714 : vector<1xf32> to vector<1x1x1xf32>
      %716 = vector.extract %715[0, 0, 0] : f32 from vector<1x1x1xf32>
      %cst_81 = arith.constant 1.2345679E-4 : f32
      %717 = arith.mulf %716, %cst_81 : f32
      %718 = vector.shape_cast %712 : vector<48x128xf32> to vector<1x48x128xf32>
      %cst_82 = arith.constant dense<0.000000e+00> : vector<1xf32>
      %719 = vector.multi_reduction <add>, %718, %cst_82 [1, 2] : vector<1x48x128xf32> to vector<1xf32>
      %720 = vector.shape_cast %719 : vector<1xf32> to vector<1x1x1xf32>
      %721 = vector.extract %720[0, 0, 0] : f32 from vector<1x1x1xf32>
      %cst_83 = arith.constant 1.2345679E-4 : f32
      %722 = arith.mulf %721, %cst_83 : f32
      %723 = arith.mulf %717, %717 : f32
      %724 = arith.subf %722, %723 : f32
      %cst_84 = arith.constant 9.99999974E-6 : f32
      %725 = arith.addf %724, %cst_84 : f32
      %726 = math.rsqrt %725 : f32
      %727 = arith.mulf %726, %9 : f32
      %728 = vector.broadcast %727 : f32 to vector<48x128xf32>
      %729 = arith.mulf %686, %728 : vector<48x128xf32>
      %730 = arith.mulf %717, %727 : f32
      %731 = arith.subf %13, %730 : f32
      %732 = vector.broadcast %731 : f32 to vector<48x128xf32>
      %733 = arith.addf %729, %732 : vector<48x128xf32>
      %734 = arith.negf %733 : vector<48x128xf32>
      %735 = math.exp %734 : vector<48x128xf32>
      %cst_85 = arith.constant 1.000000e+00 : f32
      %736 = vector.broadcast %cst_85 : f32 to vector<48x128xf32>
      %737 = arith.addf %736, %735 : vector<48x128xf32>
      %738 = arith.divf %736, %737 : vector<48x128xf32>
      %739 = arith.mulf %733, %738 : vector<48x128xf32>
      %740 = arith.mulf %739, %8 : vector<48x128xf32>
      %c1_i32_86 = arith.constant 1 : i32
      %741 = tpu.dynamic_rotate %740 by %c1_i32_86 dim 0 : vector<48x128xf32>, i32 -> vector<48x128xf32>
      %c1_i32_87 = arith.constant 1 : i32
      %742 = tpu.dynamic_rotate %741 by %c1_i32_87 dim 1 : vector<48x128xf32>, i32 -> vector<48x128xf32>
      %c127_i32_88 = arith.constant 127 : i32
      %743 = tpu.dynamic_rotate %741 by %c127_i32_88 dim 1 : vector<48x128xf32>, i32 -> vector<48x128xf32>
      %c0_89 = arith.constant 0 : index
      %744 = memref.load %arg5[%c0_89] : memref<144xf32, #tpu.memory_space<smem>>
      %745 = vector.broadcast %744 : f32 to vector<48x128xf32>
      %746 = arith.mulf %742, %745 : vector<48x128xf32>
      %747 = arith.subf %arg9, %746 : vector<48x128xf32>
      %c36_90 = arith.constant 36 : index
      %748 = memref.load %arg5[%c36_90] : memref<144xf32, #tpu.memory_space<smem>>
      %749 = vector.broadcast %748 : f32 to vector<48x128xf32>
      %750 = arith.mulf %742, %749 : vector<48x128xf32>
      %751 = arith.subf %arg10, %750 : vector<48x128xf32>
      %c72_91 = arith.constant 72 : index
      %752 = memref.load %arg5[%c72_91] : memref<144xf32, #tpu.memory_space<smem>>
      %753 = vector.broadcast %752 : f32 to vector<48x128xf32>
      %754 = arith.mulf %742, %753 : vector<48x128xf32>
      %755 = arith.subf %arg11, %754 : vector<48x128xf32>
      %c108_92 = arith.constant 108 : index
      %756 = memref.load %arg5[%c108_92] : memref<144xf32, #tpu.memory_space<smem>>
      %757 = vector.broadcast %756 : f32 to vector<48x128xf32>
      %758 = arith.mulf %742, %757 : vector<48x128xf32>
      %759 = arith.subf %arg12, %758 : vector<48x128xf32>
      %c1_93 = arith.constant 1 : index
      %760 = memref.load %arg5[%c1_93] : memref<144xf32, #tpu.memory_space<smem>>
      %761 = vector.broadcast %760 : f32 to vector<48x128xf32>
      %762 = arith.mulf %741, %761 : vector<48x128xf32>
      %763 = arith.subf %747, %762 : vector<48x128xf32>
      %c37_94 = arith.constant 37 : index
      %764 = memref.load %arg5[%c37_94] : memref<144xf32, #tpu.memory_space<smem>>
      %765 = vector.broadcast %764 : f32 to vector<48x128xf32>
      %766 = arith.mulf %741, %765 : vector<48x128xf32>
      %767 = arith.subf %751, %766 : vector<48x128xf32>
      %c73_95 = arith.constant 73 : index
      %768 = memref.load %arg5[%c73_95] : memref<144xf32, #tpu.memory_space<smem>>
      %769 = vector.broadcast %768 : f32 to vector<48x128xf32>
      %770 = arith.mulf %741, %769 : vector<48x128xf32>
      %771 = arith.subf %755, %770 : vector<48x128xf32>
      %c109_96 = arith.constant 109 : index
      %772 = memref.load %arg5[%c109_96] : memref<144xf32, #tpu.memory_space<smem>>
      %773 = vector.broadcast %772 : f32 to vector<48x128xf32>
      %774 = arith.mulf %741, %773 : vector<48x128xf32>
      %775 = arith.subf %759, %774 : vector<48x128xf32>
      %c2_97 = arith.constant 2 : index
      %776 = memref.load %arg5[%c2_97] : memref<144xf32, #tpu.memory_space<smem>>
      %777 = vector.broadcast %776 : f32 to vector<48x128xf32>
      %778 = arith.mulf %743, %777 : vector<48x128xf32>
      %779 = arith.subf %763, %778 : vector<48x128xf32>
      %c38_98 = arith.constant 38 : index
      %780 = memref.load %arg5[%c38_98] : memref<144xf32, #tpu.memory_space<smem>>
      %781 = vector.broadcast %780 : f32 to vector<48x128xf32>
      %782 = arith.mulf %743, %781 : vector<48x128xf32>
      %783 = arith.subf %767, %782 : vector<48x128xf32>
      %c74_99 = arith.constant 74 : index
      %784 = memref.load %arg5[%c74_99] : memref<144xf32, #tpu.memory_space<smem>>
      %785 = vector.broadcast %784 : f32 to vector<48x128xf32>
      %786 = arith.mulf %743, %785 : vector<48x128xf32>
      %787 = arith.subf %771, %786 : vector<48x128xf32>
      %c110_100 = arith.constant 110 : index
      %788 = memref.load %arg5[%c110_100] : memref<144xf32, #tpu.memory_space<smem>>
      %789 = vector.broadcast %788 : f32 to vector<48x128xf32>
      %790 = arith.mulf %743, %789 : vector<48x128xf32>
      %791 = arith.subf %775, %790 : vector<48x128xf32>
      %c1_i32_101 = arith.constant 1 : i32
      %792 = tpu.dynamic_rotate %740 by %c1_i32_101 dim 1 : vector<48x128xf32>, i32 -> vector<48x128xf32>
      %c127_i32_102 = arith.constant 127 : i32
      %793 = tpu.dynamic_rotate %740 by %c127_i32_102 dim 1 : vector<48x128xf32>, i32 -> vector<48x128xf32>
      %c3_103 = arith.constant 3 : index
      %794 = memref.load %arg5[%c3_103] : memref<144xf32, #tpu.memory_space<smem>>
      %795 = vector.broadcast %794 : f32 to vector<48x128xf32>
      %796 = arith.mulf %792, %795 : vector<48x128xf32>
      %797 = arith.subf %779, %796 : vector<48x128xf32>
      %c39_104 = arith.constant 39 : index
      %798 = memref.load %arg5[%c39_104] : memref<144xf32, #tpu.memory_space<smem>>
      %799 = vector.broadcast %798 : f32 to vector<48x128xf32>
      %800 = arith.mulf %792, %799 : vector<48x128xf32>
      %801 = arith.subf %783, %800 : vector<48x128xf32>
      %c75_105 = arith.constant 75 : index
      %802 = memref.load %arg5[%c75_105] : memref<144xf32, #tpu.memory_space<smem>>
      %803 = vector.broadcast %802 : f32 to vector<48x128xf32>
      %804 = arith.mulf %792, %803 : vector<48x128xf32>
      %805 = arith.subf %787, %804 : vector<48x128xf32>
      %c111_106 = arith.constant 111 : index
      %806 = memref.load %arg5[%c111_106] : memref<144xf32, #tpu.memory_space<smem>>
      %807 = vector.broadcast %806 : f32 to vector<48x128xf32>
      %808 = arith.mulf %792, %807 : vector<48x128xf32>
      %809 = arith.subf %791, %808 : vector<48x128xf32>
      %c4_107 = arith.constant 4 : index
      %810 = memref.load %arg5[%c4_107] : memref<144xf32, #tpu.memory_space<smem>>
      %811 = vector.broadcast %810 : f32 to vector<48x128xf32>
      %812 = arith.mulf %740, %811 : vector<48x128xf32>
      %813 = arith.subf %797, %812 : vector<48x128xf32>
      %c40_108 = arith.constant 40 : index
      %814 = memref.load %arg5[%c40_108] : memref<144xf32, #tpu.memory_space<smem>>
      %815 = vector.broadcast %814 : f32 to vector<48x128xf32>
      %816 = arith.mulf %740, %815 : vector<48x128xf32>
      %817 = arith.subf %801, %816 : vector<48x128xf32>
      %c76_109 = arith.constant 76 : index
      %818 = memref.load %arg5[%c76_109] : memref<144xf32, #tpu.memory_space<smem>>
      %819 = vector.broadcast %818 : f32 to vector<48x128xf32>
      %820 = arith.mulf %740, %819 : vector<48x128xf32>
      %821 = arith.subf %805, %820 : vector<48x128xf32>
      %c112_110 = arith.constant 112 : index
      %822 = memref.load %arg5[%c112_110] : memref<144xf32, #tpu.memory_space<smem>>
      %823 = vector.broadcast %822 : f32 to vector<48x128xf32>
      %824 = arith.mulf %740, %823 : vector<48x128xf32>
      %825 = arith.subf %809, %824 : vector<48x128xf32>
      %c5_111 = arith.constant 5 : index
      %826 = memref.load %arg5[%c5_111] : memref<144xf32, #tpu.memory_space<smem>>
      %827 = vector.broadcast %826 : f32 to vector<48x128xf32>
      %828 = arith.mulf %793, %827 : vector<48x128xf32>
      %829 = arith.subf %813, %828 : vector<48x128xf32>
      %c41_112 = arith.constant 41 : index
      %830 = memref.load %arg5[%c41_112] : memref<144xf32, #tpu.memory_space<smem>>
      %831 = vector.broadcast %830 : f32 to vector<48x128xf32>
      %832 = arith.mulf %793, %831 : vector<48x128xf32>
      %833 = arith.subf %817, %832 : vector<48x128xf32>
      %c77_113 = arith.constant 77 : index
      %834 = memref.load %arg5[%c77_113] : memref<144xf32, #tpu.memory_space<smem>>
      %835 = vector.broadcast %834 : f32 to vector<48x128xf32>
      %836 = arith.mulf %793, %835 : vector<48x128xf32>
      %837 = arith.subf %821, %836 : vector<48x128xf32>
      %c113_114 = arith.constant 113 : index
      %838 = memref.load %arg5[%c113_114] : memref<144xf32, #tpu.memory_space<smem>>
      %839 = vector.broadcast %838 : f32 to vector<48x128xf32>
      %840 = arith.mulf %793, %839 : vector<48x128xf32>
      %841 = arith.subf %825, %840 : vector<48x128xf32>
      %c47_i32_115 = arith.constant 47 : i32
      %842 = tpu.dynamic_rotate %740 by %c47_i32_115 dim 0 : vector<48x128xf32>, i32 -> vector<48x128xf32>
      %c1_i32_116 = arith.constant 1 : i32
      %843 = tpu.dynamic_rotate %842 by %c1_i32_116 dim 1 : vector<48x128xf32>, i32 -> vector<48x128xf32>
      %c127_i32_117 = arith.constant 127 : i32
      %844 = tpu.dynamic_rotate %842 by %c127_i32_117 dim 1 : vector<48x128xf32>, i32 -> vector<48x128xf32>
      %c6_118 = arith.constant 6 : index
      %845 = memref.load %arg5[%c6_118] : memref<144xf32, #tpu.memory_space<smem>>
      %846 = vector.broadcast %845 : f32 to vector<48x128xf32>
      %847 = arith.mulf %843, %846 : vector<48x128xf32>
      %848 = arith.subf %829, %847 : vector<48x128xf32>
      %c42_119 = arith.constant 42 : index
      %849 = memref.load %arg5[%c42_119] : memref<144xf32, #tpu.memory_space<smem>>
      %850 = vector.broadcast %849 : f32 to vector<48x128xf32>
      %851 = arith.mulf %843, %850 : vector<48x128xf32>
      %852 = arith.subf %833, %851 : vector<48x128xf32>
      %c78_120 = arith.constant 78 : index
      %853 = memref.load %arg5[%c78_120] : memref<144xf32, #tpu.memory_space<smem>>
      %854 = vector.broadcast %853 : f32 to vector<48x128xf32>
      %855 = arith.mulf %843, %854 : vector<48x128xf32>
      %856 = arith.subf %837, %855 : vector<48x128xf32>
      %c114_121 = arith.constant 114 : index
      %857 = memref.load %arg5[%c114_121] : memref<144xf32, #tpu.memory_space<smem>>
      %858 = vector.broadcast %857 : f32 to vector<48x128xf32>
      %859 = arith.mulf %843, %858 : vector<48x128xf32>
      %860 = arith.subf %841, %859 : vector<48x128xf32>
      %c7_122 = arith.constant 7 : index
      %861 = memref.load %arg5[%c7_122] : memref<144xf32, #tpu.memory_space<smem>>
      %862 = vector.broadcast %861 : f32 to vector<48x128xf32>
      %863 = arith.mulf %842, %862 : vector<48x128xf32>
      %864 = arith.subf %848, %863 : vector<48x128xf32>
      %c43_123 = arith.constant 43 : index
      %865 = memref.load %arg5[%c43_123] : memref<144xf32, #tpu.memory_space<smem>>
      %866 = vector.broadcast %865 : f32 to vector<48x128xf32>
      %867 = arith.mulf %842, %866 : vector<48x128xf32>
      %868 = arith.subf %852, %867 : vector<48x128xf32>
      %c79_124 = arith.constant 79 : index
      %869 = memref.load %arg5[%c79_124] : memref<144xf32, #tpu.memory_space<smem>>
      %870 = vector.broadcast %869 : f32 to vector<48x128xf32>
      %871 = arith.mulf %842, %870 : vector<48x128xf32>
      %872 = arith.subf %856, %871 : vector<48x128xf32>
      %c115_125 = arith.constant 115 : index
      %873 = memref.load %arg5[%c115_125] : memref<144xf32, #tpu.memory_space<smem>>
      %874 = vector.broadcast %873 : f32 to vector<48x128xf32>
      %875 = arith.mulf %842, %874 : vector<48x128xf32>
      %876 = arith.subf %860, %875 : vector<48x128xf32>
      %c8_126 = arith.constant 8 : index
      %877 = memref.load %arg5[%c8_126] : memref<144xf32, #tpu.memory_space<smem>>
      %878 = vector.broadcast %877 : f32 to vector<48x128xf32>
      %879 = arith.mulf %844, %878 : vector<48x128xf32>
      %880 = arith.subf %864, %879 : vector<48x128xf32>
      %c44_127 = arith.constant 44 : index
      %881 = memref.load %arg5[%c44_127] : memref<144xf32, #tpu.memory_space<smem>>
      %882 = vector.broadcast %881 : f32 to vector<48x128xf32>
      %883 = arith.mulf %844, %882 : vector<48x128xf32>
      %884 = arith.subf %868, %883 : vector<48x128xf32>
      %c80_128 = arith.constant 80 : index
      %885 = memref.load %arg5[%c80_128] : memref<144xf32, #tpu.memory_space<smem>>
      %886 = vector.broadcast %885 : f32 to vector<48x128xf32>
      %887 = arith.mulf %844, %886 : vector<48x128xf32>
      %888 = arith.subf %872, %887 : vector<48x128xf32>
      %c116_129 = arith.constant 116 : index
      %889 = memref.load %arg5[%c116_129] : memref<144xf32, #tpu.memory_space<smem>>
      %890 = vector.broadcast %889 : f32 to vector<48x128xf32>
      %891 = arith.mulf %844, %890 : vector<48x128xf32>
      %892 = arith.subf %876, %891 : vector<48x128xf32>
      %893 = arith.mulf %726, %10 : f32
      %894 = vector.broadcast %893 : f32 to vector<48x128xf32>
      %895 = arith.mulf %690, %894 : vector<48x128xf32>
      %896 = arith.mulf %717, %893 : f32
      %897 = arith.subf %14, %896 : f32
      %898 = vector.broadcast %897 : f32 to vector<48x128xf32>
      %899 = arith.addf %895, %898 : vector<48x128xf32>
      %900 = arith.negf %899 : vector<48x128xf32>
      %901 = math.exp %900 : vector<48x128xf32>
      %cst_130 = arith.constant 1.000000e+00 : f32
      %902 = vector.broadcast %cst_130 : f32 to vector<48x128xf32>
      %903 = arith.addf %902, %901 : vector<48x128xf32>
      %904 = arith.divf %902, %903 : vector<48x128xf32>
      %905 = arith.mulf %899, %904 : vector<48x128xf32>
      %906 = arith.mulf %905, %8 : vector<48x128xf32>
      %c1_i32_131 = arith.constant 1 : i32
      %907 = tpu.dynamic_rotate %906 by %c1_i32_131 dim 0 : vector<48x128xf32>, i32 -> vector<48x128xf32>
      %c1_i32_132 = arith.constant 1 : i32
      %908 = tpu.dynamic_rotate %907 by %c1_i32_132 dim 1 : vector<48x128xf32>, i32 -> vector<48x128xf32>
      %c127_i32_133 = arith.constant 127 : i32
      %909 = tpu.dynamic_rotate %907 by %c127_i32_133 dim 1 : vector<48x128xf32>, i32 -> vector<48x128xf32>
      %c9_134 = arith.constant 9 : index
      %910 = memref.load %arg5[%c9_134] : memref<144xf32, #tpu.memory_space<smem>>
      %911 = vector.broadcast %910 : f32 to vector<48x128xf32>
      %912 = arith.mulf %908, %911 : vector<48x128xf32>
      %913 = arith.subf %880, %912 : vector<48x128xf32>
      %c45_135 = arith.constant 45 : index
      %914 = memref.load %arg5[%c45_135] : memref<144xf32, #tpu.memory_space<smem>>
      %915 = vector.broadcast %914 : f32 to vector<48x128xf32>
      %916 = arith.mulf %908, %915 : vector<48x128xf32>
      %917 = arith.subf %884, %916 : vector<48x128xf32>
      %c81_136 = arith.constant 81 : index
      %918 = memref.load %arg5[%c81_136] : memref<144xf32, #tpu.memory_space<smem>>
      %919 = vector.broadcast %918 : f32 to vector<48x128xf32>
      %920 = arith.mulf %908, %919 : vector<48x128xf32>
      %921 = arith.subf %888, %920 : vector<48x128xf32>
      %c117_137 = arith.constant 117 : index
      %922 = memref.load %arg5[%c117_137] : memref<144xf32, #tpu.memory_space<smem>>
      %923 = vector.broadcast %922 : f32 to vector<48x128xf32>
      %924 = arith.mulf %908, %923 : vector<48x128xf32>
      %925 = arith.subf %892, %924 : vector<48x128xf32>
      %c10_138 = arith.constant 10 : index
      %926 = memref.load %arg5[%c10_138] : memref<144xf32, #tpu.memory_space<smem>>
      %927 = vector.broadcast %926 : f32 to vector<48x128xf32>
      %928 = arith.mulf %907, %927 : vector<48x128xf32>
      %929 = arith.subf %913, %928 : vector<48x128xf32>
      %c46_139 = arith.constant 46 : index
      %930 = memref.load %arg5[%c46_139] : memref<144xf32, #tpu.memory_space<smem>>
      %931 = vector.broadcast %930 : f32 to vector<48x128xf32>
      %932 = arith.mulf %907, %931 : vector<48x128xf32>
      %933 = arith.subf %917, %932 : vector<48x128xf32>
      %c82_140 = arith.constant 82 : index
      %934 = memref.load %arg5[%c82_140] : memref<144xf32, #tpu.memory_space<smem>>
      %935 = vector.broadcast %934 : f32 to vector<48x128xf32>
      %936 = arith.mulf %907, %935 : vector<48x128xf32>
      %937 = arith.subf %921, %936 : vector<48x128xf32>
      %c118_141 = arith.constant 118 : index
      %938 = memref.load %arg5[%c118_141] : memref<144xf32, #tpu.memory_space<smem>>
      %939 = vector.broadcast %938 : f32 to vector<48x128xf32>
      %940 = arith.mulf %907, %939 : vector<48x128xf32>
      %941 = arith.subf %925, %940 : vector<48x128xf32>
      %c11_142 = arith.constant 11 : index
      %942 = memref.load %arg5[%c11_142] : memref<144xf32, #tpu.memory_space<smem>>
      %943 = vector.broadcast %942 : f32 to vector<48x128xf32>
      %944 = arith.mulf %909, %943 : vector<48x128xf32>
      %945 = arith.subf %929, %944 : vector<48x128xf32>
      %c47_143 = arith.constant 47 : index
      %946 = memref.load %arg5[%c47_143] : memref<144xf32, #tpu.memory_space<smem>>
      %947 = vector.broadcast %946 : f32 to vector<48x128xf32>
      %948 = arith.mulf %909, %947 : vector<48x128xf32>
      %949 = arith.subf %933, %948 : vector<48x128xf32>
      %c83_144 = arith.constant 83 : index
      %950 = memref.load %arg5[%c83_144] : memref<144xf32, #tpu.memory_space<smem>>
      %951 = vector.broadcast %950 : f32 to vector<48x128xf32>
      %952 = arith.mulf %909, %951 : vector<48x128xf32>
      %953 = arith.subf %937, %952 : vector<48x128xf32>
      %c119_145 = arith.constant 119 : index
      %954 = memref.load %arg5[%c119_145] : memref<144xf32, #tpu.memory_space<smem>>
      %955 = vector.broadcast %954 : f32 to vector<48x128xf32>
      %956 = arith.mulf %909, %955 : vector<48x128xf32>
      %957 = arith.subf %941, %956 : vector<48x128xf32>
      %c1_i32_146 = arith.constant 1 : i32
      %958 = tpu.dynamic_rotate %906 by %c1_i32_146 dim 1 : vector<48x128xf32>, i32 -> vector<48x128xf32>
      %c127_i32_147 = arith.constant 127 : i32
      %959 = tpu.dynamic_rotate %906 by %c127_i32_147 dim 1 : vector<48x128xf32>, i32 -> vector<48x128xf32>
      %c12_148 = arith.constant 12 : index
      %960 = memref.load %arg5[%c12_148] : memref<144xf32, #tpu.memory_space<smem>>
      %961 = vector.broadcast %960 : f32 to vector<48x128xf32>
      %962 = arith.mulf %958, %961 : vector<48x128xf32>
      %963 = arith.subf %945, %962 : vector<48x128xf32>
      %c48_149 = arith.constant 48 : index
      %964 = memref.load %arg5[%c48_149] : memref<144xf32, #tpu.memory_space<smem>>
      %965 = vector.broadcast %964 : f32 to vector<48x128xf32>
      %966 = arith.mulf %958, %965 : vector<48x128xf32>
      %967 = arith.subf %949, %966 : vector<48x128xf32>
      %c84_150 = arith.constant 84 : index
      %968 = memref.load %arg5[%c84_150] : memref<144xf32, #tpu.memory_space<smem>>
      %969 = vector.broadcast %968 : f32 to vector<48x128xf32>
      %970 = arith.mulf %958, %969 : vector<48x128xf32>
      %971 = arith.subf %953, %970 : vector<48x128xf32>
      %c120_151 = arith.constant 120 : index
      %972 = memref.load %arg5[%c120_151] : memref<144xf32, #tpu.memory_space<smem>>
      %973 = vector.broadcast %972 : f32 to vector<48x128xf32>
      %974 = arith.mulf %958, %973 : vector<48x128xf32>
      %975 = arith.subf %957, %974 : vector<48x128xf32>
      %c13_152 = arith.constant 13 : index
      %976 = memref.load %arg5[%c13_152] : memref<144xf32, #tpu.memory_space<smem>>
      %977 = vector.broadcast %976 : f32 to vector<48x128xf32>
      %978 = arith.mulf %906, %977 : vector<48x128xf32>
      %979 = arith.subf %963, %978 : vector<48x128xf32>
      %c49_153 = arith.constant 49 : index
      %980 = memref.load %arg5[%c49_153] : memref<144xf32, #tpu.memory_space<smem>>
      %981 = vector.broadcast %980 : f32 to vector<48x128xf32>
      %982 = arith.mulf %906, %981 : vector<48x128xf32>
      %983 = arith.subf %967, %982 : vector<48x128xf32>
      %c85_154 = arith.constant 85 : index
      %984 = memref.load %arg5[%c85_154] : memref<144xf32, #tpu.memory_space<smem>>
      %985 = vector.broadcast %984 : f32 to vector<48x128xf32>
      %986 = arith.mulf %906, %985 : vector<48x128xf32>
      %987 = arith.subf %971, %986 : vector<48x128xf32>
      %c121_155 = arith.constant 121 : index
      %988 = memref.load %arg5[%c121_155] : memref<144xf32, #tpu.memory_space<smem>>
      %989 = vector.broadcast %988 : f32 to vector<48x128xf32>
      %990 = arith.mulf %906, %989 : vector<48x128xf32>
      %991 = arith.subf %975, %990 : vector<48x128xf32>
      %c14_156 = arith.constant 14 : index
      %992 = memref.load %arg5[%c14_156] : memref<144xf32, #tpu.memory_space<smem>>
      %993 = vector.broadcast %992 : f32 to vector<48x128xf32>
      %994 = arith.mulf %959, %993 : vector<48x128xf32>
      %995 = arith.subf %979, %994 : vector<48x128xf32>
      %c50_157 = arith.constant 50 : index
      %996 = memref.load %arg5[%c50_157] : memref<144xf32, #tpu.memory_space<smem>>
      %997 = vector.broadcast %996 : f32 to vector<48x128xf32>
      %998 = arith.mulf %959, %997 : vector<48x128xf32>
      %999 = arith.subf %983, %998 : vector<48x128xf32>
      %c86_158 = arith.constant 86 : index
      %1000 = memref.load %arg5[%c86_158] : memref<144xf32, #tpu.memory_space<smem>>
      %1001 = vector.broadcast %1000 : f32 to vector<48x128xf32>
      %1002 = arith.mulf %959, %1001 : vector<48x128xf32>
      %1003 = arith.subf %987, %1002 : vector<48x128xf32>
      %c122_159 = arith.constant 122 : index
      %1004 = memref.load %arg5[%c122_159] : memref<144xf32, #tpu.memory_space<smem>>
      %1005 = vector.broadcast %1004 : f32 to vector<48x128xf32>
      %1006 = arith.mulf %959, %1005 : vector<48x128xf32>
      %1007 = arith.subf %991, %1006 : vector<48x128xf32>
      %c47_i32_160 = arith.constant 47 : i32
      %1008 = tpu.dynamic_rotate %906 by %c47_i32_160 dim 0 : vector<48x128xf32>, i32 -> vector<48x128xf32>
      %c1_i32_161 = arith.constant 1 : i32
      %1009 = tpu.dynamic_rotate %1008 by %c1_i32_161 dim 1 : vector<48x128xf32>, i32 -> vector<48x128xf32>
      %c127_i32_162 = arith.constant 127 : i32
      %1010 = tpu.dynamic_rotate %1008 by %c127_i32_162 dim 1 : vector<48x128xf32>, i32 -> vector<48x128xf32>
      %c15_163 = arith.constant 15 : index
      %1011 = memref.load %arg5[%c15_163] : memref<144xf32, #tpu.memory_space<smem>>
      %1012 = vector.broadcast %1011 : f32 to vector<48x128xf32>
      %1013 = arith.mulf %1009, %1012 : vector<48x128xf32>
      %1014 = arith.subf %995, %1013 : vector<48x128xf32>
      %c51_164 = arith.constant 51 : index
      %1015 = memref.load %arg5[%c51_164] : memref<144xf32, #tpu.memory_space<smem>>
      %1016 = vector.broadcast %1015 : f32 to vector<48x128xf32>
      %1017 = arith.mulf %1009, %1016 : vector<48x128xf32>
      %1018 = arith.subf %999, %1017 : vector<48x128xf32>
      %c87_165 = arith.constant 87 : index
      %1019 = memref.load %arg5[%c87_165] : memref<144xf32, #tpu.memory_space<smem>>
      %1020 = vector.broadcast %1019 : f32 to vector<48x128xf32>
      %1021 = arith.mulf %1009, %1020 : vector<48x128xf32>
      %1022 = arith.subf %1003, %1021 : vector<48x128xf32>
      %c123_166 = arith.constant 123 : index
      %1023 = memref.load %arg5[%c123_166] : memref<144xf32, #tpu.memory_space<smem>>
      %1024 = vector.broadcast %1023 : f32 to vector<48x128xf32>
      %1025 = arith.mulf %1009, %1024 : vector<48x128xf32>
      %1026 = arith.subf %1007, %1025 : vector<48x128xf32>
      %c16_167 = arith.constant 16 : index
      %1027 = memref.load %arg5[%c16_167] : memref<144xf32, #tpu.memory_space<smem>>
      %1028 = vector.broadcast %1027 : f32 to vector<48x128xf32>
      %1029 = arith.mulf %1008, %1028 : vector<48x128xf32>
      %1030 = arith.subf %1014, %1029 : vector<48x128xf32>
      %c52_168 = arith.constant 52 : index
      %1031 = memref.load %arg5[%c52_168] : memref<144xf32, #tpu.memory_space<smem>>
      %1032 = vector.broadcast %1031 : f32 to vector<48x128xf32>
      %1033 = arith.mulf %1008, %1032 : vector<48x128xf32>
      %1034 = arith.subf %1018, %1033 : vector<48x128xf32>
      %c88_169 = arith.constant 88 : index
      %1035 = memref.load %arg5[%c88_169] : memref<144xf32, #tpu.memory_space<smem>>
      %1036 = vector.broadcast %1035 : f32 to vector<48x128xf32>
      %1037 = arith.mulf %1008, %1036 : vector<48x128xf32>
      %1038 = arith.subf %1022, %1037 : vector<48x128xf32>
      %c124_170 = arith.constant 124 : index
      %1039 = memref.load %arg5[%c124_170] : memref<144xf32, #tpu.memory_space<smem>>
      %1040 = vector.broadcast %1039 : f32 to vector<48x128xf32>
      %1041 = arith.mulf %1008, %1040 : vector<48x128xf32>
      %1042 = arith.subf %1026, %1041 : vector<48x128xf32>
      %c17_171 = arith.constant 17 : index
      %1043 = memref.load %arg5[%c17_171] : memref<144xf32, #tpu.memory_space<smem>>
      %1044 = vector.broadcast %1043 : f32 to vector<48x128xf32>
      %1045 = arith.mulf %1010, %1044 : vector<48x128xf32>
      %1046 = arith.subf %1030, %1045 : vector<48x128xf32>
      %c53_172 = arith.constant 53 : index
      %1047 = memref.load %arg5[%c53_172] : memref<144xf32, #tpu.memory_space<smem>>
      %1048 = vector.broadcast %1047 : f32 to vector<48x128xf32>
      %1049 = arith.mulf %1010, %1048 : vector<48x128xf32>
      %1050 = arith.subf %1034, %1049 : vector<48x128xf32>
      %c89_173 = arith.constant 89 : index
      %1051 = memref.load %arg5[%c89_173] : memref<144xf32, #tpu.memory_space<smem>>
      %1052 = vector.broadcast %1051 : f32 to vector<48x128xf32>
      %1053 = arith.mulf %1010, %1052 : vector<48x128xf32>
      %1054 = arith.subf %1038, %1053 : vector<48x128xf32>
      %c125_174 = arith.constant 125 : index
      %1055 = memref.load %arg5[%c125_174] : memref<144xf32, #tpu.memory_space<smem>>
      %1056 = vector.broadcast %1055 : f32 to vector<48x128xf32>
      %1057 = arith.mulf %1010, %1056 : vector<48x128xf32>
      %1058 = arith.subf %1042, %1057 : vector<48x128xf32>
      %1059 = arith.mulf %726, %11 : f32
      %1060 = vector.broadcast %1059 : f32 to vector<48x128xf32>
      %1061 = arith.mulf %694, %1060 : vector<48x128xf32>
      %1062 = arith.mulf %717, %1059 : f32
      %1063 = arith.subf %15, %1062 : f32
      %1064 = vector.broadcast %1063 : f32 to vector<48x128xf32>
      %1065 = arith.addf %1061, %1064 : vector<48x128xf32>
      %1066 = arith.negf %1065 : vector<48x128xf32>
      %1067 = math.exp %1066 : vector<48x128xf32>
      %cst_175 = arith.constant 1.000000e+00 : f32
      %1068 = vector.broadcast %cst_175 : f32 to vector<48x128xf32>
      %1069 = arith.addf %1068, %1067 : vector<48x128xf32>
      %1070 = arith.divf %1068, %1069 : vector<48x128xf32>
      %1071 = arith.mulf %1065, %1070 : vector<48x128xf32>
      %1072 = arith.mulf %1071, %8 : vector<48x128xf32>
      %c1_i32_176 = arith.constant 1 : i32
      %1073 = tpu.dynamic_rotate %1072 by %c1_i32_176 dim 0 : vector<48x128xf32>, i32 -> vector<48x128xf32>
      %c1_i32_177 = arith.constant 1 : i32
      %1074 = tpu.dynamic_rotate %1073 by %c1_i32_177 dim 1 : vector<48x128xf32>, i32 -> vector<48x128xf32>
      %c127_i32_178 = arith.constant 127 : i32
      %1075 = tpu.dynamic_rotate %1073 by %c127_i32_178 dim 1 : vector<48x128xf32>, i32 -> vector<48x128xf32>
      %c18_179 = arith.constant 18 : index
      %1076 = memref.load %arg5[%c18_179] : memref<144xf32, #tpu.memory_space<smem>>
      %1077 = vector.broadcast %1076 : f32 to vector<48x128xf32>
      %1078 = arith.mulf %1074, %1077 : vector<48x128xf32>
      %1079 = arith.subf %1046, %1078 : vector<48x128xf32>
      %c54_180 = arith.constant 54 : index
      %1080 = memref.load %arg5[%c54_180] : memref<144xf32, #tpu.memory_space<smem>>
      %1081 = vector.broadcast %1080 : f32 to vector<48x128xf32>
      %1082 = arith.mulf %1074, %1081 : vector<48x128xf32>
      %1083 = arith.subf %1050, %1082 : vector<48x128xf32>
      %c90_181 = arith.constant 90 : index
      %1084 = memref.load %arg5[%c90_181] : memref<144xf32, #tpu.memory_space<smem>>
      %1085 = vector.broadcast %1084 : f32 to vector<48x128xf32>
      %1086 = arith.mulf %1074, %1085 : vector<48x128xf32>
      %1087 = arith.subf %1054, %1086 : vector<48x128xf32>
      %c126_182 = arith.constant 126 : index
      %1088 = memref.load %arg5[%c126_182] : memref<144xf32, #tpu.memory_space<smem>>
      %1089 = vector.broadcast %1088 : f32 to vector<48x128xf32>
      %1090 = arith.mulf %1074, %1089 : vector<48x128xf32>
      %1091 = arith.subf %1058, %1090 : vector<48x128xf32>
      %c19_183 = arith.constant 19 : index
      %1092 = memref.load %arg5[%c19_183] : memref<144xf32, #tpu.memory_space<smem>>
      %1093 = vector.broadcast %1092 : f32 to vector<48x128xf32>
      %1094 = arith.mulf %1073, %1093 : vector<48x128xf32>
      %1095 = arith.subf %1079, %1094 : vector<48x128xf32>
      %c55_184 = arith.constant 55 : index
      %1096 = memref.load %arg5[%c55_184] : memref<144xf32, #tpu.memory_space<smem>>
      %1097 = vector.broadcast %1096 : f32 to vector<48x128xf32>
      %1098 = arith.mulf %1073, %1097 : vector<48x128xf32>
      %1099 = arith.subf %1083, %1098 : vector<48x128xf32>
      %c91_185 = arith.constant 91 : index
      %1100 = memref.load %arg5[%c91_185] : memref<144xf32, #tpu.memory_space<smem>>
      %1101 = vector.broadcast %1100 : f32 to vector<48x128xf32>
      %1102 = arith.mulf %1073, %1101 : vector<48x128xf32>
      %1103 = arith.subf %1087, %1102 : vector<48x128xf32>
      %c127_186 = arith.constant 127 : index
      %1104 = memref.load %arg5[%c127_186] : memref<144xf32, #tpu.memory_space<smem>>
      %1105 = vector.broadcast %1104 : f32 to vector<48x128xf32>
      %1106 = arith.mulf %1073, %1105 : vector<48x128xf32>
      %1107 = arith.subf %1091, %1106 : vector<48x128xf32>
      %c20_187 = arith.constant 20 : index
      %1108 = memref.load %arg5[%c20_187] : memref<144xf32, #tpu.memory_space<smem>>
      %1109 = vector.broadcast %1108 : f32 to vector<48x128xf32>
      %1110 = arith.mulf %1075, %1109 : vector<48x128xf32>
      %1111 = arith.subf %1095, %1110 : vector<48x128xf32>
      %c56_188 = arith.constant 56 : index
      %1112 = memref.load %arg5[%c56_188] : memref<144xf32, #tpu.memory_space<smem>>
      %1113 = vector.broadcast %1112 : f32 to vector<48x128xf32>
      %1114 = arith.mulf %1075, %1113 : vector<48x128xf32>
      %1115 = arith.subf %1099, %1114 : vector<48x128xf32>
      %c92_189 = arith.constant 92 : index
      %1116 = memref.load %arg5[%c92_189] : memref<144xf32, #tpu.memory_space<smem>>
      %1117 = vector.broadcast %1116 : f32 to vector<48x128xf32>
      %1118 = arith.mulf %1075, %1117 : vector<48x128xf32>
      %1119 = arith.subf %1103, %1118 : vector<48x128xf32>
      %c128_190 = arith.constant 128 : index
      %1120 = memref.load %arg5[%c128_190] : memref<144xf32, #tpu.memory_space<smem>>
      %1121 = vector.broadcast %1120 : f32 to vector<48x128xf32>
      %1122 = arith.mulf %1075, %1121 : vector<48x128xf32>
      %1123 = arith.subf %1107, %1122 : vector<48x128xf32>
      %c1_i32_191 = arith.constant 1 : i32
      %1124 = tpu.dynamic_rotate %1072 by %c1_i32_191 dim 1 : vector<48x128xf32>, i32 -> vector<48x128xf32>
      %c127_i32_192 = arith.constant 127 : i32
      %1125 = tpu.dynamic_rotate %1072 by %c127_i32_192 dim 1 : vector<48x128xf32>, i32 -> vector<48x128xf32>
      %c21_193 = arith.constant 21 : index
      %1126 = memref.load %arg5[%c21_193] : memref<144xf32, #tpu.memory_space<smem>>
      %1127 = vector.broadcast %1126 : f32 to vector<48x128xf32>
      %1128 = arith.mulf %1124, %1127 : vector<48x128xf32>
      %1129 = arith.subf %1111, %1128 : vector<48x128xf32>
      %c57_194 = arith.constant 57 : index
      %1130 = memref.load %arg5[%c57_194] : memref<144xf32, #tpu.memory_space<smem>>
      %1131 = vector.broadcast %1130 : f32 to vector<48x128xf32>
      %1132 = arith.mulf %1124, %1131 : vector<48x128xf32>
      %1133 = arith.subf %1115, %1132 : vector<48x128xf32>
      %c93_195 = arith.constant 93 : index
      %1134 = memref.load %arg5[%c93_195] : memref<144xf32, #tpu.memory_space<smem>>
      %1135 = vector.broadcast %1134 : f32 to vector<48x128xf32>
      %1136 = arith.mulf %1124, %1135 : vector<48x128xf32>
      %1137 = arith.subf %1119, %1136 : vector<48x128xf32>
      %c129_196 = arith.constant 129 : index
      %1138 = memref.load %arg5[%c129_196] : memref<144xf32, #tpu.memory_space<smem>>
      %1139 = vector.broadcast %1138 : f32 to vector<48x128xf32>
      %1140 = arith.mulf %1124, %1139 : vector<48x128xf32>
      %1141 = arith.subf %1123, %1140 : vector<48x128xf32>
      %c22_197 = arith.constant 22 : index
      %1142 = memref.load %arg5[%c22_197] : memref<144xf32, #tpu.memory_space<smem>>
      %1143 = vector.broadcast %1142 : f32 to vector<48x128xf32>
      %1144 = arith.mulf %1072, %1143 : vector<48x128xf32>
      %1145 = arith.subf %1129, %1144 : vector<48x128xf32>
      %c58_198 = arith.constant 58 : index
      %1146 = memref.load %arg5[%c58_198] : memref<144xf32, #tpu.memory_space<smem>>
      %1147 = vector.broadcast %1146 : f32 to vector<48x128xf32>
      %1148 = arith.mulf %1072, %1147 : vector<48x128xf32>
      %1149 = arith.subf %1133, %1148 : vector<48x128xf32>
      %c94_199 = arith.constant 94 : index
      %1150 = memref.load %arg5[%c94_199] : memref<144xf32, #tpu.memory_space<smem>>
      %1151 = vector.broadcast %1150 : f32 to vector<48x128xf32>
      %1152 = arith.mulf %1072, %1151 : vector<48x128xf32>
      %1153 = arith.subf %1137, %1152 : vector<48x128xf32>
      %c130_200 = arith.constant 130 : index
      %1154 = memref.load %arg5[%c130_200] : memref<144xf32, #tpu.memory_space<smem>>
      %1155 = vector.broadcast %1154 : f32 to vector<48x128xf32>
      %1156 = arith.mulf %1072, %1155 : vector<48x128xf32>
      %1157 = arith.subf %1141, %1156 : vector<48x128xf32>
      %c23_201 = arith.constant 23 : index
      %1158 = memref.load %arg5[%c23_201] : memref<144xf32, #tpu.memory_space<smem>>
      %1159 = vector.broadcast %1158 : f32 to vector<48x128xf32>
      %1160 = arith.mulf %1125, %1159 : vector<48x128xf32>
      %1161 = arith.subf %1145, %1160 : vector<48x128xf32>
      %c59_202 = arith.constant 59 : index
      %1162 = memref.load %arg5[%c59_202] : memref<144xf32, #tpu.memory_space<smem>>
      %1163 = vector.broadcast %1162 : f32 to vector<48x128xf32>
      %1164 = arith.mulf %1125, %1163 : vector<48x128xf32>
      %1165 = arith.subf %1149, %1164 : vector<48x128xf32>
      %c95_203 = arith.constant 95 : index
      %1166 = memref.load %arg5[%c95_203] : memref<144xf32, #tpu.memory_space<smem>>
      %1167 = vector.broadcast %1166 : f32 to vector<48x128xf32>
      %1168 = arith.mulf %1125, %1167 : vector<48x128xf32>
      %1169 = arith.subf %1153, %1168 : vector<48x128xf32>
      %c131_204 = arith.constant 131 : index
      %1170 = memref.load %arg5[%c131_204] : memref<144xf32, #tpu.memory_space<smem>>
      %1171 = vector.broadcast %1170 : f32 to vector<48x128xf32>
      %1172 = arith.mulf %1125, %1171 : vector<48x128xf32>
      %1173 = arith.subf %1157, %1172 : vector<48x128xf32>
      %c47_i32_205 = arith.constant 47 : i32
      %1174 = tpu.dynamic_rotate %1072 by %c47_i32_205 dim 0 : vector<48x128xf32>, i32 -> vector<48x128xf32>
      %c1_i32_206 = arith.constant 1 : i32
      %1175 = tpu.dynamic_rotate %1174 by %c1_i32_206 dim 1 : vector<48x128xf32>, i32 -> vector<48x128xf32>
      %c127_i32_207 = arith.constant 127 : i32
      %1176 = tpu.dynamic_rotate %1174 by %c127_i32_207 dim 1 : vector<48x128xf32>, i32 -> vector<48x128xf32>
      %c24_208 = arith.constant 24 : index
      %1177 = memref.load %arg5[%c24_208] : memref<144xf32, #tpu.memory_space<smem>>
      %1178 = vector.broadcast %1177 : f32 to vector<48x128xf32>
      %1179 = arith.mulf %1175, %1178 : vector<48x128xf32>
      %1180 = arith.subf %1161, %1179 : vector<48x128xf32>
      %c60_209 = arith.constant 60 : index
      %1181 = memref.load %arg5[%c60_209] : memref<144xf32, #tpu.memory_space<smem>>
      %1182 = vector.broadcast %1181 : f32 to vector<48x128xf32>
      %1183 = arith.mulf %1175, %1182 : vector<48x128xf32>
      %1184 = arith.subf %1165, %1183 : vector<48x128xf32>
      %c96_210 = arith.constant 96 : index
      %1185 = memref.load %arg5[%c96_210] : memref<144xf32, #tpu.memory_space<smem>>
      %1186 = vector.broadcast %1185 : f32 to vector<48x128xf32>
      %1187 = arith.mulf %1175, %1186 : vector<48x128xf32>
      %1188 = arith.subf %1169, %1187 : vector<48x128xf32>
      %c132_211 = arith.constant 132 : index
      %1189 = memref.load %arg5[%c132_211] : memref<144xf32, #tpu.memory_space<smem>>
      %1190 = vector.broadcast %1189 : f32 to vector<48x128xf32>
      %1191 = arith.mulf %1175, %1190 : vector<48x128xf32>
      %1192 = arith.subf %1173, %1191 : vector<48x128xf32>
      %c25_212 = arith.constant 25 : index
      %1193 = memref.load %arg5[%c25_212] : memref<144xf32, #tpu.memory_space<smem>>
      %1194 = vector.broadcast %1193 : f32 to vector<48x128xf32>
      %1195 = arith.mulf %1174, %1194 : vector<48x128xf32>
      %1196 = arith.subf %1180, %1195 : vector<48x128xf32>
      %c61_213 = arith.constant 61 : index
      %1197 = memref.load %arg5[%c61_213] : memref<144xf32, #tpu.memory_space<smem>>
      %1198 = vector.broadcast %1197 : f32 to vector<48x128xf32>
      %1199 = arith.mulf %1174, %1198 : vector<48x128xf32>
      %1200 = arith.subf %1184, %1199 : vector<48x128xf32>
      %c97_214 = arith.constant 97 : index
      %1201 = memref.load %arg5[%c97_214] : memref<144xf32, #tpu.memory_space<smem>>
      %1202 = vector.broadcast %1201 : f32 to vector<48x128xf32>
      %1203 = arith.mulf %1174, %1202 : vector<48x128xf32>
      %1204 = arith.subf %1188, %1203 : vector<48x128xf32>
      %c133_215 = arith.constant 133 : index
      %1205 = memref.load %arg5[%c133_215] : memref<144xf32, #tpu.memory_space<smem>>
      %1206 = vector.broadcast %1205 : f32 to vector<48x128xf32>
      %1207 = arith.mulf %1174, %1206 : vector<48x128xf32>
      %1208 = arith.subf %1192, %1207 : vector<48x128xf32>
      %c26_216 = arith.constant 26 : index
      %1209 = memref.load %arg5[%c26_216] : memref<144xf32, #tpu.memory_space<smem>>
      %1210 = vector.broadcast %1209 : f32 to vector<48x128xf32>
      %1211 = arith.mulf %1176, %1210 : vector<48x128xf32>
      %1212 = arith.subf %1196, %1211 : vector<48x128xf32>
      %c62_217 = arith.constant 62 : index
      %1213 = memref.load %arg5[%c62_217] : memref<144xf32, #tpu.memory_space<smem>>
      %1214 = vector.broadcast %1213 : f32 to vector<48x128xf32>
      %1215 = arith.mulf %1176, %1214 : vector<48x128xf32>
      %1216 = arith.subf %1200, %1215 : vector<48x128xf32>
      %c98_218 = arith.constant 98 : index
      %1217 = memref.load %arg5[%c98_218] : memref<144xf32, #tpu.memory_space<smem>>
      %1218 = vector.broadcast %1217 : f32 to vector<48x128xf32>
      %1219 = arith.mulf %1176, %1218 : vector<48x128xf32>
      %1220 = arith.subf %1204, %1219 : vector<48x128xf32>
      %c134_219 = arith.constant 134 : index
      %1221 = memref.load %arg5[%c134_219] : memref<144xf32, #tpu.memory_space<smem>>
      %1222 = vector.broadcast %1221 : f32 to vector<48x128xf32>
      %1223 = arith.mulf %1176, %1222 : vector<48x128xf32>
      %1224 = arith.subf %1208, %1223 : vector<48x128xf32>
      %1225 = arith.mulf %726, %12 : f32
      %1226 = vector.broadcast %1225 : f32 to vector<48x128xf32>
      %1227 = arith.mulf %698, %1226 : vector<48x128xf32>
      %1228 = arith.mulf %717, %1225 : f32
      %1229 = arith.subf %16, %1228 : f32
      %1230 = vector.broadcast %1229 : f32 to vector<48x128xf32>
      %1231 = arith.addf %1227, %1230 : vector<48x128xf32>
      %1232 = arith.negf %1231 : vector<48x128xf32>
      %1233 = math.exp %1232 : vector<48x128xf32>
      %cst_220 = arith.constant 1.000000e+00 : f32
      %1234 = vector.broadcast %cst_220 : f32 to vector<48x128xf32>
      %1235 = arith.addf %1234, %1233 : vector<48x128xf32>
      %1236 = arith.divf %1234, %1235 : vector<48x128xf32>
      %1237 = arith.mulf %1231, %1236 : vector<48x128xf32>
      %1238 = arith.mulf %1237, %8 : vector<48x128xf32>
      %c1_i32_221 = arith.constant 1 : i32
      %1239 = tpu.dynamic_rotate %1238 by %c1_i32_221 dim 0 : vector<48x128xf32>, i32 -> vector<48x128xf32>
      %c1_i32_222 = arith.constant 1 : i32
      %1240 = tpu.dynamic_rotate %1239 by %c1_i32_222 dim 1 : vector<48x128xf32>, i32 -> vector<48x128xf32>
      %c127_i32_223 = arith.constant 127 : i32
      %1241 = tpu.dynamic_rotate %1239 by %c127_i32_223 dim 1 : vector<48x128xf32>, i32 -> vector<48x128xf32>
      %c27_224 = arith.constant 27 : index
      %1242 = memref.load %arg5[%c27_224] : memref<144xf32, #tpu.memory_space<smem>>
      %1243 = vector.broadcast %1242 : f32 to vector<48x128xf32>
      %1244 = arith.mulf %1240, %1243 : vector<48x128xf32>
      %1245 = arith.subf %1212, %1244 : vector<48x128xf32>
      %c63_225 = arith.constant 63 : index
      %1246 = memref.load %arg5[%c63_225] : memref<144xf32, #tpu.memory_space<smem>>
      %1247 = vector.broadcast %1246 : f32 to vector<48x128xf32>
      %1248 = arith.mulf %1240, %1247 : vector<48x128xf32>
      %1249 = arith.subf %1216, %1248 : vector<48x128xf32>
      %c99_226 = arith.constant 99 : index
      %1250 = memref.load %arg5[%c99_226] : memref<144xf32, #tpu.memory_space<smem>>
      %1251 = vector.broadcast %1250 : f32 to vector<48x128xf32>
      %1252 = arith.mulf %1240, %1251 : vector<48x128xf32>
      %1253 = arith.subf %1220, %1252 : vector<48x128xf32>
      %c135_227 = arith.constant 135 : index
      %1254 = memref.load %arg5[%c135_227] : memref<144xf32, #tpu.memory_space<smem>>
      %1255 = vector.broadcast %1254 : f32 to vector<48x128xf32>
      %1256 = arith.mulf %1240, %1255 : vector<48x128xf32>
      %1257 = arith.subf %1224, %1256 : vector<48x128xf32>
      %c28_228 = arith.constant 28 : index
      %1258 = memref.load %arg5[%c28_228] : memref<144xf32, #tpu.memory_space<smem>>
      %1259 = vector.broadcast %1258 : f32 to vector<48x128xf32>
      %1260 = arith.mulf %1239, %1259 : vector<48x128xf32>
      %1261 = arith.subf %1245, %1260 : vector<48x128xf32>
      %c64_229 = arith.constant 64 : index
      %1262 = memref.load %arg5[%c64_229] : memref<144xf32, #tpu.memory_space<smem>>
      %1263 = vector.broadcast %1262 : f32 to vector<48x128xf32>
      %1264 = arith.mulf %1239, %1263 : vector<48x128xf32>
      %1265 = arith.subf %1249, %1264 : vector<48x128xf32>
      %c100_230 = arith.constant 100 : index
      %1266 = memref.load %arg5[%c100_230] : memref<144xf32, #tpu.memory_space<smem>>
      %1267 = vector.broadcast %1266 : f32 to vector<48x128xf32>
      %1268 = arith.mulf %1239, %1267 : vector<48x128xf32>
      %1269 = arith.subf %1253, %1268 : vector<48x128xf32>
      %c136_231 = arith.constant 136 : index
      %1270 = memref.load %arg5[%c136_231] : memref<144xf32, #tpu.memory_space<smem>>
      %1271 = vector.broadcast %1270 : f32 to vector<48x128xf32>
      %1272 = arith.mulf %1239, %1271 : vector<48x128xf32>
      %1273 = arith.subf %1257, %1272 : vector<48x128xf32>
      %c29_232 = arith.constant 29 : index
      %1274 = memref.load %arg5[%c29_232] : memref<144xf32, #tpu.memory_space<smem>>
      %1275 = vector.broadcast %1274 : f32 to vector<48x128xf32>
      %1276 = arith.mulf %1241, %1275 : vector<48x128xf32>
      %1277 = arith.subf %1261, %1276 : vector<48x128xf32>
      %c65_233 = arith.constant 65 : index
      %1278 = memref.load %arg5[%c65_233] : memref<144xf32, #tpu.memory_space<smem>>
      %1279 = vector.broadcast %1278 : f32 to vector<48x128xf32>
      %1280 = arith.mulf %1241, %1279 : vector<48x128xf32>
      %1281 = arith.subf %1265, %1280 : vector<48x128xf32>
      %c101_234 = arith.constant 101 : index
      %1282 = memref.load %arg5[%c101_234] : memref<144xf32, #tpu.memory_space<smem>>
      %1283 = vector.broadcast %1282 : f32 to vector<48x128xf32>
      %1284 = arith.mulf %1241, %1283 : vector<48x128xf32>
      %1285 = arith.subf %1269, %1284 : vector<48x128xf32>
      %c137_235 = arith.constant 137 : index
      %1286 = memref.load %arg5[%c137_235] : memref<144xf32, #tpu.memory_space<smem>>
      %1287 = vector.broadcast %1286 : f32 to vector<48x128xf32>
      %1288 = arith.mulf %1241, %1287 : vector<48x128xf32>
      %1289 = arith.subf %1273, %1288 : vector<48x128xf32>
      %c1_i32_236 = arith.constant 1 : i32
      %1290 = tpu.dynamic_rotate %1238 by %c1_i32_236 dim 1 : vector<48x128xf32>, i32 -> vector<48x128xf32>
      %c127_i32_237 = arith.constant 127 : i32
      %1291 = tpu.dynamic_rotate %1238 by %c127_i32_237 dim 1 : vector<48x128xf32>, i32 -> vector<48x128xf32>
      %c30_238 = arith.constant 30 : index
      %1292 = memref.load %arg5[%c30_238] : memref<144xf32, #tpu.memory_space<smem>>
      %1293 = vector.broadcast %1292 : f32 to vector<48x128xf32>
      %1294 = arith.mulf %1290, %1293 : vector<48x128xf32>
      %1295 = arith.subf %1277, %1294 : vector<48x128xf32>
      %c66_239 = arith.constant 66 : index
      %1296 = memref.load %arg5[%c66_239] : memref<144xf32, #tpu.memory_space<smem>>
      %1297 = vector.broadcast %1296 : f32 to vector<48x128xf32>
      %1298 = arith.mulf %1290, %1297 : vector<48x128xf32>
      %1299 = arith.subf %1281, %1298 : vector<48x128xf32>
      %c102_240 = arith.constant 102 : index
      %1300 = memref.load %arg5[%c102_240] : memref<144xf32, #tpu.memory_space<smem>>
      %1301 = vector.broadcast %1300 : f32 to vector<48x128xf32>
      %1302 = arith.mulf %1290, %1301 : vector<48x128xf32>
      %1303 = arith.subf %1285, %1302 : vector<48x128xf32>
      %c138_241 = arith.constant 138 : index
      %1304 = memref.load %arg5[%c138_241] : memref<144xf32, #tpu.memory_space<smem>>
      %1305 = vector.broadcast %1304 : f32 to vector<48x128xf32>
      %1306 = arith.mulf %1290, %1305 : vector<48x128xf32>
      %1307 = arith.subf %1289, %1306 : vector<48x128xf32>
      %c31_242 = arith.constant 31 : index
      %1308 = memref.load %arg5[%c31_242] : memref<144xf32, #tpu.memory_space<smem>>
      %1309 = vector.broadcast %1308 : f32 to vector<48x128xf32>
      %1310 = arith.mulf %1238, %1309 : vector<48x128xf32>
      %1311 = arith.subf %1295, %1310 : vector<48x128xf32>
      %c67_243 = arith.constant 67 : index
      %1312 = memref.load %arg5[%c67_243] : memref<144xf32, #tpu.memory_space<smem>>
      %1313 = vector.broadcast %1312 : f32 to vector<48x128xf32>
      %1314 = arith.mulf %1238, %1313 : vector<48x128xf32>
      %1315 = arith.subf %1299, %1314 : vector<48x128xf32>
      %c103_244 = arith.constant 103 : index
      %1316 = memref.load %arg5[%c103_244] : memref<144xf32, #tpu.memory_space<smem>>
      %1317 = vector.broadcast %1316 : f32 to vector<48x128xf32>
      %1318 = arith.mulf %1238, %1317 : vector<48x128xf32>
      %1319 = arith.subf %1303, %1318 : vector<48x128xf32>
      %c139_245 = arith.constant 139 : index
      %1320 = memref.load %arg5[%c139_245] : memref<144xf32, #tpu.memory_space<smem>>
      %1321 = vector.broadcast %1320 : f32 to vector<48x128xf32>
      %1322 = arith.mulf %1238, %1321 : vector<48x128xf32>
      %1323 = arith.subf %1307, %1322 : vector<48x128xf32>
      %c32_246 = arith.constant 32 : index
      %1324 = memref.load %arg5[%c32_246] : memref<144xf32, #tpu.memory_space<smem>>
      %1325 = vector.broadcast %1324 : f32 to vector<48x128xf32>
      %1326 = arith.mulf %1291, %1325 : vector<48x128xf32>
      %1327 = arith.subf %1311, %1326 : vector<48x128xf32>
      %c68_247 = arith.constant 68 : index
      %1328 = memref.load %arg5[%c68_247] : memref<144xf32, #tpu.memory_space<smem>>
      %1329 = vector.broadcast %1328 : f32 to vector<48x128xf32>
      %1330 = arith.mulf %1291, %1329 : vector<48x128xf32>
      %1331 = arith.subf %1315, %1330 : vector<48x128xf32>
      %c104_248 = arith.constant 104 : index
      %1332 = memref.load %arg5[%c104_248] : memref<144xf32, #tpu.memory_space<smem>>
      %1333 = vector.broadcast %1332 : f32 to vector<48x128xf32>
      %1334 = arith.mulf %1291, %1333 : vector<48x128xf32>
      %1335 = arith.subf %1319, %1334 : vector<48x128xf32>
      %c140_249 = arith.constant 140 : index
      %1336 = memref.load %arg5[%c140_249] : memref<144xf32, #tpu.memory_space<smem>>
      %1337 = vector.broadcast %1336 : f32 to vector<48x128xf32>
      %1338 = arith.mulf %1291, %1337 : vector<48x128xf32>
      %1339 = arith.subf %1323, %1338 : vector<48x128xf32>
      %c47_i32_250 = arith.constant 47 : i32
      %1340 = tpu.dynamic_rotate %1238 by %c47_i32_250 dim 0 : vector<48x128xf32>, i32 -> vector<48x128xf32>
      %c1_i32_251 = arith.constant 1 : i32
      %1341 = tpu.dynamic_rotate %1340 by %c1_i32_251 dim 1 : vector<48x128xf32>, i32 -> vector<48x128xf32>
      %c127_i32_252 = arith.constant 127 : i32
      %1342 = tpu.dynamic_rotate %1340 by %c127_i32_252 dim 1 : vector<48x128xf32>, i32 -> vector<48x128xf32>
      %c33_253 = arith.constant 33 : index
      %1343 = memref.load %arg5[%c33_253] : memref<144xf32, #tpu.memory_space<smem>>
      %1344 = vector.broadcast %1343 : f32 to vector<48x128xf32>
      %1345 = arith.mulf %1341, %1344 : vector<48x128xf32>
      %1346 = arith.subf %1327, %1345 : vector<48x128xf32>
      %c69_254 = arith.constant 69 : index
      %1347 = memref.load %arg5[%c69_254] : memref<144xf32, #tpu.memory_space<smem>>
      %1348 = vector.broadcast %1347 : f32 to vector<48x128xf32>
      %1349 = arith.mulf %1341, %1348 : vector<48x128xf32>
      %1350 = arith.subf %1331, %1349 : vector<48x128xf32>
      %c105_255 = arith.constant 105 : index
      %1351 = memref.load %arg5[%c105_255] : memref<144xf32, #tpu.memory_space<smem>>
      %1352 = vector.broadcast %1351 : f32 to vector<48x128xf32>
      %1353 = arith.mulf %1341, %1352 : vector<48x128xf32>
      %1354 = arith.subf %1335, %1353 : vector<48x128xf32>
      %c141_256 = arith.constant 141 : index
      %1355 = memref.load %arg5[%c141_256] : memref<144xf32, #tpu.memory_space<smem>>
      %1356 = vector.broadcast %1355 : f32 to vector<48x128xf32>
      %1357 = arith.mulf %1341, %1356 : vector<48x128xf32>
      %1358 = arith.subf %1339, %1357 : vector<48x128xf32>
      %c34_257 = arith.constant 34 : index
      %1359 = memref.load %arg5[%c34_257] : memref<144xf32, #tpu.memory_space<smem>>
      %1360 = vector.broadcast %1359 : f32 to vector<48x128xf32>
      %1361 = arith.mulf %1340, %1360 : vector<48x128xf32>
      %1362 = arith.subf %1346, %1361 : vector<48x128xf32>
      %c70_258 = arith.constant 70 : index
      %1363 = memref.load %arg5[%c70_258] : memref<144xf32, #tpu.memory_space<smem>>
      %1364 = vector.broadcast %1363 : f32 to vector<48x128xf32>
      %1365 = arith.mulf %1340, %1364 : vector<48x128xf32>
      %1366 = arith.subf %1350, %1365 : vector<48x128xf32>
      %c106_259 = arith.constant 106 : index
      %1367 = memref.load %arg5[%c106_259] : memref<144xf32, #tpu.memory_space<smem>>
      %1368 = vector.broadcast %1367 : f32 to vector<48x128xf32>
      %1369 = arith.mulf %1340, %1368 : vector<48x128xf32>
      %1370 = arith.subf %1354, %1369 : vector<48x128xf32>
      %c142_260 = arith.constant 142 : index
      %1371 = memref.load %arg5[%c142_260] : memref<144xf32, #tpu.memory_space<smem>>
      %1372 = vector.broadcast %1371 : f32 to vector<48x128xf32>
      %1373 = arith.mulf %1340, %1372 : vector<48x128xf32>
      %1374 = arith.subf %1358, %1373 : vector<48x128xf32>
      %c35_261 = arith.constant 35 : index
      %1375 = memref.load %arg5[%c35_261] : memref<144xf32, #tpu.memory_space<smem>>
      %1376 = vector.broadcast %1375 : f32 to vector<48x128xf32>
      %1377 = arith.mulf %1342, %1376 : vector<48x128xf32>
      %1378 = arith.subf %1362, %1377 : vector<48x128xf32>
      %c71_262 = arith.constant 71 : index
      %1379 = memref.load %arg5[%c71_262] : memref<144xf32, #tpu.memory_space<smem>>
      %1380 = vector.broadcast %1379 : f32 to vector<48x128xf32>
      %1381 = arith.mulf %1342, %1380 : vector<48x128xf32>
      %1382 = arith.subf %1366, %1381 : vector<48x128xf32>
      %c107_263 = arith.constant 107 : index
      %1383 = memref.load %arg5[%c107_263] : memref<144xf32, #tpu.memory_space<smem>>
      %1384 = vector.broadcast %1383 : f32 to vector<48x128xf32>
      %1385 = arith.mulf %1342, %1384 : vector<48x128xf32>
      %1386 = arith.subf %1370, %1385 : vector<48x128xf32>
      %c143_264 = arith.constant 143 : index
      %1387 = memref.load %arg5[%c143_264] : memref<144xf32, #tpu.memory_space<smem>>
      %1388 = vector.broadcast %1387 : f32 to vector<48x128xf32>
      %1389 = arith.mulf %1342, %1388 : vector<48x128xf32>
      %1390 = arith.subf %1374, %1389 : vector<48x128xf32>
      scf.yield %1378, %1382, %1386, %1390 : vector<48x128xf32>, vector<48x128xf32>, vector<48x128xf32>, vector<48x128xf32>
    }
    %c4_i32_21 = arith.constant 4 : i32
    %c0_22 = arith.constant 0 : index
    %c0_23 = arith.constant 0 : index
    %c0_24 = arith.constant 0 : index
    %c0_25 = arith.constant 0 : index
    %27 = vector.load %arg7[%c0_22, %c0_23, %c0_24, %c0_25] : memref<1x4x48x128xf32, #tpu.memory_space<vmem>>, vector<1x1x48x128xf32>
    %28 = vector.shape_cast %27 : vector<1x1x48x128xf32> to vector<48x128xf32>
    %29 = vector.shape_cast %26#0 : vector<48x128xf32> to vector<1x1x48x128xf32>
    tpu.vector_store %arg7[%c0_22, %c0_23, %c0_24, %c0_25], %29 {strides = array<i32>} : memref<1x4x48x128xf32, #tpu.memory_space<vmem>>, vector<1x1x48x128xf32>,
    %c0_26 = arith.constant 0 : index
    %c1_27 = arith.constant 1 : index
    %c0_28 = arith.constant 0 : index
    %c0_29 = arith.constant 0 : index
    %30 = vector.load %arg7[%c0_26, %c1_27, %c0_28, %c0_29] : memref<1x4x48x128xf32, #tpu.memory_space<vmem>>, vector<1x1x48x128xf32>
    %31 = vector.shape_cast %30 : vector<1x1x48x128xf32> to vector<48x128xf32>
    %32 = vector.shape_cast %26#1 : vector<48x128xf32> to vector<1x1x48x128xf32>
    tpu.vector_store %arg7[%c0_26, %c1_27, %c0_28, %c0_29], %32 {strides = array<i32>} : memref<1x4x48x128xf32, #tpu.memory_space<vmem>>, vector<1x1x48x128xf32>,
    %c0_30 = arith.constant 0 : index
    %c2_31 = arith.constant 2 : index
    %c0_32 = arith.constant 0 : index
    %c0_33 = arith.constant 0 : index
    %33 = vector.load %arg7[%c0_30, %c2_31, %c0_32, %c0_33] : memref<1x4x48x128xf32, #tpu.memory_space<vmem>>, vector<1x1x48x128xf32>
    %34 = vector.shape_cast %33 : vector<1x1x48x128xf32> to vector<48x128xf32>
    %35 = vector.shape_cast %26#2 : vector<48x128xf32> to vector<1x1x48x128xf32>
    tpu.vector_store %arg7[%c0_30, %c2_31, %c0_32, %c0_33], %35 {strides = array<i32>} : memref<1x4x48x128xf32, #tpu.memory_space<vmem>>, vector<1x1x48x128xf32>,
    %c0_34 = arith.constant 0 : index
    %c3_35 = arith.constant 3 : index
    %c0_36 = arith.constant 0 : index
    %c0_37 = arith.constant 0 : index
    %36 = vector.load %arg7[%c0_34, %c3_35, %c0_36, %c0_37] : memref<1x4x48x128xf32, #tpu.memory_space<vmem>>, vector<1x1x48x128xf32>
    %37 = vector.shape_cast %36 : vector<1x1x48x128xf32> to vector<48x128xf32>
    %38 = vector.shape_cast %26#3 : vector<48x128xf32> to vector<1x1x48x128xf32>
    tpu.vector_store %arg7[%c0_34, %c3_35, %c0_36, %c0_37], %38 {strides = array<i32>} : memref<1x4x48x128xf32, #tpu.memory_space<vmem>>, vector<1x1x48x128xf32>,
    return
  }
  func.func @transform_0(%arg0: i32) -> i32 {
    %c0_i32 = arith.constant 0 : i32
    %c0_i32_0 = arith.constant 0 : i32
    return %c0_i32 : i32
  }
  func.func @transform_1(%arg0: i32) -> i32 {
    %c0_i32 = arith.constant 0 : i32
    %c0_i32_0 = arith.constant 0 : i32
    return %c0_i32 : i32
  }
  func.func @transform_2(%arg0: i32) -> i32 {
    %c0_i32 = arith.constant 0 : i32
    %c0_i32_0 = arith.constant 0 : i32
    return %c0_i32 : i32
  }
  func.func @transform_3(%arg0: i32) -> i32 {
    %c0_i32 = arith.constant 0 : i32
    %c0_i32_0 = arith.constant 0 : i32
    return %c0_i32 : i32
  }
  func.func @transform_4(%arg0: i32) -> i32 {
    %c0_i32 = arith.constant 0 : i32
    %c0_i32_0 = arith.constant 0 : i32
    return %c0_i32 : i32
  }
  func.func @transform_5(%arg0: i32) -> (i32, i32, i32, i32) {
    %c0_i32 = arith.constant 0 : i32
    %c0_i32_0 = arith.constant 0 : i32
    %c0_i32_1 = arith.constant 0 : i32
    %c0_i32_2 = arith.constant 0 : i32
    return %arg0, %c0_i32, %c0_i32_0, %c0_i32_1 : i32, i32, i32, i32
  }
  func.func @transform_6(%arg0: i32) -> (i32, i32, i32, i32) {
    %c0_i32 = arith.constant 0 : i32
    %c0_i32_0 = arith.constant 0 : i32
    %c0_i32_1 = arith.constant 0 : i32
    %c0_i32_2 = arith.constant 0 : i32
    return %arg0, %c0_i32, %c0_i32_0, %c0_i32_1 : i32, i32, i32, i32
  }
}

</mosaic_0001>

<llo_original>
// kernel: fakd_flow.1
$region0: #{fakd_flow.1}
  #allocation0 [shape = 'u32[]', space=smem, size = 0x4, offset = 0x4, fixed_abs, tag = 'smem constant byte address 0x4 - core index']
  #allocation1 [shape = 'u32[144,128]{1,0:T(1,128)}', space=vmem, size = 0x12000, scoped, tag = 'internal scratch']
  %s0 = inlined_call_operand.vmem [shape: f32[32], index: 0, kind: input, shape index: {}]
  %s1 = inlined_call_operand.vmem [shape: f32[144], index: 1, kind: input, shape index: {}]
  %s2 = inlined_call_operand.vmem [shape: f32[4], index: 2, kind: input, shape index: {}]
  %s3 = inlined_call_operand.vmem [shape: f32[4], index: 3, kind: input, shape index: {}]
  %s4 = inlined_call_operand.vmem [shape: f32[144], index: 4, kind: input, shape index: {}]
  %s5 = inlined_call_operand.vmem [shape: f32[2,4,48,128], index: 5, kind: input, shape index: {}, may-alias: {5,6}]
  %s6 = inlined_call_operand.vmem [shape: f32[2,4,48,128], index: 6, kind: output, shape index: {}, may-alias: {5,6}]
  %s7 = sld [smem:[#allocation0]]
  $region84: #{fakd_flow.1} parent=0
    _
  %s9 = ssub.s32 1, %s7
  %s10 = scalar_select 0, %s9, %s7
  $region1: #{fakd_flow.1} parent=0
    #allocation2 [shape = 'u8[512]{0}', space=smem, size = 0x200, scoped, tag = 'input window, operand 0, single buffered']
    #allocation3 [shape = 's32[2]{0}', space=sflag, size = 0x8, scoped, tag = 'scoped memory for fakd_flow.1']
    #allocation4 [shape = 'u8[1024]{0}', space=smem, size = 0x400, scoped, tag = 'input window, operand 1, single buffered']
    #allocation5 [shape = 's32[1]{0}', space=sflag, size = 0x4, scoped, tag = 'scoped memory for fakd_flow.1']
    #allocation6 [shape = 'u8[512]{0}', space=smem, size = 0x200, scoped, tag = 'input window, operand 2, single buffered']
    #allocation7 [shape = 'u8[512]{0}', space=smem, size = 0x200, scoped, tag = 'input window, operand 3, single buffered']
    #allocation8 [shape = 's32[1]{0}', space=sflag, size = 0x4, scoped, tag = 'scoped memory for fakd_flow.1']
    #allocation9 [shape = 'u8[1024]{0}', space=smem, size = 0x400, scoped, tag = 'input window, operand 4, single buffered']
    %11 = vsyncpa [#allocation3], 0
    %12 = vsyncpa [#allocation5], 0
    %13 = vsyncpa [#allocation8], 0
    loop: start=0, step=1, limit=4
    $region2: #{fakd_flow.1} parent=1 // loop_pre_header
      _
    $region3: #{fakd_flow.1} parent=1 // loop_header
      %s15 = sphi 0, %s19
      %p16 = scmp.ge.s32.totalorder %s15, 4
      %s23 = sphi 0, %s23
      %s25 = sphi 0, %s23
      %s26 = sphi 0, %s25
      %s40 = sphi 0, %s26
      %s44 = sphi 0, %s44
      %s46 = sphi 0, %s44
      %s47 = sphi 0, %s46
      %s61 = sphi 0, %s47
      %s65 = sphi 0, %s65
      %s67 = sphi 0, %s65
      %s68 = sphi 0, %s67
      %s82 = sphi 0, %s68
      %s86 = sphi 0, %s86
      %s88 = sphi 0, %s86
      %s89 = sphi 0, %s88
      %s103 = sphi 0, %s89
      %s107 = sphi 0, %s107
      %s109 = sphi 0, %s107
      %s110 = sphi 0, %s109
      %s124 = sphi 0, %s110
      %s130 = sphi 0, %s132
      %s133 = sphi 0, %s130
      %s134 = sphi 0, %s133
      %s150 = sphi 0, %s134
      %s156 = sphi 0, %s158
      %s159 = sphi 0, %s156
      %s160 = sphi 0, %s159
      %s176 = sphi 0, %s160
    $region4: #{fakd_flow.1} parent=1 // loop_header_branch
      %18 = sbr.rel (%p16) target = $region8
    $region5: #{fakd_flow.1} parent=1 // loop_body
      %s20 = ssub.s32 %s15, 1
      %s21 = ssub.s32 %s15, 2
      %s22 = sadd.s32 %s15, 1
      %s24 = sadd.s32 %s23, 1
      %p27 = scmp.eq.s32.totalorder %s15, 1
      %p28 = scmp.ne.s32.totalorder %s23, %s25
      %p29 = scmp.eq.s32.totalorder %s15, 0
      %p30 = por %p28, %p29
      %p31 = scmp.ne.s32.totalorder %s23, %s25
      %p32 = scmp.eq.s32.totalorder %s20, 1
      %p33 = por %p31, %p32
      %p34 = scmp.ne.s32.totalorder %s25, %s26
      %p35 = scmp.eq.s32.totalorder %s20, 0
      %p36 = por %p34, %p35
      %p37 = scmp.ne.s32.totalorder %s25, %s26
      %p38 = scmp.eq.s32.totalorder %s21, 1
      %p39 = por %p37, %p38
      %p41 = scmp.ne.s32.totalorder %s26, %s40
      %p42 = scmp.eq.s32.totalorder %s21, 0
      %p43 = por %p41, %p42
      %s45 = sadd.s32 %s44, 1
      %p48 = scmp.eq.s32.totalorder %s15, 1
      %p49 = scmp.ne.s32.totalorder %s44, %s46
      %p50 = scmp.eq.s32.totalorder %s15, 0
      %p51 = por %p49, %p50
      %p52 = scmp.ne.s32.totalorder %s44, %s46
      %p53 = scmp.eq.s32.totalorder %s20, 1
      %p54 = por %p52, %p53
      %p55 = scmp.ne.s32.totalorder %s46, %s47
      %p56 = scmp.eq.s32.totalorder %s20, 0
      %p57 = por %p55, %p56
      %p58 = scmp.ne.s32.totalorder %s46, %s47
      %p59 = scmp.eq.s32.totalorder %s21, 1
      %p60 = por %p58, %p59
      %p62 = scmp.ne.s32.totalorder %s47, %s61
      %p63 = scmp.eq.s32.totalorder %s21, 0
      %p64 = por %p62, %p63
      %s66 = sadd.s32 %s65, 1
      %p69 = scmp.eq.s32.totalorder %s15, 1
      %p70 = scmp.ne.s32.totalorder %s65, %s67
      %p71 = scmp.eq.s32.totalorder %s15, 0
      %p72 = por %p70, %p71
      %p73 = scmp.ne.s32.totalorder %s65, %s67
      %p74 = scmp.eq.s32.totalorder %s20, 1
      %p75 = por %p73, %p74
      %p76 = scmp.ne.s32.totalorder %s67, %s68
      %p77 = scmp.eq.s32.totalorder %s20, 0
      %p78 = por %p76, %p77
      %p79 = scmp.ne.s32.totalorder %s67, %s68
      %p80 = scmp.eq.s32.totalorder %s21, 1
      %p81 = por %p79, %p80
      %p83 = scmp.ne.s32.totalorder %s68, %s82
      %p84 = scmp.eq.s32.totalorder %s21, 0
      %p85 = por %p83, %p84
      %s87 = sadd.s32 %s86, 1
      %p90 = scmp.eq.s32.totalorder %s15, 1
      %p91 = scmp.ne.s32.totalorder %s86, %s88
      %p92 = scmp.eq.s32.totalorder %s15, 0
      %p93 = por %p91, %p92
      %p94 = scmp.ne.s32.totalorder %s86, %s88
      %p95 = scmp.eq.s32.totalorder %s20, 1
      %p96 = por %p94, %p95
      %p97 = scmp.ne.s32.totalorder %s88, %s89
      %p98 = scmp.eq.s32.totalorder %s20, 0
      %p99 = por %p97, %p98
      %p100 = scmp.ne.s32.totalorder %s88, %s89
      %p101 = scmp.eq.s32.totalorder %s21, 1
      %p102 = por %p100, %p101
      %p104 = scmp.ne.s32.totalorder %s89, %s103
      %p105 = scmp.eq.s32.totalorder %s21, 0
      %p106 = por %p104, %p105
      %s108 = sadd.s32 %s107, 1
      %p111 = scmp.eq.s32.totalorder %s15, 1
      %p112 = scmp.ne.s32.totalorder %s107, %s109
      %p113 = scmp.eq.s32.totalorder %s15, 0
      %p114 = por %p112, %p113
      %p115 = scmp.ne.s32.totalorder %s107, %s109
      %p116 = scmp.eq.s32.totalorder %s20, 1
      %p117 = por %p115, %p116
      %p118 = scmp.ne.s32.totalorder %s109, %s110
      %p119 = scmp.eq.s32.totalorder %s20, 0
      %p120 = por %p118, %p119
      %p121 = scmp.ne.s32.totalorder %s109, %s110
      %p122 = scmp.eq.s32.totalorder %s21, 1
      %p123 = por %p121, %p122
      %p125 = scmp.ne.s32.totalorder %s110, %s124
      %p126 = scmp.eq.s32.totalorder %s21, 0
      %p127 = por %p125, %p126
      %s128 = ssub.s32 %s15, %s22
      %p129 = scmp.eq.s32.totalorder %s128, 0
      %s131 = sadd.s32 %s130, 1
      %s132 = scalar_select %p129, %s130, %s131
      %p135 = pneg %p129
      %p136 = scmp.eq.s32.totalorder %s15, 1
      %p137 = por %p135, %p136
      %p138 = scmp.ne.s32.totalorder %s130, %s133
      %p139 = scmp.eq.s32.totalorder %s15, 0
      %p140 = por %p138, %p139
      %p141 = scmp.ne.s32.totalorder %s130, %s133
      %p142 = scmp.eq.s32.totalorder %s20, 1
      %p143 = por %p141, %p142
      %p144 = scmp.ne.s32.totalorder %s133, %s134
      %p145 = scmp.eq.s32.totalorder %s20, 0
      %p146 = por %p144, %p145
      %p147 = scmp.ne.s32.totalorder %s133, %s134
      %p148 = scmp.eq.s32.totalorder %s21, 1
      %p149 = por %p147, %p148
      %p151 = scmp.ne.s32.totalorder %s134, %s150
      %p152 = scmp.eq.s32.totalorder %s21, 0
      %p153 = por %p151, %p152
      %s154 = ssub.s32 %s15, %s22
      %p155 = scmp.eq.s32.totalorder %s154, 0
      %s157 = sadd.s32 %s156, 1
      %s158 = scalar_select %p155, %s156, %s157
      %p161 = pneg %p155
      %p162 = scmp.eq.s32.totalorder %s15, 1
      %p163 = por %p161, %p162
      %p164 = scmp.ne.s32.totalorder %s156, %s159
      %p165 = scmp.eq.s32.totalorder %s15, 0
      %p166 = por %p164, %p165
      %p167 = scmp.ne.s32.totalorder %s156, %s159
      %p168 = scmp.eq.s32.totalorder %s20, 1
      %p169 = por %p167, %p168
      %p170 = scmp.ne.s32.totalorder %s159, %s160
      %p171 = scmp.eq.s32.totalorder %s20, 0
      %p172 = por %p170, %p171
      %p173 = scmp.ne.s32.totalorder %s159, %s160
      %p174 = scmp.eq.s32.totalorder %s21, 1
      %p175 = por %p173, %p174
      %p177 = scmp.ne.s32.totalorder %s160, %s176
      %p178 = scmp.eq.s32.totalorder %s21, 0
      %p179 = por %p177, %p178
      %p180 = scmp.le.s32.totalorder 1, %s15
      %p181 = scmp.lt.s32.totalorder %s15, 3
      %p182 = pnand %p180, %p181
      %p183 = pneg %p182
      // Predicated region
      $region9: #{fakd_flow.1} parent=5 // pred_check
        _
      $region10: #{fakd_flow.1} parent=5 // pred_check_branch
        %185 = sbr.rel (%p182) target = $region12
      $region11: #{fakd_flow.1} parent=5 // pred_region
        %s186 = ssub.s32 %s15, 1
        // Predicated region
        $region13: #{fakd_flow.1} parent=11 // pred_check
          %p187 = pneg %p36
        $region14: #{fakd_flow.1} parent=11 // pred_check_branch
          %189 = sbr.rel (%p187) target = $region16
        $region15: #{fakd_flow.1} parent=11 // pred_region
          %s191 = ssub.s32 16, 16
          %192 = vsyncadd [#allocation3], %s191
          %s194 = sshll.u32 %s0, 4
          %s195 = int_to_ptr.vmem [resolvable:$true] %s194
          %197 = dma.vmem_to_smem %s195, 16, [#allocation2], [#allocation3]
        $region16: #{fakd_flow.1} parent=11 // pred_fallthru
          _
        // Predicated region
        $region17: #{fakd_flow.1} parent=11 // pred_check
          %p198 = pneg %p57
        $region18: #{fakd_flow.1} parent=11 // pred_check_branch
          %200 = sbr.rel (%p198) target = $region20
        $region19: #{fakd_flow.1} parent=11 // pred_region
          %s202 = ssub.s32 32, 32
          %203 = vsyncadd [#allocation5], %s202
          %s205 = sshll.u32 %s1, 4
          %s206 = int_to_ptr.vmem [resolvable:$true] %s205
          %208 = dma.vmem_to_smem %s206, 32, [#allocation4], [#allocation5]
        $region20: #{fakd_flow.1} parent=11 // pred_fallthru
          _
        // Predicated region
        $region21: #{fakd_flow.1} parent=11 // pred_check
          %p209 = pneg %p78
        $region22: #{fakd_flow.1} parent=11 // pred_check_branch
          %211 = sbr.rel (%p209) target = $region24
        $region23: #{fakd_flow.1} parent=11 // pred_region
          %s213 = ssub.s32 16, 16
          %214 = vsyncadd [#allocation5], %s213
          %s216 = sshll.u32 %s2, 4
          %s217 = int_to_ptr.vmem [resolvable:$true] %s216
          %219 = dma.vmem_to_smem %s217, 16, [#allocation6], [#allocation5]
        $region24: #{fakd_flow.1} parent=11 // pred_fallthru
          _
        // Predicated region
        $region25: #{fakd_flow.1} parent=11 // pred_check
          %p220 = pneg %p99
        $region26: #{fakd_flow.1} parent=11 // pred_check_branch
          %222 = sbr.rel (%p220) target = $region28
        $region27: #{fakd_flow.1} parent=11 // pred_region
          %s224 = ssub.s32 16, 16
          %225 = vsyncadd [#allocation8], %s224
          %s227 = sshll.u32 %s3, 4
          %s228 = int_to_ptr.vmem [resolvable:$true] %s227
          %230 = dma.vmem_to_smem %s228, 16, [#allocation7], [#allocation8]
        $region28: #{fakd_flow.1} parent=11 // pred_fallthru
          _
        // Predicated region
        $region29: #{fakd_flow.1} parent=11 // pred_check
          %p231 = pneg %p120
        $region30: #{fakd_flow.1} parent=11 // pred_check_branch
          %233 = sbr.rel (%p231) target = $region32
        $region31: #{fakd_flow.1} parent=11 // pred_region
          %s235 = ssub.s32 32, 32
          %236 = vsyncadd [#allocation8], %s235
          %s238 = sshll.u32 %s4, 4
          %s239 = int_to_ptr.vmem [resolvable:$true] %s238
          %241 = dma.vmem_to_smem %s239, 32, [#allocation9], [#allocation8]
        $region32: #{fakd_flow.1} parent=11 // pred_fallthru
          _
      $region12: #{fakd_flow.1} parent=5 // pred_fallthru
        _
      %p242 = scmp.lt.s32.totalorder %s15, 2
      // Predicated region
      $region33: #{fakd_flow.1} parent=5 // pred_check
        %p243 = pneg %p242
      $region34: #{fakd_flow.1} parent=5 // pred_check_branch
        %245 = sbr.rel (%p243) target = $region36
      $region35: #{fakd_flow.1} parent=5 // pred_region
        // Predicated region
        $region37: #{fakd_flow.1} parent=35 // pred_check
          %p246 = pneg %p140
        $region38: #{fakd_flow.1} parent=35 // pred_check_branch
          %248 = sbr.rel (%p246) target = $region40
        $region39: #{fakd_flow.1} parent=35 // pred_region
          %p249 = scmp.lt.s32.totalorder %s15, 1
          %s250 = scalar_select %p249, %s15, 1
          %s251 = smul.addr %s250, 24
          %s252 = smul.addr %s251, 8
          %s253 = scalar_lea.vmem %s5, %s252
        $region40: #{fakd_flow.1} parent=35 // pred_fallthru
          _
      $region36: #{fakd_flow.1} parent=5 // pred_fallthru
        _
      %p254 = scmp.le.s32.totalorder 1, %s15
      %p255 = scmp.lt.s32.totalorder %s15, 3
      %p256 = pnand %p254, %p255
      %p257 = pneg %p256
      // Predicated region
      $region41: #{fakd_flow.1} parent=5 // pred_check
        _
      $region42: #{fakd_flow.1} parent=5 // pred_check_branch
        %259 = sbr.rel (%p256) target = $region44
      $region43: #{fakd_flow.1} parent=5 // pred_region
        %s260 = ssub.s32 %s15, 1
        // Predicated region
        $region45: #{fakd_flow.1} parent=43 // pred_check
          %p261 = pneg %p36
        $region46: #{fakd_flow.1} parent=43 // pred_check_branch
          %263 = sbr.rel (%p261) target = $region48
        $region47: #{fakd_flow.1} parent=43 // pred_region
          %264 = dma.done [#allocation3], 16
        $region48: #{fakd_flow.1} parent=43 // pred_fallthru
          _
        // Predicated region
        $region49: #{fakd_flow.1} parent=43 // pred_check
          %p265 = pneg %p57
        $region50: #{fakd_flow.1} parent=43 // pred_check_branch
          %267 = sbr.rel (%p265) target = $region52
        $region51: #{fakd_flow.1} parent=43 // pred_region
          %268 = dma.done [#allocation5], 32
        $region52: #{fakd_flow.1} parent=43 // pred_fallthru
          _
        // Predicated region
        $region53: #{fakd_flow.1} parent=43 // pred_check
          %p269 = pneg %p78
        $region54: #{fakd_flow.1} parent=43 // pred_check_branch
          %271 = sbr.rel (%p269) target = $region56
        $region55: #{fakd_flow.1} parent=43 // pred_region
          %272 = dma.done [#allocation5], 16
        $region56: #{fakd_flow.1} parent=43 // pred_fallthru
          _
        // Predicated region
        $region57: #{fakd_flow.1} parent=43 // pred_check
          %p273 = pneg %p99
        $region58: #{fakd_flow.1} parent=43 // pred_check_branch
          %275 = sbr.rel (%p273) target = $region60
        $region59: #{fakd_flow.1} parent=43 // pred_region
          %276 = dma.done [#allocation8], 16
        $region60: #{fakd_flow.1} parent=43 // pred_fallthru
          _
        // Predicated region
        $region61: #{fakd_flow.1} parent=43 // pred_check
          %p277 = pneg %p120
        $region62: #{fakd_flow.1} parent=43 // pred_check_branch
          %279 = sbr.rel (%p277) target = $region64
        $region63: #{fakd_flow.1} parent=43 // pred_region
          %280 = dma.done [#allocation8], 32
        $region64: #{fakd_flow.1} parent=43 // pred_fallthru
          _
        %281 = sfence
        %p282 = pneg %p36
        %p283 = pneg %p33
        %p284 = pneg %p57
        %p285 = pneg %p54
        %p286 = pneg %p78
        %p287 = pneg %p75
        %p288 = pneg %p99
        %p289 = pneg %p96
        %p290 = pneg %p120
        %p291 = pneg %p117
        %p292 = scmp.lt.s32.totalorder %s20, 1
        %s293 = scalar_select %p292, %s20, 1
        %s294 = smul.addr %s293, 24
        %s295 = smul.addr %s294, 8
        %s296 = scalar_lea.vmem %s5, %s295
        %p297 = pneg %p146
        %p298 = pneg %p143
        %p299 = pneg %p172
        %p300 = pneg %p169
        %p301 = scmp.lt.s32.totalorder %s20, 1
        %s302 = scalar_select %p301, %s20, 1
        %s303 = smul.addr %s302, 24
        %s304 = smul.addr %s303, 8
        %s305 = scalar_lea.vmem %s6, %s304
        %p306 = scmp.lt.s32.totalorder %s20, 1
        %s307 = scalar_select %p306, %s20, 1
        %s308 = smul.addr %s307, 24
        %s309 = smul.addr %s308, 8
        %s310 = scalar_lea.vmem %s5, %s309
        %p311 = scmp.lt.s32.totalorder %s20, 1
        %s312 = scalar_select %p311, %s20, 1
        %s313 = smul.addr %s312, 24
        %s314 = smul.addr %s313, 8
        %s315 = scalar_lea.vmem %s6, %s314
        %v316 = vlaneseq
        %v317 = vshrl.u32 %v316, 7
        %v318 = vadd.s32 %v317, 8
        %v319 = vadd.s32 %v317, 16
        %v320 = vadd.s32 %v317, 24
        %v321 = vadd.s32 %v317, 32
        %v322 = vadd.s32 %v317, 40
        %v323 = vlaneseq
        %v324 = vand.u32 %v323, 127
        %vm325 = vcmp.lt.s32.totalorder %v317, 45
        %vm326 = vcmp.lt.s32.totalorder %v318, 45
        %vm327 = vcmp.lt.s32.totalorder %v319, 45
        %vm328 = vcmp.lt.s32.totalorder %v320, 45
        %vm329 = vcmp.lt.s32.totalorder %v321, 45
        %vm330 = vcmp.lt.s32.totalorder %v322, 45
        %vm331 = vcmp.lt.s32.totalorder %v324, 45
        %vm332 = vmand %vm325, %vm331
        %vm333 = vmand %vm326, %vm331
        %vm334 = vmand %vm327, %vm331
        %vm335 = vmand %vm328, %vm331
        %vm336 = vmand %vm329, %vm331
        %vm337 = vmand %vm330, %vm331
        %v338 = vsel %vm332, 1, 0
        %v339 = vsel %vm333, 1, 0
        %v340 = vsel %vm334, 1, 0
        %v341 = vsel %vm335, 1, 0
        %v342 = vsel %vm336, 1, 0
        %v343 = vsel %vm337, 1, 0
        %v344 = vcvt.s32.f32 %v338
        %v345 = vcvt.s32.f32 %v339
        %v346 = vcvt.s32.f32 %v340
        %v347 = vcvt.s32.f32 %v341
        %v348 = vcvt.s32.f32 %v342
        %v349 = vcvt.s32.f32 %v343
        %s350 = sld [smem:[#allocation6]]
        %s351 = sld [smem:[#allocation6 + $0x1]]
        %s352 = sld [smem:[#allocation6 + $0x2]]
        %s353 = sld [smem:[#allocation6 + $0x3]]
        %s354 = sld [smem:[#allocation7]]
        %s355 = sld [smem:[#allocation7 + $0x1]]
        %s356 = sld [smem:[#allocation7 + $0x2]]
        %s357 = sld [smem:[#allocation7 + $0x3]]
        %v358 = vld [vmem:[%s310] sm:$0xff]
        %v359 = vld [vmem:[%s310 + $0x8] sm:$0xff]
        %v360 = vld [vmem:[%s310 + $0x10] sm:$0xff]
        %v361 = vld [vmem:[%s310 + $0x18] sm:$0xff]
        %v362 = vld [vmem:[%s310 + $0x20] sm:$0xff]
        %v363 = vld [vmem:[%s310 + $0x28] sm:$0xff]
        %s364 = scalar_lea.vmem %s310, 48
        %v365 = vld [vmem:[%s364] sm:$0xff]
        %v366 = vld [vmem:[%s364 + $0x8] sm:$0xff]
        %v367 = vld [vmem:[%s364 + $0x10] sm:$0xff]
        %v368 = vld [vmem:[%s364 + $0x18] sm:$0xff]
        %v369 = vld [vmem:[%s364 + $0x20] sm:$0xff]
        %v370 = vld [vmem:[%s364 + $0x28] sm:$0xff]
        %s371 = scalar_lea.vmem %s310, 96
        %v372 = vld [vmem:[%s371] sm:$0xff]
        %v373 = vld [vmem:[%s371 + $0x8] sm:$0xff]
        %v374 = vld [vmem:[%s371 + $0x10] sm:$0xff]
        %v375 = vld [vmem:[%s371 + $0x18] sm:$0xff]
        %v376 = vld [vmem:[%s371 + $0x20] sm:$0xff]
        %v377 = vld [vmem:[%s371 + $0x28] sm:$0xff]
        %s378 = scalar_lea.vmem %s310, 144
        %v379 = vld [vmem:[%s378] sm:$0xff]
        %v380 = vld [vmem:[%s378 + $0x8] sm:$0xff]
        %v381 = vld [vmem:[%s378 + $0x10] sm:$0xff]
        %v382 = vld [vmem:[%s378 + $0x18] sm:$0xff]
        %v383 = vld [vmem:[%s378 + $0x20] sm:$0xff]
        %v384 = vld [vmem:[%s378 + $0x28] sm:$0xff]
        loop: start=0, step=1, limit=4
        $region65: #{fakd_flow.1} parent=43 // loop_pre_header
          _
        $region66: #{fakd_flow.1} parent=43 // loop_header
          %s386 = sphi 0, %s390
          %p387 = scmp.ge.s32.totalorder %s386, 4
          %v391 = vphi %v358, %v5779
          %v392 = vphi %v359, %v5780
          %v393 = vphi %v360, %v5781
          %v394 = vphi %v361, %v5782
          %v395 = vphi %v362, %v5783
          %v396 = vphi %v363, %v5784
          %v397 = vphi %v365, %v5793
          %v398 = vphi %v366, %v5794
          %v399 = vphi %v367, %v5795
          %v400 = vphi %v368, %v5796
          %v401 = vphi %v369, %v5797
          %v402 = vphi %v370, %v5798
          %v403 = vphi %v372, %v5807
          %v404 = vphi %v373, %v5808
          %v405 = vphi %v374, %v5809
          %v406 = vphi %v375, %v5810
          %v407 = vphi %v376, %v5811
          %v408 = vphi %v377, %v5812
          %v409 = vphi %v379, %v5821
          %v410 = vphi %v380, %v5822
          %v411 = vphi %v381, %v5823
          %v412 = vphi %v382, %v5824
          %v413 = vphi %v383, %v5825
          %v414 = vphi %v384, %v5826
        $region67: #{fakd_flow.1} parent=43 // loop_header_branch
          %389 = sbr.rel (%p387) target = $region71
        $region68: #{fakd_flow.1} parent=43 // loop_body
          %s415 = smul.u32 %s20, 4
          %s416 = sadd.s32 %s415, %s386
          %s417 = smul.u32 %s416, 4
          %s418 = sld [smem:[#allocation2 + %s417]]
          %v419 = vstv %s418
          %v420 = vadd.f32 %v391, %v419
          %v421 = vadd.f32 %v392, %v419
          %v422 = vadd.f32 %v393, %v419
          %v423 = vadd.f32 %v394, %v419
          %v424 = vadd.f32 %v395, %v419
          %v425 = vadd.f32 %v396, %v419
          %v426 = vxor.u32 %v420, 2147483648
          %v427 = vxor.u32 %v421, 2147483648
          %v428 = vxor.u32 %v422, 2147483648
          %v429 = vxor.u32 %v423, 2147483648
          %v430 = vxor.u32 %v424, 2147483648
          %v431 = vxor.u32 %v425, 2147483648
          %v432 = vmul.f32 %v426, 1.442695
          %v433 = vpow.pop %v432
          %v434 = vmul.f32 %v427, 1.442695
          %v435 = vpow.pop %v434
          %v436 = vmul.f32 %v428, 1.442695
          %v437 = vpow.pop %v436
          %v438 = vmul.f32 %v429, 1.442695
          %v439 = vpow.pop %v438
          %v440 = vmul.f32 %v430, 1.442695
          %v441 = vpow.pop %v440
          %v442 = vmul.f32 %v431, 1.442695
          %v443 = vpow.pop %v442
          %v444 = vadd.f32 %v433, 1.0
          %v445 = vadd.f32 %v435, 1.0
          %v446 = vadd.f32 %v437, 1.0
          %v447 = vadd.f32 %v439, 1.0
          %v448 = vadd.f32 %v441, 1.0
          %v449 = vadd.f32 %v443, 1.0
          %v450 = vrcp.pop %v444
          %v451 = vmul.f32 1.0, %v450
          %v452 = vrcp.pop %v445
          %v453 = vmul.f32 1.0, %v452
          %v454 = vrcp.pop %v446
          %v455 = vmul.f32 1.0, %v454
          %v456 = vrcp.pop %v447
          %v457 = vmul.f32 1.0, %v456
          %v458 = vrcp.pop %v448
          %v459 = vmul.f32 1.0, %v458
          %v460 = vrcp.pop %v449
          %v461 = vmul.f32 1.0, %v460
          %v462 = vmul.f32 %v420, %v451
          %v463 = vmul.f32 %v421, %v453
          %v464 = vmul.f32 %v422, %v455
          %v465 = vmul.f32 %v423, %v457
          %v466 = vmul.f32 %v424, %v459
          %v467 = vmul.f32 %v425, %v461
          %v468 = vmul.f32 %v462, %v344
          %v469 = vmul.f32 %v463, %v345
          %v470 = vmul.f32 %v464, %v346
          %v471 = vmul.f32 %v465, %v347
          %v472 = vmul.f32 %v466, %v348
          %v473 = vmul.f32 %v467, %v349
          %v474 = vrot.slane %v468, 7
          %v475 = vrot.slane %v469, 7
          %v476 = vrot.slane %v470, 7
          %v477 = vrot.slane %v471, 7
          %v478 = vrot.slane %v472, 7
          %v479 = vrot.slane %v473, 7
          %vm480 = vcmp.lt.s32.totalorder %v317, 1
          %v481 = vsel %vm480, %v478, %v479
          %v482 = vsel %vm480, %v477, %v478
          %v483 = vsel %vm480, %v476, %v477
          %v484 = vsel %vm480, %v475, %v476
          %v485 = vsel %vm480, %v474, %v475
          %v486 = vsel %vm480, %v479, %v474
          %487 = vrot.lane.b32.xlu0 %v486, 1
          %v488 = vpop.permute.xlu0 %487
          %489 = vrot.lane.b32.xlu0 %v485, 1
          %v490 = vpop.permute.xlu0 %489
          %491 = vrot.lane.b32.xlu0 %v484, 1
          %v492 = vpop.permute.xlu0 %491
          %493 = vrot.lane.b32.xlu0 %v483, 1
          %v494 = vpop.permute.xlu0 %493
          %495 = vrot.lane.b32.xlu0 %v482, 1
          %v496 = vpop.permute.xlu0 %495
          %497 = vrot.lane.b32.xlu0 %v481, 1
          %v498 = vpop.permute.xlu0 %497
          %499 = vrot.lane.b32.xlu0 %v486, 127
          %v500 = vpop.permute.xlu0 %499
          %501 = vrot.lane.b32.xlu0 %v485, 127
          %v502 = vpop.permute.xlu0 %501
          %503 = vrot.lane.b32.xlu0 %v484, 127
          %v504 = vpop.permute.xlu0 %503
          %505 = vrot.lane.b32.xlu0 %v483, 127
          %v506 = vpop.permute.xlu0 %505
          %507 = vrot.lane.b32.xlu0 %v482, 127
          %v508 = vpop.permute.xlu0 %507
          %509 = vrot.lane.b32.xlu0 %v481, 127
          %v510 = vpop.permute.xlu0 %509
          %s511 = sld [smem:[#allocation4]]
          %v512 = vstv %s511
          %v513 = vmul.f32 %v488, %v512
          %v514 = vmul.f32 %v490, %v512
          %v515 = vmul.f32 %v492, %v512
          %v516 = vmul.f32 %v494, %v512
          %v517 = vmul.f32 %v496, %v512
          %v518 = vmul.f32 %v498, %v512
          %v519 = vadd.f32 %v513, 0.0
          %v520 = vadd.f32 %v514, 0.0
          %v521 = vadd.f32 %v515, 0.0
          %v522 = vadd.f32 %v516, 0.0
          %v523 = vadd.f32 %v517, 0.0
          %v524 = vadd.f32 %v518, 0.0
          %s525 = sld [smem:[#allocation4 + $0x24]]
          %v526 = vstv %s525
          %v527 = vmul.f32 %v488, %v526
          %v528 = vmul.f32 %v490, %v526
          %v529 = vmul.f32 %v492, %v526
          %v530 = vmul.f32 %v494, %v526
          %v531 = vmul.f32 %v496, %v526
          %v532 = vmul.f32 %v498, %v526
          %v533 = vadd.f32 %v527, 0.0
          %v534 = vadd.f32 %v528, 0.0
          %v535 = vadd.f32 %v529, 0.0
          %v536 = vadd.f32 %v530, 0.0
          %v537 = vadd.f32 %v531, 0.0
          %v538 = vadd.f32 %v532, 0.0
          %s539 = sld [smem:[#allocation4 + $0x48]]
          %v540 = vstv %s539
          %v541 = vmul.f32 %v488, %v540
          %v542 = vmul.f32 %v490, %v540
          %v543 = vmul.f32 %v492, %v540
          %v544 = vmul.f32 %v494, %v540
          %v545 = vmul.f32 %v496, %v540
          %v546 = vmul.f32 %v498, %v540
          %v547 = vadd.f32 %v541, 0.0
          %v548 = vadd.f32 %v542, 0.0
          %v549 = vadd.f32 %v543, 0.0
          %v550 = vadd.f32 %v544, 0.0
          %v551 = vadd.f32 %v545, 0.0
          %v552 = vadd.f32 %v546, 0.0
          %s553 = sld [smem:[#allocation4 + $0x6c]]
          %v554 = vstv %s553
          %v555 = vmul.f32 %v488, %v554
          %v556 = vmul.f32 %v490, %v554
          %v557 = vmul.f32 %v492, %v554
          %v558 = vmul.f32 %v494, %v554
          %v559 = vmul.f32 %v496, %v554
          %v560 = vmul.f32 %v498, %v554
          %v561 = vadd.f32 %v555, 0.0
          %v562 = vadd.f32 %v556, 0.0
          %v563 = vadd.f32 %v557, 0.0
          %v564 = vadd.f32 %v558, 0.0
          %v565 = vadd.f32 %v559, 0.0
          %v566 = vadd.f32 %v560, 0.0
          %s567 = sld [smem:[#allocation4 + $0x1]]
          %v568 = vstv %s567
          %v569 = vmul.f32 %v486, %v568
          %v570 = vmul.f32 %v485, %v568
          %v571 = vmul.f32 %v484, %v568
          %v572 = vmul.f32 %v483, %v568
          %v573 = vmul.f32 %v482, %v568
          %v574 = vmul.f32 %v481, %v568
          %v575 = vadd.f32 %v519, %v569
          %v576 = vadd.f32 %v520, %v570
          %v577 = vadd.f32 %v521, %v571
          %v578 = vadd.f32 %v522, %v572
          %v579 = vadd.f32 %v523, %v573
          %v580 = vadd.f32 %v524, %v574
          %s581 = sld [smem:[#allocation4 + $0x25]]
          %v582 = vstv %s581
          %v583 = vmul.f32 %v486, %v582
          %v584 = vmul.f32 %v485, %v582
          %v585 = vmul.f32 %v484, %v582
          %v586 = vmul.f32 %v483, %v582
          %v587 = vmul.f32 %v482, %v582
          %v588 = vmul.f32 %v481, %v582
          %v589 = vadd.f32 %v533, %v583
          %v590 = vadd.f32 %v534, %v584
          %v591 = vadd.f32 %v535, %v585
          %v592 = vadd.f32 %v536, %v586
          %v593 = vadd.f32 %v537, %v587
          %v594 = vadd.f32 %v538, %v588
          %s595 = sld [smem:[#allocation4 + $0x49]]
          %v596 = vstv %s595
          %v597 = vmul.f32 %v486, %v596
          %v598 = vmul.f32 %v485, %v596
          %v599 = vmul.f32 %v484, %v596
          %v600 = vmul.f32 %v483, %v596
          %v601 = vmul.f32 %v482, %v596
          %v602 = vmul.f32 %v481, %v596
          %v603 = vadd.f32 %v547, %v597
          %v604 = vadd.f32 %v548, %v598
          %v605 = vadd.f32 %v549, %v599
          %v606 = vadd.f32 %v550, %v600
          %v607 = vadd.f32 %v551, %v601
          %v608 = vadd.f32 %v552, %v602
          %s609 = sld [smem:[#allocation4 + $0x6d]]
          %v610 = vstv %s609
          %v611 = vmul.f32 %v486, %v610
          %v612 = vmul.f32 %v485, %v610
          %v613 = vmul.f32 %v484, %v610
          %v614 = vmul.f32 %v483, %v610
          %v615 = vmul.f32 %v482, %v610
          %v616 = vmul.f32 %v481, %v610
          %v617 = vadd.f32 %v561, %v611
          %v618 = vadd.f32 %v562, %v612
          %v619 = vadd.f32 %v563, %v613
          %v620 = vadd.f32 %v564, %v614
          %v621 = vadd.f32 %v565, %v615
          %v622 = vadd.f32 %v566, %v616
          %s623 = sld [smem:[#allocation4 + $0x2]]
          %v624 = vstv %s623
          %v625 = vmul.f32 %v500, %v624
          %v626 = vmul.f32 %v502, %v624
          %v627 = vmul.f32 %v504, %v624
          %v628 = vmul.f32 %v506, %v624
          %v629 = vmul.f32 %v508, %v624
          %v630 = vmul.f32 %v510, %v624
          %v631 = vadd.f32 %v575, %v625
          %v632 = vadd.f32 %v576, %v626
          %v633 = vadd.f32 %v577, %v627
          %v634 = vadd.f32 %v578, %v628
          %v635 = vadd.f32 %v579, %v629
          %v636 = vadd.f32 %v580, %v630
          %s637 = sld [smem:[#allocation4 + $0x26]]
          %v638 = vstv %s637
          %v639 = vmul.f32 %v500, %v638
          %v640 = vmul.f32 %v502, %v638
          %v641 = vmul.f32 %v504, %v638
          %v642 = vmul.f32 %v506, %v638
          %v643 = vmul.f32 %v508, %v638
          %v644 = vmul.f32 %v510, %v638
          %v645 = vadd.f32 %v589, %v639
          %v646 = vadd.f32 %v590, %v640
          %v647 = vadd.f32 %v591, %v641
          %v648 = vadd.f32 %v592, %v642
          %v649 = vadd.f32 %v593, %v643
          %v650 = vadd.f32 %v594, %v644
          %s651 = sld [smem:[#allocation4 + $0x4a]]
          %v652 = vstv %s651
          %v653 = vmul.f32 %v500, %v652
          %v654 = vmul.f32 %v502, %v652
          %v655 = vmul.f32 %v504, %v652
          %v656 = vmul.f32 %v506, %v652
          %v657 = vmul.f32 %v508, %v652
          %v658 = vmul.f32 %v510, %v652
          %v659 = vadd.f32 %v603, %v653
          %v660 = vadd.f32 %v604, %v654
          %v661 = vadd.f32 %v605, %v655
          %v662 = vadd.f32 %v606, %v656
          %v663 = vadd.f32 %v607, %v657
          %v664 = vadd.f32 %v608, %v658
          %s665 = sld [smem:[#allocation4 + $0x6e]]
          %v666 = vstv %s665
          %v667 = vmul.f32 %v500, %v666
          %v668 = vmul.f32 %v502, %v666
          %v669 = vmul.f32 %v504, %v666
          %v670 = vmul.f32 %v506, %v666
          %v671 = vmul.f32 %v508, %v666
          %v672 = vmul.f32 %v510, %v666
          %v673 = vadd.f32 %v617, %v667
          %v674 = vadd.f32 %v618, %v668
          %v675 = vadd.f32 %v619, %v669
          %v676 = vadd.f32 %v620, %v670
          %v677 = vadd.f32 %v621, %v671
          %v678 = vadd.f32 %v622, %v672
          %679 = vrot.lane.b32.xlu0 %v468, 1
          %v680 = vpop.permute.xlu0 %679
          %681 = vrot.lane.b32.xlu0 %v469, 1
          %v682 = vpop.permute.xlu0 %681
          %683 = vrot.lane.b32.xlu0 %v470, 1
          %v684 = vpop.permute.xlu0 %683
          %685 = vrot.lane.b32.xlu0 %v471, 1
          %v686 = vpop.permute.xlu0 %685
          %687 = vrot.lane.b32.xlu0 %v472, 1
          %v688 = vpop.permute.xlu0 %687
          %689 = vrot.lane.b32.xlu0 %v473, 1
          %v690 = vpop.permute.xlu0 %689
          %691 = vrot.lane.b32.xlu0 %v468, 127
          %v692 = vpop.permute.xlu0 %691
          %693 = vrot.lane.b32.xlu0 %v469, 127
          %v694 = vpop.permute.xlu0 %693
          %695 = vrot.lane.b32.xlu0 %v470, 127
          %v696 = vpop.permute.xlu0 %695
          %697 = vrot.lane.b32.xlu0 %v471, 127
          %v698 = vpop.permute.xlu0 %697
          %699 = vrot.lane.b32.xlu0 %v472, 127
          %v700 = vpop.permute.xlu0 %699
          %701 = vrot.lane.b32.xlu0 %v473, 127
          %v702 = vpop.permute.xlu0 %701
          %s703 = sld [smem:[#allocation4 + $0x3]]
          %v704 = vstv %s703
          %v705 = vmul.f32 %v680, %v704
          %v706 = vmul.f32 %v682, %v704
          %v707 = vmul.f32 %v684, %v704
          %v708 = vmul.f32 %v686, %v704
          %v709 = vmul.f32 %v688, %v704
          %v710 = vmul.f32 %v690, %v704
          %v711 = vadd.f32 %v631, %v705
          %v712 = vadd.f32 %v632, %v706
          %v713 = vadd.f32 %v633, %v707
          %v714 = vadd.f32 %v634, %v708
          %v715 = vadd.f32 %v635, %v709
          %v716 = vadd.f32 %v636, %v710
          %s717 = sld [smem:[#allocation4 + $0x27]]
          %v718 = vstv %s717
          %v719 = vmul.f32 %v680, %v718
          %v720 = vmul.f32 %v682, %v718
          %v721 = vmul.f32 %v684, %v718
          %v722 = vmul.f32 %v686, %v718
          %v723 = vmul.f32 %v688, %v718
          %v724 = vmul.f32 %v690, %v718
          %v725 = vadd.f32 %v645, %v719
          %v726 = vadd.f32 %v646, %v720
          %v727 = vadd.f32 %v647, %v721
          %v728 = vadd.f32 %v648, %v722
          %v729 = vadd.f32 %v649, %v723
          %v730 = vadd.f32 %v650, %v724
          %s731 = sld [smem:[#allocation4 + $0x4b]]
          %v732 = vstv %s731
          %v733 = vmul.f32 %v680, %v732
          %v734 = vmul.f32 %v682, %v732
          %v735 = vmul.f32 %v684, %v732
          %v736 = vmul.f32 %v686, %v732
          %v737 = vmul.f32 %v688, %v732
          %v738 = vmul.f32 %v690, %v732
          %v739 = vadd.f32 %v659, %v733
          %v740 = vadd.f32 %v660, %v734
          %v741 = vadd.f32 %v661, %v735
          %v742 = vadd.f32 %v662, %v736
          %v743 = vadd.f32 %v663, %v737
          %v744 = vadd.f32 %v664, %v738
          %s745 = sld [smem:[#allocation4 + $0x6f]]
          %v746 = vstv %s745
          %v747 = vmul.f32 %v680, %v746
          %v748 = vmul.f32 %v682, %v746
          %v749 = vmul.f32 %v684, %v746
          %v750 = vmul.f32 %v686, %v746
          %v751 = vmul.f32 %v688, %v746
          %v752 = vmul.f32 %v690, %v746
          %v753 = vadd.f32 %v673, %v747
          %v754 = vadd.f32 %v674, %v748
          %v755 = vadd.f32 %v675, %v749
          %v756 = vadd.f32 %v676, %v750
          %v757 = vadd.f32 %v677, %v751
          %v758 = vadd.f32 %v678, %v752
          %s759 = sld [smem:[#allocation4 + $0x4]]
          %v760 = vstv %s759
          %v761 = vmul.f32 %v468, %v760
          %v762 = vmul.f32 %v469, %v760
          %v763 = vmul.f32 %v470, %v760
          %v764 = vmul.f32 %v471, %v760
          %v765 = vmul.f32 %v472, %v760
          %v766 = vmul.f32 %v473, %v760
          %v767 = vadd.f32 %v711, %v761
          %v768 = vadd.f32 %v712, %v762
          %v769 = vadd.f32 %v713, %v763
          %v770 = vadd.f32 %v714, %v764
          %v771 = vadd.f32 %v715, %v765
          %v772 = vadd.f32 %v716, %v766
          %s773 = sld [smem:[#allocation4 + $0x28]]
          %v774 = vstv %s773
          %v775 = vmul.f32 %v468, %v774
          %v776 = vmul.f32 %v469, %v774
          %v777 = vmul.f32 %v470, %v774
          %v778 = vmul.f32 %v471, %v774
          %v779 = vmul.f32 %v472, %v774
          %v780 = vmul.f32 %v473, %v774
          %v781 = vadd.f32 %v725, %v775
          %v782 = vadd.f32 %v726, %v776
          %v783 = vadd.f32 %v727, %v777
          %v784 = vadd.f32 %v728, %v778
          %v785 = vadd.f32 %v729, %v779
          %v786 = vadd.f32 %v730, %v780
          %s787 = sld [smem:[#allocation4 + $0x4c]]
          %v788 = vstv %s787
          %v789 = vmul.f32 %v468, %v788
          %v790 = vmul.f32 %v469, %v788
          %v791 = vmul.f32 %v470, %v788
          %v792 = vmul.f32 %v471, %v788
          %v793 = vmul.f32 %v472, %v788
          %v794 = vmul.f32 %v473, %v788
          %v795 = vadd.f32 %v739, %v789
          %v796 = vadd.f32 %v740, %v790
          %v797 = vadd.f32 %v741, %v791
          %v798 = vadd.f32 %v742, %v792
          %v799 = vadd.f32 %v743, %v793
          %v800 = vadd.f32 %v744, %v794
          %s801 = sld [smem:[#allocation4 + $0x70]]
          %v802 = vstv %s801
          %v803 = vmul.f32 %v468, %v802
          %v804 = vmul.f32 %v469, %v802
          %v805 = vmul.f32 %v470, %v802
          %v806 = vmul.f32 %v471, %v802
          %v807 = vmul.f32 %v472, %v802
          %v808 = vmul.f32 %v473, %v802
          %v809 = vadd.f32 %v753, %v803
          %v810 = vadd.f32 %v754, %v804
          %v811 = vadd.f32 %v755, %v805
          %v812 = vadd.f32 %v756, %v806
          %v813 = vadd.f32 %v757, %v807
          %v814 = vadd.f32 %v758, %v808
          %s815 = sld [smem:[#allocation4 + $0x5]]
          %v816 = vstv %s815
          %v817 = vmul.f32 %v692, %v816
          %v818 = vmul.f32 %v694, %v816
          %v819 = vmul.f32 %v696, %v816
          %v820 = vmul.f32 %v698, %v816
          %v821 = vmul.f32 %v700, %v816
          %v822 = vmul.f32 %v702, %v816
          %v823 = vadd.f32 %v767, %v817
          %v824 = vadd.f32 %v768, %v818
          %v825 = vadd.f32 %v769, %v819
          %v826 = vadd.f32 %v770, %v820
          %v827 = vadd.f32 %v771, %v821
          %v828 = vadd.f32 %v772, %v822
          %s829 = sld [smem:[#allocation4 + $0x29]]
          %v830 = vstv %s829
          %v831 = vmul.f32 %v692, %v830
          %v832 = vmul.f32 %v694, %v830
          %v833 = vmul.f32 %v696, %v830
          %v834 = vmul.f32 %v698, %v830
          %v835 = vmul.f32 %v700, %v830
          %v836 = vmul.f32 %v702, %v830
          %v837 = vadd.f32 %v781, %v831
          %v838 = vadd.f32 %v782, %v832
          %v839 = vadd.f32 %v783, %v833
          %v840 = vadd.f32 %v784, %v834
          %v841 = vadd.f32 %v785, %v835
          %v842 = vadd.f32 %v786, %v836
          %s843 = sld [smem:[#allocation4 + $0x4d]]
          %v844 = vstv %s843
          %v845 = vmul.f32 %v692, %v844
          %v846 = vmul.f32 %v694, %v844
          %v847 = vmul.f32 %v696, %v844
          %v848 = vmul.f32 %v698, %v844
          %v849 = vmul.f32 %v700, %v844
          %v850 = vmul.f32 %v702, %v844
          %v851 = vadd.f32 %v795, %v845
          %v852 = vadd.f32 %v796, %v846
          %v853 = vadd.f32 %v797, %v847
          %v854 = vadd.f32 %v798, %v848
          %v855 = vadd.f32 %v799, %v849
          %v856 = vadd.f32 %v800, %v850
          %s857 = sld [smem:[#allocation4 + $0x71]]
          %v858 = vstv %s857
          %v859 = vmul.f32 %v692, %v858
          %v860 = vmul.f32 %v694, %v858
          %v861 = vmul.f32 %v696, %v858
          %v862 = vmul.f32 %v698, %v858
          %v863 = vmul.f32 %v700, %v858
          %v864 = vmul.f32 %v702, %v858
          %v865 = vadd.f32 %v809, %v859
          %v866 = vadd.f32 %v810, %v860
          %v867 = vadd.f32 %v811, %v861
          %v868 = vadd.f32 %v812, %v862
          %v869 = vadd.f32 %v813, %v863
          %v870 = vadd.f32 %v814, %v864
          %v871 = vrot.slane %v468, 1
          %v872 = vrot.slane %v469, 1
          %v873 = vrot.slane %v470, 1
          %v874 = vrot.slane %v471, 1
          %v875 = vrot.slane %v472, 1
          %v876 = vrot.slane %v473, 1
          %vm877 = vcmp.lt.s32.totalorder %v317, 7
          %v878 = vsel %vm877, %v875, %v876
          %v879 = vsel %vm877, %v874, %v875
          %v880 = vsel %vm877, %v873, %v874
          %v881 = vsel %vm877, %v872, %v873
          %v882 = vsel %vm877, %v871, %v872
          %v883 = vsel %vm877, %v876, %v871
          %884 = vrot.lane.b32.xlu0 %v882, 1
          %v885 = vpop.permute.xlu0 %884
          %886 = vrot.lane.b32.xlu0 %v881, 1
          %v887 = vpop.permute.xlu0 %886
          %888 = vrot.lane.b32.xlu0 %v880, 1
          %v889 = vpop.permute.xlu0 %888
          %890 = vrot.lane.b32.xlu0 %v879, 1
          %v891 = vpop.permute.xlu0 %890
          %892 = vrot.lane.b32.xlu0 %v878, 1
          %v893 = vpop.permute.xlu0 %892
          %894 = vrot.lane.b32.xlu0 %v883, 1
          %v895 = vpop.permute.xlu0 %894
          %896 = vrot.lane.b32.xlu0 %v882, 127
          %v897 = vpop.permute.xlu0 %896
          %898 = vrot.lane.b32.xlu0 %v881, 127
          %v899 = vpop.permute.xlu0 %898
          %900 = vrot.lane.b32.xlu0 %v880, 127
          %v901 = vpop.permute.xlu0 %900
          %902 = vrot.lane.b32.xlu0 %v879, 127
          %v903 = vpop.permute.xlu0 %902
          %904 = vrot.lane.b32.xlu0 %v878, 127
          %v905 = vpop.permute.xlu0 %904
          %906 = vrot.lane.b32.xlu0 %v883, 127
          %v907 = vpop.permute.xlu0 %906
          %s908 = sld [smem:[#allocation4 + $0x6]]
          %v909 = vstv %s908
          %v910 = vmul.f32 %v885, %v909
          %v911 = vmul.f32 %v887, %v909
          %v912 = vmul.f32 %v889, %v909
          %v913 = vmul.f32 %v891, %v909
          %v914 = vmul.f32 %v893, %v909
          %v915 = vmul.f32 %v895, %v909
          %v916 = vadd.f32 %v823, %v910
          %v917 = vadd.f32 %v824, %v911
          %v918 = vadd.f32 %v825, %v912
          %v919 = vadd.f32 %v826, %v913
          %v920 = vadd.f32 %v827, %v914
          %v921 = vadd.f32 %v828, %v915
          %s922 = sld [smem:[#allocation4 + $0x2a]]
          %v923 = vstv %s922
          %v924 = vmul.f32 %v885, %v923
          %v925 = vmul.f32 %v887, %v923
          %v926 = vmul.f32 %v889, %v923
          %v927 = vmul.f32 %v891, %v923
          %v928 = vmul.f32 %v893, %v923
          %v929 = vmul.f32 %v895, %v923
          %v930 = vadd.f32 %v837, %v924
          %v931 = vadd.f32 %v838, %v925
          %v932 = vadd.f32 %v839, %v926
          %v933 = vadd.f32 %v840, %v927
          %v934 = vadd.f32 %v841, %v928
          %v935 = vadd.f32 %v842, %v929
          %s936 = sld [smem:[#allocation4 + $0x4e]]
          %v937 = vstv %s936
          %v938 = vmul.f32 %v885, %v937
          %v939 = vmul.f32 %v887, %v937
          %v940 = vmul.f32 %v889, %v937
          %v941 = vmul.f32 %v891, %v937
          %v942 = vmul.f32 %v893, %v937
          %v943 = vmul.f32 %v895, %v937
          %v944 = vadd.f32 %v851, %v938
          %v945 = vadd.f32 %v852, %v939
          %v946 = vadd.f32 %v853, %v940
          %v947 = vadd.f32 %v854, %v941
          %v948 = vadd.f32 %v855, %v942
          %v949 = vadd.f32 %v856, %v943
          %s950 = sld [smem:[#allocation4 + $0x72]]
          %v951 = vstv %s950
          %v952 = vmul.f32 %v885, %v951
          %v953 = vmul.f32 %v887, %v951
          %v954 = vmul.f32 %v889, %v951
          %v955 = vmul.f32 %v891, %v951
          %v956 = vmul.f32 %v893, %v951
          %v957 = vmul.f32 %v895, %v951
          %v958 = vadd.f32 %v865, %v952
          %v959 = vadd.f32 %v866, %v953
          %v960 = vadd.f32 %v867, %v954
          %v961 = vadd.f32 %v868, %v955
          %v962 = vadd.f32 %v869, %v956
          %v963 = vadd.f32 %v870, %v957
          %s964 = sld [smem:[#allocation4 + $0x7]]
          %v965 = vstv %s964
          %v966 = vmul.f32 %v882, %v965
          %v967 = vmul.f32 %v881, %v965
          %v968 = vmul.f32 %v880, %v965
          %v969 = vmul.f32 %v879, %v965
          %v970 = vmul.f32 %v878, %v965
          %v971 = vmul.f32 %v883, %v965
          %v972 = vadd.f32 %v916, %v966
          %v973 = vadd.f32 %v917, %v967
          %v974 = vadd.f32 %v918, %v968
          %v975 = vadd.f32 %v919, %v969
          %v976 = vadd.f32 %v920, %v970
          %v977 = vadd.f32 %v921, %v971
          %s978 = sld [smem:[#allocation4 + $0x2b]]
          %v979 = vstv %s978
          %v980 = vmul.f32 %v882, %v979
          %v981 = vmul.f32 %v881, %v979
          %v982 = vmul.f32 %v880, %v979
          %v983 = vmul.f32 %v879, %v979
          %v984 = vmul.f32 %v878, %v979
          %v985 = vmul.f32 %v883, %v979
          %v986 = vadd.f32 %v930, %v980
          %v987 = vadd.f32 %v931, %v981
          %v988 = vadd.f32 %v932, %v982
          %v989 = vadd.f32 %v933, %v983
          %v990 = vadd.f32 %v934, %v984
          %v991 = vadd.f32 %v935, %v985
          %s992 = sld [smem:[#allocation4 + $0x4f]]
          %v993 = vstv %s992
          %v994 = vmul.f32 %v882, %v993
          %v995 = vmul.f32 %v881, %v993
          %v996 = vmul.f32 %v880, %v993
          %v997 = vmul.f32 %v879, %v993
          %v998 = vmul.f32 %v878, %v993
          %v999 = vmul.f32 %v883, %v993
          %v1000 = vadd.f32 %v944, %v994
          %v1001 = vadd.f32 %v945, %v995
          %v1002 = vadd.f32 %v946, %v996
          %v1003 = vadd.f32 %v947, %v997
          %v1004 = vadd.f32 %v948, %v998
          %v1005 = vadd.f32 %v949, %v999
          %s1006 = sld [smem:[#allocation4 + $0x73]]
          %v1007 = vstv %s1006
          %v1008 = vmul.f32 %v882, %v1007
          %v1009 = vmul.f32 %v881, %v1007
          %v1010 = vmul.f32 %v880, %v1007
          %v1011 = vmul.f32 %v879, %v1007
          %v1012 = vmul.f32 %v878, %v1007
          %v1013 = vmul.f32 %v883, %v1007
          %v1014 = vadd.f32 %v958, %v1008
          %v1015 = vadd.f32 %v959, %v1009
          %v1016 = vadd.f32 %v960, %v1010
          %v1017 = vadd.f32 %v961, %v1011
          %v1018 = vadd.f32 %v962, %v1012
          %v1019 = vadd.f32 %v963, %v1013
          %s1020 = sld [smem:[#allocation4 + $0x8]]
          %v1021 = vstv %s1020
          %v1022 = vmul.f32 %v897, %v1021
          %v1023 = vmul.f32 %v899, %v1021
          %v1024 = vmul.f32 %v901, %v1021
          %v1025 = vmul.f32 %v903, %v1021
          %v1026 = vmul.f32 %v905, %v1021
          %v1027 = vmul.f32 %v907, %v1021
          %v1028 = vadd.f32 %v972, %v1022
          %v1029 = vadd.f32 %v973, %v1023
          %v1030 = vadd.f32 %v974, %v1024
          %v1031 = vadd.f32 %v975, %v1025
          %v1032 = vadd.f32 %v976, %v1026
          %v1033 = vadd.f32 %v977, %v1027
          %s1034 = sld [smem:[#allocation4 + $0x2c]]
          %v1035 = vstv %s1034
          %v1036 = vmul.f32 %v897, %v1035
          %v1037 = vmul.f32 %v899, %v1035
          %v1038 = vmul.f32 %v901, %v1035
          %v1039 = vmul.f32 %v903, %v1035
          %v1040 = vmul.f32 %v905, %v1035
          %v1041 = vmul.f32 %v907, %v1035
          %v1042 = vadd.f32 %v986, %v1036
          %v1043 = vadd.f32 %v987, %v1037
          %v1044 = vadd.f32 %v988, %v1038
          %v1045 = vadd.f32 %v989, %v1039
          %v1046 = vadd.f32 %v990, %v1040
          %v1047 = vadd.f32 %v991, %v1041
          %s1048 = sld [smem:[#allocation4 + $0x50]]
          %v1049 = vstv %s1048
          %v1050 = vmul.f32 %v897, %v1049
          %v1051 = vmul.f32 %v899, %v1049
          %v1052 = vmul.f32 %v901, %v1049
          %v1053 = vmul.f32 %v903, %v1049
          %v1054 = vmul.f32 %v905, %v1049
          %v1055 = vmul.f32 %v907, %v1049
          %v1056 = vadd.f32 %v1000, %v1050
          %v1057 = vadd.f32 %v1001, %v1051
          %v1058 = vadd.f32 %v1002, %v1052
          %v1059 = vadd.f32 %v1003, %v1053
          %v1060 = vadd.f32 %v1004, %v1054
          %v1061 = vadd.f32 %v1005, %v1055
          %s1062 = sld [smem:[#allocation4 + $0x74]]
          %v1063 = vstv %s1062
          %v1064 = vmul.f32 %v897, %v1063
          %v1065 = vmul.f32 %v899, %v1063
          %v1066 = vmul.f32 %v901, %v1063
          %v1067 = vmul.f32 %v903, %v1063
          %v1068 = vmul.f32 %v905, %v1063
          %v1069 = vmul.f32 %v907, %v1063
          %v1070 = vadd.f32 %v1014, %v1064
          %v1071 = vadd.f32 %v1015, %v1065
          %v1072 = vadd.f32 %v1016, %v1066
          %v1073 = vadd.f32 %v1017, %v1067
          %v1074 = vadd.f32 %v1018, %v1068
          %v1075 = vadd.f32 %v1019, %v1069
          %s1076 = sadd.s32 %s417, 1
          %s1077 = sld [smem:[#allocation2 + %s1076]]
          %v1078 = vstv %s1077
          %v1079 = vadd.f32 %v397, %v1078
          %v1080 = vadd.f32 %v398, %v1078
          %v1081 = vadd.f32 %v399, %v1078
          %v1082 = vadd.f32 %v400, %v1078
          %v1083 = vadd.f32 %v401, %v1078
          %v1084 = vadd.f32 %v402, %v1078
          %v1085 = vxor.u32 %v1079, 2147483648
          %v1086 = vxor.u32 %v1080, 2147483648
          %v1087 = vxor.u32 %v1081, 2147483648
          %v1088 = vxor.u32 %v1082, 2147483648
          %v1089 = vxor.u32 %v1083, 2147483648
          %v1090 = vxor.u32 %v1084, 2147483648
          %v1091 = vmul.f32 %v1085, 1.442695
          %v1092 = vpow.pop %v1091
          %v1093 = vmul.f32 %v1086, 1.442695
          %v1094 = vpow.pop %v1093
          %v1095 = vmul.f32 %v1087, 1.442695
          %v1096 = vpow.pop %v1095
          %v1097 = vmul.f32 %v1088, 1.442695
          %v1098 = vpow.pop %v1097
          %v1099 = vmul.f32 %v1089, 1.442695
          %v1100 = vpow.pop %v1099
          %v1101 = vmul.f32 %v1090, 1.442695
          %v1102 = vpow.pop %v1101
          %v1103 = vadd.f32 %v1092, 1.0
          %v1104 = vadd.f32 %v1094, 1.0
          %v1105 = vadd.f32 %v1096, 1.0
          %v1106 = vadd.f32 %v1098, 1.0
          %v1107 = vadd.f32 %v1100, 1.0
          %v1108 = vadd.f32 %v1102, 1.0
          %v1109 = vrcp.pop %v1103
          %v1110 = vmul.f32 1.0, %v1109
          %v1111 = vrcp.pop %v1104
          %v1112 = vmul.f32 1.0, %v1111
          %v1113 = vrcp.pop %v1105
          %v1114 = vmul.f32 1.0, %v1113
          %v1115 = vrcp.pop %v1106
          %v1116 = vmul.f32 1.0, %v1115
          %v1117 = vrcp.pop %v1107
          %v1118 = vmul.f32 1.0, %v1117
          %v1119 = vrcp.pop %v1108
          %v1120 = vmul.f32 1.0, %v1119
          %v1121 = vmul.f32 %v1079, %v1110
          %v1122 = vmul.f32 %v1080, %v1112
          %v1123 = vmul.f32 %v1081, %v1114
          %v1124 = vmul.f32 %v1082, %v1116
          %v1125 = vmul.f32 %v1083, %v1118
          %v1126 = vmul.f32 %v1084, %v1120
          %v1127 = vmul.f32 %v1121, %v344
          %v1128 = vmul.f32 %v1122, %v345
          %v1129 = vmul.f32 %v1123, %v346
          %v1130 = vmul.f32 %v1124, %v347
          %v1131 = vmul.f32 %v1125, %v348
          %v1132 = vmul.f32 %v1126, %v349
          %v1133 = vrot.slane %v1127, 7
          %v1134 = vrot.slane %v1128, 7
          %v1135 = vrot.slane %v1129, 7
          %v1136 = vrot.slane %v1130, 7
          %v1137 = vrot.slane %v1131, 7
          %v1138 = vrot.slane %v1132, 7
          %v1139 = vsel %vm480, %v1137, %v1138
          %v1140 = vsel %vm480, %v1136, %v1137
          %v1141 = vsel %vm480, %v1135, %v1136
          %v1142 = vsel %vm480, %v1134, %v1135
          %v1143 = vsel %vm480, %v1133, %v1134
          %v1144 = vsel %vm480, %v1138, %v1133
          %1145 = vrot.lane.b32.xlu0 %v1144, 1
          %v1146 = vpop.permute.xlu0 %1145
          %1147 = vrot.lane.b32.xlu0 %v1143, 1
          %v1148 = vpop.permute.xlu0 %1147
          %1149 = vrot.lane.b32.xlu0 %v1142, 1
          %v1150 = vpop.permute.xlu0 %1149
          %1151 = vrot.lane.b32.xlu0 %v1141, 1
          %v1152 = vpop.permute.xlu0 %1151
          %1153 = vrot.lane.b32.xlu0 %v1140, 1
          %v1154 = vpop.permute.xlu0 %1153
          %1155 = vrot.lane.b32.xlu0 %v1139, 1
          %v1156 = vpop.permute.xlu0 %1155
          %1157 = vrot.lane.b32.xlu0 %v1144, 127
          %v1158 = vpop.permute.xlu0 %1157
          %1159 = vrot.lane.b32.xlu0 %v1143, 127
          %v1160 = vpop.permute.xlu0 %1159
          %1161 = vrot.lane.b32.xlu0 %v1142, 127
          %v1162 = vpop.permute.xlu0 %1161
          %1163 = vrot.lane.b32.xlu0 %v1141, 127
          %v1164 = vpop.permute.xlu0 %1163
          %1165 = vrot.lane.b32.xlu0 %v1140, 127
          %v1166 = vpop.permute.xlu0 %1165
          %1167 = vrot.lane.b32.xlu0 %v1139, 127
          %v1168 = vpop.permute.xlu0 %1167
          %s1169 = sld [smem:[#allocation4 + $0x9]]
          %v1170 = vstv %s1169
          %v1171 = vmul.f32 %v1146, %v1170
          %v1172 = vmul.f32 %v1148, %v1170
          %v1173 = vmul.f32 %v1150, %v1170
          %v1174 = vmul.f32 %v1152, %v1170
          %v1175 = vmul.f32 %v1154, %v1170
          %v1176 = vmul.f32 %v1156, %v1170
          %v1177 = vadd.f32 %v1028, %v1171
          %v1178 = vadd.f32 %v1029, %v1172
          %v1179 = vadd.f32 %v1030, %v1173
          %v1180 = vadd.f32 %v1031, %v1174
          %v1181 = vadd.f32 %v1032, %v1175
          %v1182 = vadd.f32 %v1033, %v1176
          %s1183 = sld [smem:[#allocation4 + $0x2d]]
          %v1184 = vstv %s1183
          %v1185 = vmul.f32 %v1146, %v1184
          %v1186 = vmul.f32 %v1148, %v1184
          %v1187 = vmul.f32 %v1150, %v1184
          %v1188 = vmul.f32 %v1152, %v1184
          %v1189 = vmul.f32 %v1154, %v1184
          %v1190 = vmul.f32 %v1156, %v1184
          %v1191 = vadd.f32 %v1042, %v1185
          %v1192 = vadd.f32 %v1043, %v1186
          %v1193 = vadd.f32 %v1044, %v1187
          %v1194 = vadd.f32 %v1045, %v1188
          %v1195 = vadd.f32 %v1046, %v1189
          %v1196 = vadd.f32 %v1047, %v1190
          %s1197 = sld [smem:[#allocation4 + $0x51]]
          %v1198 = vstv %s1197
          %v1199 = vmul.f32 %v1146, %v1198
          %v1200 = vmul.f32 %v1148, %v1198
          %v1201 = vmul.f32 %v1150, %v1198
          %v1202 = vmul.f32 %v1152, %v1198
          %v1203 = vmul.f32 %v1154, %v1198
          %v1204 = vmul.f32 %v1156, %v1198
          %v1205 = vadd.f32 %v1056, %v1199
          %v1206 = vadd.f32 %v1057, %v1200
          %v1207 = vadd.f32 %v1058, %v1201
          %v1208 = vadd.f32 %v1059, %v1202
          %v1209 = vadd.f32 %v1060, %v1203
          %v1210 = vadd.f32 %v1061, %v1204
          %s1211 = sld [smem:[#allocation4 + $0x75]]
          %v1212 = vstv %s1211
          %v1213 = vmul.f32 %v1146, %v1212
          %v1214 = vmul.f32 %v1148, %v1212
          %v1215 = vmul.f32 %v1150, %v1212
          %v1216 = vmul.f32 %v1152, %v1212
          %v1217 = vmul.f32 %v1154, %v1212
          %v1218 = vmul.f32 %v1156, %v1212
          %v1219 = vadd.f32 %v1070, %v1213
          %v1220 = vadd.f32 %v1071, %v1214
          %v1221 = vadd.f32 %v1072, %v1215
          %v1222 = vadd.f32 %v1073, %v1216
          %v1223 = vadd.f32 %v1074, %v1217
          %v1224 = vadd.f32 %v1075, %v1218
          %s1225 = sld [smem:[#allocation4 + $0xa]]
          %v1226 = vstv %s1225
          %v1227 = vmul.f32 %v1144, %v1226
          %v1228 = vmul.f32 %v1143, %v1226
          %v1229 = vmul.f32 %v1142, %v1226
          %v1230 = vmul.f32 %v1141, %v1226
          %v1231 = vmul.f32 %v1140, %v1226
          %v1232 = vmul.f32 %v1139, %v1226
          %v1233 = vadd.f32 %v1177, %v1227
          %v1234 = vadd.f32 %v1178, %v1228
          %v1235 = vadd.f32 %v1179, %v1229
          %v1236 = vadd.f32 %v1180, %v1230
          %v1237 = vadd.f32 %v1181, %v1231
          %v1238 = vadd.f32 %v1182, %v1232
          %s1239 = sld [smem:[#allocation4 + $0x2e]]
          %v1240 = vstv %s1239
          %v1241 = vmul.f32 %v1144, %v1240
          %v1242 = vmul.f32 %v1143, %v1240
          %v1243 = vmul.f32 %v1142, %v1240
          %v1244 = vmul.f32 %v1141, %v1240
          %v1245 = vmul.f32 %v1140, %v1240
          %v1246 = vmul.f32 %v1139, %v1240
          %v1247 = vadd.f32 %v1191, %v1241
          %v1248 = vadd.f32 %v1192, %v1242
          %v1249 = vadd.f32 %v1193, %v1243
          %v1250 = vadd.f32 %v1194, %v1244
          %v1251 = vadd.f32 %v1195, %v1245
          %v1252 = vadd.f32 %v1196, %v1246
          %s1253 = sld [smem:[#allocation4 + $0x52]]
          %v1254 = vstv %s1253
          %v1255 = vmul.f32 %v1144, %v1254
          %v1256 = vmul.f32 %v1143, %v1254
          %v1257 = vmul.f32 %v1142, %v1254
          %v1258 = vmul.f32 %v1141, %v1254
          %v1259 = vmul.f32 %v1140, %v1254
          %v1260 = vmul.f32 %v1139, %v1254
          %v1261 = vadd.f32 %v1205, %v1255
          %v1262 = vadd.f32 %v1206, %v1256
          %v1263 = vadd.f32 %v1207, %v1257
          %v1264 = vadd.f32 %v1208, %v1258
          %v1265 = vadd.f32 %v1209, %v1259
          %v1266 = vadd.f32 %v1210, %v1260
          %s1267 = sld [smem:[#allocation4 + $0x76]]
          %v1268 = vstv %s1267
          %v1269 = vmul.f32 %v1144, %v1268
          %v1270 = vmul.f32 %v1143, %v1268
          %v1271 = vmul.f32 %v1142, %v1268
          %v1272 = vmul.f32 %v1141, %v1268
          %v1273 = vmul.f32 %v1140, %v1268
          %v1274 = vmul.f32 %v1139, %v1268
          %v1275 = vadd.f32 %v1219, %v1269
          %v1276 = vadd.f32 %v1220, %v1270
          %v1277 = vadd.f32 %v1221, %v1271
          %v1278 = vadd.f32 %v1222, %v1272
          %v1279 = vadd.f32 %v1223, %v1273
          %v1280 = vadd.f32 %v1224, %v1274
          %s1281 = sld [smem:[#allocation4 + $0xb]]
          %v1282 = vstv %s1281
          %v1283 = vmul.f32 %v1158, %v1282
          %v1284 = vmul.f32 %v1160, %v1282
          %v1285 = vmul.f32 %v1162, %v1282
          %v1286 = vmul.f32 %v1164, %v1282
          %v1287 = vmul.f32 %v1166, %v1282
          %v1288 = vmul.f32 %v1168, %v1282
          %v1289 = vadd.f32 %v1233, %v1283
          %v1290 = vadd.f32 %v1234, %v1284
          %v1291 = vadd.f32 %v1235, %v1285
          %v1292 = vadd.f32 %v1236, %v1286
          %v1293 = vadd.f32 %v1237, %v1287
          %v1294 = vadd.f32 %v1238, %v1288
          %s1295 = sld [smem:[#allocation4 + $0x2f]]
          %v1296 = vstv %s1295
          %v1297 = vmul.f32 %v1158, %v1296
          %v1298 = vmul.f32 %v1160, %v1296
          %v1299 = vmul.f32 %v1162, %v1296
          %v1300 = vmul.f32 %v1164, %v1296
          %v1301 = vmul.f32 %v1166, %v1296
          %v1302 = vmul.f32 %v1168, %v1296
          %v1303 = vadd.f32 %v1247, %v1297
          %v1304 = vadd.f32 %v1248, %v1298
          %v1305 = vadd.f32 %v1249, %v1299
          %v1306 = vadd.f32 %v1250, %v1300
          %v1307 = vadd.f32 %v1251, %v1301
          %v1308 = vadd.f32 %v1252, %v1302
          %s1309 = sld [smem:[#allocation4 + $0x53]]
          %v1310 = vstv %s1309
          %v1311 = vmul.f32 %v1158, %v1310
          %v1312 = vmul.f32 %v1160, %v1310
          %v1313 = vmul.f32 %v1162, %v1310
          %v1314 = vmul.f32 %v1164, %v1310
          %v1315 = vmul.f32 %v1166, %v1310
          %v1316 = vmul.f32 %v1168, %v1310
          %v1317 = vadd.f32 %v1261, %v1311
          %v1318 = vadd.f32 %v1262, %v1312
          %v1319 = vadd.f32 %v1263, %v1313
          %v1320 = vadd.f32 %v1264, %v1314
          %v1321 = vadd.f32 %v1265, %v1315
          %v1322 = vadd.f32 %v1266, %v1316
          %s1323 = sld [smem:[#allocation4 + $0x77]]
          %v1324 = vstv %s1323
          %v1325 = vmul.f32 %v1158, %v1324
          %v1326 = vmul.f32 %v1160, %v1324
          %v1327 = vmul.f32 %v1162, %v1324
          %v1328 = vmul.f32 %v1164, %v1324
          %v1329 = vmul.f32 %v1166, %v1324
          %v1330 = vmul.f32 %v1168, %v1324
          %v1331 = vadd.f32 %v1275, %v1325
          %v1332 = vadd.f32 %v1276, %v1326
          %v1333 = vadd.f32 %v1277, %v1327
          %v1334 = vadd.f32 %v1278, %v1328
          %v1335 = vadd.f32 %v1279, %v1329
          %v1336 = vadd.f32 %v1280, %v1330
          %1337 = vrot.lane.b32.xlu0 %v1127, 1
          %v1338 = vpop.permute.xlu0 %1337
          %1339 = vrot.lane.b32.xlu0 %v1128, 1
          %v1340 = vpop.permute.xlu0 %1339
          %1341 = vrot.lane.b32.xlu0 %v1129, 1
          %v1342 = vpop.permute.xlu0 %1341
          %1343 = vrot.lane.b32.xlu0 %v1130, 1
          %v1344 = vpop.permute.xlu0 %1343
          %1345 = vrot.lane.b32.xlu0 %v1131, 1
          %v1346 = vpop.permute.xlu0 %1345
          %1347 = vrot.lane.b32.xlu0 %v1132, 1
          %v1348 = vpop.permute.xlu0 %1347
          %1349 = vrot.lane.b32.xlu0 %v1127, 127
          %v1350 = vpop.permute.xlu0 %1349
          %1351 = vrot.lane.b32.xlu0 %v1128, 127
          %v1352 = vpop.permute.xlu0 %1351
          %1353 = vrot.lane.b32.xlu0 %v1129, 127
          %v1354 = vpop.permute.xlu0 %1353
          %1355 = vrot.lane.b32.xlu0 %v1130, 127
          %v1356 = vpop.permute.xlu0 %1355
          %1357 = vrot.lane.b32.xlu0 %v1131, 127
          %v1358 = vpop.permute.xlu0 %1357
          %1359 = vrot.lane.b32.xlu0 %v1132, 127
          %v1360 = vpop.permute.xlu0 %1359
          %s1361 = sld [smem:[#allocation4 + $0xc]]
          %v1362 = vstv %s1361
          %v1363 = vmul.f32 %v1338, %v1362
          %v1364 = vmul.f32 %v1340, %v1362
          %v1365 = vmul.f32 %v1342, %v1362
          %v1366 = vmul.f32 %v1344, %v1362
          %v1367 = vmul.f32 %v1346, %v1362
          %v1368 = vmul.f32 %v1348, %v1362
          %v1369 = vadd.f32 %v1289, %v1363
          %v1370 = vadd.f32 %v1290, %v1364
          %v1371 = vadd.f32 %v1291, %v1365
          %v1372 = vadd.f32 %v1292, %v1366
          %v1373 = vadd.f32 %v1293, %v1367
          %v1374 = vadd.f32 %v1294, %v1368
          %s1375 = sld [smem:[#allocation4 + $0x30]]
          %v1376 = vstv %s1375
          %v1377 = vmul.f32 %v1338, %v1376
          %v1378 = vmul.f32 %v1340, %v1376
          %v1379 = vmul.f32 %v1342, %v1376
          %v1380 = vmul.f32 %v1344, %v1376
          %v1381 = vmul.f32 %v1346, %v1376
          %v1382 = vmul.f32 %v1348, %v1376
          %v1383 = vadd.f32 %v1303, %v1377
          %v1384 = vadd.f32 %v1304, %v1378
          %v1385 = vadd.f32 %v1305, %v1379
          %v1386 = vadd.f32 %v1306, %v1380
          %v1387 = vadd.f32 %v1307, %v1381
          %v1388 = vadd.f32 %v1308, %v1382
          %s1389 = sld [smem:[#allocation4 + $0x54]]
          %v1390 = vstv %s1389
          %v1391 = vmul.f32 %v1338, %v1390
          %v1392 = vmul.f32 %v1340, %v1390
          %v1393 = vmul.f32 %v1342, %v1390
          %v1394 = vmul.f32 %v1344, %v1390
          %v1395 = vmul.f32 %v1346, %v1390
          %v1396 = vmul.f32 %v1348, %v1390
          %v1397 = vadd.f32 %v1317, %v1391
          %v1398 = vadd.f32 %v1318, %v1392
          %v1399 = vadd.f32 %v1319, %v1393
          %v1400 = vadd.f32 %v1320, %v1394
          %v1401 = vadd.f32 %v1321, %v1395
          %v1402 = vadd.f32 %v1322, %v1396
          %s1403 = sld [smem:[#allocation4 + $0x78]]
          %v1404 = vstv %s1403
          %v1405 = vmul.f32 %v1338, %v1404
          %v1406 = vmul.f32 %v1340, %v1404
          %v1407 = vmul.f32 %v1342, %v1404
          %v1408 = vmul.f32 %v1344, %v1404
          %v1409 = vmul.f32 %v1346, %v1404
          %v1410 = vmul.f32 %v1348, %v1404
          %v1411 = vadd.f32 %v1331, %v1405
          %v1412 = vadd.f32 %v1332, %v1406
          %v1413 = vadd.f32 %v1333, %v1407
          %v1414 = vadd.f32 %v1334, %v1408
          %v1415 = vadd.f32 %v1335, %v1409
          %v1416 = vadd.f32 %v1336, %v1410
          %s1417 = sld [smem:[#allocation4 + $0xd]]
          %v1418 = vstv %s1417
          %v1419 = vmul.f32 %v1127, %v1418
          %v1420 = vmul.f32 %v1128, %v1418
          %v1421 = vmul.f32 %v1129, %v1418
          %v1422 = vmul.f32 %v1130, %v1418
          %v1423 = vmul.f32 %v1131, %v1418
          %v1424 = vmul.f32 %v1132, %v1418
          %v1425 = vadd.f32 %v1369, %v1419
          %v1426 = vadd.f32 %v1370, %v1420
          %v1427 = vadd.f32 %v1371, %v1421
          %v1428 = vadd.f32 %v1372, %v1422
          %v1429 = vadd.f32 %v1373, %v1423
          %v1430 = vadd.f32 %v1374, %v1424
          %s1431 = sld [smem:[#allocation4 + $0x31]]
          %v1432 = vstv %s1431
          %v1433 = vmul.f32 %v1127, %v1432
          %v1434 = vmul.f32 %v1128, %v1432
          %v1435 = vmul.f32 %v1129, %v1432
          %v1436 = vmul.f32 %v1130, %v1432
          %v1437 = vmul.f32 %v1131, %v1432
          %v1438 = vmul.f32 %v1132, %v1432
          %v1439 = vadd.f32 %v1383, %v1433
          %v1440 = vadd.f32 %v1384, %v1434
          %v1441 = vadd.f32 %v1385, %v1435
          %v1442 = vadd.f32 %v1386, %v1436
          %v1443 = vadd.f32 %v1387, %v1437
          %v1444 = vadd.f32 %v1388, %v1438
          %s1445 = sld [smem:[#allocation4 + $0x55]]
          %v1446 = vstv %s1445
          %v1447 = vmul.f32 %v1127, %v1446
          %v1448 = vmul.f32 %v1128, %v1446
          %v1449 = vmul.f32 %v1129, %v1446
          %v1450 = vmul.f32 %v1130, %v1446
          %v1451 = vmul.f32 %v1131, %v1446
          %v1452 = vmul.f32 %v1132, %v1446
          %v1453 = vadd.f32 %v1397, %v1447
          %v1454 = vadd.f32 %v1398, %v1448
          %v1455 = vadd.f32 %v1399, %v1449
          %v1456 = vadd.f32 %v1400, %v1450
          %v1457 = vadd.f32 %v1401, %v1451
          %v1458 = vadd.f32 %v1402, %v1452
          %s1459 = sld [smem:[#allocation4 + $0x79]]
          %v1460 = vstv %s1459
          %v1461 = vmul.f32 %v1127, %v1460
          %v1462 = vmul.f32 %v1128, %v1460
          %v1463 = vmul.f32 %v1129, %v1460
          %v1464 = vmul.f32 %v1130, %v1460
          %v1465 = vmul.f32 %v1131, %v1460
          %v1466 = vmul.f32 %v1132, %v1460
          %v1467 = vadd.f32 %v1411, %v1461
          %v1468 = vadd.f32 %v1412, %v1462
          %v1469 = vadd.f32 %v1413, %v1463
          %v1470 = vadd.f32 %v1414, %v1464
          %v1471 = vadd.f32 %v1415, %v1465
          %v1472 = vadd.f32 %v1416, %v1466
          %s1473 = sld [smem:[#allocation4 + $0xe]]
          %v1474 = vstv %s1473
          %v1475 = vmul.f32 %v1350, %v1474
          %v1476 = vmul.f32 %v1352, %v1474
          %v1477 = vmul.f32 %v1354, %v1474
          %v1478 = vmul.f32 %v1356, %v1474
          %v1479 = vmul.f32 %v1358, %v1474
          %v1480 = vmul.f32 %v1360, %v1474
          %v1481 = vadd.f32 %v1425, %v1475
          %v1482 = vadd.f32 %v1426, %v1476
          %v1483 = vadd.f32 %v1427, %v1477
          %v1484 = vadd.f32 %v1428, %v1478
          %v1485 = vadd.f32 %v1429, %v1479
          %v1486 = vadd.f32 %v1430, %v1480
          %s1487 = sld [smem:[#allocation4 + $0x32]]
          %v1488 = vstv %s1487
          %v1489 = vmul.f32 %v1350, %v1488
          %v1490 = vmul.f32 %v1352, %v1488
          %v1491 = vmul.f32 %v1354, %v1488
          %v1492 = vmul.f32 %v1356, %v1488
          %v1493 = vmul.f32 %v1358, %v1488
          %v1494 = vmul.f32 %v1360, %v1488
          %v1495 = vadd.f32 %v1439, %v1489
          %v1496 = vadd.f32 %v1440, %v1490
          %v1497 = vadd.f32 %v1441, %v1491
          %v1498 = vadd.f32 %v1442, %v1492
          %v1499 = vadd.f32 %v1443, %v1493
          %v1500 = vadd.f32 %v1444, %v1494
          %s1501 = sld [smem:[#allocation4 + $0x56]]
          %v1502 = vstv %s1501
          %v1503 = vmul.f32 %v1350, %v1502
          %v1504 = vmul.f32 %v1352, %v1502
          %v1505 = vmul.f32 %v1354, %v1502
          %v1506 = vmul.f32 %v1356, %v1502
          %v1507 = vmul.f32 %v1358, %v1502
          %v1508 = vmul.f32 %v1360, %v1502
          %v1509 = vadd.f32 %v1453, %v1503
          %v1510 = vadd.f32 %v1454, %v1504
          %v1511 = vadd.f32 %v1455, %v1505
          %v1512 = vadd.f32 %v1456, %v1506
          %v1513 = vadd.f32 %v1457, %v1507
          %v1514 = vadd.f32 %v1458, %v1508
          %s1515 = sld [smem:[#allocation4 + $0x7a]]
          %v1516 = vstv %s1515
          %v1517 = vmul.f32 %v1350, %v1516
          %v1518 = vmul.f32 %v1352, %v1516
          %v1519 = vmul.f32 %v1354, %v1516
          %v1520 = vmul.f32 %v1356, %v1516
          %v1521 = vmul.f32 %v1358, %v1516
          %v1522 = vmul.f32 %v1360, %v1516
          %v1523 = vadd.f32 %v1467, %v1517
          %v1524 = vadd.f32 %v1468, %v1518
          %v1525 = vadd.f32 %v1469, %v1519
          %v1526 = vadd.f32 %v1470, %v1520
          %v1527 = vadd.f32 %v1471, %v1521
          %v1528 = vadd.f32 %v1472, %v1522
          %v1529 = vrot.slane %v1127, 1
          %v1530 = vrot.slane %v1128, 1
          %v1531 = vrot.slane %v1129, 1
          %v1532 = vrot.slane %v1130, 1
          %v1533 = vrot.slane %v1131, 1
          %v1534 = vrot.slane %v1132, 1
          %v1535 = vsel %vm877, %v1533, %v1534
          %v1536 = vsel %vm877, %v1532, %v1533
          %v1537 = vsel %vm877, %v1531, %v1532
          %v1538 = vsel %vm877, %v1530, %v1531
          %v1539 = vsel %vm877, %v1529, %v1530
          %v1540 = vsel %vm877, %v1534, %v1529
          %1541 = vrot.lane.b32.xlu0 %v1539, 1
          %v1542 = vpop.permute.xlu0 %1541
          %1543 = vrot.lane.b32.xlu0 %v1538, 1
          %v1544 = vpop.permute.xlu0 %1543
          %1545 = vrot.lane.b32.xlu0 %v1537, 1
          %v1546 = vpop.permute.xlu0 %1545
          %1547 = vrot.lane.b32.xlu0 %v1536, 1
          %v1548 = vpop.permute.xlu0 %1547
          %1549 = vrot.lane.b32.xlu0 %v1535, 1
          %v1550 = vpop.permute.xlu0 %1549
          %1551 = vrot.lane.b32.xlu0 %v1540, 1
          %v1552 = vpop.permute.xlu0 %1551
          %1553 = vrot.lane.b32.xlu0 %v1539, 127
          %v1554 = vpop.permute.xlu0 %1553
          %1555 = vrot.lane.b32.xlu0 %v1538, 127
          %v1556 = vpop.permute.xlu0 %1555
          %1557 = vrot.lane.b32.xlu0 %v1537, 127
          %v1558 = vpop.permute.xlu0 %1557
          %1559 = vrot.lane.b32.xlu0 %v1536, 127
          %v1560 = vpop.permute.xlu0 %1559
          %1561 = vrot.lane.b32.xlu0 %v1535, 127
          %v1562 = vpop.permute.xlu0 %1561
          %1563 = vrot.lane.b32.xlu0 %v1540, 127
          %v1564 = vpop.permute.xlu0 %1563
          %s1565 = sld [smem:[#allocation4 + $0xf]]
          %v1566 = vstv %s1565
          %v1567 = vmul.f32 %v1542, %v1566
          %v1568 = vmul.f32 %v1544, %v1566
          %v1569 = vmul.f32 %v1546, %v1566
          %v1570 = vmul.f32 %v1548, %v1566
          %v1571 = vmul.f32 %v1550, %v1566
          %v1572 = vmul.f32 %v1552, %v1566
          %v1573 = vadd.f32 %v1481, %v1567
          %v1574 = vadd.f32 %v1482, %v1568
          %v1575 = vadd.f32 %v1483, %v1569
          %v1576 = vadd.f32 %v1484, %v1570
          %v1577 = vadd.f32 %v1485, %v1571
          %v1578 = vadd.f32 %v1486, %v1572
          %s1579 = sld [smem:[#allocation4 + $0x33]]
          %v1580 = vstv %s1579
          %v1581 = vmul.f32 %v1542, %v1580
          %v1582 = vmul.f32 %v1544, %v1580
          %v1583 = vmul.f32 %v1546, %v1580
          %v1584 = vmul.f32 %v1548, %v1580
          %v1585 = vmul.f32 %v1550, %v1580
          %v1586 = vmul.f32 %v1552, %v1580
          %v1587 = vadd.f32 %v1495, %v1581
          %v1588 = vadd.f32 %v1496, %v1582
          %v1589 = vadd.f32 %v1497, %v1583
          %v1590 = vadd.f32 %v1498, %v1584
          %v1591 = vadd.f32 %v1499, %v1585
          %v1592 = vadd.f32 %v1500, %v1586
          %s1593 = sld [smem:[#allocation4 + $0x57]]
          %v1594 = vstv %s1593
          %v1595 = vmul.f32 %v1542, %v1594
          %v1596 = vmul.f32 %v1544, %v1594
          %v1597 = vmul.f32 %v1546, %v1594
          %v1598 = vmul.f32 %v1548, %v1594
          %v1599 = vmul.f32 %v1550, %v1594
          %v1600 = vmul.f32 %v1552, %v1594
          %v1601 = vadd.f32 %v1509, %v1595
          %v1602 = vadd.f32 %v1510, %v1596
          %v1603 = vadd.f32 %v1511, %v1597
          %v1604 = vadd.f32 %v1512, %v1598
          %v1605 = vadd.f32 %v1513, %v1599
          %v1606 = vadd.f32 %v1514, %v1600
          %s1607 = sld [smem:[#allocation4 + $0x7b]]
          %v1608 = vstv %s1607
          %v1609 = vmul.f32 %v1542, %v1608
          %v1610 = vmul.f32 %v1544, %v1608
          %v1611 = vmul.f32 %v1546, %v1608
          %v1612 = vmul.f32 %v1548, %v1608
          %v1613 = vmul.f32 %v1550, %v1608
          %v1614 = vmul.f32 %v1552, %v1608
          %v1615 = vadd.f32 %v1523, %v1609
          %v1616 = vadd.f32 %v1524, %v1610
          %v1617 = vadd.f32 %v1525, %v1611
          %v1618 = vadd.f32 %v1526, %v1612
          %v1619 = vadd.f32 %v1527, %v1613
          %v1620 = vadd.f32 %v1528, %v1614
          %s1621 = sld [smem:[#allocation4 + $0x10]]
          %v1622 = vstv %s1621
          %v1623 = vmul.f32 %v1539, %v1622
          %v1624 = vmul.f32 %v1538, %v1622
          %v1625 = vmul.f32 %v1537, %v1622
          %v1626 = vmul.f32 %v1536, %v1622
          %v1627 = vmul.f32 %v1535, %v1622
          %v1628 = vmul.f32 %v1540, %v1622
          %v1629 = vadd.f32 %v1573, %v1623
          %v1630 = vadd.f32 %v1574, %v1624
          %v1631 = vadd.f32 %v1575, %v1625
          %v1632 = vadd.f32 %v1576, %v1626
          %v1633 = vadd.f32 %v1577, %v1627
          %v1634 = vadd.f32 %v1578, %v1628
          %s1635 = sld [smem:[#allocation4 + $0x34]]
          %v1636 = vstv %s1635
          %v1637 = vmul.f32 %v1539, %v1636
          %v1638 = vmul.f32 %v1538, %v1636
          %v1639 = vmul.f32 %v1537, %v1636
          %v1640 = vmul.f32 %v1536, %v1636
          %v1641 = vmul.f32 %v1535, %v1636
          %v1642 = vmul.f32 %v1540, %v1636
          %v1643 = vadd.f32 %v1587, %v1637
          %v1644 = vadd.f32 %v1588, %v1638
          %v1645 = vadd.f32 %v1589, %v1639
          %v1646 = vadd.f32 %v1590, %v1640
          %v1647 = vadd.f32 %v1591, %v1641
          %v1648 = vadd.f32 %v1592, %v1642
          %s1649 = sld [smem:[#allocation4 + $0x58]]
          %v1650 = vstv %s1649
          %v1651 = vmul.f32 %v1539, %v1650
          %v1652 = vmul.f32 %v1538, %v1650
          %v1653 = vmul.f32 %v1537, %v1650
          %v1654 = vmul.f32 %v1536, %v1650
          %v1655 = vmul.f32 %v1535, %v1650
          %v1656 = vmul.f32 %v1540, %v1650
          %v1657 = vadd.f32 %v1601, %v1651
          %v1658 = vadd.f32 %v1602, %v1652
          %v1659 = vadd.f32 %v1603, %v1653
          %v1660 = vadd.f32 %v1604, %v1654
          %v1661 = vadd.f32 %v1605, %v1655
          %v1662 = vadd.f32 %v1606, %v1656
          %s1663 = sld [smem:[#allocation4 + $0x7c]]
          %v1664 = vstv %s1663
          %v1665 = vmul.f32 %v1539, %v1664
          %v1666 = vmul.f32 %v1538, %v1664
          %v1667 = vmul.f32 %v1537, %v1664
          %v1668 = vmul.f32 %v1536, %v1664
          %v1669 = vmul.f32 %v1535, %v1664
          %v1670 = vmul.f32 %v1540, %v1664
          %v1671 = vadd.f32 %v1615, %v1665
          %v1672 = vadd.f32 %v1616, %v1666
          %v1673 = vadd.f32 %v1617, %v1667
          %v1674 = vadd.f32 %v1618, %v1668
          %v1675 = vadd.f32 %v1619, %v1669
          %v1676 = vadd.f32 %v1620, %v1670
          %s1677 = sld [smem:[#allocation4 + $0x11]]
          %v1678 = vstv %s1677
          %v1679 = vmul.f32 %v1554, %v1678
          %v1680 = vmul.f32 %v1556, %v1678
          %v1681 = vmul.f32 %v1558, %v1678
          %v1682 = vmul.f32 %v1560, %v1678
          %v1683 = vmul.f32 %v1562, %v1678
          %v1684 = vmul.f32 %v1564, %v1678
          %v1685 = vadd.f32 %v1629, %v1679
          %v1686 = vadd.f32 %v1630, %v1680
          %v1687 = vadd.f32 %v1631, %v1681
          %v1688 = vadd.f32 %v1632, %v1682
          %v1689 = vadd.f32 %v1633, %v1683
          %v1690 = vadd.f32 %v1634, %v1684
          %s1691 = sld [smem:[#allocation4 + $0x35]]
          %v1692 = vstv %s1691
          %v1693 = vmul.f32 %v1554, %v1692
          %v1694 = vmul.f32 %v1556, %v1692
          %v1695 = vmul.f32 %v1558, %v1692
          %v1696 = vmul.f32 %v1560, %v1692
          %v1697 = vmul.f32 %v1562, %v1692
          %v1698 = vmul.f32 %v1564, %v1692
          %v1699 = vadd.f32 %v1643, %v1693
          %v1700 = vadd.f32 %v1644, %v1694
          %v1701 = vadd.f32 %v1645, %v1695
          %v1702 = vadd.f32 %v1646, %v1696
          %v1703 = vadd.f32 %v1647, %v1697
          %v1704 = vadd.f32 %v1648, %v1698
          %s1705 = sld [smem:[#allocation4 + $0x59]]
          %v1706 = vstv %s1705
          %v1707 = vmul.f32 %v1554, %v1706
          %v1708 = vmul.f32 %v1556, %v1706
          %v1709 = vmul.f32 %v1558, %v1706
          %v1710 = vmul.f32 %v1560, %v1706
          %v1711 = vmul.f32 %v1562, %v1706
          %v1712 = vmul.f32 %v1564, %v1706
          %v1713 = vadd.f32 %v1657, %v1707
          %v1714 = vadd.f32 %v1658, %v1708
          %v1715 = vadd.f32 %v1659, %v1709
          %v1716 = vadd.f32 %v1660, %v1710
          %v1717 = vadd.f32 %v1661, %v1711
          %v1718 = vadd.f32 %v1662, %v1712
          %s1719 = sld [smem:[#allocation4 + $0x7d]]
          %v1720 = vstv %s1719
          %v1721 = vmul.f32 %v1554, %v1720
          %v1722 = vmul.f32 %v1556, %v1720
          %v1723 = vmul.f32 %v1558, %v1720
          %v1724 = vmul.f32 %v1560, %v1720
          %v1725 = vmul.f32 %v1562, %v1720
          %v1726 = vmul.f32 %v1564, %v1720
          %v1727 = vadd.f32 %v1671, %v1721
          %v1728 = vadd.f32 %v1672, %v1722
          %v1729 = vadd.f32 %v1673, %v1723
          %v1730 = vadd.f32 %v1674, %v1724
          %v1731 = vadd.f32 %v1675, %v1725
          %v1732 = vadd.f32 %v1676, %v1726
          %s1733 = sadd.s32 %s417, 2
          %s1734 = sld [smem:[#allocation2 + %s1733]]
          %v1735 = vstv %s1734
          %v1736 = vadd.f32 %v403, %v1735
          %v1737 = vadd.f32 %v404, %v1735
          %v1738 = vadd.f32 %v405, %v1735
          %v1739 = vadd.f32 %v406, %v1735
          %v1740 = vadd.f32 %v407, %v1735
          %v1741 = vadd.f32 %v408, %v1735
          %v1742 = vxor.u32 %v1736, 2147483648
          %v1743 = vxor.u32 %v1737, 2147483648
          %v1744 = vxor.u32 %v1738, 2147483648
          %v1745 = vxor.u32 %v1739, 2147483648
          %v1746 = vxor.u32 %v1740, 2147483648
          %v1747 = vxor.u32 %v1741, 2147483648
          %v1748 = vmul.f32 %v1742, 1.442695
          %v1749 = vpow.pop %v1748
          %v1750 = vmul.f32 %v1743, 1.442695
          %v1751 = vpow.pop %v1750
          %v1752 = vmul.f32 %v1744, 1.442695
          %v1753 = vpow.pop %v1752
          %v1754 = vmul.f32 %v1745, 1.442695
          %v1755 = vpow.pop %v1754
          %v1756 = vmul.f32 %v1746, 1.442695
          %v1757 = vpow.pop %v1756
          %v1758 = vmul.f32 %v1747, 1.442695
          %v1759 = vpow.pop %v1758
          %v1760 = vadd.f32 %v1749, 1.0
          %v1761 = vadd.f32 %v1751, 1.0
          %v1762 = vadd.f32 %v1753, 1.0
          %v1763 = vadd.f32 %v1755, 1.0
          %v1764 = vadd.f32 %v1757, 1.0
          %v1765 = vadd.f32 %v1759, 1.0
          %v1766 = vrcp.pop %v1760
          %v1767 = vmul.f32 1.0, %v1766
          %v1768 = vrcp.pop %v1761
          %v1769 = vmul.f32 1.0, %v1768
          %v1770 = vrcp.pop %v1762
          %v1771 = vmul.f32 1.0, %v1770
          %v1772 = vrcp.pop %v1763
          %v1773 = vmul.f32 1.0, %v1772
          %v1774 = vrcp.pop %v1764
          %v1775 = vmul.f32 1.0, %v1774
          %v1776 = vrcp.pop %v1765
          %v1777 = vmul.f32 1.0, %v1776
          %v1778 = vmul.f32 %v1736, %v1767
          %v1779 = vmul.f32 %v1737, %v1769
          %v1780 = vmul.f32 %v1738, %v1771
          %v1781 = vmul.f32 %v1739, %v1773
          %v1782 = vmul.f32 %v1740, %v1775
          %v1783 = vmul.f32 %v1741, %v1777
          %v1784 = vmul.f32 %v1778, %v344
          %v1785 = vmul.f32 %v1779, %v345
          %v1786 = vmul.f32 %v1780, %v346
          %v1787 = vmul.f32 %v1781, %v347
          %v1788 = vmul.f32 %v1782, %v348
          %v1789 = vmul.f32 %v1783, %v349
          %v1790 = vrot.slane %v1784, 7
          %v1791 = vrot.slane %v1785, 7
          %v1792 = vrot.slane %v1786, 7
          %v1793 = vrot.slane %v1787, 7
          %v1794 = vrot.slane %v1788, 7
          %v1795 = vrot.slane %v1789, 7
          %v1796 = vsel %vm480, %v1794, %v1795
          %v1797 = vsel %vm480, %v1793, %v1794
          %v1798 = vsel %vm480, %v1792, %v1793
          %v1799 = vsel %vm480, %v1791, %v1792
          %v1800 = vsel %vm480, %v1790, %v1791
          %v1801 = vsel %vm480, %v1795, %v1790
          %1802 = vrot.lane.b32.xlu0 %v1801, 1
          %v1803 = vpop.permute.xlu0 %1802
          %1804 = vrot.lane.b32.xlu0 %v1800, 1
          %v1805 = vpop.permute.xlu0 %1804
          %1806 = vrot.lane.b32.xlu0 %v1799, 1
          %v1807 = vpop.permute.xlu0 %1806
          %1808 = vrot.lane.b32.xlu0 %v1798, 1
          %v1809 = vpop.permute.xlu0 %1808
          %1810 = vrot.lane.b32.xlu0 %v1797, 1
          %v1811 = vpop.permute.xlu0 %1810
          %1812 = vrot.lane.b32.xlu0 %v1796, 1
          %v1813 = vpop.permute.xlu0 %1812
          %1814 = vrot.lane.b32.xlu0 %v1801, 127
          %v1815 = vpop.permute.xlu0 %1814
          %1816 = vrot.lane.b32.xlu0 %v1800, 127
          %v1817 = vpop.permute.xlu0 %1816
          %1818 = vrot.lane.b32.xlu0 %v1799, 127
          %v1819 = vpop.permute.xlu0 %1818
          %1820 = vrot.lane.b32.xlu0 %v1798, 127
          %v1821 = vpop.permute.xlu0 %1820
          %1822 = vrot.lane.b32.xlu0 %v1797, 127
          %v1823 = vpop.permute.xlu0 %1822
          %1824 = vrot.lane.b32.xlu0 %v1796, 127
          %v1825 = vpop.permute.xlu0 %1824
          %s1826 = sld [smem:[#allocation4 + $0x12]]
          %v1827 = vstv %s1826
          %v1828 = vmul.f32 %v1803, %v1827
          %v1829 = vmul.f32 %v1805, %v1827
          %v1830 = vmul.f32 %v1807, %v1827
          %v1831 = vmul.f32 %v1809, %v1827
          %v1832 = vmul.f32 %v1811, %v1827
          %v1833 = vmul.f32 %v1813, %v1827
          %v1834 = vadd.f32 %v1685, %v1828
          %v1835 = vadd.f32 %v1686, %v1829
          %v1836 = vadd.f32 %v1687, %v1830
          %v1837 = vadd.f32 %v1688, %v1831
          %v1838 = vadd.f32 %v1689, %v1832
          %v1839 = vadd.f32 %v1690, %v1833
          %s1840 = sld [smem:[#allocation4 + $0x36]]
          %v1841 = vstv %s1840
          %v1842 = vmul.f32 %v1803, %v1841
          %v1843 = vmul.f32 %v1805, %v1841
          %v1844 = vmul.f32 %v1807, %v1841
          %v1845 = vmul.f32 %v1809, %v1841
          %v1846 = vmul.f32 %v1811, %v1841
          %v1847 = vmul.f32 %v1813, %v1841
          %v1848 = vadd.f32 %v1699, %v1842
          %v1849 = vadd.f32 %v1700, %v1843
          %v1850 = vadd.f32 %v1701, %v1844
          %v1851 = vadd.f32 %v1702, %v1845
          %v1852 = vadd.f32 %v1703, %v1846
          %v1853 = vadd.f32 %v1704, %v1847
          %s1854 = sld [smem:[#allocation4 + $0x5a]]
          %v1855 = vstv %s1854
          %v1856 = vmul.f32 %v1803, %v1855
          %v1857 = vmul.f32 %v1805, %v1855
          %v1858 = vmul.f32 %v1807, %v1855
          %v1859 = vmul.f32 %v1809, %v1855
          %v1860 = vmul.f32 %v1811, %v1855
          %v1861 = vmul.f32 %v1813, %v1855
          %v1862 = vadd.f32 %v1713, %v1856
          %v1863 = vadd.f32 %v1714, %v1857
          %v1864 = vadd.f32 %v1715, %v1858
          %v1865 = vadd.f32 %v1716, %v1859
          %v1866 = vadd.f32 %v1717, %v1860
          %v1867 = vadd.f32 %v1718, %v1861
          %s1868 = sld [smem:[#allocation4 + $0x7e]]
          %v1869 = vstv %s1868
          %v1870 = vmul.f32 %v1803, %v1869
          %v1871 = vmul.f32 %v1805, %v1869
          %v1872 = vmul.f32 %v1807, %v1869
          %v1873 = vmul.f32 %v1809, %v1869
          %v1874 = vmul.f32 %v1811, %v1869
          %v1875 = vmul.f32 %v1813, %v1869
          %v1876 = vadd.f32 %v1727, %v1870
          %v1877 = vadd.f32 %v1728, %v1871
          %v1878 = vadd.f32 %v1729, %v1872
          %v1879 = vadd.f32 %v1730, %v1873
          %v1880 = vadd.f32 %v1731, %v1874
          %v1881 = vadd.f32 %v1732, %v1875
          %s1882 = sld [smem:[#allocation4 + $0x13]]
          %v1883 = vstv %s1882
          %v1884 = vmul.f32 %v1801, %v1883
          %v1885 = vmul.f32 %v1800, %v1883
          %v1886 = vmul.f32 %v1799, %v1883
          %v1887 = vmul.f32 %v1798, %v1883
          %v1888 = vmul.f32 %v1797, %v1883
          %v1889 = vmul.f32 %v1796, %v1883
          %v1890 = vadd.f32 %v1834, %v1884
          %v1891 = vadd.f32 %v1835, %v1885
          %v1892 = vadd.f32 %v1836, %v1886
          %v1893 = vadd.f32 %v1837, %v1887
          %v1894 = vadd.f32 %v1838, %v1888
          %v1895 = vadd.f32 %v1839, %v1889
          %s1896 = sld [smem:[#allocation4 + $0x37]]
          %v1897 = vstv %s1896
          %v1898 = vmul.f32 %v1801, %v1897
          %v1899 = vmul.f32 %v1800, %v1897
          %v1900 = vmul.f32 %v1799, %v1897
          %v1901 = vmul.f32 %v1798, %v1897
          %v1902 = vmul.f32 %v1797, %v1897
          %v1903 = vmul.f32 %v1796, %v1897
          %v1904 = vadd.f32 %v1848, %v1898
          %v1905 = vadd.f32 %v1849, %v1899
          %v1906 = vadd.f32 %v1850, %v1900
          %v1907 = vadd.f32 %v1851, %v1901
          %v1908 = vadd.f32 %v1852, %v1902
          %v1909 = vadd.f32 %v1853, %v1903
          %s1910 = sld [smem:[#allocation4 + $0x5b]]
          %v1911 = vstv %s1910
          %v1912 = vmul.f32 %v1801, %v1911
          %v1913 = vmul.f32 %v1800, %v1911
          %v1914 = vmul.f32 %v1799, %v1911
          %v1915 = vmul.f32 %v1798, %v1911
          %v1916 = vmul.f32 %v1797, %v1911
          %v1917 = vmul.f32 %v1796, %v1911
          %v1918 = vadd.f32 %v1862, %v1912
          %v1919 = vadd.f32 %v1863, %v1913
          %v1920 = vadd.f32 %v1864, %v1914
          %v1921 = vadd.f32 %v1865, %v1915
          %v1922 = vadd.f32 %v1866, %v1916
          %v1923 = vadd.f32 %v1867, %v1917
          %s1924 = sld [smem:[#allocation4 + $0x7f]]
          %v1925 = vstv %s1924
          %v1926 = vmul.f32 %v1801, %v1925
          %v1927 = vmul.f32 %v1800, %v1925
          %v1928 = vmul.f32 %v1799, %v1925
          %v1929 = vmul.f32 %v1798, %v1925
          %v1930 = vmul.f32 %v1797, %v1925
          %v1931 = vmul.f32 %v1796, %v1925
          %v1932 = vadd.f32 %v1876, %v1926
          %v1933 = vadd.f32 %v1877, %v1927
          %v1934 = vadd.f32 %v1878, %v1928
          %v1935 = vadd.f32 %v1879, %v1929
          %v1936 = vadd.f32 %v1880, %v1930
          %v1937 = vadd.f32 %v1881, %v1931
          %s1938 = sld [smem:[#allocation4 + $0x14]]
          %v1939 = vstv %s1938
          %v1940 = vmul.f32 %v1815, %v1939
          %v1941 = vmul.f32 %v1817, %v1939
          %v1942 = vmul.f32 %v1819, %v1939
          %v1943 = vmul.f32 %v1821, %v1939
          %v1944 = vmul.f32 %v1823, %v1939
          %v1945 = vmul.f32 %v1825, %v1939
          %v1946 = vadd.f32 %v1890, %v1940
          %v1947 = vadd.f32 %v1891, %v1941
          %v1948 = vadd.f32 %v1892, %v1942
          %v1949 = vadd.f32 %v1893, %v1943
          %v1950 = vadd.f32 %v1894, %v1944
          %v1951 = vadd.f32 %v1895, %v1945
          %s1952 = sld [smem:[#allocation4 + $0x38]]
          %v1953 = vstv %s1952
          %v1954 = vmul.f32 %v1815, %v1953
          %v1955 = vmul.f32 %v1817, %v1953
          %v1956 = vmul.f32 %v1819, %v1953
          %v1957 = vmul.f32 %v1821, %v1953
          %v1958 = vmul.f32 %v1823, %v1953
          %v1959 = vmul.f32 %v1825, %v1953
          %v1960 = vadd.f32 %v1904, %v1954
          %v1961 = vadd.f32 %v1905, %v1955
          %v1962 = vadd.f32 %v1906, %v1956
          %v1963 = vadd.f32 %v1907, %v1957
          %v1964 = vadd.f32 %v1908, %v1958
          %v1965 = vadd.f32 %v1909, %v1959
          %s1966 = sld [smem:[#allocation4 + $0x5c]]
          %v1967 = vstv %s1966
          %v1968 = vmul.f32 %v1815, %v1967
          %v1969 = vmul.f32 %v1817, %v1967
          %v1970 = vmul.f32 %v1819, %v1967
          %v1971 = vmul.f32 %v1821, %v1967
          %v1972 = vmul.f32 %v1823, %v1967
          %v1973 = vmul.f32 %v1825, %v1967
          %v1974 = vadd.f32 %v1918, %v1968
          %v1975 = vadd.f32 %v1919, %v1969
          %v1976 = vadd.f32 %v1920, %v1970
          %v1977 = vadd.f32 %v1921, %v1971
          %v1978 = vadd.f32 %v1922, %v1972
          %v1979 = vadd.f32 %v1923, %v1973
          %s1980 = sld [smem:[#allocation4 + $0x80]]
          %v1981 = vstv %s1980
          %v1982 = vmul.f32 %v1815, %v1981
          %v1983 = vmul.f32 %v1817, %v1981
          %v1984 = vmul.f32 %v1819, %v1981
          %v1985 = vmul.f32 %v1821, %v1981
          %v1986 = vmul.f32 %v1823, %v1981
          %v1987 = vmul.f32 %v1825, %v1981
          %v1988 = vadd.f32 %v1932, %v1982
          %v1989 = vadd.f32 %v1933, %v1983
          %v1990 = vadd.f32 %v1934, %v1984
          %v1991 = vadd.f32 %v1935, %v1985
          %v1992 = vadd.f32 %v1936, %v1986
          %v1993 = vadd.f32 %v1937, %v1987
          %1994 = vrot.lane.b32.xlu0 %v1784, 1
          %v1995 = vpop.permute.xlu0 %1994
          %1996 = vrot.lane.b32.xlu0 %v1785, 1
          %v1997 = vpop.permute.xlu0 %1996
          %1998 = vrot.lane.b32.xlu0 %v1786, 1
          %v1999 = vpop.permute.xlu0 %1998
          %2000 = vrot.lane.b32.xlu0 %v1787, 1
          %v2001 = vpop.permute.xlu0 %2000
          %2002 = vrot.lane.b32.xlu0 %v1788, 1
          %v2003 = vpop.permute.xlu0 %2002
          %2004 = vrot.lane.b32.xlu0 %v1789, 1
          %v2005 = vpop.permute.xlu0 %2004
          %2006 = vrot.lane.b32.xlu0 %v1784, 127
          %v2007 = vpop.permute.xlu0 %2006
          %2008 = vrot.lane.b32.xlu0 %v1785, 127
          %v2009 = vpop.permute.xlu0 %2008
          %2010 = vrot.lane.b32.xlu0 %v1786, 127
          %v2011 = vpop.permute.xlu0 %2010
          %2012 = vrot.lane.b32.xlu0 %v1787, 127
          %v2013 = vpop.permute.xlu0 %2012
          %2014 = vrot.lane.b32.xlu0 %v1788, 127
          %v2015 = vpop.permute.xlu0 %2014
          %2016 = vrot.lane.b32.xlu0 %v1789, 127
          %v2017 = vpop.permute.xlu0 %2016
          %s2018 = sld [smem:[#allocation4 + $0x15]]
          %v2019 = vstv %s2018
          %v2020 = vmul.f32 %v1995, %v2019
          %v2021 = vmul.f32 %v1997, %v2019
          %v2022 = vmul.f32 %v1999, %v2019
          %v2023 = vmul.f32 %v2001, %v2019
          %v2024 = vmul.f32 %v2003, %v2019
          %v2025 = vmul.f32 %v2005, %v2019
          %v2026 = vadd.f32 %v1946, %v2020
          %v2027 = vadd.f32 %v1947, %v2021
          %v2028 = vadd.f32 %v1948, %v2022
          %v2029 = vadd.f32 %v1949, %v2023
          %v2030 = vadd.f32 %v1950, %v2024
          %v2031 = vadd.f32 %v1951, %v2025
          %s2032 = sld [smem:[#allocation4 + $0x39]]
          %v2033 = vstv %s2032
          %v2034 = vmul.f32 %v1995, %v2033
          %v2035 = vmul.f32 %v1997, %v2033
          %v2036 = vmul.f32 %v1999, %v2033
          %v2037 = vmul.f32 %v2001, %v2033
          %v2038 = vmul.f32 %v2003, %v2033
          %v2039 = vmul.f32 %v2005, %v2033
          %v2040 = vadd.f32 %v1960, %v2034
          %v2041 = vadd.f32 %v1961, %v2035
          %v2042 = vadd.f32 %v1962, %v2036
          %v2043 = vadd.f32 %v1963, %v2037
          %v2044 = vadd.f32 %v1964, %v2038
          %v2045 = vadd.f32 %v1965, %v2039
          %s2046 = sld [smem:[#allocation4 + $0x5d]]
          %v2047 = vstv %s2046
          %v2048 = vmul.f32 %v1995, %v2047
          %v2049 = vmul.f32 %v1997, %v2047
          %v2050 = vmul.f32 %v1999, %v2047
          %v2051 = vmul.f32 %v2001, %v2047
          %v2052 = vmul.f32 %v2003, %v2047
          %v2053 = vmul.f32 %v2005, %v2047
          %v2054 = vadd.f32 %v1974, %v2048
          %v2055 = vadd.f32 %v1975, %v2049
          %v2056 = vadd.f32 %v1976, %v2050
          %v2057 = vadd.f32 %v1977, %v2051
          %v2058 = vadd.f32 %v1978, %v2052
          %v2059 = vadd.f32 %v1979, %v2053
          %s2060 = sld [smem:[#allocation4 + $0x81]]
          %v2061 = vstv %s2060
          %v2062 = vmul.f32 %v1995, %v2061
          %v2063 = vmul.f32 %v1997, %v2061
          %v2064 = vmul.f32 %v1999, %v2061
          %v2065 = vmul.f32 %v2001, %v2061
          %v2066 = vmul.f32 %v2003, %v2061
          %v2067 = vmul.f32 %v2005, %v2061
          %v2068 = vadd.f32 %v1988, %v2062
          %v2069 = vadd.f32 %v1989, %v2063
          %v2070 = vadd.f32 %v1990, %v2064
          %v2071 = vadd.f32 %v1991, %v2065
          %v2072 = vadd.f32 %v1992, %v2066
          %v2073 = vadd.f32 %v1993, %v2067
          %s2074 = sld [smem:[#allocation4 + $0x16]]
          %v2075 = vstv %s2074
          %v2076 = vmul.f32 %v1784, %v2075
          %v2077 = vmul.f32 %v1785, %v2075
          %v2078 = vmul.f32 %v1786, %v2075
          %v2079 = vmul.f32 %v1787, %v2075
          %v2080 = vmul.f32 %v1788, %v2075
          %v2081 = vmul.f32 %v1789, %v2075
          %v2082 = vadd.f32 %v2026, %v2076
          %v2083 = vadd.f32 %v2027, %v2077
          %v2084 = vadd.f32 %v2028, %v2078
          %v2085 = vadd.f32 %v2029, %v2079
          %v2086 = vadd.f32 %v2030, %v2080
          %v2087 = vadd.f32 %v2031, %v2081
          %s2088 = sld [smem:[#allocation4 + $0x3a]]
          %v2089 = vstv %s2088
          %v2090 = vmul.f32 %v1784, %v2089
          %v2091 = vmul.f32 %v1785, %v2089
          %v2092 = vmul.f32 %v1786, %v2089
          %v2093 = vmul.f32 %v1787, %v2089
          %v2094 = vmul.f32 %v1788, %v2089
          %v2095 = vmul.f32 %v1789, %v2089
          %v2096 = vadd.f32 %v2040, %v2090
          %v2097 = vadd.f32 %v2041, %v2091
          %v2098 = vadd.f32 %v2042, %v2092
          %v2099 = vadd.f32 %v2043, %v2093
          %v2100 = vadd.f32 %v2044, %v2094
          %v2101 = vadd.f32 %v2045, %v2095
          %s2102 = sld [smem:[#allocation4 + $0x5e]]
          %v2103 = vstv %s2102
          %v2104 = vmul.f32 %v1784, %v2103
          %v2105 = vmul.f32 %v1785, %v2103
          %v2106 = vmul.f32 %v1786, %v2103
          %v2107 = vmul.f32 %v1787, %v2103
          %v2108 = vmul.f32 %v1788, %v2103
          %v2109 = vmul.f32 %v1789, %v2103
          %v2110 = vadd.f32 %v2054, %v2104
          %v2111 = vadd.f32 %v2055, %v2105
          %v2112 = vadd.f32 %v2056, %v2106
          %v2113 = vadd.f32 %v2057, %v2107
          %v2114 = vadd.f32 %v2058, %v2108
          %v2115 = vadd.f32 %v2059, %v2109
          %s2116 = sld [smem:[#allocation4 + $0x82]]
          %v2117 = vstv %s2116
          %v2118 = vmul.f32 %v1784, %v2117
          %v2119 = vmul.f32 %v1785, %v2117
          %v2120 = vmul.f32 %v1786, %v2117
          %v2121 = vmul.f32 %v1787, %v2117
          %v2122 = vmul.f32 %v1788, %v2117
          %v2123 = vmul.f32 %v1789, %v2117
          %v2124 = vadd.f32 %v2068, %v2118
          %v2125 = vadd.f32 %v2069, %v2119
          %v2126 = vadd.f32 %v2070, %v2120
          %v2127 = vadd.f32 %v2071, %v2121
          %v2128 = vadd.f32 %v2072, %v2122
          %v2129 = vadd.f32 %v2073, %v2123
          %s2130 = sld [smem:[#allocation4 + $0x17]]
          %v2131 = vstv %s2130
          %v2132 = vmul.f32 %v2007, %v2131
          %v2133 = vmul.f32 %v2009, %v2131
          %v2134 = vmul.f32 %v2011, %v2131
          %v2135 = vmul.f32 %v2013, %v2131
          %v2136 = vmul.f32 %v2015, %v2131
          %v2137 = vmul.f32 %v2017, %v2131
          %v2138 = vadd.f32 %v2082, %v2132
          %v2139 = vadd.f32 %v2083, %v2133
          %v2140 = vadd.f32 %v2084, %v2134
          %v2141 = vadd.f32 %v2085, %v2135
          %v2142 = vadd.f32 %v2086, %v2136
          %v2143 = vadd.f32 %v2087, %v2137
          %s2144 = sld [smem:[#allocation4 + $0x3b]]
          %v2145 = vstv %s2144
          %v2146 = vmul.f32 %v2007, %v2145
          %v2147 = vmul.f32 %v2009, %v2145
          %v2148 = vmul.f32 %v2011, %v2145
          %v2149 = vmul.f32 %v2013, %v2145
          %v2150 = vmul.f32 %v2015, %v2145
          %v2151 = vmul.f32 %v2017, %v2145
          %v2152 = vadd.f32 %v2096, %v2146
          %v2153 = vadd.f32 %v2097, %v2147
          %v2154 = vadd.f32 %v2098, %v2148
          %v2155 = vadd.f32 %v2099, %v2149
          %v2156 = vadd.f32 %v2100, %v2150
          %v2157 = vadd.f32 %v2101, %v2151
          %s2158 = sld [smem:[#allocation4 + $0x5f]]
          %v2159 = vstv %s2158
          %v2160 = vmul.f32 %v2007, %v2159
          %v2161 = vmul.f32 %v2009, %v2159
          %v2162 = vmul.f32 %v2011, %v2159
          %v2163 = vmul.f32 %v2013, %v2159
          %v2164 = vmul.f32 %v2015, %v2159
          %v2165 = vmul.f32 %v2017, %v2159
          %v2166 = vadd.f32 %v2110, %v2160
          %v2167 = vadd.f32 %v2111, %v2161
          %v2168 = vadd.f32 %v2112, %v2162
          %v2169 = vadd.f32 %v2113, %v2163
          %v2170 = vadd.f32 %v2114, %v2164
          %v2171 = vadd.f32 %v2115, %v2165
          %s2172 = sld [smem:[#allocation4 + $0x83]]
          %v2173 = vstv %s2172
          %v2174 = vmul.f32 %v2007, %v2173
          %v2175 = vmul.f32 %v2009, %v2173
          %v2176 = vmul.f32 %v2011, %v2173
          %v2177 = vmul.f32 %v2013, %v2173
          %v2178 = vmul.f32 %v2015, %v2173
          %v2179 = vmul.f32 %v2017, %v2173
          %v2180 = vadd.f32 %v2124, %v2174
          %v2181 = vadd.f32 %v2125, %v2175
          %v2182 = vadd.f32 %v2126, %v2176
          %v2183 = vadd.f32 %v2127, %v2177
          %v2184 = vadd.f32 %v2128, %v2178
          %v2185 = vadd.f32 %v2129, %v2179
          %v2186 = vrot.slane %v1784, 1
          %v2187 = vrot.slane %v1785, 1
          %v2188 = vrot.slane %v1786, 1
          %v2189 = vrot.slane %v1787, 1
          %v2190 = vrot.slane %v1788, 1
          %v2191 = vrot.slane %v1789, 1
          %v2192 = vsel %vm877, %v2190, %v2191
          %v2193 = vsel %vm877, %v2189, %v2190
          %v2194 = vsel %vm877, %v2188, %v2189
          %v2195 = vsel %vm877, %v2187, %v2188
          %v2196 = vsel %vm877, %v2186, %v2187
          %v2197 = vsel %vm877, %v2191, %v2186
          %2198 = vrot.lane.b32.xlu0 %v2196, 1
          %v2199 = vpop.permute.xlu0 %2198
          %2200 = vrot.lane.b32.xlu0 %v2195, 1
          %v2201 = vpop.permute.xlu0 %2200
          %2202 = vrot.lane.b32.xlu0 %v2194, 1
          %v2203 = vpop.permute.xlu0 %2202
          %2204 = vrot.lane.b32.xlu0 %v2193, 1
          %v2205 = vpop.permute.xlu0 %2204
          %2206 = vrot.lane.b32.xlu0 %v2192, 1
          %v2207 = vpop.permute.xlu0 %2206
          %2208 = vrot.lane.b32.xlu0 %v2197, 1
          %v2209 = vpop.permute.xlu0 %2208
          %2210 = vrot.lane.b32.xlu0 %v2196, 127
          %v2211 = vpop.permute.xlu0 %2210
          %2212 = vrot.lane.b32.xlu0 %v2195, 127
          %v2213 = vpop.permute.xlu0 %2212
          %2214 = vrot.lane.b32.xlu0 %v2194, 127
          %v2215 = vpop.permute.xlu0 %2214
          %2216 = vrot.lane.b32.xlu0 %v2193, 127
          %v2217 = vpop.permute.xlu0 %2216
          %2218 = vrot.lane.b32.xlu0 %v2192, 127
          %v2219 = vpop.permute.xlu0 %2218
          %2220 = vrot.lane.b32.xlu0 %v2197, 127
          %v2221 = vpop.permute.xlu0 %2220
          %s2222 = sld [smem:[#allocation4 + $0x18]]
          %v2223 = vstv %s2222
          %v2224 = vmul.f32 %v2199, %v2223
          %v2225 = vmul.f32 %v2201, %v2223
          %v2226 = vmul.f32 %v2203, %v2223
          %v2227 = vmul.f32 %v2205, %v2223
          %v2228 = vmul.f32 %v2207, %v2223
          %v2229 = vmul.f32 %v2209, %v2223
          %v2230 = vadd.f32 %v2138, %v2224
          %v2231 = vadd.f32 %v2139, %v2225
          %v2232 = vadd.f32 %v2140, %v2226
          %v2233 = vadd.f32 %v2141, %v2227
          %v2234 = vadd.f32 %v2142, %v2228
          %v2235 = vadd.f32 %v2143, %v2229
          %s2236 = sld [smem:[#allocation4 + $0x3c]]
          %v2237 = vstv %s2236
          %v2238 = vmul.f32 %v2199, %v2237
          %v2239 = vmul.f32 %v2201, %v2237
          %v2240 = vmul.f32 %v2203, %v2237
          %v2241 = vmul.f32 %v2205, %v2237
          %v2242 = vmul.f32 %v2207, %v2237
          %v2243 = vmul.f32 %v2209, %v2237
          %v2244 = vadd.f32 %v2152, %v2238
          %v2245 = vadd.f32 %v2153, %v2239
          %v2246 = vadd.f32 %v2154, %v2240
          %v2247 = vadd.f32 %v2155, %v2241
          %v2248 = vadd.f32 %v2156, %v2242
          %v2249 = vadd.f32 %v2157, %v2243
          %s2250 = sld [smem:[#allocation4 + $0x60]]
          %v2251 = vstv %s2250
          %v2252 = vmul.f32 %v2199, %v2251
          %v2253 = vmul.f32 %v2201, %v2251
          %v2254 = vmul.f32 %v2203, %v2251
          %v2255 = vmul.f32 %v2205, %v2251
          %v2256 = vmul.f32 %v2207, %v2251
          %v2257 = vmul.f32 %v2209, %v2251
          %v2258 = vadd.f32 %v2166, %v2252
          %v2259 = vadd.f32 %v2167, %v2253
          %v2260 = vadd.f32 %v2168, %v2254
          %v2261 = vadd.f32 %v2169, %v2255
          %v2262 = vadd.f32 %v2170, %v2256
          %v2263 = vadd.f32 %v2171, %v2257
          %s2264 = sld [smem:[#allocation4 + $0x84]]
          %v2265 = vstv %s2264
          %v2266 = vmul.f32 %v2199, %v2265
          %v2267 = vmul.f32 %v2201, %v2265
          %v2268 = vmul.f32 %v2203, %v2265
          %v2269 = vmul.f32 %v2205, %v2265
          %v2270 = vmul.f32 %v2207, %v2265
          %v2271 = vmul.f32 %v2209, %v2265
          %v2272 = vadd.f32 %v2180, %v2266
          %v2273 = vadd.f32 %v2181, %v2267
          %v2274 = vadd.f32 %v2182, %v2268
          %v2275 = vadd.f32 %v2183, %v2269
          %v2276 = vadd.f32 %v2184, %v2270
          %v2277 = vadd.f32 %v2185, %v2271
          %s2278 = sld [smem:[#allocation4 + $0x19]]
          %v2279 = vstv %s2278
          %v2280 = vmul.f32 %v2196, %v2279
          %v2281 = vmul.f32 %v2195, %v2279
          %v2282 = vmul.f32 %v2194, %v2279
          %v2283 = vmul.f32 %v2193, %v2279
          %v2284 = vmul.f32 %v2192, %v2279
          %v2285 = vmul.f32 %v2197, %v2279
          %v2286 = vadd.f32 %v2230, %v2280
          %v2287 = vadd.f32 %v2231, %v2281
          %v2288 = vadd.f32 %v2232, %v2282
          %v2289 = vadd.f32 %v2233, %v2283
          %v2290 = vadd.f32 %v2234, %v2284
          %v2291 = vadd.f32 %v2235, %v2285
          %s2292 = sld [smem:[#allocation4 + $0x3d]]
          %v2293 = vstv %s2292
          %v2294 = vmul.f32 %v2196, %v2293
          %v2295 = vmul.f32 %v2195, %v2293
          %v2296 = vmul.f32 %v2194, %v2293
          %v2297 = vmul.f32 %v2193, %v2293
          %v2298 = vmul.f32 %v2192, %v2293
          %v2299 = vmul.f32 %v2197, %v2293
          %v2300 = vadd.f32 %v2244, %v2294
          %v2301 = vadd.f32 %v2245, %v2295
          %v2302 = vadd.f32 %v2246, %v2296
          %v2303 = vadd.f32 %v2247, %v2297
          %v2304 = vadd.f32 %v2248, %v2298
          %v2305 = vadd.f32 %v2249, %v2299
          %s2306 = sld [smem:[#allocation4 + $0x61]]
          %v2307 = vstv %s2306
          %v2308 = vmul.f32 %v2196, %v2307
          %v2309 = vmul.f32 %v2195, %v2307
          %v2310 = vmul.f32 %v2194, %v2307
          %v2311 = vmul.f32 %v2193, %v2307
          %v2312 = vmul.f32 %v2192, %v2307
          %v2313 = vmul.f32 %v2197, %v2307
          %v2314 = vadd.f32 %v2258, %v2308
          %v2315 = vadd.f32 %v2259, %v2309
          %v2316 = vadd.f32 %v2260, %v2310
          %v2317 = vadd.f32 %v2261, %v2311
          %v2318 = vadd.f32 %v2262, %v2312
          %v2319 = vadd.f32 %v2263, %v2313
          %s2320 = sld [smem:[#allocation4 + $0x85]]
          %v2321 = vstv %s2320
          %v2322 = vmul.f32 %v2196, %v2321
          %v2323 = vmul.f32 %v2195, %v2321
          %v2324 = vmul.f32 %v2194, %v2321
          %v2325 = vmul.f32 %v2193, %v2321
          %v2326 = vmul.f32 %v2192, %v2321
          %v2327 = vmul.f32 %v2197, %v2321
          %v2328 = vadd.f32 %v2272, %v2322
          %v2329 = vadd.f32 %v2273, %v2323
          %v2330 = vadd.f32 %v2274, %v2324
          %v2331 = vadd.f32 %v2275, %v2325
          %v2332 = vadd.f32 %v2276, %v2326
          %v2333 = vadd.f32 %v2277, %v2327
          %s2334 = sld [smem:[#allocation4 + $0x1a]]
          %v2335 = vstv %s2334
          %v2336 = vmul.f32 %v2211, %v2335
          %v2337 = vmul.f32 %v2213, %v2335
          %v2338 = vmul.f32 %v2215, %v2335
          %v2339 = vmul.f32 %v2217, %v2335
          %v2340 = vmul.f32 %v2219, %v2335
          %v2341 = vmul.f32 %v2221, %v2335
          %v2342 = vadd.f32 %v2286, %v2336
          %v2343 = vadd.f32 %v2287, %v2337
          %v2344 = vadd.f32 %v2288, %v2338
          %v2345 = vadd.f32 %v2289, %v2339
          %v2346 = vadd.f32 %v2290, %v2340
          %v2347 = vadd.f32 %v2291, %v2341
          %s2348 = sld [smem:[#allocation4 + $0x3e]]
          %v2349 = vstv %s2348
          %v2350 = vmul.f32 %v2211, %v2349
          %v2351 = vmul.f32 %v2213, %v2349
          %v2352 = vmul.f32 %v2215, %v2349
          %v2353 = vmul.f32 %v2217, %v2349
          %v2354 = vmul.f32 %v2219, %v2349
          %v2355 = vmul.f32 %v2221, %v2349
          %v2356 = vadd.f32 %v2300, %v2350
          %v2357 = vadd.f32 %v2301, %v2351
          %v2358 = vadd.f32 %v2302, %v2352
          %v2359 = vadd.f32 %v2303, %v2353
          %v2360 = vadd.f32 %v2304, %v2354
          %v2361 = vadd.f32 %v2305, %v2355
          %s2362 = sld [smem:[#allocation4 + $0x62]]
          %v2363 = vstv %s2362
          %v2364 = vmul.f32 %v2211, %v2363
          %v2365 = vmul.f32 %v2213, %v2363
          %v2366 = vmul.f32 %v2215, %v2363
          %v2367 = vmul.f32 %v2217, %v2363
          %v2368 = vmul.f32 %v2219, %v2363
          %v2369 = vmul.f32 %v2221, %v2363
          %v2370 = vadd.f32 %v2314, %v2364
          %v2371 = vadd.f32 %v2315, %v2365
          %v2372 = vadd.f32 %v2316, %v2366
          %v2373 = vadd.f32 %v2317, %v2367
          %v2374 = vadd.f32 %v2318, %v2368
          %v2375 = vadd.f32 %v2319, %v2369
          %s2376 = sld [smem:[#allocation4 + $0x86]]
          %v2377 = vstv %s2376
          %v2378 = vmul.f32 %v2211, %v2377
          %v2379 = vmul.f32 %v2213, %v2377
          %v2380 = vmul.f32 %v2215, %v2377
          %v2381 = vmul.f32 %v2217, %v2377
          %v2382 = vmul.f32 %v2219, %v2377
          %v2383 = vmul.f32 %v2221, %v2377
          %v2384 = vadd.f32 %v2328, %v2378
          %v2385 = vadd.f32 %v2329, %v2379
          %v2386 = vadd.f32 %v2330, %v2380
          %v2387 = vadd.f32 %v2331, %v2381
          %v2388 = vadd.f32 %v2332, %v2382
          %v2389 = vadd.f32 %v2333, %v2383
          %s2390 = sadd.s32 %s417, 3
          %s2391 = sld [smem:[#allocation2 + %s2390]]
          %v2392 = vstv %s2391
          %v2393 = vadd.f32 %v409, %v2392
          %v2394 = vadd.f32 %v410, %v2392
          %v2395 = vadd.f32 %v411, %v2392
          %v2396 = vadd.f32 %v412, %v2392
          %v2397 = vadd.f32 %v413, %v2392
          %v2398 = vadd.f32 %v414, %v2392
          %v2399 = vxor.u32 %v2393, 2147483648
          %v2400 = vxor.u32 %v2394, 2147483648
          %v2401 = vxor.u32 %v2395, 2147483648
          %v2402 = vxor.u32 %v2396, 2147483648
          %v2403 = vxor.u32 %v2397, 2147483648
          %v2404 = vxor.u32 %v2398, 2147483648
          %v2405 = vmul.f32 %v2399, 1.442695
          %v2406 = vpow.pop %v2405
          %v2407 = vmul.f32 %v2400, 1.442695
          %v2408 = vpow.pop %v2407
          %v2409 = vmul.f32 %v2401, 1.442695
          %v2410 = vpow.pop %v2409
          %v2411 = vmul.f32 %v2402, 1.442695
          %v2412 = vpow.pop %v2411
          %v2413 = vmul.f32 %v2403, 1.442695
          %v2414 = vpow.pop %v2413
          %v2415 = vmul.f32 %v2404, 1.442695
          %v2416 = vpow.pop %v2415
          %v2417 = vadd.f32 %v2406, 1.0
          %v2418 = vadd.f32 %v2408, 1.0
          %v2419 = vadd.f32 %v2410, 1.0
          %v2420 = vadd.f32 %v2412, 1.0
          %v2421 = vadd.f32 %v2414, 1.0
          %v2422 = vadd.f32 %v2416, 1.0
          %v2423 = vrcp.pop %v2417
          %v2424 = vmul.f32 1.0, %v2423
          %v2425 = vrcp.pop %v2418
          %v2426 = vmul.f32 1.0, %v2425
          %v2427 = vrcp.pop %v2419
          %v2428 = vmul.f32 1.0, %v2427
          %v2429 = vrcp.pop %v2420
          %v2430 = vmul.f32 1.0, %v2429
          %v2431 = vrcp.pop %v2421
          %v2432 = vmul.f32 1.0, %v2431
          %v2433 = vrcp.pop %v2422
          %v2434 = vmul.f32 1.0, %v2433
          %v2435 = vmul.f32 %v2393, %v2424
          %v2436 = vmul.f32 %v2394, %v2426
          %v2437 = vmul.f32 %v2395, %v2428
          %v2438 = vmul.f32 %v2396, %v2430
          %v2439 = vmul.f32 %v2397, %v2432
          %v2440 = vmul.f32 %v2398, %v2434
          %v2441 = vmul.f32 %v2435, %v344
          %v2442 = vmul.f32 %v2436, %v345
          %v2443 = vmul.f32 %v2437, %v346
          %v2444 = vmul.f32 %v2438, %v347
          %v2445 = vmul.f32 %v2439, %v348
          %v2446 = vmul.f32 %v2440, %v349
          %v2447 = vrot.slane %v2441, 7
          %v2448 = vrot.slane %v2442, 7
          %v2449 = vrot.slane %v2443, 7
          %v2450 = vrot.slane %v2444, 7
          %v2451 = vrot.slane %v2445, 7
          %v2452 = vrot.slane %v2446, 7
          %v2453 = vsel %vm480, %v2451, %v2452
          %v2454 = vsel %vm480, %v2450, %v2451
          %v2455 = vsel %vm480, %v2449, %v2450
          %v2456 = vsel %vm480, %v2448, %v2449
          %v2457 = vsel %vm480, %v2447, %v2448
          %v2458 = vsel %vm480, %v2452, %v2447
          %2459 = vrot.lane.b32.xlu0 %v2458, 1
          %v2460 = vpop.permute.xlu0 %2459
          %2461 = vrot.lane.b32.xlu0 %v2457, 1
          %v2462 = vpop.permute.xlu0 %2461
          %2463 = vrot.lane.b32.xlu0 %v2456, 1
          %v2464 = vpop.permute.xlu0 %2463
          %2465 = vrot.lane.b32.xlu0 %v2455, 1
          %v2466 = vpop.permute.xlu0 %2465
          %2467 = vrot.lane.b32.xlu0 %v2454, 1
          %v2468 = vpop.permute.xlu0 %2467
          %2469 = vrot.lane.b32.xlu0 %v2453, 1
          %v2470 = vpop.permute.xlu0 %2469
          %2471 = vrot.lane.b32.xlu0 %v2458, 127
          %v2472 = vpop.permute.xlu0 %2471
          %2473 = vrot.lane.b32.xlu0 %v2457, 127
          %v2474 = vpop.permute.xlu0 %2473
          %2475 = vrot.lane.b32.xlu0 %v2456, 127
          %v2476 = vpop.permute.xlu0 %2475
          %2477 = vrot.lane.b32.xlu0 %v2455, 127
          %v2478 = vpop.permute.xlu0 %2477
          %2479 = vrot.lane.b32.xlu0 %v2454, 127
          %v2480 = vpop.permute.xlu0 %2479
          %2481 = vrot.lane.b32.xlu0 %v2453, 127
          %v2482 = vpop.permute.xlu0 %2481
          %s2483 = sld [smem:[#allocation4 + $0x1b]]
          %v2484 = vstv %s2483
          %v2485 = vmul.f32 %v2460, %v2484
          %v2486 = vmul.f32 %v2462, %v2484
          %v2487 = vmul.f32 %v2464, %v2484
          %v2488 = vmul.f32 %v2466, %v2484
          %v2489 = vmul.f32 %v2468, %v2484
          %v2490 = vmul.f32 %v2470, %v2484
          %v2491 = vadd.f32 %v2342, %v2485
          %v2492 = vadd.f32 %v2343, %v2486
          %v2493 = vadd.f32 %v2344, %v2487
          %v2494 = vadd.f32 %v2345, %v2488
          %v2495 = vadd.f32 %v2346, %v2489
          %v2496 = vadd.f32 %v2347, %v2490
          %s2497 = sld [smem:[#allocation4 + $0x3f]]
          %v2498 = vstv %s2497
          %v2499 = vmul.f32 %v2460, %v2498
          %v2500 = vmul.f32 %v2462, %v2498
          %v2501 = vmul.f32 %v2464, %v2498
          %v2502 = vmul.f32 %v2466, %v2498
          %v2503 = vmul.f32 %v2468, %v2498
          %v2504 = vmul.f32 %v2470, %v2498
          %v2505 = vadd.f32 %v2356, %v2499
          %v2506 = vadd.f32 %v2357, %v2500
          %v2507 = vadd.f32 %v2358, %v2501
          %v2508 = vadd.f32 %v2359, %v2502
          %v2509 = vadd.f32 %v2360, %v2503
          %v2510 = vadd.f32 %v2361, %v2504
          %s2511 = sld [smem:[#allocation4 + $0x63]]
          %v2512 = vstv %s2511
          %v2513 = vmul.f32 %v2460, %v2512
          %v2514 = vmul.f32 %v2462, %v2512
          %v2515 = vmul.f32 %v2464, %v2512
          %v2516 = vmul.f32 %v2466, %v2512
          %v2517 = vmul.f32 %v2468, %v2512
          %v2518 = vmul.f32 %v2470, %v2512
          %v2519 = vadd.f32 %v2370, %v2513
          %v2520 = vadd.f32 %v2371, %v2514
          %v2521 = vadd.f32 %v2372, %v2515
          %v2522 = vadd.f32 %v2373, %v2516
          %v2523 = vadd.f32 %v2374, %v2517
          %v2524 = vadd.f32 %v2375, %v2518
          %s2525 = sld [smem:[#allocation4 + $0x87]]
          %v2526 = vstv %s2525
          %v2527 = vmul.f32 %v2460, %v2526
          %v2528 = vmul.f32 %v2462, %v2526
          %v2529 = vmul.f32 %v2464, %v2526
          %v2530 = vmul.f32 %v2466, %v2526
          %v2531 = vmul.f32 %v2468, %v2526
          %v2532 = vmul.f32 %v2470, %v2526
          %v2533 = vadd.f32 %v2384, %v2527
          %v2534 = vadd.f32 %v2385, %v2528
          %v2535 = vadd.f32 %v2386, %v2529
          %v2536 = vadd.f32 %v2387, %v2530
          %v2537 = vadd.f32 %v2388, %v2531
          %v2538 = vadd.f32 %v2389, %v2532
          %s2539 = sld [smem:[#allocation4 + $0x1c]]
          %v2540 = vstv %s2539
          %v2541 = vmul.f32 %v2458, %v2540
          %v2542 = vmul.f32 %v2457, %v2540
          %v2543 = vmul.f32 %v2456, %v2540
          %v2544 = vmul.f32 %v2455, %v2540
          %v2545 = vmul.f32 %v2454, %v2540
          %v2546 = vmul.f32 %v2453, %v2540
          %v2547 = vadd.f32 %v2491, %v2541
          %v2548 = vadd.f32 %v2492, %v2542
          %v2549 = vadd.f32 %v2493, %v2543
          %v2550 = vadd.f32 %v2494, %v2544
          %v2551 = vadd.f32 %v2495, %v2545
          %v2552 = vadd.f32 %v2496, %v2546
          %s2553 = sld [smem:[#allocation4 + $0x40]]
          %v2554 = vstv %s2553
          %v2555 = vmul.f32 %v2458, %v2554
          %v2556 = vmul.f32 %v2457, %v2554
          %v2557 = vmul.f32 %v2456, %v2554
          %v2558 = vmul.f32 %v2455, %v2554
          %v2559 = vmul.f32 %v2454, %v2554
          %v2560 = vmul.f32 %v2453, %v2554
          %v2561 = vadd.f32 %v2505, %v2555
          %v2562 = vadd.f32 %v2506, %v2556
          %v2563 = vadd.f32 %v2507, %v2557
          %v2564 = vadd.f32 %v2508, %v2558
          %v2565 = vadd.f32 %v2509, %v2559
          %v2566 = vadd.f32 %v2510, %v2560
          %s2567 = sld [smem:[#allocation4 + $0x64]]
          %v2568 = vstv %s2567
          %v2569 = vmul.f32 %v2458, %v2568
          %v2570 = vmul.f32 %v2457, %v2568
          %v2571 = vmul.f32 %v2456, %v2568
          %v2572 = vmul.f32 %v2455, %v2568
          %v2573 = vmul.f32 %v2454, %v2568
          %v2574 = vmul.f32 %v2453, %v2568
          %v2575 = vadd.f32 %v2519, %v2569
          %v2576 = vadd.f32 %v2520, %v2570
          %v2577 = vadd.f32 %v2521, %v2571
          %v2578 = vadd.f32 %v2522, %v2572
          %v2579 = vadd.f32 %v2523, %v2573
          %v2580 = vadd.f32 %v2524, %v2574
          %s2581 = sld [smem:[#allocation4 + $0x88]]
          %v2582 = vstv %s2581
          %v2583 = vmul.f32 %v2458, %v2582
          %v2584 = vmul.f32 %v2457, %v2582
          %v2585 = vmul.f32 %v2456, %v2582
          %v2586 = vmul.f32 %v2455, %v2582
          %v2587 = vmul.f32 %v2454, %v2582
          %v2588 = vmul.f32 %v2453, %v2582
          %v2589 = vadd.f32 %v2533, %v2583
          %v2590 = vadd.f32 %v2534, %v2584
          %v2591 = vadd.f32 %v2535, %v2585
          %v2592 = vadd.f32 %v2536, %v2586
          %v2593 = vadd.f32 %v2537, %v2587
          %v2594 = vadd.f32 %v2538, %v2588
          %s2595 = sld [smem:[#allocation4 + $0x1d]]
          %v2596 = vstv %s2595
          %v2597 = vmul.f32 %v2472, %v2596
          %v2598 = vmul.f32 %v2474, %v2596
          %v2599 = vmul.f32 %v2476, %v2596
          %v2600 = vmul.f32 %v2478, %v2596
          %v2601 = vmul.f32 %v2480, %v2596
          %v2602 = vmul.f32 %v2482, %v2596
          %v2603 = vadd.f32 %v2547, %v2597
          %v2604 = vadd.f32 %v2548, %v2598
          %v2605 = vadd.f32 %v2549, %v2599
          %v2606 = vadd.f32 %v2550, %v2600
          %v2607 = vadd.f32 %v2551, %v2601
          %v2608 = vadd.f32 %v2552, %v2602
          %s2609 = sld [smem:[#allocation4 + $0x41]]
          %v2610 = vstv %s2609
          %v2611 = vmul.f32 %v2472, %v2610
          %v2612 = vmul.f32 %v2474, %v2610
          %v2613 = vmul.f32 %v2476, %v2610
          %v2614 = vmul.f32 %v2478, %v2610
          %v2615 = vmul.f32 %v2480, %v2610
          %v2616 = vmul.f32 %v2482, %v2610
          %v2617 = vadd.f32 %v2561, %v2611
          %v2618 = vadd.f32 %v2562, %v2612
          %v2619 = vadd.f32 %v2563, %v2613
          %v2620 = vadd.f32 %v2564, %v2614
          %v2621 = vadd.f32 %v2565, %v2615
          %v2622 = vadd.f32 %v2566, %v2616
          %s2623 = sld [smem:[#allocation4 + $0x65]]
          %v2624 = vstv %s2623
          %v2625 = vmul.f32 %v2472, %v2624
          %v2626 = vmul.f32 %v2474, %v2624
          %v2627 = vmul.f32 %v2476, %v2624
          %v2628 = vmul.f32 %v2478, %v2624
          %v2629 = vmul.f32 %v2480, %v2624
          %v2630 = vmul.f32 %v2482, %v2624
          %v2631 = vadd.f32 %v2575, %v2625
          %v2632 = vadd.f32 %v2576, %v2626
          %v2633 = vadd.f32 %v2577, %v2627
          %v2634 = vadd.f32 %v2578, %v2628
          %v2635 = vadd.f32 %v2579, %v2629
          %v2636 = vadd.f32 %v2580, %v2630
          %s2637 = sld [smem:[#allocation4 + $0x89]]
          %v2638 = vstv %s2637
          %v2639 = vmul.f32 %v2472, %v2638
          %v2640 = vmul.f32 %v2474, %v2638
          %v2641 = vmul.f32 %v2476, %v2638
          %v2642 = vmul.f32 %v2478, %v2638
          %v2643 = vmul.f32 %v2480, %v2638
          %v2644 = vmul.f32 %v2482, %v2638
          %v2645 = vadd.f32 %v2589, %v2639
          %v2646 = vadd.f32 %v2590, %v2640
          %v2647 = vadd.f32 %v2591, %v2641
          %v2648 = vadd.f32 %v2592, %v2642
          %v2649 = vadd.f32 %v2593, %v2643
          %v2650 = vadd.f32 %v2594, %v2644
          %2651 = vrot.lane.b32.xlu0 %v2441, 1
          %v2652 = vpop.permute.xlu0 %2651
          %2653 = vrot.lane.b32.xlu0 %v2442, 1
          %v2654 = vpop.permute.xlu0 %2653
          %2655 = vrot.lane.b32.xlu0 %v2443, 1
          %v2656 = vpop.permute.xlu0 %2655
          %2657 = vrot.lane.b32.xlu0 %v2444, 1
          %v2658 = vpop.permute.xlu0 %2657
          %2659 = vrot.lane.b32.xlu0 %v2445, 1
          %v2660 = vpop.permute.xlu0 %2659
          %2661 = vrot.lane.b32.xlu0 %v2446, 1
          %v2662 = vpop.permute.xlu0 %2661
          %2663 = vrot.lane.b32.xlu0 %v2441, 127
          %v2664 = vpop.permute.xlu0 %2663
          %2665 = vrot.lane.b32.xlu0 %v2442, 127
          %v2666 = vpop.permute.xlu0 %2665
          %2667 = vrot.lane.b32.xlu0 %v2443, 127
          %v2668 = vpop.permute.xlu0 %2667
          %2669 = vrot.lane.b32.xlu0 %v2444, 127
          %v2670 = vpop.permute.xlu0 %2669
          %2671 = vrot.lane.b32.xlu0 %v2445, 127
          %v2672 = vpop.permute.xlu0 %2671
          %2673 = vrot.lane.b32.xlu0 %v2446, 127
          %v2674 = vpop.permute.xlu0 %2673
          %s2675 = sld [smem:[#allocation4 + $0x1e]]
          %v2676 = vstv %s2675
          %v2677 = vmul.f32 %v2652, %v2676
          %v2678 = vmul.f32 %v2654, %v2676
          %v2679 = vmul.f32 %v2656, %v2676
          %v2680 = vmul.f32 %v2658, %v2676
          %v2681 = vmul.f32 %v2660, %v2676
          %v2682 = vmul.f32 %v2662, %v2676
          %v2683 = vadd.f32 %v2603, %v2677
          %v2684 = vadd.f32 %v2604, %v2678
          %v2685 = vadd.f32 %v2605, %v2679
          %v2686 = vadd.f32 %v2606, %v2680
          %v2687 = vadd.f32 %v2607, %v2681
          %v2688 = vadd.f32 %v2608, %v2682
          %s2689 = sld [smem:[#allocation4 + $0x42]]
          %v2690 = vstv %s2689
          %v2691 = vmul.f32 %v2652, %v2690
          %v2692 = vmul.f32 %v2654, %v2690
          %v2693 = vmul.f32 %v2656, %v2690
          %v2694 = vmul.f32 %v2658, %v2690
          %v2695 = vmul.f32 %v2660, %v2690
          %v2696 = vmul.f32 %v2662, %v2690
          %v2697 = vadd.f32 %v2617, %v2691
          %v2698 = vadd.f32 %v2618, %v2692
          %v2699 = vadd.f32 %v2619, %v2693
          %v2700 = vadd.f32 %v2620, %v2694
          %v2701 = vadd.f32 %v2621, %v2695
          %v2702 = vadd.f32 %v2622, %v2696
          %s2703 = sld [smem:[#allocation4 + $0x66]]
          %v2704 = vstv %s2703
          %v2705 = vmul.f32 %v2652, %v2704
          %v2706 = vmul.f32 %v2654, %v2704
          %v2707 = vmul.f32 %v2656, %v2704
          %v2708 = vmul.f32 %v2658, %v2704
          %v2709 = vmul.f32 %v2660, %v2704
          %v2710 = vmul.f32 %v2662, %v2704
          %v2711 = vadd.f32 %v2631, %v2705
          %v2712 = vadd.f32 %v2632, %v2706
          %v2713 = vadd.f32 %v2633, %v2707
          %v2714 = vadd.f32 %v2634, %v2708
          %v2715 = vadd.f32 %v2635, %v2709
          %v2716 = vadd.f32 %v2636, %v2710
          %s2717 = sld [smem:[#allocation4 + $0x8a]]
          %v2718 = vstv %s2717
          %v2719 = vmul.f32 %v2652, %v2718
          %v2720 = vmul.f32 %v2654, %v2718
          %v2721 = vmul.f32 %v2656, %v2718
          %v2722 = vmul.f32 %v2658, %v2718
          %v2723 = vmul.f32 %v2660, %v2718
          %v2724 = vmul.f32 %v2662, %v2718
          %v2725 = vadd.f32 %v2645, %v2719
          %v2726 = vadd.f32 %v2646, %v2720
          %v2727 = vadd.f32 %v2647, %v2721
          %v2728 = vadd.f32 %v2648, %v2722
          %v2729 = vadd.f32 %v2649, %v2723
          %v2730 = vadd.f32 %v2650, %v2724
          %s2731 = sld [smem:[#allocation4 + $0x1f]]
          %v2732 = vstv %s2731
          %v2733 = vmul.f32 %v2441, %v2732
          %v2734 = vmul.f32 %v2442, %v2732
          %v2735 = vmul.f32 %v2443, %v2732
          %v2736 = vmul.f32 %v2444, %v2732
          %v2737 = vmul.f32 %v2445, %v2732
          %v2738 = vmul.f32 %v2446, %v2732
          %v2739 = vadd.f32 %v2683, %v2733
          %v2740 = vadd.f32 %v2684, %v2734
          %v2741 = vadd.f32 %v2685, %v2735
          %v2742 = vadd.f32 %v2686, %v2736
          %v2743 = vadd.f32 %v2687, %v2737
          %v2744 = vadd.f32 %v2688, %v2738
          %s2745 = sld [smem:[#allocation4 + $0x43]]
          %v2746 = vstv %s2745
          %v2747 = vmul.f32 %v2441, %v2746
          %v2748 = vmul.f32 %v2442, %v2746
          %v2749 = vmul.f32 %v2443, %v2746
          %v2750 = vmul.f32 %v2444, %v2746
          %v2751 = vmul.f32 %v2445, %v2746
          %v2752 = vmul.f32 %v2446, %v2746
          %v2753 = vadd.f32 %v2697, %v2747
          %v2754 = vadd.f32 %v2698, %v2748
          %v2755 = vadd.f32 %v2699, %v2749
          %v2756 = vadd.f32 %v2700, %v2750
          %v2757 = vadd.f32 %v2701, %v2751
          %v2758 = vadd.f32 %v2702, %v2752
          %s2759 = sld [smem:[#allocation4 + $0x67]]
          %v2760 = vstv %s2759
          %v2761 = vmul.f32 %v2441, %v2760
          %v2762 = vmul.f32 %v2442, %v2760
          %v2763 = vmul.f32 %v2443, %v2760
          %v2764 = vmul.f32 %v2444, %v2760
          %v2765 = vmul.f32 %v2445, %v2760
          %v2766 = vmul.f32 %v2446, %v2760
          %v2767 = vadd.f32 %v2711, %v2761
          %v2768 = vadd.f32 %v2712, %v2762
          %v2769 = vadd.f32 %v2713, %v2763
          %v2770 = vadd.f32 %v2714, %v2764
          %v2771 = vadd.f32 %v2715, %v2765
          %v2772 = vadd.f32 %v2716, %v2766
          %s2773 = sld [smem:[#allocation4 + $0x8b]]
          %v2774 = vstv %s2773
          %v2775 = vmul.f32 %v2441, %v2774
          %v2776 = vmul.f32 %v2442, %v2774
          %v2777 = vmul.f32 %v2443, %v2774
          %v2778 = vmul.f32 %v2444, %v2774
          %v2779 = vmul.f32 %v2445, %v2774
          %v2780 = vmul.f32 %v2446, %v2774
          %v2781 = vadd.f32 %v2725, %v2775
          %v2782 = vadd.f32 %v2726, %v2776
          %v2783 = vadd.f32 %v2727, %v2777
          %v2784 = vadd.f32 %v2728, %v2778
          %v2785 = vadd.f32 %v2729, %v2779
          %v2786 = vadd.f32 %v2730, %v2780
          %s2787 = sld [smem:[#allocation4 + $0x20]]
          %v2788 = vstv %s2787
          %v2789 = vmul.f32 %v2664, %v2788
          %v2790 = vmul.f32 %v2666, %v2788
          %v2791 = vmul.f32 %v2668, %v2788
          %v2792 = vmul.f32 %v2670, %v2788
          %v2793 = vmul.f32 %v2672, %v2788
          %v2794 = vmul.f32 %v2674, %v2788
          %v2795 = vadd.f32 %v2739, %v2789
          %v2796 = vadd.f32 %v2740, %v2790
          %v2797 = vadd.f32 %v2741, %v2791
          %v2798 = vadd.f32 %v2742, %v2792
          %v2799 = vadd.f32 %v2743, %v2793
          %v2800 = vadd.f32 %v2744, %v2794
          %s2801 = sld [smem:[#allocation4 + $0x44]]
          %v2802 = vstv %s2801
          %v2803 = vmul.f32 %v2664, %v2802
          %v2804 = vmul.f32 %v2666, %v2802
          %v2805 = vmul.f32 %v2668, %v2802
          %v2806 = vmul.f32 %v2670, %v2802
          %v2807 = vmul.f32 %v2672, %v2802
          %v2808 = vmul.f32 %v2674, %v2802
          %v2809 = vadd.f32 %v2753, %v2803
          %v2810 = vadd.f32 %v2754, %v2804
          %v2811 = vadd.f32 %v2755, %v2805
          %v2812 = vadd.f32 %v2756, %v2806
          %v2813 = vadd.f32 %v2757, %v2807
          %v2814 = vadd.f32 %v2758, %v2808
          %s2815 = sld [smem:[#allocation4 + $0x68]]
          %v2816 = vstv %s2815
          %v2817 = vmul.f32 %v2664, %v2816
          %v2818 = vmul.f32 %v2666, %v2816
          %v2819 = vmul.f32 %v2668, %v2816
          %v2820 = vmul.f32 %v2670, %v2816
          %v2821 = vmul.f32 %v2672, %v2816
          %v2822 = vmul.f32 %v2674, %v2816
          %v2823 = vadd.f32 %v2767, %v2817
          %v2824 = vadd.f32 %v2768, %v2818
          %v2825 = vadd.f32 %v2769, %v2819
          %v2826 = vadd.f32 %v2770, %v2820
          %v2827 = vadd.f32 %v2771, %v2821
          %v2828 = vadd.f32 %v2772, %v2822
          %s2829 = sld [smem:[#allocation4 + $0x8c]]
          %v2830 = vstv %s2829
          %v2831 = vmul.f32 %v2664, %v2830
          %v2832 = vmul.f32 %v2666, %v2830
          %v2833 = vmul.f32 %v2668, %v2830
          %v2834 = vmul.f32 %v2670, %v2830
          %v2835 = vmul.f32 %v2672, %v2830
          %v2836 = vmul.f32 %v2674, %v2830
          %v2837 = vadd.f32 %v2781, %v2831
          %v2838 = vadd.f32 %v2782, %v2832
          %v2839 = vadd.f32 %v2783, %v2833
          %v2840 = vadd.f32 %v2784, %v2834
          %v2841 = vadd.f32 %v2785, %v2835
          %v2842 = vadd.f32 %v2786, %v2836
          %v2843 = vrot.slane %v2441, 1
          %v2844 = vrot.slane %v2442, 1
          %v2845 = vrot.slane %v2443, 1
          %v2846 = vrot.slane %v2444, 1
          %v2847 = vrot.slane %v2445, 1
          %v2848 = vrot.slane %v2446, 1
          %v2849 = vsel %vm877, %v2847, %v2848
          %v2850 = vsel %vm877, %v2846, %v2847
          %v2851 = vsel %vm877, %v2845, %v2846
          %v2852 = vsel %vm877, %v2844, %v2845
          %v2853 = vsel %vm877, %v2843, %v2844
          %v2854 = vsel %vm877, %v2848, %v2843
          %2855 = vrot.lane.b32.xlu0 %v2853, 1
          %v2856 = vpop.permute.xlu0 %2855
          %2857 = vrot.lane.b32.xlu0 %v2852, 1
          %v2858 = vpop.permute.xlu0 %2857
          %2859 = vrot.lane.b32.xlu0 %v2851, 1
          %v2860 = vpop.permute.xlu0 %2859
          %2861 = vrot.lane.b32.xlu0 %v2850, 1
          %v2862 = vpop.permute.xlu0 %2861
          %2863 = vrot.lane.b32.xlu0 %v2849, 1
          %v2864 = vpop.permute.xlu0 %2863
          %2865 = vrot.lane.b32.xlu0 %v2854, 1
          %v2866 = vpop.permute.xlu0 %2865
          %2867 = vrot.lane.b32.xlu0 %v2853, 127
          %v2868 = vpop.permute.xlu0 %2867
          %2869 = vrot.lane.b32.xlu0 %v2852, 127
          %v2870 = vpop.permute.xlu0 %2869
          %2871 = vrot.lane.b32.xlu0 %v2851, 127
          %v2872 = vpop.permute.xlu0 %2871
          %2873 = vrot.lane.b32.xlu0 %v2850, 127
          %v2874 = vpop.permute.xlu0 %2873
          %2875 = vrot.lane.b32.xlu0 %v2849, 127
          %v2876 = vpop.permute.xlu0 %2875
          %2877 = vrot.lane.b32.xlu0 %v2854, 127
          %v2878 = vpop.permute.xlu0 %2877
          %s2879 = sld [smem:[#allocation4 + $0x21]]
          %v2880 = vstv %s2879
          %v2881 = vmul.f32 %v2856, %v2880
          %v2882 = vmul.f32 %v2858, %v2880
          %v2883 = vmul.f32 %v2860, %v2880
          %v2884 = vmul.f32 %v2862, %v2880
          %v2885 = vmul.f32 %v2864, %v2880
          %v2886 = vmul.f32 %v2866, %v2880
          %v2887 = vadd.f32 %v2795, %v2881
          %v2888 = vadd.f32 %v2796, %v2882
          %v2889 = vadd.f32 %v2797, %v2883
          %v2890 = vadd.f32 %v2798, %v2884
          %v2891 = vadd.f32 %v2799, %v2885
          %v2892 = vadd.f32 %v2800, %v2886
          %s2893 = sld [smem:[#allocation4 + $0x45]]
          %v2894 = vstv %s2893
          %v2895 = vmul.f32 %v2856, %v2894
          %v2896 = vmul.f32 %v2858, %v2894
          %v2897 = vmul.f32 %v2860, %v2894
          %v2898 = vmul.f32 %v2862, %v2894
          %v2899 = vmul.f32 %v2864, %v2894
          %v2900 = vmul.f32 %v2866, %v2894
          %v2901 = vadd.f32 %v2809, %v2895
          %v2902 = vadd.f32 %v2810, %v2896
          %v2903 = vadd.f32 %v2811, %v2897
          %v2904 = vadd.f32 %v2812, %v2898
          %v2905 = vadd.f32 %v2813, %v2899
          %v2906 = vadd.f32 %v2814, %v2900
          %s2907 = sld [smem:[#allocation4 + $0x69]]
          %v2908 = vstv %s2907
          %v2909 = vmul.f32 %v2856, %v2908
          %v2910 = vmul.f32 %v2858, %v2908
          %v2911 = vmul.f32 %v2860, %v2908
          %v2912 = vmul.f32 %v2862, %v2908
          %v2913 = vmul.f32 %v2864, %v2908
          %v2914 = vmul.f32 %v2866, %v2908
          %v2915 = vadd.f32 %v2823, %v2909
          %v2916 = vadd.f32 %v2824, %v2910
          %v2917 = vadd.f32 %v2825, %v2911
          %v2918 = vadd.f32 %v2826, %v2912
          %v2919 = vadd.f32 %v2827, %v2913
          %v2920 = vadd.f32 %v2828, %v2914
          %s2921 = sld [smem:[#allocation4 + $0x8d]]
          %v2922 = vstv %s2921
          %v2923 = vmul.f32 %v2856, %v2922
          %v2924 = vmul.f32 %v2858, %v2922
          %v2925 = vmul.f32 %v2860, %v2922
          %v2926 = vmul.f32 %v2862, %v2922
          %v2927 = vmul.f32 %v2864, %v2922
          %v2928 = vmul.f32 %v2866, %v2922
          %v2929 = vadd.f32 %v2837, %v2923
          %v2930 = vadd.f32 %v2838, %v2924
          %v2931 = vadd.f32 %v2839, %v2925
          %v2932 = vadd.f32 %v2840, %v2926
          %v2933 = vadd.f32 %v2841, %v2927
          %v2934 = vadd.f32 %v2842, %v2928
          %s2935 = sld [smem:[#allocation4 + $0x22]]
          %v2936 = vstv %s2935
          %v2937 = vmul.f32 %v2853, %v2936
          %v2938 = vmul.f32 %v2852, %v2936
          %v2939 = vmul.f32 %v2851, %v2936
          %v2940 = vmul.f32 %v2850, %v2936
          %v2941 = vmul.f32 %v2849, %v2936
          %v2942 = vmul.f32 %v2854, %v2936
          %v2943 = vadd.f32 %v2887, %v2937
          %v2944 = vadd.f32 %v2888, %v2938
          %v2945 = vadd.f32 %v2889, %v2939
          %v2946 = vadd.f32 %v2890, %v2940
          %v2947 = vadd.f32 %v2891, %v2941
          %v2948 = vadd.f32 %v2892, %v2942
          %s2949 = sld [smem:[#allocation4 + $0x46]]
          %v2950 = vstv %s2949
          %v2951 = vmul.f32 %v2853, %v2950
          %v2952 = vmul.f32 %v2852, %v2950
          %v2953 = vmul.f32 %v2851, %v2950
          %v2954 = vmul.f32 %v2850, %v2950
          %v2955 = vmul.f32 %v2849, %v2950
          %v2956 = vmul.f32 %v2854, %v2950
          %v2957 = vadd.f32 %v2901, %v2951
          %v2958 = vadd.f32 %v2902, %v2952
          %v2959 = vadd.f32 %v2903, %v2953
          %v2960 = vadd.f32 %v2904, %v2954
          %v2961 = vadd.f32 %v2905, %v2955
          %v2962 = vadd.f32 %v2906, %v2956
          %s2963 = sld [smem:[#allocation4 + $0x6a]]
          %v2964 = vstv %s2963
          %v2965 = vmul.f32 %v2853, %v2964
          %v2966 = vmul.f32 %v2852, %v2964
          %v2967 = vmul.f32 %v2851, %v2964
          %v2968 = vmul.f32 %v2850, %v2964
          %v2969 = vmul.f32 %v2849, %v2964
          %v2970 = vmul.f32 %v2854, %v2964
          %v2971 = vadd.f32 %v2915, %v2965
          %v2972 = vadd.f32 %v2916, %v2966
          %v2973 = vadd.f32 %v2917, %v2967
          %v2974 = vadd.f32 %v2918, %v2968
          %v2975 = vadd.f32 %v2919, %v2969
          %v2976 = vadd.f32 %v2920, %v2970
          %s2977 = sld [smem:[#allocation4 + $0x8e]]
          %v2978 = vstv %s2977
          %v2979 = vmul.f32 %v2853, %v2978
          %v2980 = vmul.f32 %v2852, %v2978
          %v2981 = vmul.f32 %v2851, %v2978
          %v2982 = vmul.f32 %v2850, %v2978
          %v2983 = vmul.f32 %v2849, %v2978
          %v2984 = vmul.f32 %v2854, %v2978
          %v2985 = vadd.f32 %v2929, %v2979
          %v2986 = vadd.f32 %v2930, %v2980
          %v2987 = vadd.f32 %v2931, %v2981
          %v2988 = vadd.f32 %v2932, %v2982
          %v2989 = vadd.f32 %v2933, %v2983
          %v2990 = vadd.f32 %v2934, %v2984
          %s2991 = sld [smem:[#allocation4 + $0x23]]
          %v2992 = vstv %s2991
          %v2993 = vmul.f32 %v2868, %v2992
          %v2994 = vmul.f32 %v2870, %v2992
          %v2995 = vmul.f32 %v2872, %v2992
          %v2996 = vmul.f32 %v2874, %v2992
          %v2997 = vmul.f32 %v2876, %v2992
          %v2998 = vmul.f32 %v2878, %v2992
          %v2999 = vadd.f32 %v2943, %v2993
          %v3000 = vadd.f32 %v2944, %v2994
          %v3001 = vadd.f32 %v2945, %v2995
          %v3002 = vadd.f32 %v2946, %v2996
          %v3003 = vadd.f32 %v2947, %v2997
          %v3004 = vadd.f32 %v2948, %v2998
          %s3005 = sld [smem:[#allocation4 + $0x47]]
          %v3006 = vstv %s3005
          %v3007 = vmul.f32 %v2868, %v3006
          %v3008 = vmul.f32 %v2870, %v3006
          %v3009 = vmul.f32 %v2872, %v3006
          %v3010 = vmul.f32 %v2874, %v3006
          %v3011 = vmul.f32 %v2876, %v3006
          %v3012 = vmul.f32 %v2878, %v3006
          %v3013 = vadd.f32 %v2957, %v3007
          %v3014 = vadd.f32 %v2958, %v3008
          %v3015 = vadd.f32 %v2959, %v3009
          %v3016 = vadd.f32 %v2960, %v3010
          %v3017 = vadd.f32 %v2961, %v3011
          %v3018 = vadd.f32 %v2962, %v3012
          %s3019 = sld [smem:[#allocation4 + $0x6b]]
          %v3020 = vstv %s3019
          %v3021 = vmul.f32 %v2868, %v3020
          %v3022 = vmul.f32 %v2870, %v3020
          %v3023 = vmul.f32 %v2872, %v3020
          %v3024 = vmul.f32 %v2874, %v3020
          %v3025 = vmul.f32 %v2876, %v3020
          %v3026 = vmul.f32 %v2878, %v3020
          %v3027 = vadd.f32 %v2971, %v3021
          %v3028 = vadd.f32 %v2972, %v3022
          %v3029 = vadd.f32 %v2973, %v3023
          %v3030 = vadd.f32 %v2974, %v3024
          %v3031 = vadd.f32 %v2975, %v3025
          %v3032 = vadd.f32 %v2976, %v3026
          %s3033 = sld [smem:[#allocation4 + $0x8f]]
          %v3034 = vstv %s3033
          %v3035 = vmul.f32 %v2868, %v3034
          %v3036 = vmul.f32 %v2870, %v3034
          %v3037 = vmul.f32 %v2872, %v3034
          %v3038 = vmul.f32 %v2874, %v3034
          %v3039 = vmul.f32 %v2876, %v3034
          %v3040 = vmul.f32 %v2878, %v3034
          %v3041 = vadd.f32 %v2985, %v3035
          %v3042 = vadd.f32 %v2986, %v3036
          %v3043 = vadd.f32 %v2987, %v3037
          %v3044 = vadd.f32 %v2988, %v3038
          %v3045 = vadd.f32 %v2989, %v3039
          %v3046 = vadd.f32 %v2990, %v3040
          %v3047 = vmul.f32 %v2999, %v344
          %v3048 = vmul.f32 %v3000, %v345
          %v3049 = vmul.f32 %v3001, %v346
          %v3050 = vmul.f32 %v3002, %v347
          %v3051 = vmul.f32 %v3003, %v348
          %v3052 = vmul.f32 %v3004, %v349
          %v3053 = vmul.f32 %v3047, %v2999
          %v3054 = vmul.f32 %v3048, %v3000
          %v3055 = vmul.f32 %v3049, %v3001
          %v3056 = vmul.f32 %v3050, %v3002
          %v3057 = vmul.f32 %v3051, %v3003
          %v3058 = vmul.f32 %v3052, %v3004
          %v3059 = vmul.f32 %v3013, %v344
          %v3060 = vmul.f32 %v3014, %v345
          %v3061 = vmul.f32 %v3015, %v346
          %v3062 = vmul.f32 %v3016, %v347
          %v3063 = vmul.f32 %v3017, %v348
          %v3064 = vmul.f32 %v3018, %v349
          %v3065 = vadd.f32 %v3047, %v3059
          %v3066 = vadd.f32 %v3048, %v3060
          %v3067 = vadd.f32 %v3049, %v3061
          %v3068 = vadd.f32 %v3050, %v3062
          %v3069 = vadd.f32 %v3051, %v3063
          %v3070 = vadd.f32 %v3052, %v3064
          %v3071 = vmul.f32 %v3059, %v3013
          %v3072 = vmul.f32 %v3060, %v3014
          %v3073 = vmul.f32 %v3061, %v3015
          %v3074 = vmul.f32 %v3062, %v3016
          %v3075 = vmul.f32 %v3063, %v3017
          %v3076 = vmul.f32 %v3064, %v3018
          %v3077 = vadd.f32 %v3053, %v3071
          %v3078 = vadd.f32 %v3054, %v3072
          %v3079 = vadd.f32 %v3055, %v3073
          %v3080 = vadd.f32 %v3056, %v3074
          %v3081 = vadd.f32 %v3057, %v3075
          %v3082 = vadd.f32 %v3058, %v3076
          %v3083 = vmul.f32 %v3027, %v344
          %v3084 = vmul.f32 %v3028, %v345
          %v3085 = vmul.f32 %v3029, %v346
          %v3086 = vmul.f32 %v3030, %v347
          %v3087 = vmul.f32 %v3031, %v348
          %v3088 = vmul.f32 %v3032, %v349
          %v3089 = vadd.f32 %v3065, %v3083
          %v3090 = vadd.f32 %v3066, %v3084
          %v3091 = vadd.f32 %v3067, %v3085
          %v3092 = vadd.f32 %v3068, %v3086
          %v3093 = vadd.f32 %v3069, %v3087
          %v3094 = vadd.f32 %v3070, %v3088
          %v3095 = vmul.f32 %v3083, %v3027
          %v3096 = vmul.f32 %v3084, %v3028
          %v3097 = vmul.f32 %v3085, %v3029
          %v3098 = vmul.f32 %v3086, %v3030
          %v3099 = vmul.f32 %v3087, %v3031
          %v3100 = vmul.f32 %v3088, %v3032
          %v3101 = vadd.f32 %v3077, %v3095
          %v3102 = vadd.f32 %v3078, %v3096
          %v3103 = vadd.f32 %v3079, %v3097
          %v3104 = vadd.f32 %v3080, %v3098
          %v3105 = vadd.f32 %v3081, %v3099
          %v3106 = vadd.f32 %v3082, %v3100
          %v3107 = vmul.f32 %v3041, %v344
          %v3108 = vmul.f32 %v3042, %v345
          %v3109 = vmul.f32 %v3043, %v346
          %v3110 = vmul.f32 %v3044, %v347
          %v3111 = vmul.f32 %v3045, %v348
          %v3112 = vmul.f32 %v3046, %v349
          %v3113 = vadd.f32 %v3089, %v3107
          %v3114 = vadd.f32 %v3090, %v3108
          %v3115 = vadd.f32 %v3091, %v3109
          %v3116 = vadd.f32 %v3092, %v3110
          %v3117 = vadd.f32 %v3093, %v3111
          %v3118 = vadd.f32 %v3094, %v3112
          %v3119 = vmul.f32 %v3107, %v3041
          %v3120 = vmul.f32 %v3108, %v3042
          %v3121 = vmul.f32 %v3109, %v3043
          %v3122 = vmul.f32 %v3110, %v3044
          %v3123 = vmul.f32 %v3111, %v3045
          %v3124 = vmul.f32 %v3112, %v3046
          %v3125 = vadd.f32 %v3101, %v3119
          %v3126 = vadd.f32 %v3102, %v3120
          %v3127 = vadd.f32 %v3103, %v3121
          %v3128 = vadd.f32 %v3104, %v3122
          %v3129 = vadd.f32 %v3105, %v3123
          %v3130 = vadd.f32 %v3106, %v3124
          %v3131 = vadd.f32 %v3113, %v3114
          %v3132 = vadd.f32 %v3131, %v3115
          %v3133 = vadd.f32 %v3132, %v3116
          %v3134 = vadd.f32 %v3133, %v3117
          %v3135 = vadd.f32 %v3134, %v3118
          %3136 = vadd.xlane.f32.xlu0 %v3135
          %v3137 = vpop.xlane.xlu0 %3136
          %v3138 = vrot.slane %v3137, 4
          %v3139 = vadd.f32 %v3137, %v3138
          %v3140 = vrot.slane %v3139, 2
          %v3141 = vadd.f32 %v3139, %v3140
          %v3142 = vrot.slane %v3141, 1
          %v3143 = vadd.f32 %v3141, %v3142
          %s3144 = vtos %v3143
          %s3145 = smul.f32 %s3144, 0.00012345679
          %v3146 = vadd.f32 %v3125, %v3126
          %v3147 = vadd.f32 %v3146, %v3127
          %v3148 = vadd.f32 %v3147, %v3128
          %v3149 = vadd.f32 %v3148, %v3129
          %v3150 = vadd.f32 %v3149, %v3130
          %3151 = vadd.xlane.f32.xlu0 %v3150
          %v3152 = vpop.xlane.xlu0 %3151
          %v3153 = vrot.slane %v3152, 4
          %v3154 = vadd.f32 %v3152, %v3153
          %v3155 = vrot.slane %v3154, 2
          %v3156 = vadd.f32 %v3154, %v3155
          %v3157 = vrot.slane %v3156, 1
          %v3158 = vadd.f32 %v3156, %v3157
          %s3159 = vtos %v3158
          %s3160 = smul.f32 %s3159, 0.00012345679
          %s3161 = smul.f32 %s3145, %s3145
          %s3162 = ssub.f32 %s3160, %s3161
          %s3163 = sadd.f32 %s3162, 1e-05
          %v3164 = vstv %s3163
          %v3165 = vrsqrt.pop %v3164
          %s3166 = vtos %v3165
          %s3167 = smul.f32 %s3166, %s350
          %v3168 = vstv %s3167
          %v3169 = vmul.f32 %v2999, %v3168
          %v3170 = vmul.f32 %v3000, %v3168
          %v3171 = vmul.f32 %v3001, %v3168
          %v3172 = vmul.f32 %v3002, %v3168
          %v3173 = vmul.f32 %v3003, %v3168
          %v3174 = vmul.f32 %v3004, %v3168
          %s3175 = smul.f32 %s3145, %s3167
          %s3176 = ssub.f32 %s354, %s3175
          %v3177 = vstv %s3176
          %v3178 = vadd.f32 %v3169, %v3177
          %v3179 = vadd.f32 %v3170, %v3177
          %v3180 = vadd.f32 %v3171, %v3177
          %v3181 = vadd.f32 %v3172, %v3177
          %v3182 = vadd.f32 %v3173, %v3177
          %v3183 = vadd.f32 %v3174, %v3177
          %v3184 = vxor.u32 %v3178, 2147483648
          %v3185 = vxor.u32 %v3179, 2147483648
          %v3186 = vxor.u32 %v3180, 2147483648
          %v3187 = vxor.u32 %v3181, 2147483648
          %v3188 = vxor.u32 %v3182, 2147483648
          %v3189 = vxor.u32 %v3183, 2147483648
          %v3190 = vmul.f32 %v3184, 1.442695
          %v3191 = vpow.pop %v3190
          %v3192 = vmul.f32 %v3185, 1.442695
          %v3193 = vpow.pop %v3192
          %v3194 = vmul.f32 %v3186, 1.442695
          %v3195 = vpow.pop %v3194
          %v3196 = vmul.f32 %v3187, 1.442695
          %v3197 = vpow.pop %v3196
          %v3198 = vmul.f32 %v3188, 1.442695
          %v3199 = vpow.pop %v3198
          %v3200 = vmul.f32 %v3189, 1.442695
          %v3201 = vpow.pop %v3200
          %v3202 = vadd.f32 %v3191, 1.0
          %v3203 = vadd.f32 %v3193, 1.0
          %v3204 = vadd.f32 %v3195, 1.0
          %v3205 = vadd.f32 %v3197, 1.0
          %v3206 = vadd.f32 %v3199, 1.0
          %v3207 = vadd.f32 %v3201, 1.0
          %v3208 = vrcp.pop %v3202
          %v3209 = vmul.f32 1.0, %v3208
          %v3210 = vrcp.pop %v3203
          %v3211 = vmul.f32 1.0, %v3210
          %v3212 = vrcp.pop %v3204
          %v3213 = vmul.f32 1.0, %v3212
          %v3214 = vrcp.pop %v3205
          %v3215 = vmul.f32 1.0, %v3214
          %v3216 = vrcp.pop %v3206
          %v3217 = vmul.f32 1.0, %v3216
          %v3218 = vrcp.pop %v3207
          %v3219 = vmul.f32 1.0, %v3218
          %v3220 = vmul.f32 %v3178, %v3209
          %v3221 = vmul.f32 %v3179, %v3211
          %v3222 = vmul.f32 %v3180, %v3213
          %v3223 = vmul.f32 %v3181, %v3215
          %v3224 = vmul.f32 %v3182, %v3217
          %v3225 = vmul.f32 %v3183, %v3219
          %v3226 = vmul.f32 %v3220, %v344
          %v3227 = vmul.f32 %v3221, %v345
          %v3228 = vmul.f32 %v3222, %v346
          %v3229 = vmul.f32 %v3223, %v347
          %v3230 = vmul.f32 %v3224, %v348
          %v3231 = vmul.f32 %v3225, %v349
          %v3232 = vrot.slane %v3226, 7
          %v3233 = vrot.slane %v3227, 7
          %v3234 = vrot.slane %v3228, 7
          %v3235 = vrot.slane %v3229, 7
          %v3236 = vrot.slane %v3230, 7
          %v3237 = vrot.slane %v3231, 7
          %v3238 = vsel %vm480, %v3236, %v3237
          %v3239 = vsel %vm480, %v3235, %v3236
          %v3240 = vsel %vm480, %v3234, %v3235
          %v3241 = vsel %vm480, %v3233, %v3234
          %v3242 = vsel %vm480, %v3232, %v3233
          %v3243 = vsel %vm480, %v3237, %v3232
          %3244 = vrot.lane.b32.xlu0 %v3243, 1
          %v3245 = vpop.permute.xlu0 %3244
          %3246 = vrot.lane.b32.xlu0 %v3242, 1
          %v3247 = vpop.permute.xlu0 %3246
          %3248 = vrot.lane.b32.xlu0 %v3241, 1
          %v3249 = vpop.permute.xlu0 %3248
          %3250 = vrot.lane.b32.xlu0 %v3240, 1
          %v3251 = vpop.permute.xlu0 %3250
          %3252 = vrot.lane.b32.xlu0 %v3239, 1
          %v3253 = vpop.permute.xlu0 %3252
          %3254 = vrot.lane.b32.xlu0 %v3238, 1
          %v3255 = vpop.permute.xlu0 %3254
          %3256 = vrot.lane.b32.xlu0 %v3243, 127
          %v3257 = vpop.permute.xlu0 %3256
          %3258 = vrot.lane.b32.xlu0 %v3242, 127
          %v3259 = vpop.permute.xlu0 %3258
          %3260 = vrot.lane.b32.xlu0 %v3241, 127
          %v3261 = vpop.permute.xlu0 %3260
          %3262 = vrot.lane.b32.xlu0 %v3240, 127
          %v3263 = vpop.permute.xlu0 %3262
          %3264 = vrot.lane.b32.xlu0 %v3239, 127
          %v3265 = vpop.permute.xlu0 %3264
          %3266 = vrot.lane.b32.xlu0 %v3238, 127
          %v3267 = vpop.permute.xlu0 %3266
          %s3268 = sld [smem:[#allocation9]]
          %v3269 = vstv %s3268
          %v3270 = vmul.f32 %v3245, %v3269
          %v3271 = vmul.f32 %v3247, %v3269
          %v3272 = vmul.f32 %v3249, %v3269
          %v3273 = vmul.f32 %v3251, %v3269
          %v3274 = vmul.f32 %v3253, %v3269
          %v3275 = vmul.f32 %v3255, %v3269
          %v3276 = vsub.f32 %v391, %v3270
          %v3277 = vsub.f32 %v392, %v3271
          %v3278 = vsub.f32 %v393, %v3272
          %v3279 = vsub.f32 %v394, %v3273
          %v3280 = vsub.f32 %v395, %v3274
          %v3281 = vsub.f32 %v396, %v3275
          %s3282 = sld [smem:[#allocation9 + $0x24]]
          %v3283 = vstv %s3282
          %v3284 = vmul.f32 %v3245, %v3283
          %v3285 = vmul.f32 %v3247, %v3283
          %v3286 = vmul.f32 %v3249, %v3283
          %v3287 = vmul.f32 %v3251, %v3283
          %v3288 = vmul.f32 %v3253, %v3283
          %v3289 = vmul.f32 %v3255, %v3283
          %v3290 = vsub.f32 %v397, %v3284
          %v3291 = vsub.f32 %v398, %v3285
          %v3292 = vsub.f32 %v399, %v3286
          %v3293 = vsub.f32 %v400, %v3287
          %v3294 = vsub.f32 %v401, %v3288
          %v3295 = vsub.f32 %v402, %v3289
          %s3296 = sld [smem:[#allocation9 + $0x48]]
          %v3297 = vstv %s3296
          %v3298 = vmul.f32 %v3245, %v3297
          %v3299 = vmul.f32 %v3247, %v3297
          %v3300 = vmul.f32 %v3249, %v3297
          %v3301 = vmul.f32 %v3251, %v3297
          %v3302 = vmul.f32 %v3253, %v3297
          %v3303 = vmul.f32 %v3255, %v3297
          %v3304 = vsub.f32 %v403, %v3298
          %v3305 = vsub.f32 %v404, %v3299
          %v3306 = vsub.f32 %v405, %v3300
          %v3307 = vsub.f32 %v406, %v3301
          %v3308 = vsub.f32 %v407, %v3302
          %v3309 = vsub.f32 %v408, %v3303
          %s3310 = sld [smem:[#allocation9 + $0x6c]]
          %v3311 = vstv %s3310
          %v3312 = vmul.f32 %v3245, %v3311
          %v3313 = vmul.f32 %v3247, %v3311
          %v3314 = vmul.f32 %v3249, %v3311
          %v3315 = vmul.f32 %v3251, %v3311
          %v3316 = vmul.f32 %v3253, %v3311
          %v3317 = vmul.f32 %v3255, %v3311
          %v3318 = vsub.f32 %v409, %v3312
          %v3319 = vsub.f32 %v410, %v3313
          %v3320 = vsub.f32 %v411, %v3314
          %v3321 = vsub.f32 %v412, %v3315
          %v3322 = vsub.f32 %v413, %v3316
          %v3323 = vsub.f32 %v414, %v3317
          %s3324 = sld [smem:[#allocation9 + $0x1]]
          %v3325 = vstv %s3324
          %v3326 = vmul.f32 %v3243, %v3325
          %v3327 = vmul.f32 %v3242, %v3325
          %v3328 = vmul.f32 %v3241, %v3325
          %v3329 = vmul.f32 %v3240, %v3325
          %v3330 = vmul.f32 %v3239, %v3325
          %v3331 = vmul.f32 %v3238, %v3325
          %v3332 = vsub.f32 %v3276, %v3326
          %v3333 = vsub.f32 %v3277, %v3327
          %v3334 = vsub.f32 %v3278, %v3328
          %v3335 = vsub.f32 %v3279, %v3329
          %v3336 = vsub.f32 %v3280, %v3330
          %v3337 = vsub.f32 %v3281, %v3331
          %s3338 = sld [smem:[#allocation9 + $0x25]]
          %v3339 = vstv %s3338
          %v3340 = vmul.f32 %v3243, %v3339
          %v3341 = vmul.f32 %v3242, %v3339
          %v3342 = vmul.f32 %v3241, %v3339
          %v3343 = vmul.f32 %v3240, %v3339
          %v3344 = vmul.f32 %v3239, %v3339
          %v3345 = vmul.f32 %v3238, %v3339
          %v3346 = vsub.f32 %v3290, %v3340
          %v3347 = vsub.f32 %v3291, %v3341
          %v3348 = vsub.f32 %v3292, %v3342
          %v3349 = vsub.f32 %v3293, %v3343
          %v3350 = vsub.f32 %v3294, %v3344
          %v3351 = vsub.f32 %v3295, %v3345
          %s3352 = sld [smem:[#allocation9 + $0x49]]
          %v3353 = vstv %s3352
          %v3354 = vmul.f32 %v3243, %v3353
          %v3355 = vmul.f32 %v3242, %v3353
          %v3356 = vmul.f32 %v3241, %v3353
          %v3357 = vmul.f32 %v3240, %v3353
          %v3358 = vmul.f32 %v3239, %v3353
          %v3359 = vmul.f32 %v3238, %v3353
          %v3360 = vsub.f32 %v3304, %v3354
          %v3361 = vsub.f32 %v3305, %v3355
          %v3362 = vsub.f32 %v3306, %v3356
          %v3363 = vsub.f32 %v3307, %v3357
          %v3364 = vsub.f32 %v3308, %v3358
          %v3365 = vsub.f32 %v3309, %v3359
          %s3366 = sld [smem:[#allocation9 + $0x6d]]
          %v3367 = vstv %s3366
          %v3368 = vmul.f32 %v3243, %v3367
          %v3369 = vmul.f32 %v3242, %v3367
          %v3370 = vmul.f32 %v3241, %v3367
          %v3371 = vmul.f32 %v3240, %v3367
          %v3372 = vmul.f32 %v3239, %v3367
          %v3373 = vmul.f32 %v3238, %v3367
          %v3374 = vsub.f32 %v3318, %v3368
          %v3375 = vsub.f32 %v3319, %v3369
          %v3376 = vsub.f32 %v3320, %v3370
          %v3377 = vsub.f32 %v3321, %v3371
          %v3378 = vsub.f32 %v3322, %v3372
          %v3379 = vsub.f32 %v3323, %v3373
          %s3380 = sld [smem:[#allocation9 + $0x2]]
          %v3381 = vstv %s3380
          %v3382 = vmul.f32 %v3257, %v3381
          %v3383 = vmul.f32 %v3259, %v3381
          %v3384 = vmul.f32 %v3261, %v3381
          %v3385 = vmul.f32 %v3263, %v3381
          %v3386 = vmul.f32 %v3265, %v3381
          %v3387 = vmul.f32 %v3267, %v3381
          %v3388 = vsub.f32 %v3332, %v3382
          %v3389 = vsub.f32 %v3333, %v3383
          %v3390 = vsub.f32 %v3334, %v3384
          %v3391 = vsub.f32 %v3335, %v3385
          %v3392 = vsub.f32 %v3336, %v3386
          %v3393 = vsub.f32 %v3337, %v3387
          %s3394 = sld [smem:[#allocation9 + $0x26]]
          %v3395 = vstv %s3394
          %v3396 = vmul.f32 %v3257, %v3395
          %v3397 = vmul.f32 %v3259, %v3395
          %v3398 = vmul.f32 %v3261, %v3395
          %v3399 = vmul.f32 %v3263, %v3395
          %v3400 = vmul.f32 %v3265, %v3395
          %v3401 = vmul.f32 %v3267, %v3395
          %v3402 = vsub.f32 %v3346, %v3396
          %v3403 = vsub.f32 %v3347, %v3397
          %v3404 = vsub.f32 %v3348, %v3398
          %v3405 = vsub.f32 %v3349, %v3399
          %v3406 = vsub.f32 %v3350, %v3400
          %v3407 = vsub.f32 %v3351, %v3401
          %s3408 = sld [smem:[#allocation9 + $0x4a]]
          %v3409 = vstv %s3408
          %v3410 = vmul.f32 %v3257, %v3409
          %v3411 = vmul.f32 %v3259, %v3409
          %v3412 = vmul.f32 %v3261, %v3409
          %v3413 = vmul.f32 %v3263, %v3409
          %v3414 = vmul.f32 %v3265, %v3409
          %v3415 = vmul.f32 %v3267, %v3409
          %v3416 = vsub.f32 %v3360, %v3410
          %v3417 = vsub.f32 %v3361, %v3411
          %v3418 = vsub.f32 %v3362, %v3412
          %v3419 = vsub.f32 %v3363, %v3413
          %v3420 = vsub.f32 %v3364, %v3414
          %v3421 = vsub.f32 %v3365, %v3415
          %s3422 = sld [smem:[#allocation9 + $0x6e]]
          %v3423 = vstv %s3422
          %v3424 = vmul.f32 %v3257, %v3423
          %v3425 = vmul.f32 %v3259, %v3423
          %v3426 = vmul.f32 %v3261, %v3423
          %v3427 = vmul.f32 %v3263, %v3423
          %v3428 = vmul.f32 %v3265, %v3423
          %v3429 = vmul.f32 %v3267, %v3423
          %v3430 = vsub.f32 %v3374, %v3424
          %v3431 = vsub.f32 %v3375, %v3425
          %v3432 = vsub.f32 %v3376, %v3426
          %v3433 = vsub.f32 %v3377, %v3427
          %v3434 = vsub.f32 %v3378, %v3428
          %v3435 = vsub.f32 %v3379, %v3429
          %3436 = vrot.lane.b32.xlu0 %v3226, 1
          %v3437 = vpop.permute.xlu0 %3436
          %3438 = vrot.lane.b32.xlu0 %v3227, 1
          %v3439 = vpop.permute.xlu0 %3438
          %3440 = vrot.lane.b32.xlu0 %v3228, 1
          %v3441 = vpop.permute.xlu0 %3440
          %3442 = vrot.lane.b32.xlu0 %v3229, 1
          %v3443 = vpop.permute.xlu0 %3442
          %3444 = vrot.lane.b32.xlu0 %v3230, 1
          %v3445 = vpop.permute.xlu0 %3444
          %3446 = vrot.lane.b32.xlu0 %v3231, 1
          %v3447 = vpop.permute.xlu0 %3446
          %3448 = vrot.lane.b32.xlu0 %v3226, 127
          %v3449 = vpop.permute.xlu0 %3448
          %3450 = vrot.lane.b32.xlu0 %v3227, 127
          %v3451 = vpop.permute.xlu0 %3450
          %3452 = vrot.lane.b32.xlu0 %v3228, 127
          %v3453 = vpop.permute.xlu0 %3452
          %3454 = vrot.lane.b32.xlu0 %v3229, 127
          %v3455 = vpop.permute.xlu0 %3454
          %3456 = vrot.lane.b32.xlu0 %v3230, 127
          %v3457 = vpop.permute.xlu0 %3456
          %3458 = vrot.lane.b32.xlu0 %v3231, 127
          %v3459 = vpop.permute.xlu0 %3458
          %s3460 = sld [smem:[#allocation9 + $0x3]]
          %v3461 = vstv %s3460
          %v3462 = vmul.f32 %v3437, %v3461
          %v3463 = vmul.f32 %v3439, %v3461
          %v3464 = vmul.f32 %v3441, %v3461
          %v3465 = vmul.f32 %v3443, %v3461
          %v3466 = vmul.f32 %v3445, %v3461
          %v3467 = vmul.f32 %v3447, %v3461
          %v3468 = vsub.f32 %v3388, %v3462
          %v3469 = vsub.f32 %v3389, %v3463
          %v3470 = vsub.f32 %v3390, %v3464
          %v3471 = vsub.f32 %v3391, %v3465
          %v3472 = vsub.f32 %v3392, %v3466
          %v3473 = vsub.f32 %v3393, %v3467
          %s3474 = sld [smem:[#allocation9 + $0x27]]
          %v3475 = vstv %s3474
          %v3476 = vmul.f32 %v3437, %v3475
          %v3477 = vmul.f32 %v3439, %v3475
          %v3478 = vmul.f32 %v3441, %v3475
          %v3479 = vmul.f32 %v3443, %v3475
          %v3480 = vmul.f32 %v3445, %v3475
          %v3481 = vmul.f32 %v3447, %v3475
          %v3482 = vsub.f32 %v3402, %v3476
          %v3483 = vsub.f32 %v3403, %v3477
          %v3484 = vsub.f32 %v3404, %v3478
          %v3485 = vsub.f32 %v3405, %v3479
          %v3486 = vsub.f32 %v3406, %v3480
          %v3487 = vsub.f32 %v3407, %v3481
          %s3488 = sld [smem:[#allocation9 + $0x4b]]
          %v3489 = vstv %s3488
          %v3490 = vmul.f32 %v3437, %v3489
          %v3491 = vmul.f32 %v3439, %v3489
          %v3492 = vmul.f32 %v3441, %v3489
          %v3493 = vmul.f32 %v3443, %v3489
          %v3494 = vmul.f32 %v3445, %v3489
          %v3495 = vmul.f32 %v3447, %v3489
          %v3496 = vsub.f32 %v3416, %v3490
          %v3497 = vsub.f32 %v3417, %v3491
          %v3498 = vsub.f32 %v3418, %v3492
          %v3499 = vsub.f32 %v3419, %v3493
          %v3500 = vsub.f32 %v3420, %v3494
          %v3501 = vsub.f32 %v3421, %v3495
          %s3502 = sld [smem:[#allocation9 + $0x6f]]
          %v3503 = vstv %s3502
          %v3504 = vmul.f32 %v3437, %v3503
          %v3505 = vmul.f32 %v3439, %v3503
          %v3506 = vmul.f32 %v3441, %v3503
          %v3507 = vmul.f32 %v3443, %v3503
          %v3508 = vmul.f32 %v3445, %v3503
          %v3509 = vmul.f32 %v3447, %v3503
          %v3510 = vsub.f32 %v3430, %v3504
          %v3511 = vsub.f32 %v3431, %v3505
          %v3512 = vsub.f32 %v3432, %v3506
          %v3513 = vsub.f32 %v3433, %v3507
          %v3514 = vsub.f32 %v3434, %v3508
          %v3515 = vsub.f32 %v3435, %v3509
          %s3516 = sld [smem:[#allocation9 + $0x4]]
          %v3517 = vstv %s3516
          %v3518 = vmul.f32 %v3226, %v3517
          %v3519 = vmul.f32 %v3227, %v3517
          %v3520 = vmul.f32 %v3228, %v3517
          %v3521 = vmul.f32 %v3229, %v3517
          %v3522 = vmul.f32 %v3230, %v3517
          %v3523 = vmul.f32 %v3231, %v3517
          %v3524 = vsub.f32 %v3468, %v3518
          %v3525 = vsub.f32 %v3469, %v3519
          %v3526 = vsub.f32 %v3470, %v3520
          %v3527 = vsub.f32 %v3471, %v3521
          %v3528 = vsub.f32 %v3472, %v3522
          %v3529 = vsub.f32 %v3473, %v3523
          %s3530 = sld [smem:[#allocation9 + $0x28]]
          %v3531 = vstv %s3530
          %v3532 = vmul.f32 %v3226, %v3531
          %v3533 = vmul.f32 %v3227, %v3531
          %v3534 = vmul.f32 %v3228, %v3531
          %v3535 = vmul.f32 %v3229, %v3531
          %v3536 = vmul.f32 %v3230, %v3531
          %v3537 = vmul.f32 %v3231, %v3531
          %v3538 = vsub.f32 %v3482, %v3532
          %v3539 = vsub.f32 %v3483, %v3533
          %v3540 = vsub.f32 %v3484, %v3534
          %v3541 = vsub.f32 %v3485, %v3535
          %v3542 = vsub.f32 %v3486, %v3536
          %v3543 = vsub.f32 %v3487, %v3537
          %s3544 = sld [smem:[#allocation9 + $0x4c]]
          %v3545 = vstv %s3544
          %v3546 = vmul.f32 %v3226, %v3545
          %v3547 = vmul.f32 %v3227, %v3545
          %v3548 = vmul.f32 %v3228, %v3545
          %v3549 = vmul.f32 %v3229, %v3545
          %v3550 = vmul.f32 %v3230, %v3545
          %v3551 = vmul.f32 %v3231, %v3545
          %v3552 = vsub.f32 %v3496, %v3546
          %v3553 = vsub.f32 %v3497, %v3547
          %v3554 = vsub.f32 %v3498, %v3548
          %v3555 = vsub.f32 %v3499, %v3549
          %v3556 = vsub.f32 %v3500, %v3550
          %v3557 = vsub.f32 %v3501, %v3551
          %s3558 = sld [smem:[#allocation9 + $0x70]]
          %v3559 = vstv %s3558
          %v3560 = vmul.f32 %v3226, %v3559
          %v3561 = vmul.f32 %v3227, %v3559
          %v3562 = vmul.f32 %v3228, %v3559
          %v3563 = vmul.f32 %v3229, %v3559
          %v3564 = vmul.f32 %v3230, %v3559
          %v3565 = vmul.f32 %v3231, %v3559
          %v3566 = vsub.f32 %v3510, %v3560
          %v3567 = vsub.f32 %v3511, %v3561
          %v3568 = vsub.f32 %v3512, %v3562
          %v3569 = vsub.f32 %v3513, %v3563
          %v3570 = vsub.f32 %v3514, %v3564
          %v3571 = vsub.f32 %v3515, %v3565
          %s3572 = sld [smem:[#allocation9 + $0x5]]
          %v3573 = vstv %s3572
          %v3574 = vmul.f32 %v3449, %v3573
          %v3575 = vmul.f32 %v3451, %v3573
          %v3576 = vmul.f32 %v3453, %v3573
          %v3577 = vmul.f32 %v3455, %v3573
          %v3578 = vmul.f32 %v3457, %v3573
          %v3579 = vmul.f32 %v3459, %v3573
          %v3580 = vsub.f32 %v3524, %v3574
          %v3581 = vsub.f32 %v3525, %v3575
          %v3582 = vsub.f32 %v3526, %v3576
          %v3583 = vsub.f32 %v3527, %v3577
          %v3584 = vsub.f32 %v3528, %v3578
          %v3585 = vsub.f32 %v3529, %v3579
          %s3586 = sld [smem:[#allocation9 + $0x29]]
          %v3587 = vstv %s3586
          %v3588 = vmul.f32 %v3449, %v3587
          %v3589 = vmul.f32 %v3451, %v3587
          %v3590 = vmul.f32 %v3453, %v3587
          %v3591 = vmul.f32 %v3455, %v3587
          %v3592 = vmul.f32 %v3457, %v3587
          %v3593 = vmul.f32 %v3459, %v3587
          %v3594 = vsub.f32 %v3538, %v3588
          %v3595 = vsub.f32 %v3539, %v3589
          %v3596 = vsub.f32 %v3540, %v3590
          %v3597 = vsub.f32 %v3541, %v3591
          %v3598 = vsub.f32 %v3542, %v3592
          %v3599 = vsub.f32 %v3543, %v3593
          %s3600 = sld [smem:[#allocation9 + $0x4d]]
          %v3601 = vstv %s3600
          %v3602 = vmul.f32 %v3449, %v3601
          %v3603 = vmul.f32 %v3451, %v3601
          %v3604 = vmul.f32 %v3453, %v3601
          %v3605 = vmul.f32 %v3455, %v3601
          %v3606 = vmul.f32 %v3457, %v3601
          %v3607 = vmul.f32 %v3459, %v3601
          %v3608 = vsub.f32 %v3552, %v3602
          %v3609 = vsub.f32 %v3553, %v3603
          %v3610 = vsub.f32 %v3554, %v3604
          %v3611 = vsub.f32 %v3555, %v3605
          %v3612 = vsub.f32 %v3556, %v3606
          %v3613 = vsub.f32 %v3557, %v3607
          %s3614 = sld [smem:[#allocation9 + $0x71]]
          %v3615 = vstv %s3614
          %v3616 = vmul.f32 %v3449, %v3615
          %v3617 = vmul.f32 %v3451, %v3615
          %v3618 = vmul.f32 %v3453, %v3615
          %v3619 = vmul.f32 %v3455, %v3615
          %v3620 = vmul.f32 %v3457, %v3615
          %v3621 = vmul.f32 %v3459, %v3615
          %v3622 = vsub.f32 %v3566, %v3616
          %v3623 = vsub.f32 %v3567, %v3617
          %v3624 = vsub.f32 %v3568, %v3618
          %v3625 = vsub.f32 %v3569, %v3619
          %v3626 = vsub.f32 %v3570, %v3620
          %v3627 = vsub.f32 %v3571, %v3621
          %v3628 = vrot.slane %v3226, 1
          %v3629 = vrot.slane %v3227, 1
          %v3630 = vrot.slane %v3228, 1
          %v3631 = vrot.slane %v3229, 1
          %v3632 = vrot.slane %v3230, 1
          %v3633 = vrot.slane %v3231, 1
          %v3634 = vsel %vm877, %v3632, %v3633
          %v3635 = vsel %vm877, %v3631, %v3632
          %v3636 = vsel %vm877, %v3630, %v3631
          %v3637 = vsel %vm877, %v3629, %v3630
          %v3638 = vsel %vm877, %v3628, %v3629
          %v3639 = vsel %vm877, %v3633, %v3628
          %3640 = vrot.lane.b32.xlu0 %v3638, 1
          %v3641 = vpop.permute.xlu0 %3640
          %3642 = vrot.lane.b32.xlu0 %v3637, 1
          %v3643 = vpop.permute.xlu0 %3642
          %3644 = vrot.lane.b32.xlu0 %v3636, 1
          %v3645 = vpop.permute.xlu0 %3644
          %3646 = vrot.lane.b32.xlu0 %v3635, 1
          %v3647 = vpop.permute.xlu0 %3646
          %3648 = vrot.lane.b32.xlu0 %v3634, 1
          %v3649 = vpop.permute.xlu0 %3648
          %3650 = vrot.lane.b32.xlu0 %v3639, 1
          %v3651 = vpop.permute.xlu0 %3650
          %3652 = vrot.lane.b32.xlu0 %v3638, 127
          %v3653 = vpop.permute.xlu0 %3652
          %3654 = vrot.lane.b32.xlu0 %v3637, 127
          %v3655 = vpop.permute.xlu0 %3654
          %3656 = vrot.lane.b32.xlu0 %v3636, 127
          %v3657 = vpop.permute.xlu0 %3656
          %3658 = vrot.lane.b32.xlu0 %v3635, 127
          %v3659 = vpop.permute.xlu0 %3658
          %3660 = vrot.lane.b32.xlu0 %v3634, 127
          %v3661 = vpop.permute.xlu0 %3660
          %3662 = vrot.lane.b32.xlu0 %v3639, 127
          %v3663 = vpop.permute.xlu0 %3662
          %s3664 = sld [smem:[#allocation9 + $0x6]]
          %v3665 = vstv %s3664
          %v3666 = vmul.f32 %v3641, %v3665
          %v3667 = vmul.f32 %v3643, %v3665
          %v3668 = vmul.f32 %v3645, %v3665
          %v3669 = vmul.f32 %v3647, %v3665
          %v3670 = vmul.f32 %v3649, %v3665
          %v3671 = vmul.f32 %v3651, %v3665
          %v3672 = vsub.f32 %v3580, %v3666
          %v3673 = vsub.f32 %v3581, %v3667
          %v3674 = vsub.f32 %v3582, %v3668
          %v3675 = vsub.f32 %v3583, %v3669
          %v3676 = vsub.f32 %v3584, %v3670
          %v3677 = vsub.f32 %v3585, %v3671
          %s3678 = sld [smem:[#allocation9 + $0x2a]]
          %v3679 = vstv %s3678
          %v3680 = vmul.f32 %v3641, %v3679
          %v3681 = vmul.f32 %v3643, %v3679
          %v3682 = vmul.f32 %v3645, %v3679
          %v3683 = vmul.f32 %v3647, %v3679
          %v3684 = vmul.f32 %v3649, %v3679
          %v3685 = vmul.f32 %v3651, %v3679
          %v3686 = vsub.f32 %v3594, %v3680
          %v3687 = vsub.f32 %v3595, %v3681
          %v3688 = vsub.f32 %v3596, %v3682
          %v3689 = vsub.f32 %v3597, %v3683
          %v3690 = vsub.f32 %v3598, %v3684
          %v3691 = vsub.f32 %v3599, %v3685
          %s3692 = sld [smem:[#allocation9 + $0x4e]]
          %v3693 = vstv %s3692
          %v3694 = vmul.f32 %v3641, %v3693
          %v3695 = vmul.f32 %v3643, %v3693
          %v3696 = vmul.f32 %v3645, %v3693
          %v3697 = vmul.f32 %v3647, %v3693
          %v3698 = vmul.f32 %v3649, %v3693
          %v3699 = vmul.f32 %v3651, %v3693
          %v3700 = vsub.f32 %v3608, %v3694
          %v3701 = vsub.f32 %v3609, %v3695
          %v3702 = vsub.f32 %v3610, %v3696
          %v3703 = vsub.f32 %v3611, %v3697
          %v3704 = vsub.f32 %v3612, %v3698
          %v3705 = vsub.f32 %v3613, %v3699
          %s3706 = sld [smem:[#allocation9 + $0x72]]
          %v3707 = vstv %s3706
          %v3708 = vmul.f32 %v3641, %v3707
          %v3709 = vmul.f32 %v3643, %v3707
          %v3710 = vmul.f32 %v3645, %v3707
          %v3711 = vmul.f32 %v3647, %v3707
          %v3712 = vmul.f32 %v3649, %v3707
          %v3713 = vmul.f32 %v3651, %v3707
          %v3714 = vsub.f32 %v3622, %v3708
          %v3715 = vsub.f32 %v3623, %v3709
          %v3716 = vsub.f32 %v3624, %v3710
          %v3717 = vsub.f32 %v3625, %v3711
          %v3718 = vsub.f32 %v3626, %v3712
          %v3719 = vsub.f32 %v3627, %v3713
          %s3720 = sld [smem:[#allocation9 + $0x7]]
          %v3721 = vstv %s3720
          %v3722 = vmul.f32 %v3638, %v3721
          %v3723 = vmul.f32 %v3637, %v3721
          %v3724 = vmul.f32 %v3636, %v3721
          %v3725 = vmul.f32 %v3635, %v3721
          %v3726 = vmul.f32 %v3634, %v3721
          %v3727 = vmul.f32 %v3639, %v3721
          %v3728 = vsub.f32 %v3672, %v3722
          %v3729 = vsub.f32 %v3673, %v3723
          %v3730 = vsub.f32 %v3674, %v3724
          %v3731 = vsub.f32 %v3675, %v3725
          %v3732 = vsub.f32 %v3676, %v3726
          %v3733 = vsub.f32 %v3677, %v3727
          %s3734 = sld [smem:[#allocation9 + $0x2b]]
          %v3735 = vstv %s3734
          %v3736 = vmul.f32 %v3638, %v3735
          %v3737 = vmul.f32 %v3637, %v3735
          %v3738 = vmul.f32 %v3636, %v3735
          %v3739 = vmul.f32 %v3635, %v3735
          %v3740 = vmul.f32 %v3634, %v3735
          %v3741 = vmul.f32 %v3639, %v3735
          %v3742 = vsub.f32 %v3686, %v3736
          %v3743 = vsub.f32 %v3687, %v3737
          %v3744 = vsub.f32 %v3688, %v3738
          %v3745 = vsub.f32 %v3689, %v3739
          %v3746 = vsub.f32 %v3690, %v3740
          %v3747 = vsub.f32 %v3691, %v3741
          %s3748 = sld [smem:[#allocation9 + $0x4f]]
          %v3749 = vstv %s3748
          %v3750 = vmul.f32 %v3638, %v3749
          %v3751 = vmul.f32 %v3637, %v3749
          %v3752 = vmul.f32 %v3636, %v3749
          %v3753 = vmul.f32 %v3635, %v3749
          %v3754 = vmul.f32 %v3634, %v3749
          %v3755 = vmul.f32 %v3639, %v3749
          %v3756 = vsub.f32 %v3700, %v3750
          %v3757 = vsub.f32 %v3701, %v3751
          %v3758 = vsub.f32 %v3702, %v3752
          %v3759 = vsub.f32 %v3703, %v3753
          %v3760 = vsub.f32 %v3704, %v3754
          %v3761 = vsub.f32 %v3705, %v3755
          %s3762 = sld [smem:[#allocation9 + $0x73]]
          %v3763 = vstv %s3762
          %v3764 = vmul.f32 %v3638, %v3763
          %v3765 = vmul.f32 %v3637, %v3763
          %v3766 = vmul.f32 %v3636, %v3763
          %v3767 = vmul.f32 %v3635, %v3763
          %v3768 = vmul.f32 %v3634, %v3763
          %v3769 = vmul.f32 %v3639, %v3763
          %v3770 = vsub.f32 %v3714, %v3764
          %v3771 = vsub.f32 %v3715, %v3765
          %v3772 = vsub.f32 %v3716, %v3766
          %v3773 = vsub.f32 %v3717, %v3767
          %v3774 = vsub.f32 %v3718, %v3768
          %v3775 = vsub.f32 %v3719, %v3769
          %s3776 = sld [smem:[#allocation9 + $0x8]]
          %v3777 = vstv %s3776
          %v3778 = vmul.f32 %v3653, %v3777
          %v3779 = vmul.f32 %v3655, %v3777
          %v3780 = vmul.f32 %v3657, %v3777
          %v3781 = vmul.f32 %v3659, %v3777
          %v3782 = vmul.f32 %v3661, %v3777
          %v3783 = vmul.f32 %v3663, %v3777
          %v3784 = vsub.f32 %v3728, %v3778
          %v3785 = vsub.f32 %v3729, %v3779
          %v3786 = vsub.f32 %v3730, %v3780
          %v3787 = vsub.f32 %v3731, %v3781
          %v3788 = vsub.f32 %v3732, %v3782
          %v3789 = vsub.f32 %v3733, %v3783
          %s3790 = sld [smem:[#allocation9 + $0x2c]]
          %v3791 = vstv %s3790
          %v3792 = vmul.f32 %v3653, %v3791
          %v3793 = vmul.f32 %v3655, %v3791
          %v3794 = vmul.f32 %v3657, %v3791
          %v3795 = vmul.f32 %v3659, %v3791
          %v3796 = vmul.f32 %v3661, %v3791
          %v3797 = vmul.f32 %v3663, %v3791
          %v3798 = vsub.f32 %v3742, %v3792
          %v3799 = vsub.f32 %v3743, %v3793
          %v3800 = vsub.f32 %v3744, %v3794
          %v3801 = vsub.f32 %v3745, %v3795
          %v3802 = vsub.f32 %v3746, %v3796
          %v3803 = vsub.f32 %v3747, %v3797
          %s3804 = sld [smem:[#allocation9 + $0x50]]
          %v3805 = vstv %s3804
          %v3806 = vmul.f32 %v3653, %v3805
          %v3807 = vmul.f32 %v3655, %v3805
          %v3808 = vmul.f32 %v3657, %v3805
          %v3809 = vmul.f32 %v3659, %v3805
          %v3810 = vmul.f32 %v3661, %v3805
          %v3811 = vmul.f32 %v3663, %v3805
          %v3812 = vsub.f32 %v3756, %v3806
          %v3813 = vsub.f32 %v3757, %v3807
          %v3814 = vsub.f32 %v3758, %v3808
          %v3815 = vsub.f32 %v3759, %v3809
          %v3816 = vsub.f32 %v3760, %v3810
          %v3817 = vsub.f32 %v3761, %v3811
          %s3818 = sld [smem:[#allocation9 + $0x74]]
          %v3819 = vstv %s3818
          %v3820 = vmul.f32 %v3653, %v3819
          %v3821 = vmul.f32 %v3655, %v3819
          %v3822 = vmul.f32 %v3657, %v3819
          %v3823 = vmul.f32 %v3659, %v3819
          %v3824 = vmul.f32 %v3661, %v3819
          %v3825 = vmul.f32 %v3663, %v3819
          %v3826 = vsub.f32 %v3770, %v3820
          %v3827 = vsub.f32 %v3771, %v3821
          %v3828 = vsub.f32 %v3772, %v3822
          %v3829 = vsub.f32 %v3773, %v3823
          %v3830 = vsub.f32 %v3774, %v3824
          %v3831 = vsub.f32 %v3775, %v3825
          %s3832 = smul.f32 %s3166, %s351
          %v3833 = vstv %s3832
          %v3834 = vmul.f32 %v3013, %v3833
          %v3835 = vmul.f32 %v3014, %v3833
          %v3836 = vmul.f32 %v3015, %v3833
          %v3837 = vmul.f32 %v3016, %v3833
          %v3838 = vmul.f32 %v3017, %v3833
          %v3839 = vmul.f32 %v3018, %v3833
          %s3840 = smul.f32 %s3145, %s3832
          %s3841 = ssub.f32 %s355, %s3840
          %v3842 = vstv %s3841
          %v3843 = vadd.f32 %v3834, %v3842
          %v3844 = vadd.f32 %v3835, %v3842
          %v3845 = vadd.f32 %v3836, %v3842
          %v3846 = vadd.f32 %v3837, %v3842
          %v3847 = vadd.f32 %v3838, %v3842
          %v3848 = vadd.f32 %v3839, %v3842
          %v3849 = vxor.u32 %v3843, 2147483648
          %v3850 = vxor.u32 %v3844, 2147483648
          %v3851 = vxor.u32 %v3845, 2147483648
          %v3852 = vxor.u32 %v3846, 2147483648
          %v3853 = vxor.u32 %v3847, 2147483648
          %v3854 = vxor.u32 %v3848, 2147483648
          %v3855 = vmul.f32 %v3849, 1.442695
          %v3856 = vpow.pop %v3855
          %v3857 = vmul.f32 %v3850, 1.442695
          %v3858 = vpow.pop %v3857
          %v3859 = vmul.f32 %v3851, 1.442695
          %v3860 = vpow.pop %v3859
          %v3861 = vmul.f32 %v3852, 1.442695
          %v3862 = vpow.pop %v3861
          %v3863 = vmul.f32 %v3853, 1.442695
          %v3864 = vpow.pop %v3863
          %v3865 = vmul.f32 %v3854, 1.442695
          %v3866 = vpow.pop %v3865
          %v3867 = vadd.f32 %v3856, 1.0
          %v3868 = vadd.f32 %v3858, 1.0
          %v3869 = vadd.f32 %v3860, 1.0
          %v3870 = vadd.f32 %v3862, 1.0
          %v3871 = vadd.f32 %v3864, 1.0
          %v3872 = vadd.f32 %v3866, 1.0
          %v3873 = vrcp.pop %v3867
          %v3874 = vmul.f32 1.0, %v3873
          %v3875 = vrcp.pop %v3868
          %v3876 = vmul.f32 1.0, %v3875
          %v3877 = vrcp.pop %v3869
          %v3878 = vmul.f32 1.0, %v3877
          %v3879 = vrcp.pop %v3870
          %v3880 = vmul.f32 1.0, %v3879
          %v3881 = vrcp.pop %v3871
          %v3882 = vmul.f32 1.0, %v3881
          %v3883 = vrcp.pop %v3872
          %v3884 = vmul.f32 1.0, %v3883
          %v3885 = vmul.f32 %v3843, %v3874
          %v3886 = vmul.f32 %v3844, %v3876
          %v3887 = vmul.f32 %v3845, %v3878
          %v3888 = vmul.f32 %v3846, %v3880
          %v3889 = vmul.f32 %v3847, %v3882
          %v3890 = vmul.f32 %v3848, %v3884
          %v3891 = vmul.f32 %v3885, %v344
          %v3892 = vmul.f32 %v3886, %v345
          %v3893 = vmul.f32 %v3887, %v346
          %v3894 = vmul.f32 %v3888, %v347
          %v3895 = vmul.f32 %v3889, %v348
          %v3896 = vmul.f32 %v3890, %v349
          %v3897 = vrot.slane %v3891, 7
          %v3898 = vrot.slane %v3892, 7
          %v3899 = vrot.slane %v3893, 7
          %v3900 = vrot.slane %v3894, 7
          %v3901 = vrot.slane %v3895, 7
          %v3902 = vrot.slane %v3896, 7
          %v3903 = vsel %vm480, %v3901, %v3902
          %v3904 = vsel %vm480, %v3900, %v3901
          %v3905 = vsel %vm480, %v3899, %v3900
          %v3906 = vsel %vm480, %v3898, %v3899
          %v3907 = vsel %vm480, %v3897, %v3898
          %v3908 = vsel %vm480, %v3902, %v3897
          %3909 = vrot.lane.b32.xlu0 %v3908, 1
          %v3910 = vpop.permute.xlu0 %3909
          %3911 = vrot.lane.b32.xlu0 %v3907, 1
          %v3912 = vpop.permute.xlu0 %3911
          %3913 = vrot.lane.b32.xlu0 %v3906, 1
          %v3914 = vpop.permute.xlu0 %3913
          %3915 = vrot.lane.b32.xlu0 %v3905, 1
          %v3916 = vpop.permute.xlu0 %3915
          %3917 = vrot.lane.b32.xlu0 %v3904, 1
          %v3918 = vpop.permute.xlu0 %3917
          %3919 = vrot.lane.b32.xlu0 %v3903, 1
          %v3920 = vpop.permute.xlu0 %3919
          %3921 = vrot.lane.b32.xlu0 %v3908, 127
          %v3922 = vpop.permute.xlu0 %3921
          %3923 = vrot.lane.b32.xlu0 %v3907, 127
          %v3924 = vpop.permute.xlu0 %3923
          %3925 = vrot.lane.b32.xlu0 %v3906, 127
          %v3926 = vpop.permute.xlu0 %3925
          %3927 = vrot.lane.b32.xlu0 %v3905, 127
          %v3928 = vpop.permute.xlu0 %3927
          %3929 = vrot.lane.b32.xlu0 %v3904, 127
          %v3930 = vpop.permute.xlu0 %3929
          %3931 = vrot.lane.b32.xlu0 %v3903, 127
          %v3932 = vpop.permute.xlu0 %3931
          %s3933 = sld [smem:[#allocation9 + $0x9]]
          %v3934 = vstv %s3933
          %v3935 = vmul.f32 %v3910, %v3934
          %v3936 = vmul.f32 %v3912, %v3934
          %v3937 = vmul.f32 %v3914, %v3934
          %v3938 = vmul.f32 %v3916, %v3934
          %v3939 = vmul.f32 %v3918, %v3934
          %v3940 = vmul.f32 %v3920, %v3934
          %v3941 = vsub.f32 %v3784, %v3935
          %v3942 = vsub.f32 %v3785, %v3936
          %v3943 = vsub.f32 %v3786, %v3937
          %v3944 = vsub.f32 %v3787, %v3938
          %v3945 = vsub.f32 %v3788, %v3939
          %v3946 = vsub.f32 %v3789, %v3940
          %s3947 = sld [smem:[#allocation9 + $0x2d]]
          %v3948 = vstv %s3947
          %v3949 = vmul.f32 %v3910, %v3948
          %v3950 = vmul.f32 %v3912, %v3948
          %v3951 = vmul.f32 %v3914, %v3948
          %v3952 = vmul.f32 %v3916, %v3948
          %v3953 = vmul.f32 %v3918, %v3948
          %v3954 = vmul.f32 %v3920, %v3948
          %v3955 = vsub.f32 %v3798, %v3949
          %v3956 = vsub.f32 %v3799, %v3950
          %v3957 = vsub.f32 %v3800, %v3951
          %v3958 = vsub.f32 %v3801, %v3952
          %v3959 = vsub.f32 %v3802, %v3953
          %v3960 = vsub.f32 %v3803, %v3954
          %s3961 = sld [smem:[#allocation9 + $0x51]]
          %v3962 = vstv %s3961
          %v3963 = vmul.f32 %v3910, %v3962
          %v3964 = vmul.f32 %v3912, %v3962
          %v3965 = vmul.f32 %v3914, %v3962
          %v3966 = vmul.f32 %v3916, %v3962
          %v3967 = vmul.f32 %v3918, %v3962
          %v3968 = vmul.f32 %v3920, %v3962
          %v3969 = vsub.f32 %v3812, %v3963
          %v3970 = vsub.f32 %v3813, %v3964
          %v3971 = vsub.f32 %v3814, %v3965
          %v3972 = vsub.f32 %v3815, %v3966
          %v3973 = vsub.f32 %v3816, %v3967
          %v3974 = vsub.f32 %v3817, %v3968
          %s3975 = sld [smem:[#allocation9 + $0x75]]
          %v3976 = vstv %s3975
          %v3977 = vmul.f32 %v3910, %v3976
          %v3978 = vmul.f32 %v3912, %v3976
          %v3979 = vmul.f32 %v3914, %v3976
          %v3980 = vmul.f32 %v3916, %v3976
          %v3981 = vmul.f32 %v3918, %v3976
          %v3982 = vmul.f32 %v3920, %v3976
          %v3983 = vsub.f32 %v3826, %v3977
          %v3984 = vsub.f32 %v3827, %v3978
          %v3985 = vsub.f32 %v3828, %v3979
          %v3986 = vsub.f32 %v3829, %v3980
          %v3987 = vsub.f32 %v3830, %v3981
          %v3988 = vsub.f32 %v3831, %v3982
          %s3989 = sld [smem:[#allocation9 + $0xa]]
          %v3990 = vstv %s3989
          %v3991 = vmul.f32 %v3908, %v3990
          %v3992 = vmul.f32 %v3907, %v3990
          %v3993 = vmul.f32 %v3906, %v3990
          %v3994 = vmul.f32 %v3905, %v3990
          %v3995 = vmul.f32 %v3904, %v3990
          %v3996 = vmul.f32 %v3903, %v3990
          %v3997 = vsub.f32 %v3941, %v3991
          %v3998 = vsub.f32 %v3942, %v3992
          %v3999 = vsub.f32 %v3943, %v3993
          %v4000 = vsub.f32 %v3944, %v3994
          %v4001 = vsub.f32 %v3945, %v3995
          %v4002 = vsub.f32 %v3946, %v3996
          %s4003 = sld [smem:[#allocation9 + $0x2e]]
          %v4004 = vstv %s4003
          %v4005 = vmul.f32 %v3908, %v4004
          %v4006 = vmul.f32 %v3907, %v4004
          %v4007 = vmul.f32 %v3906, %v4004
          %v4008 = vmul.f32 %v3905, %v4004
          %v4009 = vmul.f32 %v3904, %v4004
          %v4010 = vmul.f32 %v3903, %v4004
          %v4011 = vsub.f32 %v3955, %v4005
          %v4012 = vsub.f32 %v3956, %v4006
          %v4013 = vsub.f32 %v3957, %v4007
          %v4014 = vsub.f32 %v3958, %v4008
          %v4015 = vsub.f32 %v3959, %v4009
          %v4016 = vsub.f32 %v3960, %v4010
          %s4017 = sld [smem:[#allocation9 + $0x52]]
          %v4018 = vstv %s4017
          %v4019 = vmul.f32 %v3908, %v4018
          %v4020 = vmul.f32 %v3907, %v4018
          %v4021 = vmul.f32 %v3906, %v4018
          %v4022 = vmul.f32 %v3905, %v4018
          %v4023 = vmul.f32 %v3904, %v4018
          %v4024 = vmul.f32 %v3903, %v4018
          %v4025 = vsub.f32 %v3969, %v4019
          %v4026 = vsub.f32 %v3970, %v4020
          %v4027 = vsub.f32 %v3971, %v4021
          %v4028 = vsub.f32 %v3972, %v4022
          %v4029 = vsub.f32 %v3973, %v4023
          %v4030 = vsub.f32 %v3974, %v4024
          %s4031 = sld [smem:[#allocation9 + $0x76]]
          %v4032 = vstv %s4031
          %v4033 = vmul.f32 %v3908, %v4032
          %v4034 = vmul.f32 %v3907, %v4032
          %v4035 = vmul.f32 %v3906, %v4032
          %v4036 = vmul.f32 %v3905, %v4032
          %v4037 = vmul.f32 %v3904, %v4032
          %v4038 = vmul.f32 %v3903, %v4032
          %v4039 = vsub.f32 %v3983, %v4033
          %v4040 = vsub.f32 %v3984, %v4034
          %v4041 = vsub.f32 %v3985, %v4035
          %v4042 = vsub.f32 %v3986, %v4036
          %v4043 = vsub.f32 %v3987, %v4037
          %v4044 = vsub.f32 %v3988, %v4038
          %s4045 = sld [smem:[#allocation9 + $0xb]]
          %v4046 = vstv %s4045
          %v4047 = vmul.f32 %v3922, %v4046
          %v4048 = vmul.f32 %v3924, %v4046
          %v4049 = vmul.f32 %v3926, %v4046
          %v4050 = vmul.f32 %v3928, %v4046
          %v4051 = vmul.f32 %v3930, %v4046
          %v4052 = vmul.f32 %v3932, %v4046
          %v4053 = vsub.f32 %v3997, %v4047
          %v4054 = vsub.f32 %v3998, %v4048
          %v4055 = vsub.f32 %v3999, %v4049
          %v4056 = vsub.f32 %v4000, %v4050
          %v4057 = vsub.f32 %v4001, %v4051
          %v4058 = vsub.f32 %v4002, %v4052
          %s4059 = sld [smem:[#allocation9 + $0x2f]]
          %v4060 = vstv %s4059
          %v4061 = vmul.f32 %v3922, %v4060
          %v4062 = vmul.f32 %v3924, %v4060
          %v4063 = vmul.f32 %v3926, %v4060
          %v4064 = vmul.f32 %v3928, %v4060
          %v4065 = vmul.f32 %v3930, %v4060
          %v4066 = vmul.f32 %v3932, %v4060
          %v4067 = vsub.f32 %v4011, %v4061
          %v4068 = vsub.f32 %v4012, %v4062
          %v4069 = vsub.f32 %v4013, %v4063
          %v4070 = vsub.f32 %v4014, %v4064
          %v4071 = vsub.f32 %v4015, %v4065
          %v4072 = vsub.f32 %v4016, %v4066
          %s4073 = sld [smem:[#allocation9 + $0x53]]
          %v4074 = vstv %s4073
          %v4075 = vmul.f32 %v3922, %v4074
          %v4076 = vmul.f32 %v3924, %v4074
          %v4077 = vmul.f32 %v3926, %v4074
          %v4078 = vmul.f32 %v3928, %v4074
          %v4079 = vmul.f32 %v3930, %v4074
          %v4080 = vmul.f32 %v3932, %v4074
          %v4081 = vsub.f32 %v4025, %v4075
          %v4082 = vsub.f32 %v4026, %v4076
          %v4083 = vsub.f32 %v4027, %v4077
          %v4084 = vsub.f32 %v4028, %v4078
          %v4085 = vsub.f32 %v4029, %v4079
          %v4086 = vsub.f32 %v4030, %v4080
          %s4087 = sld [smem:[#allocation9 + $0x77]]
          %v4088 = vstv %s4087
          %v4089 = vmul.f32 %v3922, %v4088
          %v4090 = vmul.f32 %v3924, %v4088
          %v4091 = vmul.f32 %v3926, %v4088
          %v4092 = vmul.f32 %v3928, %v4088
          %v4093 = vmul.f32 %v3930, %v4088
          %v4094 = vmul.f32 %v3932, %v4088
          %v4095 = vsub.f32 %v4039, %v4089
          %v4096 = vsub.f32 %v4040, %v4090
          %v4097 = vsub.f32 %v4041, %v4091
          %v4098 = vsub.f32 %v4042, %v4092
          %v4099 = vsub.f32 %v4043, %v4093
          %v4100 = vsub.f32 %v4044, %v4094
          %4101 = vrot.lane.b32.xlu0 %v3891, 1
          %v4102 = vpop.permute.xlu0 %4101
          %4103 = vrot.lane.b32.xlu0 %v3892, 1
          %v4104 = vpop.permute.xlu0 %4103
          %4105 = vrot.lane.b32.xlu0 %v3893, 1
          %v4106 = vpop.permute.xlu0 %4105
          %4107 = vrot.lane.b32.xlu0 %v3894, 1
          %v4108 = vpop.permute.xlu0 %4107
          %4109 = vrot.lane.b32.xlu0 %v3895, 1
          %v4110 = vpop.permute.xlu0 %4109
          %4111 = vrot.lane.b32.xlu0 %v3896, 1
          %v4112 = vpop.permute.xlu0 %4111
          %4113 = vrot.lane.b32.xlu0 %v3891, 127
          %v4114 = vpop.permute.xlu0 %4113
          %4115 = vrot.lane.b32.xlu0 %v3892, 127
          %v4116 = vpop.permute.xlu0 %4115
          %4117 = vrot.lane.b32.xlu0 %v3893, 127
          %v4118 = vpop.permute.xlu0 %4117
          %4119 = vrot.lane.b32.xlu0 %v3894, 127
          %v4120 = vpop.permute.xlu0 %4119
          %4121 = vrot.lane.b32.xlu0 %v3895, 127
          %v4122 = vpop.permute.xlu0 %4121
          %4123 = vrot.lane.b32.xlu0 %v3896, 127
          %v4124 = vpop.permute.xlu0 %4123
          %s4125 = sld [smem:[#allocation9 + $0xc]]
          %v4126 = vstv %s4125
          %v4127 = vmul.f32 %v4102, %v4126
          %v4128 = vmul.f32 %v4104, %v4126
          %v4129 = vmul.f32 %v4106, %v4126
          %v4130 = vmul.f32 %v4108, %v4126
          %v4131 = vmul.f32 %v4110, %v4126
          %v4132 = vmul.f32 %v4112, %v4126
          %v4133 = vsub.f32 %v4053, %v4127
          %v4134 = vsub.f32 %v4054, %v4128
          %v4135 = vsub.f32 %v4055, %v4129
          %v4136 = vsub.f32 %v4056, %v4130
          %v4137 = vsub.f32 %v4057, %v4131
          %v4138 = vsub.f32 %v4058, %v4132
          %s4139 = sld [smem:[#allocation9 + $0x30]]
          %v4140 = vstv %s4139
          %v4141 = vmul.f32 %v4102, %v4140
          %v4142 = vmul.f32 %v4104, %v4140
          %v4143 = vmul.f32 %v4106, %v4140
          %v4144 = vmul.f32 %v4108, %v4140
          %v4145 = vmul.f32 %v4110, %v4140
          %v4146 = vmul.f32 %v4112, %v4140
          %v4147 = vsub.f32 %v4067, %v4141
          %v4148 = vsub.f32 %v4068, %v4142
          %v4149 = vsub.f32 %v4069, %v4143
          %v4150 = vsub.f32 %v4070, %v4144
          %v4151 = vsub.f32 %v4071, %v4145
          %v4152 = vsub.f32 %v4072, %v4146
          %s4153 = sld [smem:[#allocation9 + $0x54]]
          %v4154 = vstv %s4153
          %v4155 = vmul.f32 %v4102, %v4154
          %v4156 = vmul.f32 %v4104, %v4154
          %v4157 = vmul.f32 %v4106, %v4154
          %v4158 = vmul.f32 %v4108, %v4154
          %v4159 = vmul.f32 %v4110, %v4154
          %v4160 = vmul.f32 %v4112, %v4154
          %v4161 = vsub.f32 %v4081, %v4155
          %v4162 = vsub.f32 %v4082, %v4156
          %v4163 = vsub.f32 %v4083, %v4157
          %v4164 = vsub.f32 %v4084, %v4158
          %v4165 = vsub.f32 %v4085, %v4159
          %v4166 = vsub.f32 %v4086, %v4160
          %s4167 = sld [smem:[#allocation9 + $0x78]]
          %v4168 = vstv %s4167
          %v4169 = vmul.f32 %v4102, %v4168
          %v4170 = vmul.f32 %v4104, %v4168
          %v4171 = vmul.f32 %v4106, %v4168
          %v4172 = vmul.f32 %v4108, %v4168
          %v4173 = vmul.f32 %v4110, %v4168
          %v4174 = vmul.f32 %v4112, %v4168
          %v4175 = vsub.f32 %v4095, %v4169
          %v4176 = vsub.f32 %v4096, %v4170
          %v4177 = vsub.f32 %v4097, %v4171
          %v4178 = vsub.f32 %v4098, %v4172
          %v4179 = vsub.f32 %v4099, %v4173
          %v4180 = vsub.f32 %v4100, %v4174
          %s4181 = sld [smem:[#allocation9 + $0xd]]
          %v4182 = vstv %s4181
          %v4183 = vmul.f32 %v3891, %v4182
          %v4184 = vmul.f32 %v3892, %v4182
          %v4185 = vmul.f32 %v3893, %v4182
          %v4186 = vmul.f32 %v3894, %v4182
          %v4187 = vmul.f32 %v3895, %v4182
          %v4188 = vmul.f32 %v3896, %v4182
          %v4189 = vsub.f32 %v4133, %v4183
          %v4190 = vsub.f32 %v4134, %v4184
          %v4191 = vsub.f32 %v4135, %v4185
          %v4192 = vsub.f32 %v4136, %v4186
          %v4193 = vsub.f32 %v4137, %v4187
          %v4194 = vsub.f32 %v4138, %v4188
          %s4195 = sld [smem:[#allocation9 + $0x31]]
          %v4196 = vstv %s4195
          %v4197 = vmul.f32 %v3891, %v4196
          %v4198 = vmul.f32 %v3892, %v4196
          %v4199 = vmul.f32 %v3893, %v4196
          %v4200 = vmul.f32 %v3894, %v4196
          %v4201 = vmul.f32 %v3895, %v4196
          %v4202 = vmul.f32 %v3896, %v4196
          %v4203 = vsub.f32 %v4147, %v4197
          %v4204 = vsub.f32 %v4148, %v4198
          %v4205 = vsub.f32 %v4149, %v4199
          %v4206 = vsub.f32 %v4150, %v4200
          %v4207 = vsub.f32 %v4151, %v4201
          %v4208 = vsub.f32 %v4152, %v4202
          %s4209 = sld [smem:[#allocation9 + $0x55]]
          %v4210 = vstv %s4209
          %v4211 = vmul.f32 %v3891, %v4210
          %v4212 = vmul.f32 %v3892, %v4210
          %v4213 = vmul.f32 %v3893, %v4210
          %v4214 = vmul.f32 %v3894, %v4210
          %v4215 = vmul.f32 %v3895, %v4210
          %v4216 = vmul.f32 %v3896, %v4210
          %v4217 = vsub.f32 %v4161, %v4211
          %v4218 = vsub.f32 %v4162, %v4212
          %v4219 = vsub.f32 %v4163, %v4213
          %v4220 = vsub.f32 %v4164, %v4214
          %v4221 = vsub.f32 %v4165, %v4215
          %v4222 = vsub.f32 %v4166, %v4216
          %s4223 = sld [smem:[#allocation9 + $0x79]]
          %v4224 = vstv %s4223
          %v4225 = vmul.f32 %v3891, %v4224
          %v4226 = vmul.f32 %v3892, %v4224
          %v4227 = vmul.f32 %v3893, %v4224
          %v4228 = vmul.f32 %v3894, %v4224
          %v4229 = vmul.f32 %v3895, %v4224
          %v4230 = vmul.f32 %v3896, %v4224
          %v4231 = vsub.f32 %v4175, %v4225
          %v4232 = vsub.f32 %v4176, %v4226
          %v4233 = vsub.f32 %v4177, %v4227
          %v4234 = vsub.f32 %v4178, %v4228
          %v4235 = vsub.f32 %v4179, %v4229
          %v4236 = vsub.f32 %v4180, %v4230
          %s4237 = sld [smem:[#allocation9 + $0xe]]
          %v4238 = vstv %s4237
          %v4239 = vmul.f32 %v4114, %v4238
          %v4240 = vmul.f32 %v4116, %v4238
          %v4241 = vmul.f32 %v4118, %v4238
          %v4242 = vmul.f32 %v4120, %v4238
          %v4243 = vmul.f32 %v4122, %v4238
          %v4244 = vmul.f32 %v4124, %v4238
          %v4245 = vsub.f32 %v4189, %v4239
          %v4246 = vsub.f32 %v4190, %v4240
          %v4247 = vsub.f32 %v4191, %v4241
          %v4248 = vsub.f32 %v4192, %v4242
          %v4249 = vsub.f32 %v4193, %v4243
          %v4250 = vsub.f32 %v4194, %v4244
          %s4251 = sld [smem:[#allocation9 + $0x32]]
          %v4252 = vstv %s4251
          %v4253 = vmul.f32 %v4114, %v4252
          %v4254 = vmul.f32 %v4116, %v4252
          %v4255 = vmul.f32 %v4118, %v4252
          %v4256 = vmul.f32 %v4120, %v4252
          %v4257 = vmul.f32 %v4122, %v4252
          %v4258 = vmul.f32 %v4124, %v4252
          %v4259 = vsub.f32 %v4203, %v4253
          %v4260 = vsub.f32 %v4204, %v4254
          %v4261 = vsub.f32 %v4205, %v4255
          %v4262 = vsub.f32 %v4206, %v4256
          %v4263 = vsub.f32 %v4207, %v4257
          %v4264 = vsub.f32 %v4208, %v4258
          %s4265 = sld [smem:[#allocation9 + $0x56]]
          %v4266 = vstv %s4265
          %v4267 = vmul.f32 %v4114, %v4266
          %v4268 = vmul.f32 %v4116, %v4266
          %v4269 = vmul.f32 %v4118, %v4266
          %v4270 = vmul.f32 %v4120, %v4266
          %v4271 = vmul.f32 %v4122, %v4266
          %v4272 = vmul.f32 %v4124, %v4266
          %v4273 = vsub.f32 %v4217, %v4267
          %v4274 = vsub.f32 %v4218, %v4268
          %v4275 = vsub.f32 %v4219, %v4269
          %v4276 = vsub.f32 %v4220, %v4270
          %v4277 = vsub.f32 %v4221, %v4271
          %v4278 = vsub.f32 %v4222, %v4272
          %s4279 = sld [smem:[#allocation9 + $0x7a]]
          %v4280 = vstv %s4279
          %v4281 = vmul.f32 %v4114, %v4280
          %v4282 = vmul.f32 %v4116, %v4280
          %v4283 = vmul.f32 %v4118, %v4280
          %v4284 = vmul.f32 %v4120, %v4280
          %v4285 = vmul.f32 %v4122, %v4280
          %v4286 = vmul.f32 %v4124, %v4280
          %v4287 = vsub.f32 %v4231, %v4281
          %v4288 = vsub.f32 %v4232, %v4282
          %v4289 = vsub.f32 %v4233, %v4283
          %v4290 = vsub.f32 %v4234, %v4284
          %v4291 = vsub.f32 %v4235, %v4285
          %v4292 = vsub.f32 %v4236, %v4286
          %v4293 = vrot.slane %v3891, 1
          %v4294 = vrot.slane %v3892, 1
          %v4295 = vrot.slane %v3893, 1
          %v4296 = vrot.slane %v3894, 1
          %v4297 = vrot.slane %v3895, 1
          %v4298 = vrot.slane %v3896, 1
          %v4299 = vsel %vm877, %v4297, %v4298
          %v4300 = vsel %vm877, %v4296, %v4297
          %v4301 = vsel %vm877, %v4295, %v4296
          %v4302 = vsel %vm877, %v4294, %v4295
          %v4303 = vsel %vm877, %v4293, %v4294
          %v4304 = vsel %vm877, %v4298, %v4293
          %4305 = vrot.lane.b32.xlu0 %v4303, 1
          %v4306 = vpop.permute.xlu0 %4305
          %4307 = vrot.lane.b32.xlu0 %v4302, 1
          %v4308 = vpop.permute.xlu0 %4307
          %4309 = vrot.lane.b32.xlu0 %v4301, 1
          %v4310 = vpop.permute.xlu0 %4309
          %4311 = vrot.lane.b32.xlu0 %v4300, 1
          %v4312 = vpop.permute.xlu0 %4311
          %4313 = vrot.lane.b32.xlu0 %v4299, 1
          %v4314 = vpop.permute.xlu0 %4313
          %4315 = vrot.lane.b32.xlu0 %v4304, 1
          %v4316 = vpop.permute.xlu0 %4315
          %4317 = vrot.lane.b32.xlu0 %v4303, 127
          %v4318 = vpop.permute.xlu0 %4317
          %4319 = vrot.lane.b32.xlu0 %v4302, 127
          %v4320 = vpop.permute.xlu0 %4319
          %4321 = vrot.lane.b32.xlu0 %v4301, 127
          %v4322 = vpop.permute.xlu0 %4321
          %4323 = vrot.lane.b32.xlu0 %v4300, 127
          %v4324 = vpop.permute.xlu0 %4323
          %4325 = vrot.lane.b32.xlu0 %v4299, 127
          %v4326 = vpop.permute.xlu0 %4325
          %4327 = vrot.lane.b32.xlu0 %v4304, 127
          %v4328 = vpop.permute.xlu0 %4327
          %s4329 = sld [smem:[#allocation9 + $0xf]]
          %v4330 = vstv %s4329
          %v4331 = vmul.f32 %v4306, %v4330
          %v4332 = vmul.f32 %v4308, %v4330
          %v4333 = vmul.f32 %v4310, %v4330
          %v4334 = vmul.f32 %v4312, %v4330
          %v4335 = vmul.f32 %v4314, %v4330
          %v4336 = vmul.f32 %v4316, %v4330
          %v4337 = vsub.f32 %v4245, %v4331
          %v4338 = vsub.f32 %v4246, %v4332
          %v4339 = vsub.f32 %v4247, %v4333
          %v4340 = vsub.f32 %v4248, %v4334
          %v4341 = vsub.f32 %v4249, %v4335
          %v4342 = vsub.f32 %v4250, %v4336
          %s4343 = sld [smem:[#allocation9 + $0x33]]
          %v4344 = vstv %s4343
          %v4345 = vmul.f32 %v4306, %v4344
          %v4346 = vmul.f32 %v4308, %v4344
          %v4347 = vmul.f32 %v4310, %v4344
          %v4348 = vmul.f32 %v4312, %v4344
          %v4349 = vmul.f32 %v4314, %v4344
          %v4350 = vmul.f32 %v4316, %v4344
          %v4351 = vsub.f32 %v4259, %v4345
          %v4352 = vsub.f32 %v4260, %v4346
          %v4353 = vsub.f32 %v4261, %v4347
          %v4354 = vsub.f32 %v4262, %v4348
          %v4355 = vsub.f32 %v4263, %v4349
          %v4356 = vsub.f32 %v4264, %v4350
          %s4357 = sld [smem:[#allocation9 + $0x57]]
          %v4358 = vstv %s4357
          %v4359 = vmul.f32 %v4306, %v4358
          %v4360 = vmul.f32 %v4308, %v4358
          %v4361 = vmul.f32 %v4310, %v4358
          %v4362 = vmul.f32 %v4312, %v4358
          %v4363 = vmul.f32 %v4314, %v4358
          %v4364 = vmul.f32 %v4316, %v4358
          %v4365 = vsub.f32 %v4273, %v4359
          %v4366 = vsub.f32 %v4274, %v4360
          %v4367 = vsub.f32 %v4275, %v4361
          %v4368 = vsub.f32 %v4276, %v4362
          %v4369 = vsub.f32 %v4277, %v4363
          %v4370 = vsub.f32 %v4278, %v4364
          %s4371 = sld [smem:[#allocation9 + $0x7b]]
          %v4372 = vstv %s4371
          %v4373 = vmul.f32 %v4306, %v4372
          %v4374 = vmul.f32 %v4308, %v4372
          %v4375 = vmul.f32 %v4310, %v4372
          %v4376 = vmul.f32 %v4312, %v4372
          %v4377 = vmul.f32 %v4314, %v4372
          %v4378 = vmul.f32 %v4316, %v4372
          %v4379 = vsub.f32 %v4287, %v4373
          %v4380 = vsub.f32 %v4288, %v4374
          %v4381 = vsub.f32 %v4289, %v4375
          %v4382 = vsub.f32 %v4290, %v4376
          %v4383 = vsub.f32 %v4291, %v4377
          %v4384 = vsub.f32 %v4292, %v4378
          %s4385 = sld [smem:[#allocation9 + $0x10]]
          %v4386 = vstv %s4385
          %v4387 = vmul.f32 %v4303, %v4386
          %v4388 = vmul.f32 %v4302, %v4386
          %v4389 = vmul.f32 %v4301, %v4386
          %v4390 = vmul.f32 %v4300, %v4386
          %v4391 = vmul.f32 %v4299, %v4386
          %v4392 = vmul.f32 %v4304, %v4386
          %v4393 = vsub.f32 %v4337, %v4387
          %v4394 = vsub.f32 %v4338, %v4388
          %v4395 = vsub.f32 %v4339, %v4389
          %v4396 = vsub.f32 %v4340, %v4390
          %v4397 = vsub.f32 %v4341, %v4391
          %v4398 = vsub.f32 %v4342, %v4392
          %s4399 = sld [smem:[#allocation9 + $0x34]]
          %v4400 = vstv %s4399
          %v4401 = vmul.f32 %v4303, %v4400
          %v4402 = vmul.f32 %v4302, %v4400
          %v4403 = vmul.f32 %v4301, %v4400
          %v4404 = vmul.f32 %v4300, %v4400
          %v4405 = vmul.f32 %v4299, %v4400
          %v4406 = vmul.f32 %v4304, %v4400
          %v4407 = vsub.f32 %v4351, %v4401
          %v4408 = vsub.f32 %v4352, %v4402
          %v4409 = vsub.f32 %v4353, %v4403
          %v4410 = vsub.f32 %v4354, %v4404
          %v4411 = vsub.f32 %v4355, %v4405
          %v4412 = vsub.f32 %v4356, %v4406
          %s4413 = sld [smem:[#allocation9 + $0x58]]
          %v4414 = vstv %s4413
          %v4415 = vmul.f32 %v4303, %v4414
          %v4416 = vmul.f32 %v4302, %v4414
          %v4417 = vmul.f32 %v4301, %v4414
          %v4418 = vmul.f32 %v4300, %v4414
          %v4419 = vmul.f32 %v4299, %v4414
          %v4420 = vmul.f32 %v4304, %v4414
          %v4421 = vsub.f32 %v4365, %v4415
          %v4422 = vsub.f32 %v4366, %v4416
          %v4423 = vsub.f32 %v4367, %v4417
          %v4424 = vsub.f32 %v4368, %v4418
          %v4425 = vsub.f32 %v4369, %v4419
          %v4426 = vsub.f32 %v4370, %v4420
          %s4427 = sld [smem:[#allocation9 + $0x7c]]
          %v4428 = vstv %s4427
          %v4429 = vmul.f32 %v4303, %v4428
          %v4430 = vmul.f32 %v4302, %v4428
          %v4431 = vmul.f32 %v4301, %v4428
          %v4432 = vmul.f32 %v4300, %v4428
          %v4433 = vmul.f32 %v4299, %v4428
          %v4434 = vmul.f32 %v4304, %v4428
          %v4435 = vsub.f32 %v4379, %v4429
          %v4436 = vsub.f32 %v4380, %v4430
          %v4437 = vsub.f32 %v4381, %v4431
          %v4438 = vsub.f32 %v4382, %v4432
          %v4439 = vsub.f32 %v4383, %v4433
          %v4440 = vsub.f32 %v4384, %v4434
          %s4441 = sld [smem:[#allocation9 + $0x11]]
          %v4442 = vstv %s4441
          %v4443 = vmul.f32 %v4318, %v4442
          %v4444 = vmul.f32 %v4320, %v4442
          %v4445 = vmul.f32 %v4322, %v4442
          %v4446 = vmul.f32 %v4324, %v4442
          %v4447 = vmul.f32 %v4326, %v4442
          %v4448 = vmul.f32 %v4328, %v4442
          %v4449 = vsub.f32 %v4393, %v4443
          %v4450 = vsub.f32 %v4394, %v4444
          %v4451 = vsub.f32 %v4395, %v4445
          %v4452 = vsub.f32 %v4396, %v4446
          %v4453 = vsub.f32 %v4397, %v4447
          %v4454 = vsub.f32 %v4398, %v4448
          %s4455 = sld [smem:[#allocation9 + $0x35]]
          %v4456 = vstv %s4455
          %v4457 = vmul.f32 %v4318, %v4456
          %v4458 = vmul.f32 %v4320, %v4456
          %v4459 = vmul.f32 %v4322, %v4456
          %v4460 = vmul.f32 %v4324, %v4456
          %v4461 = vmul.f32 %v4326, %v4456
          %v4462 = vmul.f32 %v4328, %v4456
          %v4463 = vsub.f32 %v4407, %v4457
          %v4464 = vsub.f32 %v4408, %v4458
          %v4465 = vsub.f32 %v4409, %v4459
          %v4466 = vsub.f32 %v4410, %v4460
          %v4467 = vsub.f32 %v4411, %v4461
          %v4468 = vsub.f32 %v4412, %v4462
          %s4469 = sld [smem:[#allocation9 + $0x59]]
          %v4470 = vstv %s4469
          %v4471 = vmul.f32 %v4318, %v4470
          %v4472 = vmul.f32 %v4320, %v4470
          %v4473 = vmul.f32 %v4322, %v4470
          %v4474 = vmul.f32 %v4324, %v4470
          %v4475 = vmul.f32 %v4326, %v4470
          %v4476 = vmul.f32 %v4328, %v4470
          %v4477 = vsub.f32 %v4421, %v4471
          %v4478 = vsub.f32 %v4422, %v4472
          %v4479 = vsub.f32 %v4423, %v4473
          %v4480 = vsub.f32 %v4424, %v4474
          %v4481 = vsub.f32 %v4425, %v4475
          %v4482 = vsub.f32 %v4426, %v4476
          %s4483 = sld [smem:[#allocation9 + $0x7d]]
          %v4484 = vstv %s4483
          %v4485 = vmul.f32 %v4318, %v4484
          %v4486 = vmul.f32 %v4320, %v4484
          %v4487 = vmul.f32 %v4322, %v4484
          %v4488 = vmul.f32 %v4324, %v4484
          %v4489 = vmul.f32 %v4326, %v4484
          %v4490 = vmul.f32 %v4328, %v4484
          %v4491 = vsub.f32 %v4435, %v4485
          %v4492 = vsub.f32 %v4436, %v4486
          %v4493 = vsub.f32 %v4437, %v4487
          %v4494 = vsub.f32 %v4438, %v4488
          %v4495 = vsub.f32 %v4439, %v4489
          %v4496 = vsub.f32 %v4440, %v4490
          %s4497 = smul.f32 %s3166, %s352
          %v4498 = vstv %s4497
          %v4499 = vmul.f32 %v3027, %v4498
          %v4500 = vmul.f32 %v3028, %v4498
          %v4501 = vmul.f32 %v3029, %v4498
          %v4502 = vmul.f32 %v3030, %v4498
          %v4503 = vmul.f32 %v3031, %v4498
          %v4504 = vmul.f32 %v3032, %v4498
          %s4505 = smul.f32 %s3145, %s4497
          %s4506 = ssub.f32 %s356, %s4505
          %v4507 = vstv %s4506
          %v4508 = vadd.f32 %v4499, %v4507
          %v4509 = vadd.f32 %v4500, %v4507
          %v4510 = vadd.f32 %v4501, %v4507
          %v4511 = vadd.f32 %v4502, %v4507
          %v4512 = vadd.f32 %v4503, %v4507
          %v4513 = vadd.f32 %v4504, %v4507
          %v4514 = vxor.u32 %v4508, 2147483648
          %v4515 = vxor.u32 %v4509, 2147483648
          %v4516 = vxor.u32 %v4510, 2147483648
          %v4517 = vxor.u32 %v4511, 2147483648
          %v4518 = vxor.u32 %v4512, 2147483648
          %v4519 = vxor.u32 %v4513, 2147483648
          %v4520 = vmul.f32 %v4514, 1.442695
          %v4521 = vpow.pop %v4520
          %v4522 = vmul.f32 %v4515, 1.442695
          %v4523 = vpow.pop %v4522
          %v4524 = vmul.f32 %v4516, 1.442695
          %v4525 = vpow.pop %v4524
          %v4526 = vmul.f32 %v4517, 1.442695
          %v4527 = vpow.pop %v4526
          %v4528 = vmul.f32 %v4518, 1.442695
          %v4529 = vpow.pop %v4528
          %v4530 = vmul.f32 %v4519, 1.442695
          %v4531 = vpow.pop %v4530
          %v4532 = vadd.f32 %v4521, 1.0
          %v4533 = vadd.f32 %v4523, 1.0
          %v4534 = vadd.f32 %v4525, 1.0
          %v4535 = vadd.f32 %v4527, 1.0
          %v4536 = vadd.f32 %v4529, 1.0
          %v4537 = vadd.f32 %v4531, 1.0
          %v4538 = vrcp.pop %v4532
          %v4539 = vmul.f32 1.0, %v4538
          %v4540 = vrcp.pop %v4533
          %v4541 = vmul.f32 1.0, %v4540
          %v4542 = vrcp.pop %v4534
          %v4543 = vmul.f32 1.0, %v4542
          %v4544 = vrcp.pop %v4535
          %v4545 = vmul.f32 1.0, %v4544
          %v4546 = vrcp.pop %v4536
          %v4547 = vmul.f32 1.0, %v4546
          %v4548 = vrcp.pop %v4537
          %v4549 = vmul.f32 1.0, %v4548
          %v4550 = vmul.f32 %v4508, %v4539
          %v4551 = vmul.f32 %v4509, %v4541
          %v4552 = vmul.f32 %v4510, %v4543
          %v4553 = vmul.f32 %v4511, %v4545
          %v4554 = vmul.f32 %v4512, %v4547
          %v4555 = vmul.f32 %v4513, %v4549
          %v4556 = vmul.f32 %v4550, %v344
          %v4557 = vmul.f32 %v4551, %v345
          %v4558 = vmul.f32 %v4552, %v346
          %v4559 = vmul.f32 %v4553, %v347
          %v4560 = vmul.f32 %v4554, %v348
          %v4561 = vmul.f32 %v4555, %v349
          %v4562 = vrot.slane %v4556, 7
          %v4563 = vrot.slane %v4557, 7
          %v4564 = vrot.slane %v4558, 7
          %v4565 = vrot.slane %v4559, 7
          %v4566 = vrot.slane %v4560, 7
          %v4567 = vrot.slane %v4561, 7
          %v4568 = vsel %vm480, %v4566, %v4567
          %v4569 = vsel %vm480, %v4565, %v4566
          %v4570 = vsel %vm480, %v4564, %v4565
          %v4571 = vsel %vm480, %v4563, %v4564
          %v4572 = vsel %vm480, %v4562, %v4563
          %v4573 = vsel %vm480, %v4567, %v4562
          %4574 = vrot.lane.b32.xlu0 %v4573, 1
          %v4575 = vpop.permute.xlu0 %4574
          %4576 = vrot.lane.b32.xlu0 %v4572, 1
          %v4577 = vpop.permute.xlu0 %4576
          %4578 = vrot.lane.b32.xlu0 %v4571, 1
          %v4579 = vpop.permute.xlu0 %4578
          %4580 = vrot.lane.b32.xlu0 %v4570, 1
          %v4581 = vpop.permute.xlu0 %4580
          %4582 = vrot.lane.b32.xlu0 %v4569, 1
          %v4583 = vpop.permute.xlu0 %4582
          %4584 = vrot.lane.b32.xlu0 %v4568, 1
          %v4585 = vpop.permute.xlu0 %4584
          %4586 = vrot.lane.b32.xlu0 %v4573, 127
          %v4587 = vpop.permute.xlu0 %4586
          %4588 = vrot.lane.b32.xlu0 %v4572, 127
          %v4589 = vpop.permute.xlu0 %4588
          %4590 = vrot.lane.b32.xlu0 %v4571, 127
          %v4591 = vpop.permute.xlu0 %4590
          %4592 = vrot.lane.b32.xlu0 %v4570, 127
          %v4593 = vpop.permute.xlu0 %4592
          %4594 = vrot.lane.b32.xlu0 %v4569, 127
          %v4595 = vpop.permute.xlu0 %4594
          %4596 = vrot.lane.b32.xlu0 %v4568, 127
          %v4597 = vpop.permute.xlu0 %4596
          %s4598 = sld [smem:[#allocation9 + $0x12]]
          %v4599 = vstv %s4598
          %v4600 = vmul.f32 %v4575, %v4599
          %v4601 = vmul.f32 %v4577, %v4599
          %v4602 = vmul.f32 %v4579, %v4599
          %v4603 = vmul.f32 %v4581, %v4599
          %v4604 = vmul.f32 %v4583, %v4599
          %v4605 = vmul.f32 %v4585, %v4599
          %v4606 = vsub.f32 %v4449, %v4600
          %v4607 = vsub.f32 %v4450, %v4601
          %v4608 = vsub.f32 %v4451, %v4602
          %v4609 = vsub.f32 %v4452, %v4603
          %v4610 = vsub.f32 %v4453, %v4604
          %v4611 = vsub.f32 %v4454, %v4605
          %s4612 = sld [smem:[#allocation9 + $0x36]]
          %v4613 = vstv %s4612
          %v4614 = vmul.f32 %v4575, %v4613
          %v4615 = vmul.f32 %v4577, %v4613
          %v4616 = vmul.f32 %v4579, %v4613
          %v4617 = vmul.f32 %v4581, %v4613
          %v4618 = vmul.f32 %v4583, %v4613
          %v4619 = vmul.f32 %v4585, %v4613
          %v4620 = vsub.f32 %v4463, %v4614
          %v4621 = vsub.f32 %v4464, %v4615
          %v4622 = vsub.f32 %v4465, %v4616
          %v4623 = vsub.f32 %v4466, %v4617
          %v4624 = vsub.f32 %v4467, %v4618
          %v4625 = vsub.f32 %v4468, %v4619
          %s4626 = sld [smem:[#allocation9 + $0x5a]]
          %v4627 = vstv %s4626
          %v4628 = vmul.f32 %v4575, %v4627
          %v4629 = vmul.f32 %v4577, %v4627
          %v4630 = vmul.f32 %v4579, %v4627
          %v4631 = vmul.f32 %v4581, %v4627
          %v4632 = vmul.f32 %v4583, %v4627
          %v4633 = vmul.f32 %v4585, %v4627
          %v4634 = vsub.f32 %v4477, %v4628
          %v4635 = vsub.f32 %v4478, %v4629
          %v4636 = vsub.f32 %v4479, %v4630
          %v4637 = vsub.f32 %v4480, %v4631
          %v4638 = vsub.f32 %v4481, %v4632
          %v4639 = vsub.f32 %v4482, %v4633
          %s4640 = sld [smem:[#allocation9 + $0x7e]]
          %v4641 = vstv %s4640
          %v4642 = vmul.f32 %v4575, %v4641
          %v4643 = vmul.f32 %v4577, %v4641
          %v4644 = vmul.f32 %v4579, %v4641
          %v4645 = vmul.f32 %v4581, %v4641
          %v4646 = vmul.f32 %v4583, %v4641
          %v4647 = vmul.f32 %v4585, %v4641
          %v4648 = vsub.f32 %v4491, %v4642
          %v4649 = vsub.f32 %v4492, %v4643
          %v4650 = vsub.f32 %v4493, %v4644
          %v4651 = vsub.f32 %v4494, %v4645
          %v4652 = vsub.f32 %v4495, %v4646
          %v4653 = vsub.f32 %v4496, %v4647
          %s4654 = sld [smem:[#allocation9 + $0x13]]
          %v4655 = vstv %s4654
          %v4656 = vmul.f32 %v4573, %v4655
          %v4657 = vmul.f32 %v4572, %v4655
          %v4658 = vmul.f32 %v4571, %v4655
          %v4659 = vmul.f32 %v4570, %v4655
          %v4660 = vmul.f32 %v4569, %v4655
          %v4661 = vmul.f32 %v4568, %v4655
          %v4662 = vsub.f32 %v4606, %v4656
          %v4663 = vsub.f32 %v4607, %v4657
          %v4664 = vsub.f32 %v4608, %v4658
          %v4665 = vsub.f32 %v4609, %v4659
          %v4666 = vsub.f32 %v4610, %v4660
          %v4667 = vsub.f32 %v4611, %v4661
          %s4668 = sld [smem:[#allocation9 + $0x37]]
          %v4669 = vstv %s4668
          %v4670 = vmul.f32 %v4573, %v4669
          %v4671 = vmul.f32 %v4572, %v4669
          %v4672 = vmul.f32 %v4571, %v4669
          %v4673 = vmul.f32 %v4570, %v4669
          %v4674 = vmul.f32 %v4569, %v4669
          %v4675 = vmul.f32 %v4568, %v4669
          %v4676 = vsub.f32 %v4620, %v4670
          %v4677 = vsub.f32 %v4621, %v4671
          %v4678 = vsub.f32 %v4622, %v4672
          %v4679 = vsub.f32 %v4623, %v4673
          %v4680 = vsub.f32 %v4624, %v4674
          %v4681 = vsub.f32 %v4625, %v4675
          %s4682 = sld [smem:[#allocation9 + $0x5b]]
          %v4683 = vstv %s4682
          %v4684 = vmul.f32 %v4573, %v4683
          %v4685 = vmul.f32 %v4572, %v4683
          %v4686 = vmul.f32 %v4571, %v4683
          %v4687 = vmul.f32 %v4570, %v4683
          %v4688 = vmul.f32 %v4569, %v4683
          %v4689 = vmul.f32 %v4568, %v4683
          %v4690 = vsub.f32 %v4634, %v4684
          %v4691 = vsub.f32 %v4635, %v4685
          %v4692 = vsub.f32 %v4636, %v4686
          %v4693 = vsub.f32 %v4637, %v4687
          %v4694 = vsub.f32 %v4638, %v4688
          %v4695 = vsub.f32 %v4639, %v4689
          %s4696 = sld [smem:[#allocation9 + $0x7f]]
          %v4697 = vstv %s4696
          %v4698 = vmul.f32 %v4573, %v4697
          %v4699 = vmul.f32 %v4572, %v4697
          %v4700 = vmul.f32 %v4571, %v4697
          %v4701 = vmul.f32 %v4570, %v4697
          %v4702 = vmul.f32 %v4569, %v4697
          %v4703 = vmul.f32 %v4568, %v4697
          %v4704 = vsub.f32 %v4648, %v4698
          %v4705 = vsub.f32 %v4649, %v4699
          %v4706 = vsub.f32 %v4650, %v4700
          %v4707 = vsub.f32 %v4651, %v4701
          %v4708 = vsub.f32 %v4652, %v4702
          %v4709 = vsub.f32 %v4653, %v4703
          %s4710 = sld [smem:[#allocation9 + $0x14]]
          %v4711 = vstv %s4710
          %v4712 = vmul.f32 %v4587, %v4711
          %v4713 = vmul.f32 %v4589, %v4711
          %v4714 = vmul.f32 %v4591, %v4711
          %v4715 = vmul.f32 %v4593, %v4711
          %v4716 = vmul.f32 %v4595, %v4711
          %v4717 = vmul.f32 %v4597, %v4711
          %v4718 = vsub.f32 %v4662, %v4712
          %v4719 = vsub.f32 %v4663, %v4713
          %v4720 = vsub.f32 %v4664, %v4714
          %v4721 = vsub.f32 %v4665, %v4715
          %v4722 = vsub.f32 %v4666, %v4716
          %v4723 = vsub.f32 %v4667, %v4717
          %s4724 = sld [smem:[#allocation9 + $0x38]]
          %v4725 = vstv %s4724
          %v4726 = vmul.f32 %v4587, %v4725
          %v4727 = vmul.f32 %v4589, %v4725
          %v4728 = vmul.f32 %v4591, %v4725
          %v4729 = vmul.f32 %v4593, %v4725
          %v4730 = vmul.f32 %v4595, %v4725
          %v4731 = vmul.f32 %v4597, %v4725
          %v4732 = vsub.f32 %v4676, %v4726
          %v4733 = vsub.f32 %v4677, %v4727
          %v4734 = vsub.f32 %v4678, %v4728
          %v4735 = vsub.f32 %v4679, %v4729
          %v4736 = vsub.f32 %v4680, %v4730
          %v4737 = vsub.f32 %v4681, %v4731
          %s4738 = sld [smem:[#allocation9 + $0x5c]]
          %v4739 = vstv %s4738
          %v4740 = vmul.f32 %v4587, %v4739
          %v4741 = vmul.f32 %v4589, %v4739
          %v4742 = vmul.f32 %v4591, %v4739
          %v4743 = vmul.f32 %v4593, %v4739
          %v4744 = vmul.f32 %v4595, %v4739
          %v4745 = vmul.f32 %v4597, %v4739
          %v4746 = vsub.f32 %v4690, %v4740
          %v4747 = vsub.f32 %v4691, %v4741
          %v4748 = vsub.f32 %v4692, %v4742
          %v4749 = vsub.f32 %v4693, %v4743
          %v4750 = vsub.f32 %v4694, %v4744
          %v4751 = vsub.f32 %v4695, %v4745
          %s4752 = sld [smem:[#allocation9 + $0x80]]
          %v4753 = vstv %s4752
          %v4754 = vmul.f32 %v4587, %v4753
          %v4755 = vmul.f32 %v4589, %v4753
          %v4756 = vmul.f32 %v4591, %v4753
          %v4757 = vmul.f32 %v4593, %v4753
          %v4758 = vmul.f32 %v4595, %v4753
          %v4759 = vmul.f32 %v4597, %v4753
          %v4760 = vsub.f32 %v4704, %v4754
          %v4761 = vsub.f32 %v4705, %v4755
          %v4762 = vsub.f32 %v4706, %v4756
          %v4763 = vsub.f32 %v4707, %v4757
          %v4764 = vsub.f32 %v4708, %v4758
          %v4765 = vsub.f32 %v4709, %v4759
          %4766 = vrot.lane.b32.xlu0 %v4556, 1
          %v4767 = vpop.permute.xlu0 %4766
          %4768 = vrot.lane.b32.xlu0 %v4557, 1
          %v4769 = vpop.permute.xlu0 %4768
          %4770 = vrot.lane.b32.xlu0 %v4558, 1
          %v4771 = vpop.permute.xlu0 %4770
          %4772 = vrot.lane.b32.xlu0 %v4559, 1
          %v4773 = vpop.permute.xlu0 %4772
          %4774 = vrot.lane.b32.xlu0 %v4560, 1
          %v4775 = vpop.permute.xlu0 %4774
          %4776 = vrot.lane.b32.xlu0 %v4561, 1
          %v4777 = vpop.permute.xlu0 %4776
          %4778 = vrot.lane.b32.xlu0 %v4556, 127
          %v4779 = vpop.permute.xlu0 %4778
          %4780 = vrot.lane.b32.xlu0 %v4557, 127
          %v4781 = vpop.permute.xlu0 %4780
          %4782 = vrot.lane.b32.xlu0 %v4558, 127
          %v4783 = vpop.permute.xlu0 %4782
          %4784 = vrot.lane.b32.xlu0 %v4559, 127
          %v4785 = vpop.permute.xlu0 %4784
          %4786 = vrot.lane.b32.xlu0 %v4560, 127
          %v4787 = vpop.permute.xlu0 %4786
          %4788 = vrot.lane.b32.xlu0 %v4561, 127
          %v4789 = vpop.permute.xlu0 %4788
          %s4790 = sld [smem:[#allocation9 + $0x15]]
          %v4791 = vstv %s4790
          %v4792 = vmul.f32 %v4767, %v4791
          %v4793 = vmul.f32 %v4769, %v4791
          %v4794 = vmul.f32 %v4771, %v4791
          %v4795 = vmul.f32 %v4773, %v4791
          %v4796 = vmul.f32 %v4775, %v4791
          %v4797 = vmul.f32 %v4777, %v4791
          %v4798 = vsub.f32 %v4718, %v4792
          %v4799 = vsub.f32 %v4719, %v4793
          %v4800 = vsub.f32 %v4720, %v4794
          %v4801 = vsub.f32 %v4721, %v4795
          %v4802 = vsub.f32 %v4722, %v4796
          %v4803 = vsub.f32 %v4723, %v4797
          %s4804 = sld [smem:[#allocation9 + $0x39]]
          %v4805 = vstv %s4804
          %v4806 = vmul.f32 %v4767, %v4805
          %v4807 = vmul.f32 %v4769, %v4805
          %v4808 = vmul.f32 %v4771, %v4805
          %v4809 = vmul.f32 %v4773, %v4805
          %v4810 = vmul.f32 %v4775, %v4805
          %v4811 = vmul.f32 %v4777, %v4805
          %v4812 = vsub.f32 %v4732, %v4806
          %v4813 = vsub.f32 %v4733, %v4807
          %v4814 = vsub.f32 %v4734, %v4808
          %v4815 = vsub.f32 %v4735, %v4809
          %v4816 = vsub.f32 %v4736, %v4810
          %v4817 = vsub.f32 %v4737, %v4811
          %s4818 = sld [smem:[#allocation9 + $0x5d]]
          %v4819 = vstv %s4818
          %v4820 = vmul.f32 %v4767, %v4819
          %v4821 = vmul.f32 %v4769, %v4819
          %v4822 = vmul.f32 %v4771, %v4819
          %v4823 = vmul.f32 %v4773, %v4819
          %v4824 = vmul.f32 %v4775, %v4819
          %v4825 = vmul.f32 %v4777, %v4819
          %v4826 = vsub.f32 %v4746, %v4820
          %v4827 = vsub.f32 %v4747, %v4821
          %v4828 = vsub.f32 %v4748, %v4822
          %v4829 = vsub.f32 %v4749, %v4823
          %v4830 = vsub.f32 %v4750, %v4824
          %v4831 = vsub.f32 %v4751, %v4825
          %s4832 = sld [smem:[#allocation9 + $0x81]]
          %v4833 = vstv %s4832
          %v4834 = vmul.f32 %v4767, %v4833
          %v4835 = vmul.f32 %v4769, %v4833
          %v4836 = vmul.f32 %v4771, %v4833
          %v4837 = vmul.f32 %v4773, %v4833
          %v4838 = vmul.f32 %v4775, %v4833
          %v4839 = vmul.f32 %v4777, %v4833
          %v4840 = vsub.f32 %v4760, %v4834
          %v4841 = vsub.f32 %v4761, %v4835
          %v4842 = vsub.f32 %v4762, %v4836
          %v4843 = vsub.f32 %v4763, %v4837
          %v4844 = vsub.f32 %v4764, %v4838
          %v4845 = vsub.f32 %v4765, %v4839
          %s4846 = sld [smem:[#allocation9 + $0x16]]
          %v4847 = vstv %s4846
          %v4848 = vmul.f32 %v4556, %v4847
          %v4849 = vmul.f32 %v4557, %v4847
          %v4850 = vmul.f32 %v4558, %v4847
          %v4851 = vmul.f32 %v4559, %v4847
          %v4852 = vmul.f32 %v4560, %v4847
          %v4853 = vmul.f32 %v4561, %v4847
          %v4854 = vsub.f32 %v4798, %v4848
          %v4855 = vsub.f32 %v4799, %v4849
          %v4856 = vsub.f32 %v4800, %v4850
          %v4857 = vsub.f32 %v4801, %v4851
          %v4858 = vsub.f32 %v4802, %v4852
          %v4859 = vsub.f32 %v4803, %v4853
          %s4860 = sld [smem:[#allocation9 + $0x3a]]
          %v4861 = vstv %s4860
          %v4862 = vmul.f32 %v4556, %v4861
          %v4863 = vmul.f32 %v4557, %v4861
          %v4864 = vmul.f32 %v4558, %v4861
          %v4865 = vmul.f32 %v4559, %v4861
          %v4866 = vmul.f32 %v4560, %v4861
          %v4867 = vmul.f32 %v4561, %v4861
          %v4868 = vsub.f32 %v4812, %v4862
          %v4869 = vsub.f32 %v4813, %v4863
          %v4870 = vsub.f32 %v4814, %v4864
          %v4871 = vsub.f32 %v4815, %v4865
          %v4872 = vsub.f32 %v4816, %v4866
          %v4873 = vsub.f32 %v4817, %v4867
          %s4874 = sld [smem:[#allocation9 + $0x5e]]
          %v4875 = vstv %s4874
          %v4876 = vmul.f32 %v4556, %v4875
          %v4877 = vmul.f32 %v4557, %v4875
          %v4878 = vmul.f32 %v4558, %v4875
          %v4879 = vmul.f32 %v4559, %v4875
          %v4880 = vmul.f32 %v4560, %v4875
          %v4881 = vmul.f32 %v4561, %v4875
          %v4882 = vsub.f32 %v4826, %v4876
          %v4883 = vsub.f32 %v4827, %v4877
          %v4884 = vsub.f32 %v4828, %v4878
          %v4885 = vsub.f32 %v4829, %v4879
          %v4886 = vsub.f32 %v4830, %v4880
          %v4887 = vsub.f32 %v4831, %v4881
          %s4888 = sld [smem:[#allocation9 + $0x82]]
          %v4889 = vstv %s4888
          %v4890 = vmul.f32 %v4556, %v4889
          %v4891 = vmul.f32 %v4557, %v4889
          %v4892 = vmul.f32 %v4558, %v4889
          %v4893 = vmul.f32 %v4559, %v4889
          %v4894 = vmul.f32 %v4560, %v4889
          %v4895 = vmul.f32 %v4561, %v4889
          %v4896 = vsub.f32 %v4840, %v4890
          %v4897 = vsub.f32 %v4841, %v4891
          %v4898 = vsub.f32 %v4842, %v4892
          %v4899 = vsub.f32 %v4843, %v4893
          %v4900 = vsub.f32 %v4844, %v4894
          %v4901 = vsub.f32 %v4845, %v4895
          %s4902 = sld [smem:[#allocation9 + $0x17]]
          %v4903 = vstv %s4902
          %v4904 = vmul.f32 %v4779, %v4903
          %v4905 = vmul.f32 %v4781, %v4903
          %v4906 = vmul.f32 %v4783, %v4903
          %v4907 = vmul.f32 %v4785, %v4903
          %v4908 = vmul.f32 %v4787, %v4903
          %v4909 = vmul.f32 %v4789, %v4903
          %v4910 = vsub.f32 %v4854, %v4904
          %v4911 = vsub.f32 %v4855, %v4905
          %v4912 = vsub.f32 %v4856, %v4906
          %v4913 = vsub.f32 %v4857, %v4907
          %v4914 = vsub.f32 %v4858, %v4908
          %v4915 = vsub.f32 %v4859, %v4909
          %s4916 = sld [smem:[#allocation9 + $0x3b]]
          %v4917 = vstv %s4916
          %v4918 = vmul.f32 %v4779, %v4917
          %v4919 = vmul.f32 %v4781, %v4917
          %v4920 = vmul.f32 %v4783, %v4917
          %v4921 = vmul.f32 %v4785, %v4917
          %v4922 = vmul.f32 %v4787, %v4917
          %v4923 = vmul.f32 %v4789, %v4917
          %v4924 = vsub.f32 %v4868, %v4918
          %v4925 = vsub.f32 %v4869, %v4919
          %v4926 = vsub.f32 %v4870, %v4920
          %v4927 = vsub.f32 %v4871, %v4921
          %v4928 = vsub.f32 %v4872, %v4922
          %v4929 = vsub.f32 %v4873, %v4923
          %s4930 = sld [smem:[#allocation9 + $0x5f]]
          %v4931 = vstv %s4930
          %v4932 = vmul.f32 %v4779, %v4931
          %v4933 = vmul.f32 %v4781, %v4931
          %v4934 = vmul.f32 %v4783, %v4931
          %v4935 = vmul.f32 %v4785, %v4931
          %v4936 = vmul.f32 %v4787, %v4931
          %v4937 = vmul.f32 %v4789, %v4931
          %v4938 = vsub.f32 %v4882, %v4932
          %v4939 = vsub.f32 %v4883, %v4933
          %v4940 = vsub.f32 %v4884, %v4934
          %v4941 = vsub.f32 %v4885, %v4935
          %v4942 = vsub.f32 %v4886, %v4936
          %v4943 = vsub.f32 %v4887, %v4937
          %s4944 = sld [smem:[#allocation9 + $0x83]]
          %v4945 = vstv %s4944
          %v4946 = vmul.f32 %v4779, %v4945
          %v4947 = vmul.f32 %v4781, %v4945
          %v4948 = vmul.f32 %v4783, %v4945
          %v4949 = vmul.f32 %v4785, %v4945
          %v4950 = vmul.f32 %v4787, %v4945
          %v4951 = vmul.f32 %v4789, %v4945
          %v4952 = vsub.f32 %v4896, %v4946
          %v4953 = vsub.f32 %v4897, %v4947
          %v4954 = vsub.f32 %v4898, %v4948
          %v4955 = vsub.f32 %v4899, %v4949
          %v4956 = vsub.f32 %v4900, %v4950
          %v4957 = vsub.f32 %v4901, %v4951
          %v4958 = vrot.slane %v4556, 1
          %v4959 = vrot.slane %v4557, 1
          %v4960 = vrot.slane %v4558, 1
          %v4961 = vrot.slane %v4559, 1
          %v4962 = vrot.slane %v4560, 1
          %v4963 = vrot.slane %v4561, 1
          %v4964 = vsel %vm877, %v4962, %v4963
          %v4965 = vsel %vm877, %v4961, %v4962
          %v4966 = vsel %vm877, %v4960, %v4961
          %v4967 = vsel %vm877, %v4959, %v4960
          %v4968 = vsel %vm877, %v4958, %v4959
          %v4969 = vsel %vm877, %v4963, %v4958
          %4970 = vrot.lane.b32.xlu0 %v4968, 1
          %v4971 = vpop.permute.xlu0 %4970
          %4972 = vrot.lane.b32.xlu0 %v4967, 1
          %v4973 = vpop.permute.xlu0 %4972
          %4974 = vrot.lane.b32.xlu0 %v4966, 1
          %v4975 = vpop.permute.xlu0 %4974
          %4976 = vrot.lane.b32.xlu0 %v4965, 1
          %v4977 = vpop.permute.xlu0 %4976
          %4978 = vrot.lane.b32.xlu0 %v4964, 1
          %v4979 = vpop.permute.xlu0 %4978
          %4980 = vrot.lane.b32.xlu0 %v4969, 1
          %v4981 = vpop.permute.xlu0 %4980
          %4982 = vrot.lane.b32.xlu0 %v4968, 127
          %v4983 = vpop.permute.xlu0 %4982
          %4984 = vrot.lane.b32.xlu0 %v4967, 127
          %v4985 = vpop.permute.xlu0 %4984
          %4986 = vrot.lane.b32.xlu0 %v4966, 127
          %v4987 = vpop.permute.xlu0 %4986
          %4988 = vrot.lane.b32.xlu0 %v4965, 127
          %v4989 = vpop.permute.xlu0 %4988
          %4990 = vrot.lane.b32.xlu0 %v4964, 127
          %v4991 = vpop.permute.xlu0 %4990
          %4992 = vrot.lane.b32.xlu0 %v4969, 127
          %v4993 = vpop.permute.xlu0 %4992
          %s4994 = sld [smem:[#allocation9 + $0x18]]
          %v4995 = vstv %s4994
          %v4996 = vmul.f32 %v4971, %v4995
          %v4997 = vmul.f32 %v4973, %v4995
          %v4998 = vmul.f32 %v4975, %v4995
          %v4999 = vmul.f32 %v4977, %v4995
          %v5000 = vmul.f32 %v4979, %v4995
          %v5001 = vmul.f32 %v4981, %v4995
          %v5002 = vsub.f32 %v4910, %v4996
          %v5003 = vsub.f32 %v4911, %v4997
          %v5004 = vsub.f32 %v4912, %v4998
          %v5005 = vsub.f32 %v4913, %v4999
          %v5006 = vsub.f32 %v4914, %v5000
          %v5007 = vsub.f32 %v4915, %v5001
          %s5008 = sld [smem:[#allocation9 + $0x3c]]
          %v5009 = vstv %s5008
          %v5010 = vmul.f32 %v4971, %v5009
          %v5011 = vmul.f32 %v4973, %v5009
          %v5012 = vmul.f32 %v4975, %v5009
          %v5013 = vmul.f32 %v4977, %v5009
          %v5014 = vmul.f32 %v4979, %v5009
          %v5015 = vmul.f32 %v4981, %v5009
          %v5016 = vsub.f32 %v4924, %v5010
          %v5017 = vsub.f32 %v4925, %v5011
          %v5018 = vsub.f32 %v4926, %v5012
          %v5019 = vsub.f32 %v4927, %v5013
          %v5020 = vsub.f32 %v4928, %v5014
          %v5021 = vsub.f32 %v4929, %v5015
          %s5022 = sld [smem:[#allocation9 + $0x60]]
          %v5023 = vstv %s5022
          %v5024 = vmul.f32 %v4971, %v5023
          %v5025 = vmul.f32 %v4973, %v5023
          %v5026 = vmul.f32 %v4975, %v5023
          %v5027 = vmul.f32 %v4977, %v5023
          %v5028 = vmul.f32 %v4979, %v5023
          %v5029 = vmul.f32 %v4981, %v5023
          %v5030 = vsub.f32 %v4938, %v5024
          %v5031 = vsub.f32 %v4939, %v5025
          %v5032 = vsub.f32 %v4940, %v5026
          %v5033 = vsub.f32 %v4941, %v5027
          %v5034 = vsub.f32 %v4942, %v5028
          %v5035 = vsub.f32 %v4943, %v5029
          %s5036 = sld [smem:[#allocation9 + $0x84]]
          %v5037 = vstv %s5036
          %v5038 = vmul.f32 %v4971, %v5037
          %v5039 = vmul.f32 %v4973, %v5037
          %v5040 = vmul.f32 %v4975, %v5037
          %v5041 = vmul.f32 %v4977, %v5037
          %v5042 = vmul.f32 %v4979, %v5037
          %v5043 = vmul.f32 %v4981, %v5037
          %v5044 = vsub.f32 %v4952, %v5038
          %v5045 = vsub.f32 %v4953, %v5039
          %v5046 = vsub.f32 %v4954, %v5040
          %v5047 = vsub.f32 %v4955, %v5041
          %v5048 = vsub.f32 %v4956, %v5042
          %v5049 = vsub.f32 %v4957, %v5043
          %s5050 = sld [smem:[#allocation9 + $0x19]]
          %v5051 = vstv %s5050
          %v5052 = vmul.f32 %v4968, %v5051
          %v5053 = vmul.f32 %v4967, %v5051
          %v5054 = vmul.f32 %v4966, %v5051
          %v5055 = vmul.f32 %v4965, %v5051
          %v5056 = vmul.f32 %v4964, %v5051
          %v5057 = vmul.f32 %v4969, %v5051
          %v5058 = vsub.f32 %v5002, %v5052
          %v5059 = vsub.f32 %v5003, %v5053
          %v5060 = vsub.f32 %v5004, %v5054
          %v5061 = vsub.f32 %v5005, %v5055
          %v5062 = vsub.f32 %v5006, %v5056
          %v5063 = vsub.f32 %v5007, %v5057
          %s5064 = sld [smem:[#allocation9 + $0x3d]]
          %v5065 = vstv %s5064
          %v5066 = vmul.f32 %v4968, %v5065
          %v5067 = vmul.f32 %v4967, %v5065
          %v5068 = vmul.f32 %v4966, %v5065
          %v5069 = vmul.f32 %v4965, %v5065
          %v5070 = vmul.f32 %v4964, %v5065
          %v5071 = vmul.f32 %v4969, %v5065
          %v5072 = vsub.f32 %v5016, %v5066
          %v5073 = vsub.f32 %v5017, %v5067
          %v5074 = vsub.f32 %v5018, %v5068
          %v5075 = vsub.f32 %v5019, %v5069
          %v5076 = vsub.f32 %v5020, %v5070
          %v5077 = vsub.f32 %v5021, %v5071
          %s5078 = sld [smem:[#allocation9 + $0x61]]
          %v5079 = vstv %s5078
          %v5080 = vmul.f32 %v4968, %v5079
          %v5081 = vmul.f32 %v4967, %v5079
          %v5082 = vmul.f32 %v4966, %v5079
          %v5083 = vmul.f32 %v4965, %v5079
          %v5084 = vmul.f32 %v4964, %v5079
          %v5085 = vmul.f32 %v4969, %v5079
          %v5086 = vsub.f32 %v5030, %v5080
          %v5087 = vsub.f32 %v5031, %v5081
          %v5088 = vsub.f32 %v5032, %v5082
          %v5089 = vsub.f32 %v5033, %v5083
          %v5090 = vsub.f32 %v5034, %v5084
          %v5091 = vsub.f32 %v5035, %v5085
          %s5092 = sld [smem:[#allocation9 + $0x85]]
          %v5093 = vstv %s5092
          %v5094 = vmul.f32 %v4968, %v5093
          %v5095 = vmul.f32 %v4967, %v5093
          %v5096 = vmul.f32 %v4966, %v5093
          %v5097 = vmul.f32 %v4965, %v5093
          %v5098 = vmul.f32 %v4964, %v5093
          %v5099 = vmul.f32 %v4969, %v5093
          %v5100 = vsub.f32 %v5044, %v5094
          %v5101 = vsub.f32 %v5045, %v5095
          %v5102 = vsub.f32 %v5046, %v5096
          %v5103 = vsub.f32 %v5047, %v5097
          %v5104 = vsub.f32 %v5048, %v5098
          %v5105 = vsub.f32 %v5049, %v5099
          %s5106 = sld [smem:[#allocation9 + $0x1a]]
          %v5107 = vstv %s5106
          %v5108 = vmul.f32 %v4983, %v5107
          %v5109 = vmul.f32 %v4985, %v5107
          %v5110 = vmul.f32 %v4987, %v5107
          %v5111 = vmul.f32 %v4989, %v5107
          %v5112 = vmul.f32 %v4991, %v5107
          %v5113 = vmul.f32 %v4993, %v5107
          %v5114 = vsub.f32 %v5058, %v5108
          %v5115 = vsub.f32 %v5059, %v5109
          %v5116 = vsub.f32 %v5060, %v5110
          %v5117 = vsub.f32 %v5061, %v5111
          %v5118 = vsub.f32 %v5062, %v5112
          %v5119 = vsub.f32 %v5063, %v5113
          %s5120 = sld [smem:[#allocation9 + $0x3e]]
          %v5121 = vstv %s5120
          %v5122 = vmul.f32 %v4983, %v5121
          %v5123 = vmul.f32 %v4985, %v5121
          %v5124 = vmul.f32 %v4987, %v5121
          %v5125 = vmul.f32 %v4989, %v5121
          %v5126 = vmul.f32 %v4991, %v5121
          %v5127 = vmul.f32 %v4993, %v5121
          %v5128 = vsub.f32 %v5072, %v5122
          %v5129 = vsub.f32 %v5073, %v5123
          %v5130 = vsub.f32 %v5074, %v5124
          %v5131 = vsub.f32 %v5075, %v5125
          %v5132 = vsub.f32 %v5076, %v5126
          %v5133 = vsub.f32 %v5077, %v5127
          %s5134 = sld [smem:[#allocation9 + $0x62]]
          %v5135 = vstv %s5134
          %v5136 = vmul.f32 %v4983, %v5135
          %v5137 = vmul.f32 %v4985, %v5135
          %v5138 = vmul.f32 %v4987, %v5135
          %v5139 = vmul.f32 %v4989, %v5135
          %v5140 = vmul.f32 %v4991, %v5135
          %v5141 = vmul.f32 %v4993, %v5135
          %v5142 = vsub.f32 %v5086, %v5136
          %v5143 = vsub.f32 %v5087, %v5137
          %v5144 = vsub.f32 %v5088, %v5138
          %v5145 = vsub.f32 %v5089, %v5139
          %v5146 = vsub.f32 %v5090, %v5140
          %v5147 = vsub.f32 %v5091, %v5141
          %s5148 = sld [smem:[#allocation9 + $0x86]]
          %v5149 = vstv %s5148
          %v5150 = vmul.f32 %v4983, %v5149
          %v5151 = vmul.f32 %v4985, %v5149
          %v5152 = vmul.f32 %v4987, %v5149
          %v5153 = vmul.f32 %v4989, %v5149
          %v5154 = vmul.f32 %v4991, %v5149
          %v5155 = vmul.f32 %v4993, %v5149
          %v5156 = vsub.f32 %v5100, %v5150
          %v5157 = vsub.f32 %v5101, %v5151
          %v5158 = vsub.f32 %v5102, %v5152
          %v5159 = vsub.f32 %v5103, %v5153
          %v5160 = vsub.f32 %v5104, %v5154
          %v5161 = vsub.f32 %v5105, %v5155
          %s5162 = smul.f32 %s3166, %s353
          %v5163 = vstv %s5162
          %v5164 = vmul.f32 %v3041, %v5163
          %v5165 = vmul.f32 %v3042, %v5163
          %v5166 = vmul.f32 %v3043, %v5163
          %v5167 = vmul.f32 %v3044, %v5163
          %v5168 = vmul.f32 %v3045, %v5163
          %v5169 = vmul.f32 %v3046, %v5163
          %s5170 = smul.f32 %s3145, %s5162
          %s5171 = ssub.f32 %s357, %s5170
          %v5172 = vstv %s5171
          %v5173 = vadd.f32 %v5164, %v5172
          %v5174 = vadd.f32 %v5165, %v5172
          %v5175 = vadd.f32 %v5166, %v5172
          %v5176 = vadd.f32 %v5167, %v5172
          %v5177 = vadd.f32 %v5168, %v5172
          %v5178 = vadd.f32 %v5169, %v5172
          %v5179 = vxor.u32 %v5173, 2147483648
          %v5180 = vxor.u32 %v5174, 2147483648
          %v5181 = vxor.u32 %v5175, 2147483648
          %v5182 = vxor.u32 %v5176, 2147483648
          %v5183 = vxor.u32 %v5177, 2147483648
          %v5184 = vxor.u32 %v5178, 2147483648
          %v5185 = vmul.f32 %v5179, 1.442695
          %v5186 = vpow.pop %v5185
          %v5187 = vmul.f32 %v5180, 1.442695
          %v5188 = vpow.pop %v5187
          %v5189 = vmul.f32 %v5181, 1.442695
          %v5190 = vpow.pop %v5189
          %v5191 = vmul.f32 %v5182, 1.442695
          %v5192 = vpow.pop %v5191
          %v5193 = vmul.f32 %v5183, 1.442695
          %v5194 = vpow.pop %v5193
          %v5195 = vmul.f32 %v5184, 1.442695
          %v5196 = vpow.pop %v5195
          %v5197 = vadd.f32 %v5186, 1.0
          %v5198 = vadd.f32 %v5188, 1.0
          %v5199 = vadd.f32 %v5190, 1.0
          %v5200 = vadd.f32 %v5192, 1.0
          %v5201 = vadd.f32 %v5194, 1.0
          %v5202 = vadd.f32 %v5196, 1.0
          %v5203 = vrcp.pop %v5197
          %v5204 = vmul.f32 1.0, %v5203
          %v5205 = vrcp.pop %v5198
          %v5206 = vmul.f32 1.0, %v5205
          %v5207 = vrcp.pop %v5199
          %v5208 = vmul.f32 1.0, %v5207
          %v5209 = vrcp.pop %v5200
          %v5210 = vmul.f32 1.0, %v5209
          %v5211 = vrcp.pop %v5201
          %v5212 = vmul.f32 1.0, %v5211
          %v5213 = vrcp.pop %v5202
          %v5214 = vmul.f32 1.0, %v5213
          %v5215 = vmul.f32 %v5173, %v5204
          %v5216 = vmul.f32 %v5174, %v5206
          %v5217 = vmul.f32 %v5175, %v5208
          %v5218 = vmul.f32 %v5176, %v5210
          %v5219 = vmul.f32 %v5177, %v5212
          %v5220 = vmul.f32 %v5178, %v5214
          %v5221 = vmul.f32 %v5215, %v344
          %v5222 = vmul.f32 %v5216, %v345
          %v5223 = vmul.f32 %v5217, %v346
          %v5224 = vmul.f32 %v5218, %v347
          %v5225 = vmul.f32 %v5219, %v348
          %v5226 = vmul.f32 %v5220, %v349
          %v5227 = vrot.slane %v5221, 7
          %v5228 = vrot.slane %v5222, 7
          %v5229 = vrot.slane %v5223, 7
          %v5230 = vrot.slane %v5224, 7
          %v5231 = vrot.slane %v5225, 7
          %v5232 = vrot.slane %v5226, 7
          %v5233 = vsel %vm480, %v5231, %v5232
          %v5234 = vsel %vm480, %v5230, %v5231
          %v5235 = vsel %vm480, %v5229, %v5230
          %v5236 = vsel %vm480, %v5228, %v5229
          %v5237 = vsel %vm480, %v5227, %v5228
          %v5238 = vsel %vm480, %v5232, %v5227
          %5239 = vrot.lane.b32.xlu0 %v5238, 1
          %v5240 = vpop.permute.xlu0 %5239
          %5241 = vrot.lane.b32.xlu0 %v5237, 1
          %v5242 = vpop.permute.xlu0 %5241
          %5243 = vrot.lane.b32.xlu0 %v5236, 1
          %v5244 = vpop.permute.xlu0 %5243
          %5245 = vrot.lane.b32.xlu0 %v5235, 1
          %v5246 = vpop.permute.xlu0 %5245
          %5247 = vrot.lane.b32.xlu0 %v5234, 1
          %v5248 = vpop.permute.xlu0 %5247
          %5249 = vrot.lane.b32.xlu0 %v5233, 1
          %v5250 = vpop.permute.xlu0 %5249
          %5251 = vrot.lane.b32.xlu0 %v5238, 127
          %v5252 = vpop.permute.xlu0 %5251
          %5253 = vrot.lane.b32.xlu0 %v5237, 127
          %v5254 = vpop.permute.xlu0 %5253
          %5255 = vrot.lane.b32.xlu0 %v5236, 127
          %v5256 = vpop.permute.xlu0 %5255
          %5257 = vrot.lane.b32.xlu0 %v5235, 127
          %v5258 = vpop.permute.xlu0 %5257
          %5259 = vrot.lane.b32.xlu0 %v5234, 127
          %v5260 = vpop.permute.xlu0 %5259
          %5261 = vrot.lane.b32.xlu0 %v5233, 127
          %v5262 = vpop.permute.xlu0 %5261
          %s5263 = sld [smem:[#allocation9 + $0x1b]]
          %v5264 = vstv %s5263
          %v5265 = vmul.f32 %v5240, %v5264
          %v5266 = vmul.f32 %v5242, %v5264
          %v5267 = vmul.f32 %v5244, %v5264
          %v5268 = vmul.f32 %v5246, %v5264
          %v5269 = vmul.f32 %v5248, %v5264
          %v5270 = vmul.f32 %v5250, %v5264
          %v5271 = vsub.f32 %v5114, %v5265
          %v5272 = vsub.f32 %v5115, %v5266
          %v5273 = vsub.f32 %v5116, %v5267
          %v5274 = vsub.f32 %v5117, %v5268
          %v5275 = vsub.f32 %v5118, %v5269
          %v5276 = vsub.f32 %v5119, %v5270
          %s5277 = sld [smem:[#allocation9 + $0x3f]]
          %v5278 = vstv %s5277
          %v5279 = vmul.f32 %v5240, %v5278
          %v5280 = vmul.f32 %v5242, %v5278
          %v5281 = vmul.f32 %v5244, %v5278
          %v5282 = vmul.f32 %v5246, %v5278
          %v5283 = vmul.f32 %v5248, %v5278
          %v5284 = vmul.f32 %v5250, %v5278
          %v5285 = vsub.f32 %v5128, %v5279
          %v5286 = vsub.f32 %v5129, %v5280
          %v5287 = vsub.f32 %v5130, %v5281
          %v5288 = vsub.f32 %v5131, %v5282
          %v5289 = vsub.f32 %v5132, %v5283
          %v5290 = vsub.f32 %v5133, %v5284
          %s5291 = sld [smem:[#allocation9 + $0x63]]
          %v5292 = vstv %s5291
          %v5293 = vmul.f32 %v5240, %v5292
          %v5294 = vmul.f32 %v5242, %v5292
          %v5295 = vmul.f32 %v5244, %v5292
          %v5296 = vmul.f32 %v5246, %v5292
          %v5297 = vmul.f32 %v5248, %v5292
          %v5298 = vmul.f32 %v5250, %v5292
          %v5299 = vsub.f32 %v5142, %v5293
          %v5300 = vsub.f32 %v5143, %v5294
          %v5301 = vsub.f32 %v5144, %v5295
          %v5302 = vsub.f32 %v5145, %v5296
          %v5303 = vsub.f32 %v5146, %v5297
          %v5304 = vsub.f32 %v5147, %v5298
          %s5305 = sld [smem:[#allocation9 + $0x87]]
          %v5306 = vstv %s5305
          %v5307 = vmul.f32 %v5240, %v5306
          %v5308 = vmul.f32 %v5242, %v5306
          %v5309 = vmul.f32 %v5244, %v5306
          %v5310 = vmul.f32 %v5246, %v5306
          %v5311 = vmul.f32 %v5248, %v5306
          %v5312 = vmul.f32 %v5250, %v5306
          %v5313 = vsub.f32 %v5156, %v5307
          %v5314 = vsub.f32 %v5157, %v5308
          %v5315 = vsub.f32 %v5158, %v5309
          %v5316 = vsub.f32 %v5159, %v5310
          %v5317 = vsub.f32 %v5160, %v5311
          %v5318 = vsub.f32 %v5161, %v5312
          %s5319 = sld [smem:[#allocation9 + $0x1c]]
          %v5320 = vstv %s5319
          %v5321 = vmul.f32 %v5238, %v5320
          %v5322 = vmul.f32 %v5237, %v5320
          %v5323 = vmul.f32 %v5236, %v5320
          %v5324 = vmul.f32 %v5235, %v5320
          %v5325 = vmul.f32 %v5234, %v5320
          %v5326 = vmul.f32 %v5233, %v5320
          %v5327 = vsub.f32 %v5271, %v5321
          %v5328 = vsub.f32 %v5272, %v5322
          %v5329 = vsub.f32 %v5273, %v5323
          %v5330 = vsub.f32 %v5274, %v5324
          %v5331 = vsub.f32 %v5275, %v5325
          %v5332 = vsub.f32 %v5276, %v5326
          %s5333 = sld [smem:[#allocation9 + $0x40]]
          %v5334 = vstv %s5333
          %v5335 = vmul.f32 %v5238, %v5334
          %v5336 = vmul.f32 %v5237, %v5334
          %v5337 = vmul.f32 %v5236, %v5334
          %v5338 = vmul.f32 %v5235, %v5334
          %v5339 = vmul.f32 %v5234, %v5334
          %v5340 = vmul.f32 %v5233, %v5334
          %v5341 = vsub.f32 %v5285, %v5335
          %v5342 = vsub.f32 %v5286, %v5336
          %v5343 = vsub.f32 %v5287, %v5337
          %v5344 = vsub.f32 %v5288, %v5338
          %v5345 = vsub.f32 %v5289, %v5339
          %v5346 = vsub.f32 %v5290, %v5340
          %s5347 = sld [smem:[#allocation9 + $0x64]]
          %v5348 = vstv %s5347
          %v5349 = vmul.f32 %v5238, %v5348
          %v5350 = vmul.f32 %v5237, %v5348
          %v5351 = vmul.f32 %v5236, %v5348
          %v5352 = vmul.f32 %v5235, %v5348
          %v5353 = vmul.f32 %v5234, %v5348
          %v5354 = vmul.f32 %v5233, %v5348
          %v5355 = vsub.f32 %v5299, %v5349
          %v5356 = vsub.f32 %v5300, %v5350
          %v5357 = vsub.f32 %v5301, %v5351
          %v5358 = vsub.f32 %v5302, %v5352
          %v5359 = vsub.f32 %v5303, %v5353
          %v5360 = vsub.f32 %v5304, %v5354
          %s5361 = sld [smem:[#allocation9 + $0x88]]
          %v5362 = vstv %s5361
          %v5363 = vmul.f32 %v5238, %v5362
          %v5364 = vmul.f32 %v5237, %v5362
          %v5365 = vmul.f32 %v5236, %v5362
          %v5366 = vmul.f32 %v5235, %v5362
          %v5367 = vmul.f32 %v5234, %v5362
          %v5368 = vmul.f32 %v5233, %v5362
          %v5369 = vsub.f32 %v5313, %v5363
          %v5370 = vsub.f32 %v5314, %v5364
          %v5371 = vsub.f32 %v5315, %v5365
          %v5372 = vsub.f32 %v5316, %v5366
          %v5373 = vsub.f32 %v5317, %v5367
          %v5374 = vsub.f32 %v5318, %v5368
          %s5375 = sld [smem:[#allocation9 + $0x1d]]
          %v5376 = vstv %s5375
          %v5377 = vmul.f32 %v5252, %v5376
          %v5378 = vmul.f32 %v5254, %v5376
          %v5379 = vmul.f32 %v5256, %v5376
          %v5380 = vmul.f32 %v5258, %v5376
          %v5381 = vmul.f32 %v5260, %v5376
          %v5382 = vmul.f32 %v5262, %v5376
          %v5383 = vsub.f32 %v5327, %v5377
          %v5384 = vsub.f32 %v5328, %v5378
          %v5385 = vsub.f32 %v5329, %v5379
          %v5386 = vsub.f32 %v5330, %v5380
          %v5387 = vsub.f32 %v5331, %v5381
          %v5388 = vsub.f32 %v5332, %v5382
          %s5389 = sld [smem:[#allocation9 + $0x41]]
          %v5390 = vstv %s5389
          %v5391 = vmul.f32 %v5252, %v5390
          %v5392 = vmul.f32 %v5254, %v5390
          %v5393 = vmul.f32 %v5256, %v5390
          %v5394 = vmul.f32 %v5258, %v5390
          %v5395 = vmul.f32 %v5260, %v5390
          %v5396 = vmul.f32 %v5262, %v5390
          %v5397 = vsub.f32 %v5341, %v5391
          %v5398 = vsub.f32 %v5342, %v5392
          %v5399 = vsub.f32 %v5343, %v5393
          %v5400 = vsub.f32 %v5344, %v5394
          %v5401 = vsub.f32 %v5345, %v5395
          %v5402 = vsub.f32 %v5346, %v5396
          %s5403 = sld [smem:[#allocation9 + $0x65]]
          %v5404 = vstv %s5403
          %v5405 = vmul.f32 %v5252, %v5404
          %v5406 = vmul.f32 %v5254, %v5404
          %v5407 = vmul.f32 %v5256, %v5404
          %v5408 = vmul.f32 %v5258, %v5404
          %v5409 = vmul.f32 %v5260, %v5404
          %v5410 = vmul.f32 %v5262, %v5404
          %v5411 = vsub.f32 %v5355, %v5405
          %v5412 = vsub.f32 %v5356, %v5406
          %v5413 = vsub.f32 %v5357, %v5407
          %v5414 = vsub.f32 %v5358, %v5408
          %v5415 = vsub.f32 %v5359, %v5409
          %v5416 = vsub.f32 %v5360, %v5410
          %s5417 = sld [smem:[#allocation9 + $0x89]]
          %v5418 = vstv %s5417
          %v5419 = vmul.f32 %v5252, %v5418
          %v5420 = vmul.f32 %v5254, %v5418
          %v5421 = vmul.f32 %v5256, %v5418
          %v5422 = vmul.f32 %v5258, %v5418
          %v5423 = vmul.f32 %v5260, %v5418
          %v5424 = vmul.f32 %v5262, %v5418
          %v5425 = vsub.f32 %v5369, %v5419
          %v5426 = vsub.f32 %v5370, %v5420
          %v5427 = vsub.f32 %v5371, %v5421
          %v5428 = vsub.f32 %v5372, %v5422
          %v5429 = vsub.f32 %v5373, %v5423
          %v5430 = vsub.f32 %v5374, %v5424
          %5431 = vrot.lane.b32.xlu0 %v5221, 1
          %v5432 = vpop.permute.xlu0 %5431
          %5433 = vrot.lane.b32.xlu0 %v5222, 1
          %v5434 = vpop.permute.xlu0 %5433
          %5435 = vrot.lane.b32.xlu0 %v5223, 1
          %v5436 = vpop.permute.xlu0 %5435
          %5437 = vrot.lane.b32.xlu0 %v5224, 1
          %v5438 = vpop.permute.xlu0 %5437
          %5439 = vrot.lane.b32.xlu0 %v5225, 1
          %v5440 = vpop.permute.xlu0 %5439
          %5441 = vrot.lane.b32.xlu0 %v5226, 1
          %v5442 = vpop.permute.xlu0 %5441
          %5443 = vrot.lane.b32.xlu0 %v5221, 127
          %v5444 = vpop.permute.xlu0 %5443
          %5445 = vrot.lane.b32.xlu0 %v5222, 127
          %v5446 = vpop.permute.xlu0 %5445
          %5447 = vrot.lane.b32.xlu0 %v5223, 127
          %v5448 = vpop.permute.xlu0 %5447
          %5449 = vrot.lane.b32.xlu0 %v5224, 127
          %v5450 = vpop.permute.xlu0 %5449
          %5451 = vrot.lane.b32.xlu0 %v5225, 127
          %v5452 = vpop.permute.xlu0 %5451
          %5453 = vrot.lane.b32.xlu0 %v5226, 127
          %v5454 = vpop.permute.xlu0 %5453
          %s5455 = sld [smem:[#allocation9 + $0x1e]]
          %v5456 = vstv %s5455
          %v5457 = vmul.f32 %v5432, %v5456
          %v5458 = vmul.f32 %v5434, %v5456
          %v5459 = vmul.f32 %v5436, %v5456
          %v5460 = vmul.f32 %v5438, %v5456
          %v5461 = vmul.f32 %v5440, %v5456
          %v5462 = vmul.f32 %v5442, %v5456
          %v5463 = vsub.f32 %v5383, %v5457
          %v5464 = vsub.f32 %v5384, %v5458
          %v5465 = vsub.f32 %v5385, %v5459
          %v5466 = vsub.f32 %v5386, %v5460
          %v5467 = vsub.f32 %v5387, %v5461
          %v5468 = vsub.f32 %v5388, %v5462
          %s5469 = sld [smem:[#allocation9 + $0x42]]
          %v5470 = vstv %s5469
          %v5471 = vmul.f32 %v5432, %v5470
          %v5472 = vmul.f32 %v5434, %v5470
          %v5473 = vmul.f32 %v5436, %v5470
          %v5474 = vmul.f32 %v5438, %v5470
          %v5475 = vmul.f32 %v5440, %v5470
          %v5476 = vmul.f32 %v5442, %v5470
          %v5477 = vsub.f32 %v5397, %v5471
          %v5478 = vsub.f32 %v5398, %v5472
          %v5479 = vsub.f32 %v5399, %v5473
          %v5480 = vsub.f32 %v5400, %v5474
          %v5481 = vsub.f32 %v5401, %v5475
          %v5482 = vsub.f32 %v5402, %v5476
          %s5483 = sld [smem:[#allocation9 + $0x66]]
          %v5484 = vstv %s5483
          %v5485 = vmul.f32 %v5432, %v5484
          %v5486 = vmul.f32 %v5434, %v5484
          %v5487 = vmul.f32 %v5436, %v5484
          %v5488 = vmul.f32 %v5438, %v5484
          %v5489 = vmul.f32 %v5440, %v5484
          %v5490 = vmul.f32 %v5442, %v5484
          %v5491 = vsub.f32 %v5411, %v5485
          %v5492 = vsub.f32 %v5412, %v5486
          %v5493 = vsub.f32 %v5413, %v5487
          %v5494 = vsub.f32 %v5414, %v5488
          %v5495 = vsub.f32 %v5415, %v5489
          %v5496 = vsub.f32 %v5416, %v5490
          %s5497 = sld [smem:[#allocation9 + $0x8a]]
          %v5498 = vstv %s5497
          %v5499 = vmul.f32 %v5432, %v5498
          %v5500 = vmul.f32 %v5434, %v5498
          %v5501 = vmul.f32 %v5436, %v5498
          %v5502 = vmul.f32 %v5438, %v5498
          %v5503 = vmul.f32 %v5440, %v5498
          %v5504 = vmul.f32 %v5442, %v5498
          %v5505 = vsub.f32 %v5425, %v5499
          %v5506 = vsub.f32 %v5426, %v5500
          %v5507 = vsub.f32 %v5427, %v5501
          %v5508 = vsub.f32 %v5428, %v5502
          %v5509 = vsub.f32 %v5429, %v5503
          %v5510 = vsub.f32 %v5430, %v5504
          %s5511 = sld [smem:[#allocation9 + $0x1f]]
          %v5512 = vstv %s5511
          %v5513 = vmul.f32 %v5221, %v5512
          %v5514 = vmul.f32 %v5222, %v5512
          %v5515 = vmul.f32 %v5223, %v5512
          %v5516 = vmul.f32 %v5224, %v5512
          %v5517 = vmul.f32 %v5225, %v5512
          %v5518 = vmul.f32 %v5226, %v5512
          %v5519 = vsub.f32 %v5463, %v5513
          %v5520 = vsub.f32 %v5464, %v5514
          %v5521 = vsub.f32 %v5465, %v5515
          %v5522 = vsub.f32 %v5466, %v5516
          %v5523 = vsub.f32 %v5467, %v5517
          %v5524 = vsub.f32 %v5468, %v5518
          %s5525 = sld [smem:[#allocation9 + $0x43]]
          %v5526 = vstv %s5525
          %v5527 = vmul.f32 %v5221, %v5526
          %v5528 = vmul.f32 %v5222, %v5526
          %v5529 = vmul.f32 %v5223, %v5526
          %v5530 = vmul.f32 %v5224, %v5526
          %v5531 = vmul.f32 %v5225, %v5526
          %v5532 = vmul.f32 %v5226, %v5526
          %v5533 = vsub.f32 %v5477, %v5527
          %v5534 = vsub.f32 %v5478, %v5528
          %v5535 = vsub.f32 %v5479, %v5529
          %v5536 = vsub.f32 %v5480, %v5530
          %v5537 = vsub.f32 %v5481, %v5531
          %v5538 = vsub.f32 %v5482, %v5532
          %s5539 = sld [smem:[#allocation9 + $0x67]]
          %v5540 = vstv %s5539
          %v5541 = vmul.f32 %v5221, %v5540
          %v5542 = vmul.f32 %v5222, %v5540
          %v5543 = vmul.f32 %v5223, %v5540
          %v5544 = vmul.f32 %v5224, %v5540
          %v5545 = vmul.f32 %v5225, %v5540
          %v5546 = vmul.f32 %v5226, %v5540
          %v5547 = vsub.f32 %v5491, %v5541
          %v5548 = vsub.f32 %v5492, %v5542
          %v5549 = vsub.f32 %v5493, %v5543
          %v5550 = vsub.f32 %v5494, %v5544
          %v5551 = vsub.f32 %v5495, %v5545
          %v5552 = vsub.f32 %v5496, %v5546
          %s5553 = sld [smem:[#allocation9 + $0x8b]]
          %v5554 = vstv %s5553
          %v5555 = vmul.f32 %v5221, %v5554
          %v5556 = vmul.f32 %v5222, %v5554
          %v5557 = vmul.f32 %v5223, %v5554
          %v5558 = vmul.f32 %v5224, %v5554
          %v5559 = vmul.f32 %v5225, %v5554
          %v5560 = vmul.f32 %v5226, %v5554
          %v5561 = vsub.f32 %v5505, %v5555
          %v5562 = vsub.f32 %v5506, %v5556
          %v5563 = vsub.f32 %v5507, %v5557
          %v5564 = vsub.f32 %v5508, %v5558
          %v5565 = vsub.f32 %v5509, %v5559
          %v5566 = vsub.f32 %v5510, %v5560
          %s5567 = sld [smem:[#allocation9 + $0x20]]
          %v5568 = vstv %s5567
          %v5569 = vmul.f32 %v5444, %v5568
          %v5570 = vmul.f32 %v5446, %v5568
          %v5571 = vmul.f32 %v5448, %v5568
          %v5572 = vmul.f32 %v5450, %v5568
          %v5573 = vmul.f32 %v5452, %v5568
          %v5574 = vmul.f32 %v5454, %v5568
          %v5575 = vsub.f32 %v5519, %v5569
          %v5576 = vsub.f32 %v5520, %v5570
          %v5577 = vsub.f32 %v5521, %v5571
          %v5578 = vsub.f32 %v5522, %v5572
          %v5579 = vsub.f32 %v5523, %v5573
          %v5580 = vsub.f32 %v5524, %v5574
          %s5581 = sld [smem:[#allocation9 + $0x44]]
          %v5582 = vstv %s5581
          %v5583 = vmul.f32 %v5444, %v5582
          %v5584 = vmul.f32 %v5446, %v5582
          %v5585 = vmul.f32 %v5448, %v5582
          %v5586 = vmul.f32 %v5450, %v5582
          %v5587 = vmul.f32 %v5452, %v5582
          %v5588 = vmul.f32 %v5454, %v5582
          %v5589 = vsub.f32 %v5533, %v5583
          %v5590 = vsub.f32 %v5534, %v5584
          %v5591 = vsub.f32 %v5535, %v5585
          %v5592 = vsub.f32 %v5536, %v5586
          %v5593 = vsub.f32 %v5537, %v5587
          %v5594 = vsub.f32 %v5538, %v5588
          %s5595 = sld [smem:[#allocation9 + $0x68]]
          %v5596 = vstv %s5595
          %v5597 = vmul.f32 %v5444, %v5596
          %v5598 = vmul.f32 %v5446, %v5596
          %v5599 = vmul.f32 %v5448, %v5596
          %v5600 = vmul.f32 %v5450, %v5596
          %v5601 = vmul.f32 %v5452, %v5596
          %v5602 = vmul.f32 %v5454, %v5596
          %v5603 = vsub.f32 %v5547, %v5597
          %v5604 = vsub.f32 %v5548, %v5598
          %v5605 = vsub.f32 %v5549, %v5599
          %v5606 = vsub.f32 %v5550, %v5600
          %v5607 = vsub.f32 %v5551, %v5601
          %v5608 = vsub.f32 %v5552, %v5602
          %s5609 = sld [smem:[#allocation9 + $0x8c]]
          %v5610 = vstv %s5609
          %v5611 = vmul.f32 %v5444, %v5610
          %v5612 = vmul.f32 %v5446, %v5610
          %v5613 = vmul.f32 %v5448, %v5610
          %v5614 = vmul.f32 %v5450, %v5610
          %v5615 = vmul.f32 %v5452, %v5610
          %v5616 = vmul.f32 %v5454, %v5610
          %v5617 = vsub.f32 %v5561, %v5611
          %v5618 = vsub.f32 %v5562, %v5612
          %v5619 = vsub.f32 %v5563, %v5613
          %v5620 = vsub.f32 %v5564, %v5614
          %v5621 = vsub.f32 %v5565, %v5615
          %v5622 = vsub.f32 %v5566, %v5616
          %v5623 = vrot.slane %v5221, 1
          %v5624 = vrot.slane %v5222, 1
          %v5625 = vrot.slane %v5223, 1
          %v5626 = vrot.slane %v5224, 1
          %v5627 = vrot.slane %v5225, 1
          %v5628 = vrot.slane %v5226, 1
          %v5629 = vsel %vm877, %v5627, %v5628
          %v5630 = vsel %vm877, %v5626, %v5627
          %v5631 = vsel %vm877, %v5625, %v5626
          %v5632 = vsel %vm877, %v5624, %v5625
          %v5633 = vsel %vm877, %v5623, %v5624
          %v5634 = vsel %vm877, %v5628, %v5623
          %5635 = vrot.lane.b32.xlu0 %v5633, 1
          %v5636 = vpop.permute.xlu0 %5635
          %5637 = vrot.lane.b32.xlu0 %v5632, 1
          %v5638 = vpop.permute.xlu0 %5637
          %5639 = vrot.lane.b32.xlu0 %v5631, 1
          %v5640 = vpop.permute.xlu0 %5639
          %5641 = vrot.lane.b32.xlu0 %v5630, 1
          %v5642 = vpop.permute.xlu0 %5641
          %5643 = vrot.lane.b32.xlu0 %v5629, 1
          %v5644 = vpop.permute.xlu0 %5643
          %5645 = vrot.lane.b32.xlu0 %v5634, 1
          %v5646 = vpop.permute.xlu0 %5645
          %5647 = vrot.lane.b32.xlu0 %v5633, 127
          %v5648 = vpop.permute.xlu0 %5647
          %5649 = vrot.lane.b32.xlu0 %v5632, 127
          %v5650 = vpop.permute.xlu0 %5649
          %5651 = vrot.lane.b32.xlu0 %v5631, 127
          %v5652 = vpop.permute.xlu0 %5651
          %5653 = vrot.lane.b32.xlu0 %v5630, 127
          %v5654 = vpop.permute.xlu0 %5653
          %5655 = vrot.lane.b32.xlu0 %v5629, 127
          %v5656 = vpop.permute.xlu0 %5655
          %5657 = vrot.lane.b32.xlu0 %v5634, 127
          %v5658 = vpop.permute.xlu0 %5657
          %s5659 = sld [smem:[#allocation9 + $0x21]]
          %v5660 = vstv %s5659
          %v5661 = vmul.f32 %v5636, %v5660
          %v5662 = vmul.f32 %v5638, %v5660
          %v5663 = vmul.f32 %v5640, %v5660
          %v5664 = vmul.f32 %v5642, %v5660
          %v5665 = vmul.f32 %v5644, %v5660
          %v5666 = vmul.f32 %v5646, %v5660
          %v5667 = vsub.f32 %v5575, %v5661
          %v5668 = vsub.f32 %v5576, %v5662
          %v5669 = vsub.f32 %v5577, %v5663
          %v5670 = vsub.f32 %v5578, %v5664
          %v5671 = vsub.f32 %v5579, %v5665
          %v5672 = vsub.f32 %v5580, %v5666
          %s5673 = sld [smem:[#allocation9 + $0x45]]
          %v5674 = vstv %s5673
          %v5675 = vmul.f32 %v5636, %v5674
          %v5676 = vmul.f32 %v5638, %v5674
          %v5677 = vmul.f32 %v5640, %v5674
          %v5678 = vmul.f32 %v5642, %v5674
          %v5679 = vmul.f32 %v5644, %v5674
          %v5680 = vmul.f32 %v5646, %v5674
          %v5681 = vsub.f32 %v5589, %v5675
          %v5682 = vsub.f32 %v5590, %v5676
          %v5683 = vsub.f32 %v5591, %v5677
          %v5684 = vsub.f32 %v5592, %v5678
          %v5685 = vsub.f32 %v5593, %v5679
          %v5686 = vsub.f32 %v5594, %v5680
          %s5687 = sld [smem:[#allocation9 + $0x69]]
          %v5688 = vstv %s5687
          %v5689 = vmul.f32 %v5636, %v5688
          %v5690 = vmul.f32 %v5638, %v5688
          %v5691 = vmul.f32 %v5640, %v5688
          %v5692 = vmul.f32 %v5642, %v5688
          %v5693 = vmul.f32 %v5644, %v5688
          %v5694 = vmul.f32 %v5646, %v5688
          %v5695 = vsub.f32 %v5603, %v5689
          %v5696 = vsub.f32 %v5604, %v5690
          %v5697 = vsub.f32 %v5605, %v5691
          %v5698 = vsub.f32 %v5606, %v5692
          %v5699 = vsub.f32 %v5607, %v5693
          %v5700 = vsub.f32 %v5608, %v5694
          %s5701 = sld [smem:[#allocation9 + $0x8d]]
          %v5702 = vstv %s5701
          %v5703 = vmul.f32 %v5636, %v5702
          %v5704 = vmul.f32 %v5638, %v5702
          %v5705 = vmul.f32 %v5640, %v5702
          %v5706 = vmul.f32 %v5642, %v5702
          %v5707 = vmul.f32 %v5644, %v5702
          %v5708 = vmul.f32 %v5646, %v5702
          %v5709 = vsub.f32 %v5617, %v5703
          %v5710 = vsub.f32 %v5618, %v5704
          %v5711 = vsub.f32 %v5619, %v5705
          %v5712 = vsub.f32 %v5620, %v5706
          %v5713 = vsub.f32 %v5621, %v5707
          %v5714 = vsub.f32 %v5622, %v5708
          %s5715 = sld [smem:[#allocation9 + $0x22]]
          %v5716 = vstv %s5715
          %v5717 = vmul.f32 %v5633, %v5716
          %v5718 = vmul.f32 %v5632, %v5716
          %v5719 = vmul.f32 %v5631, %v5716
          %v5720 = vmul.f32 %v5630, %v5716
          %v5721 = vmul.f32 %v5629, %v5716
          %v5722 = vmul.f32 %v5634, %v5716
          %v5723 = vsub.f32 %v5667, %v5717
          %v5724 = vsub.f32 %v5668, %v5718
          %v5725 = vsub.f32 %v5669, %v5719
          %v5726 = vsub.f32 %v5670, %v5720
          %v5727 = vsub.f32 %v5671, %v5721
          %v5728 = vsub.f32 %v5672, %v5722
          %s5729 = sld [smem:[#allocation9 + $0x46]]
          %v5730 = vstv %s5729
          %v5731 = vmul.f32 %v5633, %v5730
          %v5732 = vmul.f32 %v5632, %v5730
          %v5733 = vmul.f32 %v5631, %v5730
          %v5734 = vmul.f32 %v5630, %v5730
          %v5735 = vmul.f32 %v5629, %v5730
          %v5736 = vmul.f32 %v5634, %v5730
          %v5737 = vsub.f32 %v5681, %v5731
          %v5738 = vsub.f32 %v5682, %v5732
          %v5739 = vsub.f32 %v5683, %v5733
          %v5740 = vsub.f32 %v5684, %v5734
          %v5741 = vsub.f32 %v5685, %v5735
          %v5742 = vsub.f32 %v5686, %v5736
          %s5743 = sld [smem:[#allocation9 + $0x6a]]
          %v5744 = vstv %s5743
          %v5745 = vmul.f32 %v5633, %v5744
          %v5746 = vmul.f32 %v5632, %v5744
          %v5747 = vmul.f32 %v5631, %v5744
          %v5748 = vmul.f32 %v5630, %v5744
          %v5749 = vmul.f32 %v5629, %v5744
          %v5750 = vmul.f32 %v5634, %v5744
          %v5751 = vsub.f32 %v5695, %v5745
          %v5752 = vsub.f32 %v5696, %v5746
          %v5753 = vsub.f32 %v5697, %v5747
          %v5754 = vsub.f32 %v5698, %v5748
          %v5755 = vsub.f32 %v5699, %v5749
          %v5756 = vsub.f32 %v5700, %v5750
          %s5757 = sld [smem:[#allocation9 + $0x8e]]
          %v5758 = vstv %s5757
          %v5759 = vmul.f32 %v5633, %v5758
          %v5760 = vmul.f32 %v5632, %v5758
          %v5761 = vmul.f32 %v5631, %v5758
          %v5762 = vmul.f32 %v5630, %v5758
          %v5763 = vmul.f32 %v5629, %v5758
          %v5764 = vmul.f32 %v5634, %v5758
          %v5765 = vsub.f32 %v5709, %v5759
          %v5766 = vsub.f32 %v5710, %v5760
          %v5767 = vsub.f32 %v5711, %v5761
          %v5768 = vsub.f32 %v5712, %v5762
          %v5769 = vsub.f32 %v5713, %v5763
          %v5770 = vsub.f32 %v5714, %v5764
          %s5771 = sld [smem:[#allocation9 + $0x23]]
          %v5772 = vstv %s5771
          %v5773 = vmul.f32 %v5648, %v5772
          %v5774 = vmul.f32 %v5650, %v5772
          %v5775 = vmul.f32 %v5652, %v5772
          %v5776 = vmul.f32 %v5654, %v5772
          %v5777 = vmul.f32 %v5656, %v5772
          %v5778 = vmul.f32 %v5658, %v5772
          %v5779 = vsub.f32 %v5723, %v5773
          %v5780 = vsub.f32 %v5724, %v5774
          %v5781 = vsub.f32 %v5725, %v5775
          %v5782 = vsub.f32 %v5726, %v5776
          %v5783 = vsub.f32 %v5727, %v5777
          %v5784 = vsub.f32 %v5728, %v5778
          %s5785 = sld [smem:[#allocation9 + $0x47]]
          %v5786 = vstv %s5785
          %v5787 = vmul.f32 %v5648, %v5786
          %v5788 = vmul.f32 %v5650, %v5786
          %v5789 = vmul.f32 %v5652, %v5786
          %v5790 = vmul.f32 %v5654, %v5786
          %v5791 = vmul.f32 %v5656, %v5786
          %v5792 = vmul.f32 %v5658, %v5786
          %v5793 = vsub.f32 %v5737, %v5787
          %v5794 = vsub.f32 %v5738, %v5788
          %v5795 = vsub.f32 %v5739, %v5789
          %v5796 = vsub.f32 %v5740, %v5790
          %v5797 = vsub.f32 %v5741, %v5791
          %v5798 = vsub.f32 %v5742, %v5792
          %s5799 = sld [smem:[#allocation9 + $0x6b]]
          %v5800 = vstv %s5799
          %v5801 = vmul.f32 %v5648, %v5800
          %v5802 = vmul.f32 %v5650, %v5800
          %v5803 = vmul.f32 %v5652, %v5800
          %v5804 = vmul.f32 %v5654, %v5800
          %v5805 = vmul.f32 %v5656, %v5800
          %v5806 = vmul.f32 %v5658, %v5800
          %v5807 = vsub.f32 %v5751, %v5801
          %v5808 = vsub.f32 %v5752, %v5802
          %v5809 = vsub.f32 %v5753, %v5803
          %v5810 = vsub.f32 %v5754, %v5804
          %v5811 = vsub.f32 %v5755, %v5805
          %v5812 = vsub.f32 %v5756, %v5806
          %s5813 = sld [smem:[#allocation9 + $0x8f]]
          %v5814 = vstv %s5813
          %v5815 = vmul.f32 %v5648, %v5814
          %v5816 = vmul.f32 %v5650, %v5814
          %v5817 = vmul.f32 %v5652, %v5814
          %v5818 = vmul.f32 %v5654, %v5814
          %v5819 = vmul.f32 %v5656, %v5814
          %v5820 = vmul.f32 %v5658, %v5814
          %v5821 = vsub.f32 %v5765, %v5815
          %v5822 = vsub.f32 %v5766, %v5816
          %v5823 = vsub.f32 %v5767, %v5817
          %v5824 = vsub.f32 %v5768, %v5818
          %v5825 = vsub.f32 %v5769, %v5819
          %v5826 = vsub.f32 %v5770, %v5820
        $region69: #{fakd_flow.1} parent=43 // loop_footer
          %s390 = sadd.s32 1, %s386
        $region70: #{fakd_flow.1} parent=43 // loop_footer_branch
          %385 = sbr.rel target = $region66
        $region71: #{fakd_flow.1} parent=43 // loop_exit
          _
        %5827 = vst [vmem:[%s315] sm:$0xff] %v391
        %5828 = vst [vmem:[%s315 + $0x8] sm:$0xff] %v392
        %5829 = vst [vmem:[%s315 + $0x10] sm:$0xff] %v393
        %5830 = vst [vmem:[%s315 + $0x18] sm:$0xff] %v394
        %5831 = vst [vmem:[%s315 + $0x20] sm:$0xff] %v395
        %5832 = vst [vmem:[%s315 + $0x28] sm:$0xff] %v396
        %s5833 = scalar_lea.vmem %s315, 48
        %5834 = vst [vmem:[%s5833] sm:$0xff] %v397
        %5835 = vst [vmem:[%s5833 + $0x8] sm:$0xff] %v398
        %5836 = vst [vmem:[%s5833 + $0x10] sm:$0xff] %v399
        %5837 = vst [vmem:[%s5833 + $0x18] sm:$0xff] %v400
        %5838 = vst [vmem:[%s5833 + $0x20] sm:$0xff] %v401
        %5839 = vst [vmem:[%s5833 + $0x28] sm:$0xff] %v402
        %s5840 = scalar_lea.vmem %s315, 96
        %5841 = vst [vmem:[%s5840] sm:$0xff] %v403
        %5842 = vst [vmem:[%s5840 + $0x8] sm:$0xff] %v404
        %5843 = vst [vmem:[%s5840 + $0x10] sm:$0xff] %v405
        %5844 = vst [vmem:[%s5840 + $0x18] sm:$0xff] %v406
        %5845 = vst [vmem:[%s5840 + $0x20] sm:$0xff] %v407
        %5846 = vst [vmem:[%s5840 + $0x28] sm:$0xff] %v408
        %s5847 = scalar_lea.vmem %s315, 144
        %5848 = vst [vmem:[%s5847] sm:$0xff] %v409
        %5849 = vst [vmem:[%s5847 + $0x8] sm:$0xff] %v410
        %5850 = vst [vmem:[%s5847 + $0x10] sm:$0xff] %v411
        %5851 = vst [vmem:[%s5847 + $0x18] sm:$0xff] %v412
        %5852 = vst [vmem:[%s5847 + $0x20] sm:$0xff] %v413
        %5853 = vst [vmem:[%s5847 + $0x28] sm:$0xff] %v414
        %p5854 = scmp.lt.s32.totalorder %s20, 1
        %s5855 = scalar_select %p5854, %s20, 1
        %s5856 = smul.addr %s5855, 24
        %s5857 = smul.addr %s5856, 8
        %s5858 = scalar_lea.vmem %s6, %s5857
        // Predicated region
        $region72: #{fakd_flow.1} parent=43 // pred_check
          %p5859 = pneg %p169
        $region73: #{fakd_flow.1} parent=43 // pred_check_branch
          %5861 = sbr.rel (%p5859) target = $region75
        $region74: #{fakd_flow.1} parent=43 // pred_region
          _
        $region75: #{fakd_flow.1} parent=43 // pred_fallthru
          _
      $region44: #{fakd_flow.1} parent=5 // pred_fallthru
        _
      %p5862 = scmp.le.s32.totalorder 2, %s15
      // Predicated region
      $region76: #{fakd_flow.1} parent=5 // pred_check
        %p5863 = pneg %p5862
      $region77: #{fakd_flow.1} parent=5 // pred_check_branch
        %5865 = sbr.rel (%p5863) target = $region79
      $region78: #{fakd_flow.1} parent=5 // pred_region
        %s5866 = ssub.s32 %s15, 2
        // Predicated region
        $region80: #{fakd_flow.1} parent=78 // pred_check
          %p5867 = pneg %p175
        $region81: #{fakd_flow.1} parent=78 // pred_check_branch
          %5869 = sbr.rel (%p5867) target = $region83
        $region82: #{fakd_flow.1} parent=78 // pred_region
          %p5870 = scmp.lt.s32.totalorder %s21, 1
          %s5871 = scalar_select %p5870, %s21, 1
          %s5872 = smul.addr %s5871, 24
          %s5873 = smul.addr %s5872, 8
          %s5874 = scalar_lea.vmem %s6, %s5873
        $region83: #{fakd_flow.1} parent=78 // pred_fallthru
          _
      $region79: #{fakd_flow.1} parent=5 // pred_fallthru
        _
    $region6: #{fakd_flow.1} parent=1 // loop_footer
      %s19 = sadd.s32 1, %s15
    $region7: #{fakd_flow.1} parent=1 // loop_footer_branch
      %14 = sbr.rel target = $region3
    $region8: #{fakd_flow.1} parent=1 // loop_exit
      _
    %5875 = vsyncpa [#allocation3], 1
    %s5876 = scalar_lea.sflag [#allocation3], 1
    %5877 = vsyncpa %s5876, 1
    %5878 = vsyncpa [#allocation5], 1
    %5879 = vsyncpa [#allocation8], 1

</llo_original>
